<compile_context>
chip_gen: v7x
topology: tpu7x:2x2x1
jax: 0.10.0
libtpu: 0.0.40
codegen_flags: <defaults>
</compile_context>

<pallas_src>
import functools

import numpy as np

import jax
import jax.numpy as jnp
from jax.experimental import pallas as pl
from jax.experimental.pallas import tpu as pltpu

LRELU_SLOPE = 0.1  # modules_v9.LRELU_SLOPE in the reference repo

# (c_in, c_out, kernel, stride, pad) for self.convs  (kernel_size=5, stride=3)
LAYER_CFGS = [
    (1, 32, 5, 3, 2),
    (32, 128, 5, 3, 2),
    (128, 512, 5, 3, 2),
    (512, 1024, 5, 3, 2),
    (1024, 1024, 5, 1, 2),
]
# conv_post
POST_CFG = (1024, 1, 3, 1, 1)


def _round_up(x, m):
    return ((x + m - 1) // m) * m


# ---------------------------------------------------------------------------
# Pallas kernel: grid = (T_out tiles, taps). Each tap's matmul accumulates into
# an f32 VMEM scratch; the last tap applies bias + leaky_relu and stores bf16.
# ---------------------------------------------------------------------------
def _conv_tap_kernel(x_ref, w_ref, b_ref, o_ref, acc_ref, *, lrelu_slope):
    k = pl.program_id(1)
    nk = pl.num_programs(1)

    @pl.when(k == 0)
    def _():
        acc_ref[...] = jnp.zeros_like(acc_ref)

    acc_ref[...] += jax.lax.dot_general(
        x_ref[0], w_ref[0],                            # (N,Tt,Cin) @ (Cin,Cout)
        dimension_numbers=(((2,), (0,)), ((), ())),
        preferred_element_type=jnp.float32)

    @pl.when(k == nk - 1)
    def _():
        y = acc_ref[...] + b_ref[...]                  # (N,Tt,Cout) + (1,Cout)
        if lrelu_slope is not None:
            y = jnp.where(y >= 0, y, lrelu_slope * y)
        o_ref[...] = y.astype(o_ref.dtype)


def _choose_t_tile(n, t_out, c_eff, c_out):
    """Largest multiple-of-8 T_out tile keeping per-step VMEM (double-buffered bf16
    x + weight tap, double-buffered bf16 out, single f32 accumulator) within a
    budget that also fits v5e's 16 MiB default scoped limit and v7x's smaller VMEM."""
    budget = 10 * 1024 * 1024
    w_bytes = 2 * (c_eff * c_out * 2)                  # weight tap, 2 bufs, bf16
    # x (2 bufs bf16) + out (2 bufs bf16) + acc (1 buf f32), per output row
    per_row = n * (4 * c_eff + 4 * c_out + 4 * c_out)
    avail = max(budget - w_bytes, 8 * per_row)
    t_tile = min(512, max(8, avail // per_row))
    t_tile = max(8, (t_tile // 8) * 8)
    if t_tile >= t_out:
        t_tile = _round_up(t_out, 8)
    return t_tile


def conv1d_pallas(x_nlc, w_kic, bias, *, kernel_size, stride, pad, lrelu):
    """Channels-last 1-D conv along the middle axis.

    x_nlc: (N, T, C_in) f32/bf16, w_kic: (K, C_in, C_out) bf16, bias: (C_out,) f32.
    Returns (N, T_out, C_out) bf16 (f32 accumulation inside the kernel).
    """
    n, t_in, c_in = x_nlc.shape
    k_sz, c_in_w, c_out = w_kic.shape
    assert k_sz == kernel_size and c_in_w == c_in

    t_pad = t_in + 2 * pad
    t_out = (t_pad - kernel_size) // stride + 1

    # bf16 at the kernel boundary (MXU-native); accumulation stays f32 in-kernel.
    x_p = jnp.pad(x_nlc.astype(jnp.bfloat16), ((0, 0), (pad, pad), (0, 0)))

    # Tap-major layout built in glue so the kernel never needs an unaligned
    # dynamic sublane slice: x_taps[k, n, t, c] = x_pad[n, k + stride*t, c].
    taps = [
        jax.lax.slice(x_p, (0, k, 0),
                      (n, k + stride * (t_out - 1) + 1, c_in),
                      (1, stride, 1))
        for k in range(kernel_size)
    ]
    x_taps = jnp.stack(taps, axis=0)                   # (K, N, T_out, C_in)

    # Small-C_in layers: fold the K taps into the contraction dim so the MXU sees
    # one (K*C_in) contraction instead of K near-empty passes.
    fold = c_in < 128
    if fold:
        x_taps = jnp.transpose(x_taps, (1, 2, 0, 3)).reshape(
            1, n, t_out, kernel_size * c_in)
        w_use = w_kic.reshape(1, kernel_size * c_in, c_out)
        k_eff, c_eff = 1, kernel_size * c_in
    else:
        w_use = w_kic
        k_eff, c_eff = kernel_size, c_in

    t_tile = _choose_t_tile(n, t_out, c_eff, c_out)
    t_out_p = _round_up(t_out, t_tile)
    if t_out_p > t_out:
        x_taps = jnp.pad(
            x_taps, ((0, 0), (0, 0), (0, t_out_p - t_out), (0, 0)))
    n_tiles = t_out_p // t_tile

    bias2 = bias.reshape(1, c_out).astype(jnp.float32)

    kernel = functools.partial(
        _conv_tap_kernel, lrelu_slope=LRELU_SLOPE if lrelu else None)

    out = pl.pallas_call(
        kernel,
        out_shape=jax.ShapeDtypeStruct((n, t_out_p, c_out), jnp.bfloat16),
        grid_spec=pltpu.PrefetchScalarGridSpec(
            num_scalar_prefetch=0,
            grid=(n_tiles, k_eff),
            in_specs=[
                pl.BlockSpec((1, n, t_tile, c_eff), lambda ti, k: (k, 0, ti, 0)),
                pl.BlockSpec((1, c_eff, c_out), lambda ti, k: (k, 0, 0)),
                pl.BlockSpec((1, c_out), lambda ti, k: (0, 0)),
            ],
            out_specs=pl.BlockSpec((n, t_tile, c_out), lambda ti, k: (0, ti, 0)),
            scratch_shapes=[pltpu.VMEM((n, t_tile, c_out), jnp.float32)],
        ),
        compiler_params=pltpu.CompilerParams(
            dimension_semantics=("parallel", "arbitrary"),
            vmem_limit_bytes=32 * 1024 * 1024),
    )(x_taps, w_use, bias2)
    return out[:, :t_out, :]


# ---------------------------------------------------------------------------
# Parameters (deterministic, synthetic) + one-time kernel-layout preparation
# ---------------------------------------------------------------------------
def make_params(key):
    """Torch-layout Conv2d params: w (C_out, C_in, K, 1) f32, b (C_out,) f32."""
    params = []
    for (c_in, c_out, k, _s, _p) in LAYER_CFGS + [POST_CFG]:
        key, k1, k2 = jax.random.split(key, 3)
        scale = float(np.sqrt(2.0 / (c_in * k)))
        w = jax.random.normal(k1, (c_out, c_in, k, 1), jnp.float32) * scale
        b = jax.random.normal(k2, (c_out,), jnp.float32) * 0.01
        params.append((w, b))
    return params


def prepare_params(params_torch):
    """Hoisted out of the forward pass: torch OIHW -> (K, C_in, C_out) bf16, once."""
    prepared = []
    for w, b in params_torch:
        w_k = jnp.transpose(w[..., 0], (2, 1, 0)).astype(jnp.bfloat16)
        prepared.append((w_k, b.astype(jnp.float32)))
    return prepared


# ---------------------------------------------------------------------------
# DiscriminatorP forward (Pallas) and a pure-JAX reference for verification
# ---------------------------------------------------------------------------
def _nlc_to_nchw(x_nlc, b, period):
    n, h, c = x_nlc.shape
    return jnp.transpose(x_nlc.reshape(b, period, h, c), (0, 3, 2, 1))


def discriminator_p_forward(x_bct, params, period):
    """x_bct: (B, 1, T) like PyTorch. Returns (flattened_out, fmap) with fmap NCHW."""
    b, c, t = x_bct.shape
    if t % period != 0:
        n_pad = period - (t % period)
        x_bct = jnp.pad(x_bct, ((0, 0), (0, 0), (0, n_pad)), mode="reflect")
        t = t + n_pad
    h = t // period
    # (B, C, H, W=period) -> (B, W, H, C) -> (B*W, H, C): the (K,1) conv only mixes
    # along H, independently per period column, so (B, W) folds into the batch axis.
    x = jnp.transpose(x_bct.reshape(b, c, h, period), (0, 3, 2, 1))
    x = x.reshape(b * period, h, c).astype(jnp.bfloat16)

    fmap = []
    for (w_k, bias), (_ci, _co, k, s, p) in zip(params[:-1], LAYER_CFGS):
        x = conv1d_pallas(x, w_k, bias, kernel_size=k, stride=s, pad=p, lrelu=True)
        fmap.append(_nlc_to_nchw(x, b, period))
    w_k, bias = params[-1]
    _, _, k, s, p = POST_CFG
    x = conv1d_pallas(x, w_k, bias, kernel_size=k, stride=s, pad=p, lrelu=False)
    last = _nlc_to_nchw(x, b, period)
    fmap.append(last)
    out = last.reshape(b, -1)                          # torch.flatten(x, 1, -1)
    return out, fmap


def ref_conv_layer(x_nchw, w_oihw, b, *, stride, pad, lrelu):
    y = jax.lax.conv_general_dilated(
        x_nchw.astype(jnp.float32), w_oihw, window_strides=(stride, 1),
        padding=[(pad, pad), (0, 0)],
        dimension_numbers=("NCHW", "OIHW", "NCHW"),
        precision=jax.lax.Precision.HIGHEST)
    y = y + b[None, :, None, None]
    if lrelu:
        y = jnp.where(y >= 0, y, LRELU_SLOPE * y)
    return y


if __name__ == "__main__":
    B, T, PERIOD = 2, 250, 3
    key = jax.random.PRNGKey(0)
    x = jax.random.normal(key, (B, 1, T), jnp.float32)   # PyTorch NCL input

    params_t = make_params(jax.random.PRNGKey(1))        # torch-layout f32 (reference)
    params_k = prepare_params(params_t)                  # kernel-layout bf16 (once)

    fwd = jax.jit(discriminator_p_forward, static_argnums=(2,))
    out, fmap = fwd(x, params_k, PERIOD)
    out = jax.block_until_ready(out)
    fmap = [jax.block_until_ready(f) for f in fmap]

    # Rebuild the torch-style reshaped NCHW input for the layer-0 reference check.
    t_eff = T
    x_in = x
    if t_eff % PERIOD != 0:
        n_pad = PERIOD - (t_eff % PERIOD)
        x_in = jnp.pad(x, ((0, 0), (0, 0), (0, n_pad)), mode="reflect")
        t_eff += n_pad
    x_nchw = x_in.reshape(B, 1, t_eff // PERIOD, PERIOD)

    # Per-layer check against a pure-JAX f32 reference (same layer input), so
    # bf16 precision differences do not compound across layers.
    cfgs = LAYER_CFGS + [POST_CFG]
    layer_inputs = [x_nchw] + list(fmap[:-1])
    for i, ((w_t, b_t), (_ci, _co, k, s, p)) in enumerate(zip(params_t, cfgs)):
        ref = ref_conv_layer(layer_inputs[i], w_t, b_t, stride=s, pad=p,
                             lrelu=(i < len(cfgs) - 1))
        got = np.asarray(jnp.asarray(fmap[i], jnp.float32))
        np.testing.assert_allclose(got, np.asarray(ref), rtol=5e-2, atol=5e-2)

    assert len(fmap) == 6
    b_, c_, h_, w_ = fmap[-1].shape
    assert out.shape == (B, c_ * h_ * w_)
    print("KERNEL_OK")
</pallas_src>

<mosaic_0001>
module attributes {stable_mosaic.version = 11 : i64} {
  func.func @_conv_tap_kernel(%arg0: i32, %arg1: i32, %arg2: memref<1x6x32x5xbf16, #tpu.memory_space<vmem>>, %arg3: memref<1x5x32xbf16, #tpu.memory_space<vmem>>, %arg4: memref<1x32xf32, #tpu.memory_space<vmem>>, %arg5: memref<6x32x32xbf16, #tpu.memory_space<vmem>>, %arg6: memref<6x32x32xf32, #tpu.memory_space<vmem>>) attributes {dimension_semantics = [#tpu.dimension_semantics<parallel>, #tpu.dimension_semantics<arbitrary>], iteration_bounds = array<i64: 1, 1>, scalar_prefetch = 0 : i64, scratch_operands = 1 : i64, tpu.core_type = #tpu.core_type<tc>, window_params = [{transform_indices = @transform_0, window_bounds = array<i64: 1, 6, 32, 5>}, {transform_indices = @transform_1, window_bounds = array<i64: 1, 5, 32>}, {pipeline_mode = #tpu.pipeline_mode<synchronous>, transform_indices = @transform_2, window_bounds = array<i64: 1, 32>}, {transform_indices = @transform_3, window_bounds = array<i64: 6, 32, 32>}]} {
    %c0_i32 = arith.constant 0 : i32
    %0 = arith.cmpi eq, %arg1, %c0_i32 : i32
    %1 = arith.extui %0 : i1 to i32
    %c0_i32_0 = arith.constant 0 : i32
    %2 = arith.cmpi ne, %1, %c0_i32_0 : i32
    scf.if %2 {
      %cst_15 = arith.constant 0.000000e+00 : f32
      %14 = vector.broadcast %cst_15 : f32 to vector<6x32x32xf32>
      %c0_16 = arith.constant 0 : index
      %c0_17 = arith.constant 0 : index
      %c0_18 = arith.constant 0 : index
      %15 = vector.load %arg6[%c0_16, %c0_17, %c0_18] : memref<6x32x32xf32, #tpu.memory_space<vmem>>, vector<6x32x32xf32>
      tpu.vector_store %arg6[%c0_16, %c0_17, %c0_18], %14 {strides = array<i32>} : memref<6x32x32xf32, #tpu.memory_space<vmem>>, vector<6x32x32xf32>,
    } else {
    }
    %c0 = arith.constant 0 : index
    %c0_1 = arith.constant 0 : index
    %c0_2 = arith.constant 0 : index
    %3 = vector.load %arg6[%c0, %c0_1, %c0_2] : memref<6x32x32xf32, #tpu.memory_space<vmem>>, vector<6x32x32xf32>
    %c0_3 = arith.constant 0 : index
    %c0_4 = arith.constant 0 : index
    %c0_5 = arith.constant 0 : index
    %c0_6 = arith.constant 0 : index
    %4 = vector.load %arg2[%c0_3, %c0_4, %c0_5, %c0_6] : memref<1x6x32x5xbf16, #tpu.memory_space<vmem>>, vector<1x6x32x5xbf16>
    %5 = vector.shape_cast %4 : vector<1x6x32x5xbf16> to vector<6x32x5xbf16>
    %c0_7 = arith.constant 0 : index
    %c0_8 = arith.constant 0 : index
    %c0_9 = arith.constant 0 : index
    %6 = vector.load %arg3[%c0_7, %c0_8, %c0_9] : memref<1x5x32xbf16, #tpu.memory_space<vmem>>, vector<1x5x32xbf16>
    %7 = vector.shape_cast %6 : vector<1x5x32xbf16> to vector<5x32xbf16>
    %cst = arith.constant dense<0.000000e+00> : vector<6x32x32xf32>
    %8 = tpu.matmul %5, %7, %cst {dimension_numbers = #tpu.dot_dimension_numbers<[2], [0], [0, 1], [1], [0, 0, 0, 1, 1, 1], [], []>} : vector<6x32x5xbf16>, vector<5x32xbf16>, vector<6x32x32xf32> -> vector<6x32x32xf32>
    %9 = arith.addf %3, %8 : vector<6x32x32xf32>
    %c0_10 = arith.constant 0 : index
    %c0_11 = arith.constant 0 : index
    %c0_12 = arith.constant 0 : index
    %10 = vector.load %arg6[%c0_10, %c0_11, %c0_12] : memref<6x32x32xf32, #tpu.memory_space<vmem>>, vector<6x32x32xf32>
    tpu.vector_store %arg6[%c0_10, %c0_11, %c0_12], %9 {strides = array<i32>} : memref<6x32x32xf32, #tpu.memory_space<vmem>>, vector<6x32x32xf32>,
    %c0_i32_13 = arith.constant 0 : i32
    %11 = arith.cmpi eq, %arg1, %c0_i32_13 : i32
    %12 = arith.extui %11 : i1 to i32
    %c0_i32_14 = arith.constant 0 : i32
    %13 = arith.cmpi ne, %12, %c0_i32_14 : i32
    scf.if %13 {
      %c0_15 = arith.constant 0 : index
      %c0_16 = arith.constant 0 : index
      %c0_17 = arith.constant 0 : index
      %14 = vector.load %arg6[%c0_15, %c0_16, %c0_17] : memref<6x32x32xf32, #tpu.memory_space<vmem>>, vector<6x32x32xf32>
      %c0_18 = arith.constant 0 : index
      %c0_19 = arith.constant 0 : index
      %15 = vector.load %arg4[%c0_18, %c0_19] : memref<1x32xf32, #tpu.memory_space<vmem>>, vector<1x32xf32>
      %16 = vector.shape_cast %15 : vector<1x32xf32> to vector<1x1x32xf32>
      %17 = vector.broadcast %16 : vector<1x1x32xf32> to vector<6x32x32xf32>
      %18 = arith.addf %14, %17 : vector<6x32x32xf32>
      %cst_20 = arith.constant 0.000000e+00 : f32
      %19 = vector.broadcast %cst_20 : f32 to vector<6x32x32xf32>
      %20 = arith.cmpf oge, %18, %19 : vector<6x32x32xf32>
      %cst_21 = arith.constant 1.000000e-01 : f32
      %21 = vector.broadcast %cst_21 : f32 to vector<6x32x32xf32>
      %22 = arith.mulf %21, %18 : vector<6x32x32xf32>
      %23 = arith.select %20, %18, %22 : vector<6x32x32xi1>, vector<6x32x32xf32>
      %24 = arith.truncf %23 : vector<6x32x32xf32> to vector<6x32x32xbf16>
      %c0_22 = arith.constant 0 : index
      %c0_23 = arith.constant 0 : index
      %c0_24 = arith.constant 0 : index
      %25 = vector.load %arg5[%c0_22, %c0_23, %c0_24] : memref<6x32x32xbf16, #tpu.memory_space<vmem>>, vector<6x32x32xbf16>
      tpu.vector_store %arg5[%c0_22, %c0_23, %c0_24], %24 {strides = array<i32>} : memref<6x32x32xbf16, #tpu.memory_space<vmem>>, vector<6x32x32xbf16>,
    } else {
    }
    return
  }
  func.func @transform_0(%arg0: i32, %arg1: i32) -> (i32, i32, i32, i32) {
    %c0_i32 = arith.constant 0 : i32
    %c0_i32_0 = arith.constant 0 : i32
    %c0_i32_1 = arith.constant 0 : i32
    return %arg1, %c0_i32, %arg0, %c0_i32_0 : i32, i32, i32, i32
  }
  func.func @transform_1(%arg0: i32, %arg1: i32) -> (i32, i32, i32) {
    %c0_i32 = arith.constant 0 : i32
    %c0_i32_0 = arith.constant 0 : i32
    %c0_i32_1 = arith.constant 0 : i32
    return %arg1, %c0_i32, %c0_i32_0 : i32, i32, i32
  }
  func.func @transform_2(%arg0: i32, %arg1: i32) -> (i32, i32) {
    %c0_i32 = arith.constant 0 : i32
    %c0_i32_0 = arith.constant 0 : i32
    %c0_i32_1 = arith.constant 0 : i32
    return %c0_i32, %c0_i32_0 : i32, i32
  }
  func.func @transform_3(%arg0: i32, %arg1: i32) -> (i32, i32, i32) {
    %c0_i32 = arith.constant 0 : i32
    %c0_i32_0 = arith.constant 0 : i32
    %c0_i32_1 = arith.constant 0 : i32
    return %c0_i32, %arg0, %c0_i32_0 : i32, i32, i32
  }
}

module attributes {stable_mosaic.version = 11 : i64} {
  func.func @_conv_tap_kernel(%arg0: i32, %arg1: i32, %arg2: memref<1x6x16x160xbf16, #tpu.memory_space<vmem>>, %arg3: memref<1x160x128xbf16, #tpu.memory_space<vmem>>, %arg4: memref<1x128xf32, #tpu.memory_space<vmem>>, %arg5: memref<6x16x128xbf16, #tpu.memory_space<vmem>>, %arg6: memref<6x16x128xf32, #tpu.memory_space<vmem>>) attributes {dimension_semantics = [#tpu.dimension_semantics<parallel>, #tpu.dimension_semantics<arbitrary>], iteration_bounds = array<i64: 1, 1>, scalar_prefetch = 0 : i64, scratch_operands = 1 : i64, tpu.core_type = #tpu.core_type<tc>, window_params = [{transform_indices = @transform_0, window_bounds = array<i64: 1, 6, 16, 160>}, {transform_indices = @transform_1, window_bounds = array<i64: 1, 160, 128>}, {pipeline_mode = #tpu.pipeline_mode<synchronous>, transform_indices = @transform_2, window_bounds = array<i64: 1, 128>}, {transform_indices = @transform_3, window_bounds = array<i64: 6, 16, 128>}]} {
    %c0_i32 = arith.constant 0 : i32
    %0 = arith.cmpi eq, %arg1, %c0_i32 : i32
    %1 = arith.extui %0 : i1 to i32
    %c0_i32_0 = arith.constant 0 : i32
    %2 = arith.cmpi ne, %1, %c0_i32_0 : i32
    scf.if %2 {
      %cst_15 = arith.constant 0.000000e+00 : f32
      %14 = vector.broadcast %cst_15 : f32 to vector<6x16x128xf32>
      %c0_16 = arith.constant 0 : index
      %c0_17 = arith.constant 0 : index
      %c0_18 = arith.constant 0 : index
      %15 = vector.load %arg6[%c0_16, %c0_17, %c0_18] : memref<6x16x128xf32, #tpu.memory_space<vmem>>, vector<6x16x128xf32>
      tpu.vector_store %arg6[%c0_16, %c0_17, %c0_18], %14 {strides = array<i32>} : memref<6x16x128xf32, #tpu.memory_space<vmem>>, vector<6x16x128xf32>,
    } else {
    }
    %c0 = arith.constant 0 : index
    %c0_1 = arith.constant 0 : index
    %c0_2 = arith.constant 0 : index
    %3 = vector.load %arg6[%c0, %c0_1, %c0_2] : memref<6x16x128xf32, #tpu.memory_space<vmem>>, vector<6x16x128xf32>
    %c0_3 = arith.constant 0 : index
    %c0_4 = arith.constant 0 : index
    %c0_5 = arith.constant 0 : index
    %c0_6 = arith.constant 0 : index
    %4 = vector.load %arg2[%c0_3, %c0_4, %c0_5, %c0_6] : memref<1x6x16x160xbf16, #tpu.memory_space<vmem>>, vector<1x6x16x160xbf16>
    %5 = vector.shape_cast %4 : vector<1x6x16x160xbf16> to vector<6x16x160xbf16>
    %c0_7 = arith.constant 0 : index
    %c0_8 = arith.constant 0 : index
    %c0_9 = arith.constant 0 : index
    %6 = vector.load %arg3[%c0_7, %c0_8, %c0_9] : memref<1x160x128xbf16, #tpu.memory_space<vmem>>, vector<1x160x128xbf16>
    %7 = vector.shape_cast %6 : vector<1x160x128xbf16> to vector<160x128xbf16>
    %cst = arith.constant dense<0.000000e+00> : vector<6x16x128xf32>
    %8 = tpu.matmul %5, %7, %cst {dimension_numbers = #tpu.dot_dimension_numbers<[2], [0], [0, 1], [1], [0, 0, 0, 1, 1, 1], [], []>} : vector<6x16x160xbf16>, vector<160x128xbf16>, vector<6x16x128xf32> -> vector<6x16x128xf32>
    %9 = arith.addf %3, %8 : vector<6x16x128xf32>
    %c0_10 = arith.constant 0 : index
    %c0_11 = arith.constant 0 : index
    %c0_12 = arith.constant 0 : index
    %10 = vector.load %arg6[%c0_10, %c0_11, %c0_12] : memref<6x16x128xf32, #tpu.memory_space<vmem>>, vector<6x16x128xf32>
    tpu.vector_store %arg6[%c0_10, %c0_11, %c0_12], %9 {strides = array<i32>} : memref<6x16x128xf32, #tpu.memory_space<vmem>>, vector<6x16x128xf32>,
    %c0_i32_13 = arith.constant 0 : i32
    %11 = arith.cmpi eq, %arg1, %c0_i32_13 : i32
    %12 = arith.extui %11 : i1 to i32
    %c0_i32_14 = arith.constant 0 : i32
    %13 = arith.cmpi ne, %12, %c0_i32_14 : i32
    scf.if %13 {
      %c0_15 = arith.constant 0 : index
      %c0_16 = arith.constant 0 : index
      %c0_17 = arith.constant 0 : index
      %14 = vector.load %arg6[%c0_15, %c0_16, %c0_17] : memref<6x16x128xf32, #tpu.memory_space<vmem>>, vector<6x16x128xf32>
      %c0_18 = arith.constant 0 : index
      %c0_19 = arith.constant 0 : index
      %15 = vector.load %arg4[%c0_18, %c0_19] : memref<1x128xf32, #tpu.memory_space<vmem>>, vector<1x128xf32>
      %16 = vector.shape_cast %15 : vector<1x128xf32> to vector<1x1x128xf32>
      %17 = vector.broadcast %16 : vector<1x1x128xf32> to vector<6x16x128xf32>
      %18 = arith.addf %14, %17 : vector<6x16x128xf32>
      %cst_20 = arith.constant 0.000000e+00 : f32
      %19 = vector.broadcast %cst_20 : f32 to vector<6x16x128xf32>
      %20 = arith.cmpf oge, %18, %19 : vector<6x16x128xf32>
      %cst_21 = arith.constant 1.000000e-01 : f32
      %21 = vector.broadcast %cst_21 : f32 to vector<6x16x128xf32>
      %22 = arith.mulf %21, %18 : vector<6x16x128xf32>
      %23 = arith.select %20, %18, %22 : vector<6x16x128xi1>, vector<6x16x128xf32>
      %24 = arith.truncf %23 : vector<6x16x128xf32> to vector<6x16x128xbf16>
      %c0_22 = arith.constant 0 : index
      %c0_23 = arith.constant 0 : index
      %c0_24 = arith.constant 0 : index
      %25 = vector.load %arg5[%c0_22, %c0_23, %c0_24] : memref<6x16x128xbf16, #tpu.memory_space<vmem>>, vector<6x16x128xbf16>
      tpu.vector_store %arg5[%c0_22, %c0_23, %c0_24], %24 {strides = array<i32>} : memref<6x16x128xbf16, #tpu.memory_space<vmem>>, vector<6x16x128xbf16>,
    } else {
    }
    return
  }
  func.func @transform_0(%arg0: i32, %arg1: i32) -> (i32, i32, i32, i32) {
    %c0_i32 = arith.constant 0 : i32
    %c0_i32_0 = arith.constant 0 : i32
    %c0_i32_1 = arith.constant 0 : i32
    return %arg1, %c0_i32, %arg0, %c0_i32_0 : i32, i32, i32, i32
  }
  func.func @transform_1(%arg0: i32, %arg1: i32) -> (i32, i32, i32) {
    %c0_i32 = arith.constant 0 : i32
    %c0_i32_0 = arith.constant 0 : i32
    %c0_i32_1 = arith.constant 0 : i32
    return %arg1, %c0_i32, %c0_i32_0 : i32, i32, i32
  }
  func.func @transform_2(%arg0: i32, %arg1: i32) -> (i32, i32) {
    %c0_i32 = arith.constant 0 : i32
    %c0_i32_0 = arith.constant 0 : i32
    %c0_i32_1 = arith.constant 0 : i32
    return %c0_i32, %c0_i32_0 : i32, i32
  }
  func.func @transform_3(%arg0: i32, %arg1: i32) -> (i32, i32, i32) {
    %c0_i32 = arith.constant 0 : i32
    %c0_i32_0 = arith.constant 0 : i32
    %c0_i32_1 = arith.constant 0 : i32
    return %c0_i32, %arg0, %c0_i32_0 : i32, i32, i32
  }
}

module attributes {stable_mosaic.version = 11 : i64} {
  func.func @_conv_tap_kernel(%arg0: i32, %arg1: i32, %arg2: memref<1x6x8x128xbf16, #tpu.memory_space<vmem>>, %arg3: memref<1x128x512xbf16, #tpu.memory_space<vmem>>, %arg4: memref<1x512xf32, #tpu.memory_space<vmem>>, %arg5: memref<6x8x512xbf16, #tpu.memory_space<vmem>>, %arg6: memref<6x8x512xf32, #tpu.memory_space<vmem>>) attributes {dimension_semantics = [#tpu.dimension_semantics<parallel>, #tpu.dimension_semantics<arbitrary>], iteration_bounds = array<i64: 1, 5>, scalar_prefetch = 0 : i64, scratch_operands = 1 : i64, tpu.core_type = #tpu.core_type<tc>, window_params = [{transform_indices = @transform_0, window_bounds = array<i64: 1, 6, 8, 128>}, {transform_indices = @transform_1, window_bounds = array<i64: 1, 128, 512>}, {pipeline_mode = #tpu.pipeline_mode<synchronous>, transform_indices = @transform_2, window_bounds = array<i64: 1, 512>}, {transform_indices = @transform_3, window_bounds = array<i64: 6, 8, 512>}]} {
    %c0_i32 = arith.constant 0 : i32
    %0 = arith.cmpi eq, %arg1, %c0_i32 : i32
    %1 = arith.extui %0 : i1 to i32
    %c0_i32_0 = arith.constant 0 : i32
    %2 = arith.cmpi ne, %1, %c0_i32_0 : i32
    scf.if %2 {
      %cst_14 = arith.constant 0.000000e+00 : f32
      %14 = vector.broadcast %cst_14 : f32 to vector<6x8x512xf32>
      %c0_15 = arith.constant 0 : index
      %c0_16 = arith.constant 0 : index
      %c0_17 = arith.constant 0 : index
      %15 = vector.load %arg6[%c0_15, %c0_16, %c0_17] : memref<6x8x512xf32, #tpu.memory_space<vmem>>, vector<6x8x512xf32>
      tpu.vector_store %arg6[%c0_15, %c0_16, %c0_17], %14 {strides = array<i32>} : memref<6x8x512xf32, #tpu.memory_space<vmem>>, vector<6x8x512xf32>,
    } else {
    }
    %c0 = arith.constant 0 : index
    %c0_1 = arith.constant 0 : index
    %c0_2 = arith.constant 0 : index
    %3 = vector.load %arg6[%c0, %c0_1, %c0_2] : memref<6x8x512xf32, #tpu.memory_space<vmem>>, vector<6x8x512xf32>
    %c0_3 = arith.constant 0 : index
    %c0_4 = arith.constant 0 : index
    %c0_5 = arith.constant 0 : index
    %c0_6 = arith.constant 0 : index
    %4 = vector.load %arg2[%c0_3, %c0_4, %c0_5, %c0_6] : memref<1x6x8x128xbf16, #tpu.memory_space<vmem>>, vector<1x6x8x128xbf16>
    %5 = vector.shape_cast %4 : vector<1x6x8x128xbf16> to vector<6x8x128xbf16>
    %c0_7 = arith.constant 0 : index
    %c0_8 = arith.constant 0 : index
    %c0_9 = arith.constant 0 : index
    %6 = vector.load %arg3[%c0_7, %c0_8, %c0_9] : memref<1x128x512xbf16, #tpu.memory_space<vmem>>, vector<1x128x512xbf16>
    %7 = vector.shape_cast %6 : vector<1x128x512xbf16> to vector<128x512xbf16>
    %cst = arith.constant dense<0.000000e+00> : vector<6x8x512xf32>
    %8 = tpu.matmul %5, %7, %cst {dimension_numbers = #tpu.dot_dimension_numbers<[2], [0], [0, 1], [1], [0, 0, 0, 1, 1, 1], [], []>} : vector<6x8x128xbf16>, vector<128x512xbf16>, vector<6x8x512xf32> -> vector<6x8x512xf32>
    %9 = arith.addf %3, %8 : vector<6x8x512xf32>
    %c0_10 = arith.constant 0 : index
    %c0_11 = arith.constant 0 : index
    %c0_12 = arith.constant 0 : index
    %10 = vector.load %arg6[%c0_10, %c0_11, %c0_12] : memref<6x8x512xf32, #tpu.memory_space<vmem>>, vector<6x8x512xf32>
    tpu.vector_store %arg6[%c0_10, %c0_11, %c0_12], %9 {strides = array<i32>} : memref<6x8x512xf32, #tpu.memory_space<vmem>>, vector<6x8x512xf32>,
    %c4_i32 = arith.constant 4 : i32
    %11 = arith.cmpi eq, %arg1, %c4_i32 : i32
    %12 = arith.extui %11 : i1 to i32
    %c0_i32_13 = arith.constant 0 : i32
    %13 = arith.cmpi ne, %12, %c0_i32_13 : i32
    scf.if %13 {
      %c0_14 = arith.constant 0 : index
      %c0_15 = arith.constant 0 : index
      %c0_16 = arith.constant 0 : index
      %14 = vector.load %arg6[%c0_14, %c0_15, %c0_16] : memref<6x8x512xf32, #tpu.memory_space<vmem>>, vector<6x8x512xf32>
      %c0_17 = arith.constant 0 : index
      %c0_18 = arith.constant 0 : index
      %15 = vector.load %arg4[%c0_17, %c0_18] : memref<1x512xf32, #tpu.memory_space<vmem>>, vector<1x512xf32>
      %16 = vector.shape_cast %15 : vector<1x512xf32> to vector<1x1x512xf32>
      %17 = vector.broadcast %16 : vector<1x1x512xf32> to vector<6x8x512xf32>
      %18 = arith.addf %14, %17 : vector<6x8x512xf32>
      %cst_19 = arith.constant 0.000000e+00 : f32
      %19 = vector.broadcast %cst_19 : f32 to vector<6x8x512xf32>
      %20 = arith.cmpf oge, %18, %19 : vector<6x8x512xf32>
      %cst_20 = arith.constant 1.000000e-01 : f32
      %21 = vector.broadcast %cst_20 : f32 to vector<6x8x512xf32>
      %22 = arith.mulf %21, %18 : vector<6x8x512xf32>
      %23 = arith.select %20, %18, %22 : vector<6x8x512xi1>, vector<6x8x512xf32>
      %24 = arith.truncf %23 : vector<6x8x512xf32> to vector<6x8x512xbf16>
      %c0_21 = arith.constant 0 : index
      %c0_22 = arith.constant 0 : index
      %c0_23 = arith.constant 0 : index
      %25 = vector.load %arg5[%c0_21, %c0_22, %c0_23] : memref<6x8x512xbf16, #tpu.memory_space<vmem>>, vector<6x8x512xbf16>
      tpu.vector_store %arg5[%c0_21, %c0_22, %c0_23], %24 {strides = array<i32>} : memref<6x8x512xbf16, #tpu.memory_space<vmem>>, vector<6x8x512xbf16>,
    } else {
    }
    return
  }
  func.func @transform_0(%arg0: i32, %arg1: i32) -> (i32, i32, i32, i32) {
    %c0_i32 = arith.constant 0 : i32
    %c0_i32_0 = arith.constant 0 : i32
    %c0_i32_1 = arith.constant 0 : i32
    return %arg1, %c0_i32, %arg0, %c0_i32_0 : i32, i32, i32, i32
  }
  func.func @transform_1(%arg0: i32, %arg1: i32) -> (i32, i32, i32) {
    %c0_i32 = arith.constant 0 : i32
    %c0_i32_0 = arith.constant 0 : i32
    %c0_i32_1 = arith.constant 0 : i32
    return %arg1, %c0_i32, %c0_i32_0 : i32, i32, i32
  }
  func.func @transform_2(%arg0: i32, %arg1: i32) -> (i32, i32) {
    %c0_i32 = arith.constant 0 : i32
    %c0_i32_0 = arith.constant 0 : i32
    %c0_i32_1 = arith.constant 0 : i32
    return %c0_i32, %c0_i32_0 : i32, i32
  }
  func.func @transform_3(%arg0: i32, %arg1: i32) -> (i32, i32, i32) {
    %c0_i32 = arith.constant 0 : i32
    %c0_i32_0 = arith.constant 0 : i32
    %c0_i32_1 = arith.constant 0 : i32
    return %c0_i32, %arg0, %c0_i32_0 : i32, i32, i32
  }
}

module attributes {stable_mosaic.version = 11 : i64} {
  func.func @_conv_tap_kernel(%arg0: i32, %arg1: i32, %arg2: memref<1x6x8x512xbf16, #tpu.memory_space<vmem>>, %arg3: memref<1x512x1024xbf16, #tpu.memory_space<vmem>>, %arg4: memref<1x1024xf32, #tpu.memory_space<vmem>>, %arg5: memref<6x8x1024xbf16, #tpu.memory_space<vmem>>, %arg6: memref<6x8x1024xf32, #tpu.memory_space<vmem>>) attributes {dimension_semantics = [#tpu.dimension_semantics<parallel>, #tpu.dimension_semantics<arbitrary>], iteration_bounds = array<i64: 1, 5>, scalar_prefetch = 0 : i64, scratch_operands = 1 : i64, tpu.core_type = #tpu.core_type<tc>, window_params = [{transform_indices = @transform_0, window_bounds = array<i64: 1, 6, 8, 512>}, {transform_indices = @transform_1, window_bounds = array<i64: 1, 512, 1024>}, {pipeline_mode = #tpu.pipeline_mode<synchronous>, transform_indices = @transform_2, window_bounds = array<i64: 1, 1024>}, {transform_indices = @transform_3, window_bounds = array<i64: 6, 8, 1024>}]} {
    %c0_i32 = arith.constant 0 : i32
    %0 = arith.cmpi eq, %arg1, %c0_i32 : i32
    %1 = arith.extui %0 : i1 to i32
    %c0_i32_0 = arith.constant 0 : i32
    %2 = arith.cmpi ne, %1, %c0_i32_0 : i32
    scf.if %2 {
      %cst_14 = arith.constant 0.000000e+00 : f32
      %14 = vector.broadcast %cst_14 : f32 to vector<6x8x1024xf32>
      %c0_15 = arith.constant 0 : index
      %c0_16 = arith.constant 0 : index
      %c0_17 = arith.constant 0 : index
      %15 = vector.load %arg6[%c0_15, %c0_16, %c0_17] : memref<6x8x1024xf32, #tpu.memory_space<vmem>>, vector<6x8x1024xf32>
      tpu.vector_store %arg6[%c0_15, %c0_16, %c0_17], %14 {strides = array<i32>} : memref<6x8x1024xf32, #tpu.memory_space<vmem>>, vector<6x8x1024xf32>,
    } else {
    }
    %c0 = arith.constant 0 : index
    %c0_1 = arith.constant 0 : index
    %c0_2 = arith.constant 0 : index
    %3 = vector.load %arg6[%c0, %c0_1, %c0_2] : memref<6x8x1024xf32, #tpu.memory_space<vmem>>, vector<6x8x1024xf32>
    %c0_3 = arith.constant 0 : index
    %c0_4 = arith.constant 0 : index
    %c0_5 = arith.constant 0 : index
    %c0_6 = arith.constant 0 : index
    %4 = vector.load %arg2[%c0_3, %c0_4, %c0_5, %c0_6] : memref<1x6x8x512xbf16, #tpu.memory_space<vmem>>, vector<1x6x8x512xbf16>
    %5 = vector.shape_cast %4 : vector<1x6x8x512xbf16> to vector<6x8x512xbf16>
    %c0_7 = arith.constant 0 : index
    %c0_8 = arith.constant 0 : index
    %c0_9 = arith.constant 0 : index
    %6 = vector.load %arg3[%c0_7, %c0_8, %c0_9] : memref<1x512x1024xbf16, #tpu.memory_space<vmem>>, vector<1x512x1024xbf16>
    %7 = vector.shape_cast %6 : vector<1x512x1024xbf16> to vector<512x1024xbf16>
    %cst = arith.constant dense<0.000000e+00> : vector<6x8x1024xf32>
    %8 = tpu.matmul %5, %7, %cst {dimension_numbers = #tpu.dot_dimension_numbers<[2], [0], [0, 1], [1], [0, 0, 0, 1, 1, 1], [], []>} : vector<6x8x512xbf16>, vector<512x1024xbf16>, vector<6x8x1024xf32> -> vector<6x8x1024xf32>
    %9 = arith.addf %3, %8 : vector<6x8x1024xf32>
    %c0_10 = arith.constant 0 : index
    %c0_11 = arith.constant 0 : index
    %c0_12 = arith.constant 0 : index
    %10 = vector.load %arg6[%c0_10, %c0_11, %c0_12] : memref<6x8x1024xf32, #tpu.memory_space<vmem>>, vector<6x8x1024xf32>
    tpu.vector_store %arg6[%c0_10, %c0_11, %c0_12], %9 {strides = array<i32>} : memref<6x8x1024xf32, #tpu.memory_space<vmem>>, vector<6x8x1024xf32>,
    %c4_i32 = arith.constant 4 : i32
    %11 = arith.cmpi eq, %arg1, %c4_i32 : i32
    %12 = arith.extui %11 : i1 to i32
    %c0_i32_13 = arith.constant 0 : i32
    %13 = arith.cmpi ne, %12, %c0_i32_13 : i32
    scf.if %13 {
      %c0_14 = arith.constant 0 : index
      %c0_15 = arith.constant 0 : index
      %c0_16 = arith.constant 0 : index
      %14 = vector.load %arg6[%c0_14, %c0_15, %c0_16] : memref<6x8x1024xf32, #tpu.memory_space<vmem>>, vector<6x8x1024xf32>
      %c0_17 = arith.constant 0 : index
      %c0_18 = arith.constant 0 : index
      %15 = vector.load %arg4[%c0_17, %c0_18] : memref<1x1024xf32, #tpu.memory_space<vmem>>, vector<1x1024xf32>
      %16 = vector.shape_cast %15 : vector<1x1024xf32> to vector<1x1x1024xf32>
      %17 = vector.broadcast %16 : vector<1x1x1024xf32> to vector<6x8x1024xf32>
      %18 = arith.addf %14, %17 : vector<6x8x1024xf32>
      %cst_19 = arith.constant 0.000000e+00 : f32
      %19 = vector.broadcast %cst_19 : f32 to vector<6x8x1024xf32>
      %20 = arith.cmpf oge, %18, %19 : vector<6x8x1024xf32>
      %cst_20 = arith.constant 1.000000e-01 : f32
      %21 = vector.broadcast %cst_20 : f32 to vector<6x8x1024xf32>
      %22 = arith.mulf %21, %18 : vector<6x8x1024xf32>
      %23 = arith.select %20, %18, %22 : vector<6x8x1024xi1>, vector<6x8x1024xf32>
      %24 = arith.truncf %23 : vector<6x8x1024xf32> to vector<6x8x1024xbf16>
      %c0_21 = arith.constant 0 : index
      %c0_22 = arith.constant 0 : index
      %c0_23 = arith.constant 0 : index
      %25 = vector.load %arg5[%c0_21, %c0_22, %c0_23] : memref<6x8x1024xbf16, #tpu.memory_space<vmem>>, vector<6x8x1024xbf16>
      tpu.vector_store %arg5[%c0_21, %c0_22, %c0_23], %24 {strides = array<i32>} : memref<6x8x1024xbf16, #tpu.memory_space<vmem>>, vector<6x8x1024xbf16>,
    } else {
    }
    return
  }
  func.func @transform_0(%arg0: i32, %arg1: i32) -> (i32, i32, i32, i32) {
    %c0_i32 = arith.constant 0 : i32
    %c0_i32_0 = arith.constant 0 : i32
    %c0_i32_1 = arith.constant 0 : i32
    return %arg1, %c0_i32, %arg0, %c0_i32_0 : i32, i32, i32, i32
  }
  func.func @transform_1(%arg0: i32, %arg1: i32) -> (i32, i32, i32) {
    %c0_i32 = arith.constant 0 : i32
    %c0_i32_0 = arith.constant 0 : i32
    %c0_i32_1 = arith.constant 0 : i32
    return %arg1, %c0_i32, %c0_i32_0 : i32, i32, i32
  }
  func.func @transform_2(%arg0: i32, %arg1: i32) -> (i32, i32) {
    %c0_i32 = arith.constant 0 : i32
    %c0_i32_0 = arith.constant 0 : i32
    %c0_i32_1 = arith.constant 0 : i32
    return %c0_i32, %c0_i32_0 : i32, i32
  }
  func.func @transform_3(%arg0: i32, %arg1: i32) -> (i32, i32, i32) {
    %c0_i32 = arith.constant 0 : i32
    %c0_i32_0 = arith.constant 0 : i32
    %c0_i32_1 = arith.constant 0 : i32
    return %c0_i32, %arg0, %c0_i32_0 : i32, i32, i32
  }
}

module attributes {stable_mosaic.version = 11 : i64} {
  func.func @_conv_tap_kernel(%arg0: i32, %arg1: i32, %arg2: memref<1x6x8x1024xbf16, #tpu.memory_space<vmem>>, %arg3: memref<1x1024x1024xbf16, #tpu.memory_space<vmem>>, %arg4: memref<1x1024xf32, #tpu.memory_space<vmem>>, %arg5: memref<6x8x1024xbf16, #tpu.memory_space<vmem>>, %arg6: memref<6x8x1024xf32, #tpu.memory_space<vmem>>) attributes {dimension_semantics = [#tpu.dimension_semantics<parallel>, #tpu.dimension_semantics<arbitrary>], iteration_bounds = array<i64: 1, 5>, scalar_prefetch = 0 : i64, scratch_operands = 1 : i64, tpu.core_type = #tpu.core_type<tc>, window_params = [{transform_indices = @transform_0, window_bounds = array<i64: 1, 6, 8, 1024>}, {transform_indices = @transform_1, window_bounds = array<i64: 1, 1024, 1024>}, {pipeline_mode = #tpu.pipeline_mode<synchronous>, transform_indices = @transform_2, window_bounds = array<i64: 1, 1024>}, {transform_indices = @transform_3, window_bounds = array<i64: 6, 8, 1024>}]} {
    %c0_i32 = arith.constant 0 : i32
    %0 = arith.cmpi eq, %arg1, %c0_i32 : i32
    %1 = arith.extui %0 : i1 to i32
    %c0_i32_0 = arith.constant 0 : i32
    %2 = arith.cmpi ne, %1, %c0_i32_0 : i32
    scf.if %2 {
      %cst_14 = arith.constant 0.000000e+00 : f32
      %14 = vector.broadcast %cst_14 : f32 to vector<6x8x1024xf32>
      %c0_15 = arith.constant 0 : index
      %c0_16 = arith.constant 0 : index
      %c0_17 = arith.constant 0 : index
      %15 = vector.load %arg6[%c0_15, %c0_16, %c0_17] : memref<6x8x1024xf32, #tpu.memory_space<vmem>>, vector<6x8x1024xf32>
      tpu.vector_store %arg6[%c0_15, %c0_16, %c0_17], %14 {strides = array<i32>} : memref<6x8x1024xf32, #tpu.memory_space<vmem>>, vector<6x8x1024xf32>,
    } else {
    }
    %c0 = arith.constant 0 : index
    %c0_1 = arith.constant 0 : index
    %c0_2 = arith.constant 0 : index
    %3 = vector.load %arg6[%c0, %c0_1, %c0_2] : memref<6x8x1024xf32, #tpu.memory_space<vmem>>, vector<6x8x1024xf32>
    %c0_3 = arith.constant 0 : index
    %c0_4 = arith.constant 0 : index
    %c0_5 = arith.constant 0 : index
    %c0_6 = arith.constant 0 : index
    %4 = vector.load %arg2[%c0_3, %c0_4, %c0_5, %c0_6] : memref<1x6x8x1024xbf16, #tpu.memory_space<vmem>>, vector<1x6x8x1024xbf16>
    %5 = vector.shape_cast %4 : vector<1x6x8x1024xbf16> to vector<6x8x1024xbf16>
    %c0_7 = arith.constant 0 : index
    %c0_8 = arith.constant 0 : index
    %c0_9 = arith.constant 0 : index
    %6 = vector.load %arg3[%c0_7, %c0_8, %c0_9] : memref<1x1024x1024xbf16, #tpu.memory_space<vmem>>, vector<1x1024x1024xbf16>
    %7 = vector.shape_cast %6 : vector<1x1024x1024xbf16> to vector<1024x1024xbf16>
    %cst = arith.constant dense<0.000000e+00> : vector<6x8x1024xf32>
    %8 = tpu.matmul %5, %7, %cst {dimension_numbers = #tpu.dot_dimension_numbers<[2], [0], [0, 1], [1], [0, 0, 0, 1, 1, 1], [], []>} : vector<6x8x1024xbf16>, vector<1024x1024xbf16>, vector<6x8x1024xf32> -> vector<6x8x1024xf32>
    %9 = arith.addf %3, %8 : vector<6x8x1024xf32>
    %c0_10 = arith.constant 0 : index
    %c0_11 = arith.constant 0 : index
    %c0_12 = arith.constant 0 : index
    %10 = vector.load %arg6[%c0_10, %c0_11, %c0_12] : memref<6x8x1024xf32, #tpu.memory_space<vmem>>, vector<6x8x1024xf32>
    tpu.vector_store %arg6[%c0_10, %c0_11, %c0_12], %9 {strides = array<i32>} : memref<6x8x1024xf32, #tpu.memory_space<vmem>>, vector<6x8x1024xf32>,
    %c4_i32 = arith.constant 4 : i32
    %11 = arith.cmpi eq, %arg1, %c4_i32 : i32
    %12 = arith.extui %11 : i1 to i32
    %c0_i32_13 = arith.constant 0 : i32
    %13 = arith.cmpi ne, %12, %c0_i32_13 : i32
    scf.if %13 {
      %c0_14 = arith.constant 0 : index
      %c0_15 = arith.constant 0 : index
      %c0_16 = arith.constant 0 : index
      %14 = vector.load %arg6[%c0_14, %c0_15, %c0_16] : memref<6x8x1024xf32, #tpu.memory_space<vmem>>, vector<6x8x1024xf32>
      %c0_17 = arith.constant 0 : index
      %c0_18 = arith.constant 0 : index
      %15 = vector.load %arg4[%c0_17, %c0_18] : memref<1x1024xf32, #tpu.memory_space<vmem>>, vector<1x1024xf32>
      %16 = vector.shape_cast %15 : vector<1x1024xf32> to vector<1x1x1024xf32>
      %17 = vector.broadcast %16 : vector<1x1x1024xf32> to vector<6x8x1024xf32>
      %18 = arith.addf %14, %17 : vector<6x8x1024xf32>
      %cst_19 = arith.constant 0.000000e+00 : f32
      %19 = vector.broadcast %cst_19 : f32 to vector<6x8x1024xf32>
      %20 = arith.cmpf oge, %18, %19 : vector<6x8x1024xf32>
      %cst_20 = arith.constant 1.000000e-01 : f32
      %21 = vector.broadcast %cst_20 : f32 to vector<6x8x1024xf32>
      %22 = arith.mulf %21, %18 : vector<6x8x1024xf32>
      %23 = arith.select %20, %18, %22 : vector<6x8x1024xi1>, vector<6x8x1024xf32>
      %24 = arith.truncf %23 : vector<6x8x1024xf32> to vector<6x8x1024xbf16>
      %c0_21 = arith.constant 0 : index
      %c0_22 = arith.constant 0 : index
      %c0_23 = arith.constant 0 : index
      %25 = vector.load %arg5[%c0_21, %c0_22, %c0_23] : memref<6x8x1024xbf16, #tpu.memory_space<vmem>>, vector<6x8x1024xbf16>
      tpu.vector_store %arg5[%c0_21, %c0_22, %c0_23], %24 {strides = array<i32>} : memref<6x8x1024xbf16, #tpu.memory_space<vmem>>, vector<6x8x1024xbf16>,
    } else {
    }
    return
  }
  func.func @transform_0(%arg0: i32, %arg1: i32) -> (i32, i32, i32, i32) {
    %c0_i32 = arith.constant 0 : i32
    %c0_i32_0 = arith.constant 0 : i32
    %c0_i32_1 = arith.constant 0 : i32
    return %arg1, %c0_i32, %arg0, %c0_i32_0 : i32, i32, i32, i32
  }
  func.func @transform_1(%arg0: i32, %arg1: i32) -> (i32, i32, i32) {
    %c0_i32 = arith.constant 0 : i32
    %c0_i32_0 = arith.constant 0 : i32
    %c0_i32_1 = arith.constant 0 : i32
    return %arg1, %c0_i32, %c0_i32_0 : i32, i32, i32
  }
  func.func @transform_2(%arg0: i32, %arg1: i32) -> (i32, i32) {
    %c0_i32 = arith.constant 0 : i32
    %c0_i32_0 = arith.constant 0 : i32
    %c0_i32_1 = arith.constant 0 : i32
    return %c0_i32, %c0_i32_0 : i32, i32
  }
  func.func @transform_3(%arg0: i32, %arg1: i32) -> (i32, i32, i32) {
    %c0_i32 = arith.constant 0 : i32
    %c0_i32_0 = arith.constant 0 : i32
    %c0_i32_1 = arith.constant 0 : i32
    return %c0_i32, %arg0, %c0_i32_0 : i32, i32, i32
  }
}

module attributes {stable_mosaic.version = 11 : i64} {
  func.func @_conv_tap_kernel(%arg0: i32, %arg1: i32, %arg2: memref<1x6x8x1024xbf16, #tpu.memory_space<vmem>>, %arg3: memref<1x1024x1xbf16, #tpu.memory_space<vmem>>, %arg4: memref<1x1xf32, #tpu.memory_space<vmem>>, %arg5: memref<6x8x1xbf16, #tpu.memory_space<vmem>>, %arg6: memref<6x8x1xf32, #tpu.memory_space<vmem>>) attributes {dimension_semantics = [#tpu.dimension_semantics<parallel>, #tpu.dimension_semantics<arbitrary>], iteration_bounds = array<i64: 1, 3>, scalar_prefetch = 0 : i64, scratch_operands = 1 : i64, tpu.core_type = #tpu.core_type<tc>, window_params = [{transform_indices = @transform_0, window_bounds = array<i64: 1, 6, 8, 1024>}, {transform_indices = @transform_1, window_bounds = array<i64: 1, 1024, 1>}, {pipeline_mode = #tpu.pipeline_mode<synchronous>, transform_indices = @transform_2, window_bounds = array<i64: 1, 1>}, {transform_indices = @transform_3, window_bounds = array<i64: 6, 8, 1>}]} {
    %c0_i32 = arith.constant 0 : i32
    %0 = arith.cmpi eq, %arg1, %c0_i32 : i32
    %1 = arith.extui %0 : i1 to i32
    %c0_i32_0 = arith.constant 0 : i32
    %2 = arith.cmpi ne, %1, %c0_i32_0 : i32
    scf.if %2 {
      %cst_14 = arith.constant 0.000000e+00 : f32
      %14 = vector.broadcast %cst_14 : f32 to vector<6x8x1xf32>
      %c0_15 = arith.constant 0 : index
      %c0_16 = arith.constant 0 : index
      %c0_17 = arith.constant 0 : index
      %15 = vector.load %arg6[%c0_15, %c0_16, %c0_17] : memref<6x8x1xf32, #tpu.memory_space<vmem>>, vector<6x8x1xf32>
      tpu.vector_store %arg6[%c0_15, %c0_16, %c0_17], %14 {strides = array<i32>} : memref<6x8x1xf32, #tpu.memory_space<vmem>>, vector<6x8x1xf32>,
    } else {
    }
    %c0 = arith.constant 0 : index
    %c0_1 = arith.constant 0 : index
    %c0_2 = arith.constant 0 : index
    %3 = vector.load %arg6[%c0, %c0_1, %c0_2] : memref<6x8x1xf32, #tpu.memory_space<vmem>>, vector<6x8x1xf32>
    %c0_3 = arith.constant 0 : index
    %c0_4 = arith.constant 0 : index
    %c0_5 = arith.constant 0 : index
    %c0_6 = arith.constant 0 : index
    %4 = vector.load %arg2[%c0_3, %c0_4, %c0_5, %c0_6] : memref<1x6x8x1024xbf16, #tpu.memory_space<vmem>>, vector<1x6x8x1024xbf16>
    %5 = vector.shape_cast %4 : vector<1x6x8x1024xbf16> to vector<6x8x1024xbf16>
    %c0_7 = arith.constant 0 : index
    %c0_8 = arith.constant 0 : index
    %c0_9 = arith.constant 0 : index
    %6 = vector.load %arg3[%c0_7, %c0_8, %c0_9] : memref<1x1024x1xbf16, #tpu.memory_space<vmem>>, vector<1x1024x1xbf16>
    %7 = vector.shape_cast %6 : vector<1x1024x1xbf16> to vector<1024x1xbf16>
    %cst = arith.constant dense<0.000000e+00> : vector<6x8x1xf32>
    %8 = tpu.matmul %5, %7, %cst {dimension_numbers = #tpu.dot_dimension_numbers<[2], [0], [0, 1], [1], [0, 0, 0, 1, 1, 1], [], []>} : vector<6x8x1024xbf16>, vector<1024x1xbf16>, vector<6x8x1xf32> -> vector<6x8x1xf32>
    %9 = arith.addf %3, %8 : vector<6x8x1xf32>
    %c0_10 = arith.constant 0 : index
    %c0_11 = arith.constant 0 : index
    %c0_12 = arith.constant 0 : index
    %10 = vector.load %arg6[%c0_10, %c0_11, %c0_12] : memref<6x8x1xf32, #tpu.memory_space<vmem>>, vector<6x8x1xf32>
    tpu.vector_store %arg6[%c0_10, %c0_11, %c0_12], %9 {strides = array<i32>} : memref<6x8x1xf32, #tpu.memory_space<vmem>>, vector<6x8x1xf32>,
    %c2_i32 = arith.constant 2 : i32
    %11 = arith.cmpi eq, %arg1, %c2_i32 : i32
    %12 = arith.extui %11 : i1 to i32
    %c0_i32_13 = arith.constant 0 : i32
    %13 = arith.cmpi ne, %12, %c0_i32_13 : i32
    scf.if %13 {
      %c0_14 = arith.constant 0 : index
      %c0_15 = arith.constant 0 : index
      %c0_16 = arith.constant 0 : index
      %14 = vector.load %arg6[%c0_14, %c0_15, %c0_16] : memref<6x8x1xf32, #tpu.memory_space<vmem>>, vector<6x8x1xf32>
      %c0_17 = arith.constant 0 : index
      %c0_18 = arith.constant 0 : index
      %15 = vector.load %arg4[%c0_17, %c0_18] : memref<1x1xf32, #tpu.memory_space<vmem>>, vector<1x1xf32>
      %16 = vector.shape_cast %15 : vector<1x1xf32> to vector<1x1x1xf32>
      %17 = vector.broadcast %16 : vector<1x1x1xf32> to vector<6x8x1xf32>
      %18 = arith.addf %14, %17 : vector<6x8x1xf32>
      %19 = arith.truncf %18 : vector<6x8x1xf32> to vector<6x8x1xbf16>
      %c0_19 = arith.constant 0 : index
      %c0_20 = arith.constant 0 : index
      %c0_21 = arith.constant 0 : index
      %20 = vector.load %arg5[%c0_19, %c0_20, %c0_21] : memref<6x8x1xbf16, #tpu.memory_space<vmem>>, vector<6x8x1xbf16>
      tpu.vector_store %arg5[%c0_19, %c0_20, %c0_21], %19 {strides = array<i32>} : memref<6x8x1xbf16, #tpu.memory_space<vmem>>, vector<6x8x1xbf16>,
    } else {
    }
    return
  }
  func.func @transform_0(%arg0: i32, %arg1: i32) -> (i32, i32, i32, i32) {
    %c0_i32 = arith.constant 0 : i32
    %c0_i32_0 = arith.constant 0 : i32
    %c0_i32_1 = arith.constant 0 : i32
    return %arg1, %c0_i32, %arg0, %c0_i32_0 : i32, i32, i32, i32
  }
  func.func @transform_1(%arg0: i32, %arg1: i32) -> (i32, i32, i32) {
    %c0_i32 = arith.constant 0 : i32
    %c0_i32_0 = arith.constant 0 : i32
    %c0_i32_1 = arith.constant 0 : i32
    return %arg1, %c0_i32, %c0_i32_0 : i32, i32, i32
  }
  func.func @transform_2(%arg0: i32, %arg1: i32) -> (i32, i32) {
    %c0_i32 = arith.constant 0 : i32
    %c0_i32_0 = arith.constant 0 : i32
    %c0_i32_1 = arith.constant 0 : i32
    return %c0_i32, %c0_i32_0 : i32, i32
  }
  func.func @transform_3(%arg0: i32, %arg1: i32) -> (i32, i32, i32) {
    %c0_i32 = arith.constant 0 : i32
    %c0_i32_0 = arith.constant 0 : i32
    %c0_i32_1 = arith.constant 0 : i32
    return %c0_i32, %arg0, %c0_i32_0 : i32, i32, i32
  }
}

</mosaic_0001>

<llo_original>
// kernel: discriminator_p_forward.6
$region0: #{discriminator_p_forward.6}
  #allocation0 [shape = 'u32[]', space=smem, size = 0x4, offset = 0x4, fixed_abs, tag = 'smem constant byte address 0x4 - core index']
  #allocation1 [shape = 'u32[144,128]{1,0:T(1,128)}', space=vmem, size = 0x12000, scoped, tag = 'internal scratch']
  #allocation2 [shape = 'f32[6,32,32]{2,1,0:T(8,128)}', space=vmem, size = 0x18000, scoped, tag = 'scratch operand']
  %s0 = inlined_call_operand.vmem [shape: bf16[1,6,32,5], index: 0, kind: input, shape index: {}]
  %s1 = inlined_call_operand.hbm [shape: bf16[1,5,32], index: 1, kind: input, shape index: {}]
  %s2 = inlined_call_operand.hbm [shape: f32[1,32], index: 2, kind: input, shape index: {}]
  %s3 = inlined_call_operand.vmem [shape: bf16[6,32,32], index: 3, kind: output, shape index: {}]
  %s4 = sld [smem:[#allocation0]]
  $region38: #{discriminator_p_forward.6} parent=0
    _
  %s6 = ssub.s32 1, %s4
  %s7 = scalar_select 0, %s6, %s4
  $region1: #{discriminator_p_forward.6} parent=0
    #allocation3 [shape = 'u8[2048]{0}', space=vmem, size = 0x800, scoped, tag = 'input window, operand 1, single buffered']
    #allocation4 [shape = 's32[1]{0}', space=sflag, size = 0x4, scoped, tag = 'scoped memory for discriminator_p_forward.6']
    #allocation5 [shape = 'u8[512]{0}', space=vmem, size = 0x400, scoped, tag = 'input window, operand 2, single buffered']
    #allocation6 [shape = 's32[1]{0}', space=sflag, size = 0x4, scoped, tag = 'scoped memory for discriminator_p_forward.6']
    %8 = vsyncpa [#allocation4], 0
    %9 = vsyncpa [#allocation6], 0
    // Predicated region
    $region2: #{discriminator_p_forward.6} parent=1 // pred_check
      _
    $region3: #{discriminator_p_forward.6} parent=1 // pred_check_branch
      %11 = sbr.rel (0) target = $region5
    $region4: #{discriminator_p_forward.6} parent=1 // pred_region
      _
    $region5: #{discriminator_p_forward.6} parent=1 // pred_fallthru
      _
    // Predicated region
    $region6: #{discriminator_p_forward.6} parent=1 // pred_check
      _
    $region7: #{discriminator_p_forward.6} parent=1 // pred_check_branch
      %13 = sbr.rel (0) target = $region9
    $region8: #{discriminator_p_forward.6} parent=1 // pred_region
      %s15 = ssub.s32 64, 64
      %16 = vsyncadd [#allocation4], %s15
      %s18 = sshll.u32 [#allocation3], 4
      %s19 = int_to_ptr.vmem [resolvable:$true] %s18
      %21 = dma.hbm_to_vmem [thread:$0]  %s1, 64, %s19, [#allocation4]
    $region9: #{discriminator_p_forward.6} parent=1 // pred_fallthru
      _
    // Predicated region
    $region10: #{discriminator_p_forward.6} parent=1 // pred_check
      _
    $region11: #{discriminator_p_forward.6} parent=1 // pred_check_branch
      %23 = sbr.rel (0) target = $region13
    $region12: #{discriminator_p_forward.6} parent=1 // pred_region
      %s25 = ssub.s32 16, 16
      %26 = vsyncadd [#allocation6], %s25
      %s28 = sshll.u32 [#allocation5], 4
      %s29 = int_to_ptr.vmem [resolvable:$true] %s28
      %31 = dma.hbm_to_vmem [thread:$0]  %s2, 16, %s29, [#allocation6]
    $region13: #{discriminator_p_forward.6} parent=1 // pred_fallthru
      _
    // Predicated region
    $region14: #{discriminator_p_forward.6} parent=1 // pred_check
      _
    $region15: #{discriminator_p_forward.6} parent=1 // pred_check_branch
      %33 = sbr.rel (0) target = $region17
    $region16: #{discriminator_p_forward.6} parent=1 // pred_region
      %34 = dma.done [#allocation4], 64
    $region17: #{discriminator_p_forward.6} parent=1 // pred_fallthru
      _
    // Predicated region
    $region18: #{discriminator_p_forward.6} parent=1 // pred_check
      _
    $region19: #{discriminator_p_forward.6} parent=1 // pred_check_branch
      %36 = sbr.rel (0) target = $region21
    $region20: #{discriminator_p_forward.6} parent=1 // pred_region
      %37 = dma.done [#allocation6], 16
    $region21: #{discriminator_p_forward.6} parent=1 // pred_fallthru
      _
    %p39 = scmp.eq.s32.totalorder 0, 0
    // Predicated region
    $region22: #{discriminator_p_forward.6} parent=1 // pred_check
      %p40 = pneg %p39
    $region23: #{discriminator_p_forward.6} parent=1 // pred_check_branch
      %42 = sbr.rel (%p40) target = $region25
    $region24: #{discriminator_p_forward.6} parent=1 // pred_region
      %vm43 = vcmask 261120
      %44 = vst.msk [vmem:[#allocation2] sm:$0xff] %vm43, 0.0
      %45 = vst.msk [vmem:[#allocation2 + $0x8] sm:$0xff] %vm43, 0.0
      %46 = vst.msk [vmem:[#allocation2 + $0x10] sm:$0xff] %vm43, 0.0
      %47 = vst.msk [vmem:[#allocation2 + $0x18] sm:$0xff] %vm43, 0.0
      %48 = vst.msk [vmem:[#allocation2 + $0x20] sm:$0xff] %vm43, 0.0
      %49 = vst.msk [vmem:[#allocation2 + $0x28] sm:$0xff] %vm43, 0.0
      %50 = vst.msk [vmem:[#allocation2 + $0x30] sm:$0xff] %vm43, 0.0
      %51 = vst.msk [vmem:[#allocation2 + $0x38] sm:$0xff] %vm43, 0.0
      %52 = vst.msk [vmem:[#allocation2 + $0x40] sm:$0xff] %vm43, 0.0
      %53 = vst.msk [vmem:[#allocation2 + $0x48] sm:$0xff] %vm43, 0.0
      %54 = vst.msk [vmem:[#allocation2 + $0x50] sm:$0xff] %vm43, 0.0
      %55 = vst.msk [vmem:[#allocation2 + $0x58] sm:$0xff] %vm43, 0.0
      %56 = vst.msk [vmem:[#allocation2 + $0x60] sm:$0xff] %vm43, 0.0
      %57 = vst.msk [vmem:[#allocation2 + $0x68] sm:$0xff] %vm43, 0.0
      %58 = vst.msk [vmem:[#allocation2 + $0x70] sm:$0xff] %vm43, 0.0
      %59 = vst.msk [vmem:[#allocation2 + $0x78] sm:$0xff] %vm43, 0.0
      %60 = vst.msk [vmem:[#allocation2 + $0x80] sm:$0xff] %vm43, 0.0
      %61 = vst.msk [vmem:[#allocation2 + $0x88] sm:$0xff] %vm43, 0.0
      %62 = vst.msk [vmem:[#allocation2 + $0x90] sm:$0xff] %vm43, 0.0
      %63 = vst.msk [vmem:[#allocation2 + $0x98] sm:$0xff] %vm43, 0.0
      %64 = vst.msk [vmem:[#allocation2 + $0xa0] sm:$0xff] %vm43, 0.0
      %65 = vst.msk [vmem:[#allocation2 + $0xa8] sm:$0xff] %vm43, 0.0
      %66 = vst.msk [vmem:[#allocation2 + $0xb0] sm:$0xff] %vm43, 0.0
      %67 = vst.msk [vmem:[#allocation2 + $0xb8] sm:$0xff] %vm43, 0.0
    $region25: #{discriminator_p_forward.6} parent=1 // pred_fallthru
      _
    %v68 = vld [vmem:[#allocation2] sm:$0xff]
    %v69 = vld [vmem:[#allocation2 + $0x8] sm:$0xff]
    %v70 = vld [vmem:[#allocation2 + $0x10] sm:$0xff]
    %v71 = vld [vmem:[#allocation2 + $0x18] sm:$0xff]
    %v72 = vld [vmem:[#allocation2 + $0x20] sm:$0xff]
    %v73 = vld [vmem:[#allocation2 + $0x28] sm:$0xff]
    %v74 = vld [vmem:[#allocation2 + $0x30] sm:$0xff]
    %v75 = vld [vmem:[#allocation2 + $0x38] sm:$0xff]
    %v76 = vld [vmem:[#allocation2 + $0x40] sm:$0xff]
    %v77 = vld [vmem:[#allocation2 + $0x48] sm:$0xff]
    %v78 = vld [vmem:[#allocation2 + $0x50] sm:$0xff]
    %v79 = vld [vmem:[#allocation2 + $0x58] sm:$0xff]
    %v80 = vld [vmem:[#allocation2 + $0x60] sm:$0xff]
    %v81 = vld [vmem:[#allocation2 + $0x68] sm:$0xff]
    %v82 = vld [vmem:[#allocation2 + $0x70] sm:$0xff]
    %v83 = vld [vmem:[#allocation2 + $0x78] sm:$0xff]
    %v84 = vld [vmem:[#allocation2 + $0x80] sm:$0xff]
    %v85 = vld [vmem:[#allocation2 + $0x88] sm:$0xff]
    %v86 = vld [vmem:[#allocation2 + $0x90] sm:$0xff]
    %v87 = vld [vmem:[#allocation2 + $0x98] sm:$0xff]
    %v88 = vld [vmem:[#allocation2 + $0xa0] sm:$0xff]
    %v89 = vld [vmem:[#allocation2 + $0xa8] sm:$0xff]
    %v90 = vld [vmem:[#allocation2 + $0xb0] sm:$0xff]
    %v91 = vld [vmem:[#allocation2 + $0xb8] sm:$0xff]
    %v92 = vld [vmem:[%s0] sm:$0xf]
    %v93 = vld [vmem:[%s0 + $0x4] sm:$0xf]
    %v94 = vld [vmem:[%s0 + $0x8] sm:$0xf]
    %v95 = vld [vmem:[%s0 + $0xc] sm:$0xf]
    %v96 = vld [vmem:[%s0 + $0x10] sm:$0xf]
    %v97 = vld [vmem:[%s0 + $0x14] sm:$0xf]
    %v98 = vld [vmem:[%s0 + $0x18] sm:$0xf]
    %v99 = vld [vmem:[%s0 + $0x1c] sm:$0xf]
    %v100 = vld [vmem:[%s0 + $0x20] sm:$0xf]
    %v101 = vld [vmem:[%s0 + $0x24] sm:$0xf]
    %v102 = vld [vmem:[%s0 + $0x28] sm:$0xf]
    %v103 = vld [vmem:[%s0 + $0x2c] sm:$0xf]
    %v104 = vld [vmem:[%s0 + $0x30] sm:$0xf]
    %v105 = vld [vmem:[%s0 + $0x34] sm:$0xf]
    %v106 = vld [vmem:[%s0 + $0x38] sm:$0xf]
    %v107 = vld [vmem:[%s0 + $0x3c] sm:$0xf]
    %v108 = vld [vmem:[%s0 + $0x40] sm:$0xf]
    %v109 = vld [vmem:[%s0 + $0x44] sm:$0xf]
    %v110 = vld [vmem:[%s0 + $0x48] sm:$0xf]
    %v111 = vld [vmem:[%s0 + $0x4c] sm:$0xf]
    %v112 = vld [vmem:[%s0 + $0x50] sm:$0xf]
    %v113 = vld [vmem:[%s0 + $0x54] sm:$0xf]
    %v114 = vld [vmem:[%s0 + $0x58] sm:$0xf]
    %v115 = vld [vmem:[%s0 + $0x5c] sm:$0xf]
    %v116 = vld [vmem:[#allocation3] sm:$0x7]
    %v141 = vunpack.c.l.b16 %v92
    %v142 = vunpack.c.l.b16 %v93
    %v143 = vunpack.c.l.b16 %v94
    %v144 = vunpack.c.l.b16 %v95
    %v145 = vunpack.c.l.b16 %v96
    %v146 = vunpack.c.l.b16 %v97
    %v147 = vunpack.c.l.b16 %v98
    %v148 = vunpack.c.l.b16 %v99
    %v149 = vunpack.c.l.b16 %v100
    %v150 = vunpack.c.l.b16 %v101
    %v151 = vunpack.c.l.b16 %v102
    %v152 = vunpack.c.l.b16 %v103
    %v153 = vunpack.c.l.b16 %v104
    %v154 = vunpack.c.l.b16 %v105
    %v155 = vunpack.c.l.b16 %v106
    %v156 = vunpack.c.l.b16 %v107
    %v157 = vunpack.c.l.b16 %v108
    %v158 = vunpack.c.l.b16 %v109
    %v159 = vunpack.c.l.b16 %v110
    %v160 = vunpack.c.l.b16 %v111
    %v161 = vunpack.c.l.b16 %v112
    %v162 = vunpack.c.l.b16 %v113
    %v163 = vunpack.c.l.b16 %v114
    %v164 = vunpack.c.l.b16 %v115
    %v165 = vpack.c.b16 %v142, %v141
    %v166 = vpack.c.b16 %v144, %v143
    %v167 = vpack.c.b16 %v146, %v145
    %v168 = vpack.c.b16 %v148, %v147
    %v169 = vpack.c.b16 %v150, %v149
    %v170 = vpack.c.b16 %v152, %v151
    %v171 = vpack.c.b16 %v154, %v153
    %v172 = vpack.c.b16 %v156, %v155
    %v173 = vpack.c.b16 %v158, %v157
    %v174 = vpack.c.b16 %v160, %v159
    %v175 = vpack.c.b16 %v162, %v161
    %v176 = vpack.c.b16 %v164, %v163
    %vm177 = vcmask 39936
    %v179 = vsel %vm177, %v165, 0
    %v182 = vsel %vm177, %v166, 0
    %v185 = vsel %vm177, %v167, 0
    %v188 = vsel %vm177, %v168, 0
    %v191 = vsel %vm177, %v169, 0
    %v194 = vsel %vm177, %v170, 0
    %v197 = vsel %vm177, %v171, 0
    %v200 = vsel %vm177, %v172, 0
    %v203 = vsel %vm177, %v173, 0
    %v206 = vsel %vm177, %v174, 0
    %v209 = vsel %vm177, %v175, 0
    %v212 = vsel %vm177, %v176, 0
    %vm214 = vcmask 1041408
    %vm215 = vcmask 1042432
    %v216 = vsel %vm214, 4294967295, 65535
    %v217 = vsel %vm215, %v216, 0
    %v219 = vand.u32 %v116, %v217
    %221 = vmatprep.subr.bf16.mxu0 0
    %222 = vmatpush1.bf16.msra.mxu0 %v219
    %223 = vmatprep.subr.bf16.mxu0 0
    %224 = vmatpush1.bf16.msra.mxu0 0
    %225 = vmatprep.subr.bf16.mxu0 0
    %226 = vmatpush1.bf16.msra.mxu0 0
    %227 = vmatprep.subr.bf16.mxu0 0
    %228 = vmatpush1.bf16.msra.mxu0 0
    %229 = vmatprep.subr.bf16.mxu0 0
    %230 = vmatpush1.bf16.msra.mxu0 0
    %231 = vmatprep.subr.bf16.mxu0 0
    %232 = vmatpush1.bf16.msra.mxu0 0
    %233 = vmatprep.subr.bf16.mxu0 0
    %234 = vmatpush1.bf16.msra.mxu0 0
    %235 = vmatprep.subr.bf16.mxu0 0
    %236 = vmatpush1.bf16.msra.mxu0 0
    %237 = vmatprep.subr.bf16.mxu0 0
    %238 = vmatpush1.bf16.msra.mxu0 0
    %239 = vmatprep.subr.bf16.mxu0 0
    %240 = vmatpush1.bf16.msra.mxu0 0
    %241 = vmatprep.subr.bf16.mxu0 0
    %242 = vmatpush1.bf16.msra.mxu0 0
    %243 = vmatprep.subr.bf16.mxu0 0
    %244 = vmatpush1.bf16.msra.mxu0 0
    %245 = vmatprep.subr.bf16.mxu0 0
    %246 = vmatpush1.bf16.msra.mxu0 0
    %247 = vmatprep.subr.bf16.mxu0 0
    %248 = vmatpush1.bf16.msra.mxu0 0
    %249 = vmatprep.subr.bf16.mxu0 0
    %250 = vmatpush1.bf16.msra.mxu0 0
    %251 = vmatprep.subr.bf16.mxu0 0
    %252 = vmatpush1.bf16.msra.mxu0 0
    %253 = vmatprep.mubr.bf16.mxu0 0
    %254 = vmatmul.mubr.bf16.gmra.mrb[0].mxu0 %v179
    %v255 = vpop.f32.mrb[0].mxu0
    %v256 = vadd.f32 0.0, %v255
    %v257 = vpop.f32.mrb[0].mxu0
    %v258 = vpop.f32.mrb[0].mxu0
    %v259 = vadd.f32 0.0, %v258
    %v260 = vpop.f32.mrb[0].mxu0
    %261 = vmatprep.mubr.bf16.mxu0 0
    %262 = vmatmul.mubr.bf16.gmra.mrb[0].mxu0 %v182
    %v263 = vpop.f32.mrb[0].mxu0
    %v264 = vadd.f32 0.0, %v263
    %v265 = vpop.f32.mrb[0].mxu0
    %v266 = vpop.f32.mrb[0].mxu0
    %v267 = vadd.f32 0.0, %v266
    %v268 = vpop.f32.mrb[0].mxu0
    %269 = vmatprep.mubr.bf16.mxu0 0
    %270 = vmatmul.mubr.bf16.gmra.mrb[0].mxu0 %v185
    %v271 = vpop.f32.mrb[0].mxu0
    %v272 = vadd.f32 0.0, %v271
    %v273 = vpop.f32.mrb[0].mxu0
    %v274 = vpop.f32.mrb[0].mxu0
    %v275 = vadd.f32 0.0, %v274
    %v276 = vpop.f32.mrb[0].mxu0
    %277 = vmatprep.mubr.bf16.mxu0 0
    %278 = vmatmul.mubr.bf16.gmra.mrb[0].mxu0 %v188
    %v279 = vpop.f32.mrb[0].mxu0
    %v280 = vadd.f32 0.0, %v279
    %v281 = vpop.f32.mrb[0].mxu0
    %v282 = vpop.f32.mrb[0].mxu0
    %v283 = vadd.f32 0.0, %v282
    %v284 = vpop.f32.mrb[0].mxu0
    %285 = vmatprep.mubr.bf16.mxu0 0
    %286 = vmatmul.mubr.bf16.gmra.mrb[0].mxu0 %v191
    %v287 = vpop.f32.mrb[0].mxu0
    %v288 = vadd.f32 0.0, %v287
    %v289 = vpop.f32.mrb[0].mxu0
    %v290 = vpop.f32.mrb[0].mxu0
    %v291 = vadd.f32 0.0, %v290
    %v292 = vpop.f32.mrb[0].mxu0
    %293 = vmatprep.mubr.bf16.mxu0 0
    %294 = vmatmul.mubr.bf16.gmra.mrb[0].mxu0 %v194
    %v295 = vpop.f32.mrb[0].mxu0
    %v296 = vadd.f32 0.0, %v295
    %v297 = vpop.f32.mrb[0].mxu0
    %v298 = vpop.f32.mrb[0].mxu0
    %v299 = vadd.f32 0.0, %v298
    %v300 = vpop.f32.mrb[0].mxu0
    %301 = vmatprep.mubr.bf16.mxu0 0
    %302 = vmatmul.mubr.bf16.gmra.mrb[0].mxu0 %v197
    %v303 = vpop.f32.mrb[0].mxu0
    %v304 = vadd.f32 0.0, %v303
    %v305 = vpop.f32.mrb[0].mxu0
    %v306 = vpop.f32.mrb[0].mxu0
    %v307 = vadd.f32 0.0, %v306
    %v308 = vpop.f32.mrb[0].mxu0
    %309 = vmatprep.mubr.bf16.mxu0 0
    %310 = vmatmul.mubr.bf16.gmra.mrb[0].mxu0 %v200
    %v311 = vpop.f32.mrb[0].mxu0
    %v312 = vadd.f32 0.0, %v311
    %v313 = vpop.f32.mrb[0].mxu0
    %v314 = vpop.f32.mrb[0].mxu0
    %v315 = vadd.f32 0.0, %v314
    %v316 = vpop.f32.mrb[0].mxu0
    %317 = vmatprep.mubr.bf16.mxu0 0
    %318 = vmatmul.mubr.bf16.gmra.mrb[0].mxu0 %v203
    %v319 = vpop.f32.mrb[0].mxu0
    %v320 = vadd.f32 0.0, %v319
    %v321 = vpop.f32.mrb[0].mxu0
    %v322 = vpop.f32.mrb[0].mxu0
    %v323 = vadd.f32 0.0, %v322
    %v324 = vpop.f32.mrb[0].mxu0
    %325 = vmatprep.mubr.bf16.mxu0 0
    %326 = vmatmul.mubr.bf16.gmra.mrb[0].mxu0 %v206
    %v327 = vpop.f32.mrb[0].mxu0
    %v328 = vadd.f32 0.0, %v327
    %v329 = vpop.f32.mrb[0].mxu0
    %v330 = vpop.f32.mrb[0].mxu0
    %v331 = vadd.f32 0.0, %v330
    %v332 = vpop.f32.mrb[0].mxu0
    %333 = vmatprep.mubr.bf16.mxu0 0
    %334 = vmatmul.mubr.bf16.gmra.mrb[0].mxu0 %v209
    %v335 = vpop.f32.mrb[0].mxu0
    %v336 = vadd.f32 0.0, %v335
    %v337 = vpop.f32.mrb[0].mxu0
    %v338 = vpop.f32.mrb[0].mxu0
    %v339 = vadd.f32 0.0, %v338
    %v340 = vpop.f32.mrb[0].mxu0
    %341 = vmatprep.mubr.bf16.mxu0 0
    %342 = vmatmul.mubr.bf16.gmra.mrb[0].mxu0 %v212
    %v343 = vpop.f32.mrb[0].mxu0
    %v344 = vadd.f32 0.0, %v343
    %v345 = vpop.f32.mrb[0].mxu0
    %v346 = vpop.f32.mrb[0].mxu0
    %v347 = vadd.f32 0.0, %v346
    %v348 = vpop.f32.mrb[0].mxu0
    %349 = vdwg.mxu0
    %v350 = vadd.f32 %v68, %v256
    %v351 = vadd.f32 %v69, %v259
    %v352 = vadd.f32 %v70, %v264
    %v353 = vadd.f32 %v71, %v267
    %v354 = vadd.f32 %v72, %v272
    %v355 = vadd.f32 %v73, %v275
    %v356 = vadd.f32 %v74, %v280
    %v357 = vadd.f32 %v75, %v283
    %v358 = vadd.f32 %v76, %v288
    %v359 = vadd.f32 %v77, %v291
    %v360 = vadd.f32 %v78, %v296
    %v361 = vadd.f32 %v79, %v299
    %v362 = vadd.f32 %v80, %v304
    %v363 = vadd.f32 %v81, %v307
    %v364 = vadd.f32 %v82, %v312
    %v365 = vadd.f32 %v83, %v315
    %v366 = vadd.f32 %v84, %v320
    %v367 = vadd.f32 %v85, %v323
    %v368 = vadd.f32 %v86, %v328
    %v369 = vadd.f32 %v87, %v331
    %v370 = vadd.f32 %v88, %v336
    %v371 = vadd.f32 %v89, %v339
    %v372 = vadd.f32 %v90, %v344
    %v373 = vadd.f32 %v91, %v347
    %vm374 = vcmask 261120
    %375 = vst.msk [vmem:[#allocation2] sm:$0xff] %vm374, %v350
    %376 = vst.msk [vmem:[#allocation2 + $0x8] sm:$0xff] %vm374, %v351
    %377 = vst.msk [vmem:[#allocation2 + $0x10] sm:$0xff] %vm374, %v352
    %378 = vst.msk [vmem:[#allocation2 + $0x18] sm:$0xff] %vm374, %v353
    %379 = vst.msk [vmem:[#allocation2 + $0x20] sm:$0xff] %vm374, %v354
    %380 = vst.msk [vmem:[#allocation2 + $0x28] sm:$0xff] %vm374, %v355
    %381 = vst.msk [vmem:[#allocation2 + $0x30] sm:$0xff] %vm374, %v356
    %382 = vst.msk [vmem:[#allocation2 + $0x38] sm:$0xff] %vm374, %v357
    %383 = vst.msk [vmem:[#allocation2 + $0x40] sm:$0xff] %vm374, %v358
    %384 = vst.msk [vmem:[#allocation2 + $0x48] sm:$0xff] %vm374, %v359
    %385 = vst.msk [vmem:[#allocation2 + $0x50] sm:$0xff] %vm374, %v360
    %386 = vst.msk [vmem:[#allocation2 + $0x58] sm:$0xff] %vm374, %v361
    %387 = vst.msk [vmem:[#allocation2 + $0x60] sm:$0xff] %vm374, %v362
    %388 = vst.msk [vmem:[#allocation2 + $0x68] sm:$0xff] %vm374, %v363
    %389 = vst.msk [vmem:[#allocation2 + $0x70] sm:$0xff] %vm374, %v364
    %390 = vst.msk [vmem:[#allocation2 + $0x78] sm:$0xff] %vm374, %v365
    %391 = vst.msk [vmem:[#allocation2 + $0x80] sm:$0xff] %vm374, %v366
    %392 = vst.msk [vmem:[#allocation2 + $0x88] sm:$0xff] %vm374, %v367
    %393 = vst.msk [vmem:[#allocation2 + $0x90] sm:$0xff] %vm374, %v368
    %394 = vst.msk [vmem:[#allocation2 + $0x98] sm:$0xff] %vm374, %v369
    %395 = vst.msk [vmem:[#allocation2 + $0xa0] sm:$0xff] %vm374, %v370
    %396 = vst.msk [vmem:[#allocation2 + $0xa8] sm:$0xff] %vm374, %v371
    %397 = vst.msk [vmem:[#allocation2 + $0xb0] sm:$0xff] %vm374, %v372
    %398 = vst.msk [vmem:[#allocation2 + $0xb8] sm:$0xff] %vm374, %v373
    // Predicated region
    $region26: #{discriminator_p_forward.6} parent=1 // pred_check
      %p399 = pneg %p39
    $region27: #{discriminator_p_forward.6} parent=1 // pred_check_branch
      %401 = sbr.rel (%p399) target = $region29
    $region28: #{discriminator_p_forward.6} parent=1 // pred_region
      %v402 = vld [vmem:[#allocation2] sm:$0xff]
      %v403 = vld [vmem:[#allocation2 + $0x8] sm:$0xff]
      %v404 = vld [vmem:[#allocation2 + $0x10] sm:$0xff]
      %v405 = vld [vmem:[#allocation2 + $0x18] sm:$0xff]
      %v406 = vld [vmem:[#allocation2 + $0x20] sm:$0xff]
      %v407 = vld [vmem:[#allocation2 + $0x28] sm:$0xff]
      %v408 = vld [vmem:[#allocation2 + $0x30] sm:$0xff]
      %v409 = vld [vmem:[#allocation2 + $0x38] sm:$0xff]
      %v410 = vld [vmem:[#allocation2 + $0x40] sm:$0xff]
      %v411 = vld [vmem:[#allocation2 + $0x48] sm:$0xff]
      %v412 = vld [vmem:[#allocation2 + $0x50] sm:$0xff]
      %v413 = vld [vmem:[#allocation2 + $0x58] sm:$0xff]
      %v414 = vld [vmem:[#allocation2 + $0x60] sm:$0xff]
      %v415 = vld [vmem:[#allocation2 + $0x68] sm:$0xff]
      %v416 = vld [vmem:[#allocation2 + $0x70] sm:$0xff]
      %v417 = vld [vmem:[#allocation2 + $0x78] sm:$0xff]
      %v418 = vld [vmem:[#allocation2 + $0x80] sm:$0xff]
      %v419 = vld [vmem:[#allocation2 + $0x88] sm:$0xff]
      %v420 = vld [vmem:[#allocation2 + $0x90] sm:$0xff]
      %v421 = vld [vmem:[#allocation2 + $0x98] sm:$0xff]
      %v422 = vld [vmem:[#allocation2 + $0xa0] sm:$0xff]
      %v423 = vld [vmem:[#allocation2 + $0xa8] sm:$0xff]
      %v424 = vld [vmem:[#allocation2 + $0xb0] sm:$0xff]
      %v425 = vld [vmem:[#allocation2 + $0xb8] sm:$0xff]
      %v426 = vld [vmem:[#allocation5] sm:$0x1]
      %v428 = vlaneseq
      %v429 = vshrl.u32 %v428, 7
      %v430 = vsub.s32 0, %v429
      %v431 = vrot.slane %v426, %v430
      %v433 = vadd.f32 %v402, %v431
      %v434 = vadd.f32 %v403, %v431
      %v435 = vadd.f32 %v404, %v431
      %v436 = vadd.f32 %v405, %v431
      %v437 = vadd.f32 %v406, %v431
      %v438 = vadd.f32 %v407, %v431
      %v439 = vadd.f32 %v408, %v431
      %v440 = vadd.f32 %v409, %v431
      %v441 = vadd.f32 %v410, %v431
      %v442 = vadd.f32 %v411, %v431
      %v443 = vadd.f32 %v412, %v431
      %v444 = vadd.f32 %v413, %v431
      %v445 = vadd.f32 %v414, %v431
      %v446 = vadd.f32 %v415, %v431
      %v447 = vadd.f32 %v416, %v431
      %v448 = vadd.f32 %v417, %v431
      %v449 = vadd.f32 %v418, %v431
      %v450 = vadd.f32 %v419, %v431
      %v451 = vadd.f32 %v420, %v431
      %v452 = vadd.f32 %v421, %v431
      %v453 = vadd.f32 %v422, %v431
      %v454 = vadd.f32 %v423, %v431
      %v455 = vadd.f32 %v424, %v431
      %v456 = vadd.f32 %v425, %v431
      %vm457 = vcmp.ge.f32.partialorder %v433, 0.0
      %vm458 = vcmp.ge.f32.partialorder %v434, 0.0
      %vm459 = vcmp.ge.f32.partialorder %v435, 0.0
      %vm460 = vcmp.ge.f32.partialorder %v436, 0.0
      %vm461 = vcmp.ge.f32.partialorder %v437, 0.0
      %vm462 = vcmp.ge.f32.partialorder %v438, 0.0
      %vm463 = vcmp.ge.f32.partialorder %v439, 0.0
      %vm464 = vcmp.ge.f32.partialorder %v440, 0.0
      %vm465 = vcmp.ge.f32.partialorder %v441, 0.0
      %vm466 = vcmp.ge.f32.partialorder %v442, 0.0
      %vm467 = vcmp.ge.f32.partialorder %v443, 0.0
      %vm468 = vcmp.ge.f32.partialorder %v444, 0.0
      %vm469 = vcmp.ge.f32.partialorder %v445, 0.0
      %vm470 = vcmp.ge.f32.partialorder %v446, 0.0
      %vm471 = vcmp.ge.f32.partialorder %v447, 0.0
      %vm472 = vcmp.ge.f32.partialorder %v448, 0.0
      %vm473 = vcmp.ge.f32.partialorder %v449, 0.0
      %vm474 = vcmp.ge.f32.partialorder %v450, 0.0
      %vm475 = vcmp.ge.f32.partialorder %v451, 0.0
      %vm476 = vcmp.ge.f32.partialorder %v452, 0.0
      %vm477 = vcmp.ge.f32.partialorder %v453, 0.0
      %vm478 = vcmp.ge.f32.partialorder %v454, 0.0
      %vm479 = vcmp.ge.f32.partialorder %v455, 0.0
      %vm480 = vcmp.ge.f32.partialorder %v456, 0.0
      %v481 = vmul.f32 %v433, 0.1
      %v482 = vmul.f32 %v434, 0.1
      %v483 = vmul.f32 %v435, 0.1
      %v484 = vmul.f32 %v436, 0.1
      %v485 = vmul.f32 %v437, 0.1
      %v486 = vmul.f32 %v438, 0.1
      %v487 = vmul.f32 %v439, 0.1
      %v488 = vmul.f32 %v440, 0.1
      %v489 = vmul.f32 %v441, 0.1
      %v490 = vmul.f32 %v442, 0.1
      %v491 = vmul.f32 %v443, 0.1
      %v492 = vmul.f32 %v444, 0.1
      %v493 = vmul.f32 %v445, 0.1
      %v494 = vmul.f32 %v446, 0.1
      %v495 = vmul.f32 %v447, 0.1
      %v496 = vmul.f32 %v448, 0.1
      %v497 = vmul.f32 %v449, 0.1
      %v498 = vmul.f32 %v450, 0.1
      %v499 = vmul.f32 %v451, 0.1
      %v500 = vmul.f32 %v452, 0.1
      %v501 = vmul.f32 %v453, 0.1
      %v502 = vmul.f32 %v454, 0.1
      %v503 = vmul.f32 %v455, 0.1
      %v504 = vmul.f32 %v456, 0.1
      %v505 = vsel %vm457, %v433, %v481
      %v506 = vsel %vm458, %v434, %v482
      %v507 = vsel %vm459, %v435, %v483
      %v508 = vsel %vm460, %v436, %v484
      %v509 = vsel %vm461, %v437, %v485
      %v510 = vsel %vm462, %v438, %v486
      %v511 = vsel %vm463, %v439, %v487
      %v512 = vsel %vm464, %v440, %v488
      %v513 = vsel %vm465, %v441, %v489
      %v514 = vsel %vm466, %v442, %v490
      %v515 = vsel %vm467, %v443, %v491
      %v516 = vsel %vm468, %v444, %v492
      %v517 = vsel %vm469, %v445, %v493
      %v518 = vsel %vm470, %v446, %v494
      %v519 = vsel %vm471, %v447, %v495
      %v520 = vsel %vm472, %v448, %v496
      %v521 = vsel %vm473, %v449, %v497
      %v522 = vsel %vm474, %v450, %v498
      %v523 = vsel %vm475, %v451, %v499
      %v524 = vsel %vm476, %v452, %v500
      %v525 = vsel %vm477, %v453, %v501
      %v526 = vsel %vm478, %v454, %v502
      %v527 = vsel %vm479, %v455, %v503
      %v528 = vsel %vm480, %v456, %v504
      %v529 = vpack.c.bf16 %v506, %v505
      %v530 = vpack.c.bf16 %v508, %v507
      %v531 = vpack.c.bf16 %v510, %v509
      %v532 = vpack.c.bf16 %v512, %v511
      %v533 = vpack.c.bf16 %v514, %v513
      %v534 = vpack.c.bf16 %v516, %v515
      %v535 = vpack.c.bf16 %v518, %v517
      %v536 = vpack.c.bf16 %v520, %v519
      %v537 = vpack.c.bf16 %v522, %v521
      %v538 = vpack.c.bf16 %v524, %v523
      %v539 = vpack.c.bf16 %v526, %v525
      %v540 = vpack.c.bf16 %v528, %v527
      %v553 = vunpack.c.l.b16 %v529
      %v554 = vunpack.c.h.b16 %v529
      %v555 = vunpack.c.l.b16 %v530
      %v556 = vunpack.c.h.b16 %v530
      %v557 = vunpack.c.l.b16 %v531
      %v558 = vunpack.c.h.b16 %v531
      %v559 = vunpack.c.l.b16 %v532
      %v560 = vunpack.c.h.b16 %v532
      %v561 = vunpack.c.l.b16 %v533
      %v562 = vunpack.c.h.b16 %v533
      %v563 = vunpack.c.l.b16 %v534
      %v564 = vunpack.c.h.b16 %v534
      %v565 = vunpack.c.l.b16 %v535
      %v566 = vunpack.c.h.b16 %v535
      %v567 = vunpack.c.l.b16 %v536
      %v568 = vunpack.c.h.b16 %v536
      %v569 = vunpack.c.l.b16 %v537
      %v570 = vunpack.c.h.b16 %v537
      %v571 = vunpack.c.l.b16 %v538
      %v572 = vunpack.c.h.b16 %v538
      %v573 = vunpack.c.l.b16 %v539
      %v574 = vunpack.c.h.b16 %v539
      %v575 = vunpack.c.l.b16 %v540
      %v576 = vunpack.c.h.b16 %v540
      %v577 = vpack.c.b16 %v553, %v553
      %v578 = vpack.c.b16 %v554, %v554
      %v579 = vpack.c.b16 %v555, %v555
      %v580 = vpack.c.b16 %v556, %v556
      %v581 = vpack.c.b16 %v557, %v557
      %v582 = vpack.c.b16 %v558, %v558
      %v583 = vpack.c.b16 %v559, %v559
      %v584 = vpack.c.b16 %v560, %v560
      %v585 = vpack.c.b16 %v561, %v561
      %v586 = vpack.c.b16 %v562, %v562
      %v587 = vpack.c.b16 %v563, %v563
      %v588 = vpack.c.b16 %v564, %v564
      %v589 = vpack.c.b16 %v565, %v565
      %v590 = vpack.c.b16 %v566, %v566
      %v591 = vpack.c.b16 %v567, %v567
      %v592 = vpack.c.b16 %v568, %v568
      %v593 = vpack.c.b16 %v569, %v569
      %v594 = vpack.c.b16 %v570, %v570
      %v595 = vpack.c.b16 %v571, %v571
      %v596 = vpack.c.b16 %v572, %v572
      %v597 = vpack.c.b16 %v573, %v573
      %v598 = vpack.c.b16 %v574, %v574
      %v599 = vpack.c.b16 %v575, %v575
      %v600 = vpack.c.b16 %v576, %v576
      %vm625 = vcmask 257024
      %626 = vst.msk [vmem:[%s3] sm:$0xf] %vm625, %v577
      %627 = vst.msk [vmem:[%s3 + $0x4] sm:$0xf] %vm625, %v578
      %628 = vst.msk [vmem:[%s3 + $0x8] sm:$0xf] %vm625, %v579
      %629 = vst.msk [vmem:[%s3 + $0xc] sm:$0xf] %vm625, %v580
      %630 = vst.msk [vmem:[%s3 + $0x10] sm:$0xf] %vm625, %v581
      %631 = vst.msk [vmem:[%s3 + $0x14] sm:$0xf] %vm625, %v582
      %632 = vst.msk [vmem:[%s3 + $0x18] sm:$0xf] %vm625, %v583
      %633 = vst.msk [vmem:[%s3 + $0x1c] sm:$0xf] %vm625, %v584
      %634 = vst.msk [vmem:[%s3 + $0x20] sm:$0xf] %vm625, %v585
      %635 = vst.msk [vmem:[%s3 + $0x24] sm:$0xf] %vm625, %v586
      %636 = vst.msk [vmem:[%s3 + $0x28] sm:$0xf] %vm625, %v587
      %637 = vst.msk [vmem:[%s3 + $0x2c] sm:$0xf] %vm625, %v588
      %638 = vst.msk [vmem:[%s3 + $0x30] sm:$0xf] %vm625, %v589
      %639 = vst.msk [vmem:[%s3 + $0x34] sm:$0xf] %vm625, %v590
      %640 = vst.msk [vmem:[%s3 + $0x38] sm:$0xf] %vm625, %v591
      %641 = vst.msk [vmem:[%s3 + $0x3c] sm:$0xf] %vm625, %v592
      %642 = vst.msk [vmem:[%s3 + $0x40] sm:$0xf] %vm625, %v593
      %643 = vst.msk [vmem:[%s3 + $0x44] sm:$0xf] %vm625, %v594
      %644 = vst.msk [vmem:[%s3 + $0x48] sm:$0xf] %vm625, %v595
      %645 = vst.msk [vmem:[%s3 + $0x4c] sm:$0xf] %vm625, %v596
      %646 = vst.msk [vmem:[%s3 + $0x50] sm:$0xf] %vm625, %v597
      %647 = vst.msk [vmem:[%s3 + $0x54] sm:$0xf] %vm625, %v598
      %648 = vst.msk [vmem:[%s3 + $0x58] sm:$0xf] %vm625, %v599
      %649 = vst.msk [vmem:[%s3 + $0x5c] sm:$0xf] %vm625, %v600
    $region29: #{discriminator_p_forward.6} parent=1 // pred_fallthru
      _
    // Predicated region
    $region30: #{discriminator_p_forward.6} parent=1 // pred_check
      _
    $region31: #{discriminator_p_forward.6} parent=1 // pred_check_branch
      %651 = sbr.rel (0) target = $region33
    $region32: #{discriminator_p_forward.6} parent=1 // pred_region
      _
    $region33: #{discriminator_p_forward.6} parent=1 // pred_fallthru
      _
    // Predicated region
    $region34: #{discriminator_p_forward.6} parent=1 // pred_check
      _
    $region35: #{discriminator_p_forward.6} parent=1 // pred_check_branch
      %653 = sbr.rel (0) target = $region37
    $region36: #{discriminator_p_forward.6} parent=1 // pred_region
      _
    $region37: #{discriminator_p_forward.6} parent=1 // pred_fallthru
      _
    %654 = vsyncpa [#allocation4], 1
    %655 = vsyncpa [#allocation6], 1

// kernel: discriminator_p_forward.7
$region0: #{discriminator_p_forward.7}
  #allocation0 [shape = 'u32[]', space=smem, size = 0x4, offset = 0x4, fixed_abs, tag = 'smem constant byte address 0x4 - core index']
  #allocation1 [shape = 'u32[144,128]{1,0:T(1,128)}', space=vmem, size = 0x12000, scoped, tag = 'internal scratch']
  #allocation2 [shape = 'f32[6,16,128]{2,1,0:T(8,128)}', space=vmem, size = 0xc000, scoped, tag = 'scratch operand']
  %s0 = inlined_call_operand.vmem [shape: bf16[1,6,16,160], index: 0, kind: input, shape index: {}]
  %s1 = inlined_call_operand.hbm [shape: bf16[1,160,128], index: 1, kind: input, shape index: {}]
  %s2 = inlined_call_operand.hbm [shape: f32[1,128], index: 2, kind: input, shape index: {}]
  %s3 = inlined_call_operand.vmem [shape: bf16[6,16,128], index: 3, kind: output, shape index: {}]
  %s4 = sld [smem:[#allocation0]]
  $region38: #{discriminator_p_forward.7} parent=0
    _
  %s6 = ssub.s32 1, %s4
  %s7 = scalar_select 0, %s6, %s4
  $region1: #{discriminator_p_forward.7} parent=0
    #allocation3 [shape = 'u8[40960]{0}', space=vmem, size = 0xa000, scoped, tag = 'input window, operand 1, single buffered']
    #allocation4 [shape = 's32[1]{0}', space=sflag, size = 0x4, scoped, tag = 'scoped memory for discriminator_p_forward.7']
    #allocation5 [shape = 'u8[512]{0}', space=vmem, size = 0x400, scoped, tag = 'input window, operand 2, single buffered']
    #allocation6 [shape = 's32[1]{0}', space=sflag, size = 0x4, scoped, tag = 'scoped memory for discriminator_p_forward.7']
    %8 = vsyncpa [#allocation4], 0
    %9 = vsyncpa [#allocation6], 0
    // Predicated region
    $region2: #{discriminator_p_forward.7} parent=1 // pred_check
      _
    $region3: #{discriminator_p_forward.7} parent=1 // pred_check_branch
      %11 = sbr.rel (0) target = $region5
    $region4: #{discriminator_p_forward.7} parent=1 // pred_region
      _
    $region5: #{discriminator_p_forward.7} parent=1 // pred_fallthru
      _
    // Predicated region
    $region6: #{discriminator_p_forward.7} parent=1 // pred_check
      _
    $region7: #{discriminator_p_forward.7} parent=1 // pred_check_branch
      %13 = sbr.rel (0) target = $region9
    $region8: #{discriminator_p_forward.7} parent=1 // pred_region
      %s15 = ssub.s32 1280, 1280
      %16 = vsyncadd [#allocation4], %s15
      %s17 = sshll.u32 [#allocation3], 4
      %s18 = int_to_ptr.vmem [resolvable:$true] %s17
      %23 = dma.hbm_to_vmem [thread:$0]  %s1, 1280, %s18, [#allocation4], 64, 64, 4
    $region9: #{discriminator_p_forward.7} parent=1 // pred_fallthru
      _
    // Predicated region
    $region10: #{discriminator_p_forward.7} parent=1 // pred_check
      _
    $region11: #{discriminator_p_forward.7} parent=1 // pred_check_branch
      %25 = sbr.rel (0) target = $region13
    $region12: #{discriminator_p_forward.7} parent=1 // pred_region
      %s27 = ssub.s32 16, 16
      %28 = vsyncadd [#allocation6], %s27
      %s30 = sshll.u32 [#allocation5], 4
      %s31 = int_to_ptr.vmem [resolvable:$true] %s30
      %33 = dma.hbm_to_vmem [thread:$0]  %s2, 16, %s31, [#allocation6]
    $region13: #{discriminator_p_forward.7} parent=1 // pred_fallthru
      _
    // Predicated region
    $region14: #{discriminator_p_forward.7} parent=1 // pred_check
      _
    $region15: #{discriminator_p_forward.7} parent=1 // pred_check_branch
      %35 = sbr.rel (0) target = $region17
    $region16: #{discriminator_p_forward.7} parent=1 // pred_region
      %36 = dma.done [#allocation4], 1280
    $region17: #{discriminator_p_forward.7} parent=1 // pred_fallthru
      _
    // Predicated region
    $region18: #{discriminator_p_forward.7} parent=1 // pred_check
      _
    $region19: #{discriminator_p_forward.7} parent=1 // pred_check_branch
      %38 = sbr.rel (0) target = $region21
    $region20: #{discriminator_p_forward.7} parent=1 // pred_region
      %39 = dma.done [#allocation6], 16
    $region21: #{discriminator_p_forward.7} parent=1 // pred_fallthru
      _
    %p41 = scmp.eq.s32.totalorder 0, 0
    // Predicated region
    $region22: #{discriminator_p_forward.7} parent=1 // pred_check
      %p42 = pneg %p41
    $region23: #{discriminator_p_forward.7} parent=1 // pred_check_branch
      %44 = sbr.rel (%p42) target = $region25
    $region24: #{discriminator_p_forward.7} parent=1 // pred_region
      %45 = vst [vmem:[#allocation2] sm:$0xff] 0.0
      %46 = vst [vmem:[#allocation2 + $0x8] sm:$0xff] 0.0
      %47 = vst [vmem:[#allocation2 + $0x10] sm:$0xff] 0.0
      %48 = vst [vmem:[#allocation2 + $0x18] sm:$0xff] 0.0
      %49 = vst [vmem:[#allocation2 + $0x20] sm:$0xff] 0.0
      %50 = vst [vmem:[#allocation2 + $0x28] sm:$0xff] 0.0
      %51 = vst [vmem:[#allocation2 + $0x30] sm:$0xff] 0.0
      %52 = vst [vmem:[#allocation2 + $0x38] sm:$0xff] 0.0
      %53 = vst [vmem:[#allocation2 + $0x40] sm:$0xff] 0.0
      %54 = vst [vmem:[#allocation2 + $0x48] sm:$0xff] 0.0
      %55 = vst [vmem:[#allocation2 + $0x50] sm:$0xff] 0.0
      %56 = vst [vmem:[#allocation2 + $0x58] sm:$0xff] 0.0
    $region25: #{discriminator_p_forward.7} parent=1 // pred_fallthru
      _
    %v57 = vld [vmem:[#allocation2] sm:$0xff]
    %v58 = vld [vmem:[#allocation2 + $0x8] sm:$0xff]
    %v59 = vld [vmem:[#allocation2 + $0x10] sm:$0xff]
    %v60 = vld [vmem:[#allocation2 + $0x18] sm:$0xff]
    %v61 = vld [vmem:[#allocation2 + $0x20] sm:$0xff]
    %v62 = vld [vmem:[#allocation2 + $0x28] sm:$0xff]
    %v63 = vld [vmem:[#allocation2 + $0x30] sm:$0xff]
    %v64 = vld [vmem:[#allocation2 + $0x38] sm:$0xff]
    %v65 = vld [vmem:[#allocation2 + $0x40] sm:$0xff]
    %v66 = vld [vmem:[#allocation2 + $0x48] sm:$0xff]
    %v67 = vld [vmem:[#allocation2 + $0x50] sm:$0xff]
    %v68 = vld [vmem:[#allocation2 + $0x58] sm:$0xff]
    %v69 = vld [vmem:[%s0] sm:$0xff]
    %v70 = vld [vmem:[%s0 + $0x8] sm:$0xff]
    %v71 = vld [vmem:[%s0 + $0x10] sm:$0xff]
    %v72 = vld [vmem:[%s0 + $0x18] sm:$0xff]
    %v73 = vld [vmem:[%s0 + $0x20] sm:$0xff]
    %v74 = vld [vmem:[%s0 + $0x28] sm:$0xff]
    %v75 = vld [vmem:[%s0 + $0x30] sm:$0xff]
    %v76 = vld [vmem:[%s0 + $0x38] sm:$0xff]
    %v77 = vld [vmem:[%s0 + $0x40] sm:$0xff]
    %v78 = vld [vmem:[%s0 + $0x48] sm:$0xff]
    %v79 = vld [vmem:[%s0 + $0x50] sm:$0xff]
    %v80 = vld [vmem:[%s0 + $0x58] sm:$0xff]
    %v81 = vld [vmem:[#allocation3] sm:$0xf]
    %v82 = vld [vmem:[#allocation3 + $0x4] sm:$0xf]
    %v83 = vld [vmem:[#allocation3 + $0x8] sm:$0xf]
    %v84 = vld [vmem:[#allocation3 + $0xc] sm:$0xf]
    %v85 = vld [vmem:[#allocation3 + $0x10] sm:$0xf]
    %v86 = vld [vmem:[#allocation3 + $0x14] sm:$0xf]
    %v87 = vld [vmem:[#allocation3 + $0x18] sm:$0xf]
    %v88 = vld [vmem:[#allocation3 + $0x1c] sm:$0xf]
    %v89 = vld [vmem:[#allocation3 + $0x20] sm:$0xf]
    %v90 = vld [vmem:[#allocation3 + $0x24] sm:$0xf]
    %v91 = vld [vmem:[#allocation3 + $0x28] sm:$0xf]
    %v92 = vld [vmem:[#allocation3 + $0x2c] sm:$0xf]
    %v93 = vld [vmem:[#allocation3 + $0x30] sm:$0xf]
    %v94 = vld [vmem:[#allocation3 + $0x34] sm:$0xf]
    %v95 = vld [vmem:[#allocation3 + $0x38] sm:$0xf]
    %v96 = vld [vmem:[#allocation3 + $0x3c] sm:$0xf]
    %v97 = vld [vmem:[#allocation3 + $0x40] sm:$0xf]
    %v98 = vld [vmem:[#allocation3 + $0x44] sm:$0xf]
    %v99 = vld [vmem:[#allocation3 + $0x48] sm:$0xf]
    %v100 = vld [vmem:[#allocation3 + $0x4c] sm:$0xf]
    %v113 = vunpack.c.l.b16 %v69
    %v114 = vunpack.c.h.b16 %v69
    %v115 = vunpack.c.l.b16 %v70
    %v116 = vunpack.c.h.b16 %v70
    %v117 = vunpack.c.l.b16 %v71
    %v118 = vunpack.c.h.b16 %v71
    %v119 = vunpack.c.l.b16 %v72
    %v120 = vunpack.c.h.b16 %v72
    %v121 = vunpack.c.l.b16 %v73
    %v122 = vunpack.c.h.b16 %v73
    %v123 = vunpack.c.l.b16 %v74
    %v124 = vunpack.c.h.b16 %v74
    %v125 = vunpack.c.l.b16 %v75
    %v126 = vunpack.c.h.b16 %v75
    %v127 = vunpack.c.l.b16 %v76
    %v128 = vunpack.c.h.b16 %v76
    %v129 = vunpack.c.l.b16 %v77
    %v130 = vunpack.c.h.b16 %v77
    %v131 = vunpack.c.l.b16 %v78
    %v132 = vunpack.c.h.b16 %v78
    %v133 = vunpack.c.l.b16 %v79
    %v134 = vunpack.c.h.b16 %v79
    %v135 = vunpack.c.l.b16 %v80
    %v136 = vunpack.c.h.b16 %v80
    %v137 = vpack.c.b16 %v115, %v113
    %v138 = vpack.c.b16 %v116, %v114
    %v139 = vpack.c.b16 %v119, %v117
    %v140 = vpack.c.b16 %v120, %v118
    %v141 = vpack.c.b16 %v123, %v121
    %v142 = vpack.c.b16 %v124, %v122
    %v143 = vpack.c.b16 %v127, %v125
    %v144 = vpack.c.b16 %v128, %v126
    %v145 = vpack.c.b16 %v131, %v129
    %v146 = vpack.c.b16 %v132, %v130
    %v147 = vpack.c.b16 %v135, %v133
    %v148 = vpack.c.b16 %v136, %v134
    %v175 = vunpack.c.l.b16 %v81
    %v176 = vunpack.c.l.b16 %v82
    %v177 = vunpack.c.l.b16 %v83
    %v178 = vunpack.c.l.b16 %v84
    %v179 = vunpack.c.l.b16 %v85
    %v180 = vunpack.c.l.b16 %v86
    %v181 = vunpack.c.l.b16 %v87
    %v182 = vunpack.c.l.b16 %v88
    %v183 = vunpack.c.l.b16 %v89
    %v184 = vunpack.c.l.b16 %v90
    %v185 = vunpack.c.l.b16 %v91
    %v186 = vunpack.c.l.b16 %v92
    %v187 = vunpack.c.l.b16 %v93
    %v188 = vunpack.c.l.b16 %v94
    %v189 = vunpack.c.l.b16 %v95
    %v190 = vunpack.c.l.b16 %v96
    %v191 = vunpack.c.l.b16 %v97
    %v192 = vunpack.c.l.b16 %v98
    %v193 = vunpack.c.l.b16 %v99
    %v194 = vunpack.c.l.b16 %v100
    %v195 = vpack.c.b16 %v176, %v175
    %v196 = vpack.c.b16 %v178, %v177
    %v197 = vpack.c.b16 %v180, %v179
    %v198 = vpack.c.b16 %v182, %v181
    %v199 = vpack.c.b16 %v184, %v183
    %v200 = vpack.c.b16 %v186, %v185
    %v201 = vpack.c.b16 %v188, %v187
    %v202 = vpack.c.b16 %v190, %v189
    %v203 = vpack.c.b16 %v192, %v191
    %v204 = vpack.c.b16 %v194, %v193
    %vm215 = vcmask 261120
    %v217 = vsel %vm215, %v138, 0
    %v220 = vsel %vm215, %v140, 0
    %v223 = vsel %vm215, %v142, 0
    %v226 = vsel %vm215, %v144, 0
    %v229 = vsel %vm215, %v146, 0
    %v232 = vsel %vm215, %v148, 0
    %234 = vmatprep.subr.bf16.mxu0 0
    %235 = vmatpush1.bf16.msra.mxu0 %v195
    %236 = vmatprep.subr.bf16.mxu0 0
    %237 = vmatpush1.bf16.msra.mxu0 %v196
    %238 = vmatprep.subr.bf16.mxu0 0
    %239 = vmatpush1.bf16.msra.mxu0 %v197
    %240 = vmatprep.subr.bf16.mxu0 0
    %241 = vmatpush1.bf16.msra.mxu0 %v198
    %242 = vmatprep.subr.bf16.mxu0 0
    %243 = vmatpush1.bf16.msra.mxu0 %v199
    %244 = vmatprep.subr.bf16.mxu0 0
    %245 = vmatpush1.bf16.msra.mxu0 %v200
    %246 = vmatprep.subr.bf16.mxu0 0
    %247 = vmatpush1.bf16.msra.mxu0 %v201
    %248 = vmatprep.subr.bf16.mxu0 0
    %249 = vmatpush1.bf16.msra.mxu0 %v202
    %250 = vmatprep.subr.bf16.mxu0 0
    %251 = vmatpush1.bf16.msra.mxu0 %v203
    %252 = vmatprep.subr.bf16.mxu0 0
    %253 = vmatpush1.bf16.msra.mxu0 %v204
    %254 = vmatprep.subr.bf16.mxu0 0
    %255 = vmatpush1.bf16.msra.mxu0 0
    %256 = vmatprep.subr.bf16.mxu0 0
    %257 = vmatpush1.bf16.msra.mxu0 0
    %258 = vmatprep.subr.bf16.mxu0 0
    %259 = vmatpush1.bf16.msra.mxu0 0
    %260 = vmatprep.subr.bf16.mxu0 0
    %261 = vmatpush1.bf16.msra.mxu0 0
    %262 = vmatprep.subr.bf16.mxu0 0
    %263 = vmatpush1.bf16.msra.mxu0 0
    %264 = vmatprep.subr.bf16.mxu0 0
    %265 = vmatpush1.bf16.msra.mxu0 0
    %266 = vmatprep.mubr.bf16.mxu0 %v217
    %267 = vmatmul.mubr.bf16.gmra.mrb[0].mxu0 %v137
    %v268 = vpop.f32.mrb[0].mxu0
    %v269 = vadd.f32 0.0, %v268
    %v270 = vpop.f32.mrb[0].mxu0
    %v271 = vpop.f32.mrb[0].mxu0
    %v272 = vadd.f32 0.0, %v271
    %v273 = vpop.f32.mrb[0].mxu0
    %274 = vmatprep.mubr.bf16.mxu0 %v220
    %275 = vmatmul.mubr.bf16.gmra.mrb[0].mxu0 %v139
    %v276 = vpop.f32.mrb[0].mxu0
    %v277 = vadd.f32 0.0, %v276
    %v278 = vpop.f32.mrb[0].mxu0
    %v279 = vpop.f32.mrb[0].mxu0
    %v280 = vadd.f32 0.0, %v279
    %v281 = vpop.f32.mrb[0].mxu0
    %282 = vmatprep.mubr.bf16.mxu0 %v223
    %283 = vmatmul.mubr.bf16.gmra.mrb[0].mxu0 %v141
    %v284 = vpop.f32.mrb[0].mxu0
    %v285 = vadd.f32 0.0, %v284
    %v286 = vpop.f32.mrb[0].mxu0
    %v287 = vpop.f32.mrb[0].mxu0
    %v288 = vadd.f32 0.0, %v287
    %v289 = vpop.f32.mrb[0].mxu0
    %290 = vmatprep.mubr.bf16.mxu0 %v226
    %291 = vmatmul.mubr.bf16.gmra.mrb[0].mxu0 %v143
    %v292 = vpop.f32.mrb[0].mxu0
    %v293 = vadd.f32 0.0, %v292
    %v294 = vpop.f32.mrb[0].mxu0
    %v295 = vpop.f32.mrb[0].mxu0
    %v296 = vadd.f32 0.0, %v295
    %v297 = vpop.f32.mrb[0].mxu0
    %298 = vmatprep.mubr.bf16.mxu0 %v229
    %299 = vmatmul.mubr.bf16.gmra.mrb[0].mxu0 %v145
    %v300 = vpop.f32.mrb[0].mxu0
    %v301 = vadd.f32 0.0, %v300
    %v302 = vpop.f32.mrb[0].mxu0
    %v303 = vpop.f32.mrb[0].mxu0
    %v304 = vadd.f32 0.0, %v303
    %v305 = vpop.f32.mrb[0].mxu0
    %306 = vmatprep.mubr.bf16.mxu0 %v232
    %307 = vmatmul.mubr.bf16.gmra.mrb[0].mxu0 %v147
    %v308 = vpop.f32.mrb[0].mxu0
    %v309 = vadd.f32 0.0, %v308
    %v310 = vpop.f32.mrb[0].mxu0
    %v311 = vpop.f32.mrb[0].mxu0
    %v312 = vadd.f32 0.0, %v311
    %v313 = vpop.f32.mrb[0].mxu0
    %314 = vdwg.mxu0
    %v315 = vadd.f32 %v57, %v269
    %v316 = vadd.f32 %v58, %v272
    %v317 = vadd.f32 %v59, %v277
    %v318 = vadd.f32 %v60, %v280
    %v319 = vadd.f32 %v61, %v285
    %v320 = vadd.f32 %v62, %v288
    %v321 = vadd.f32 %v63, %v293
    %v322 = vadd.f32 %v64, %v296
    %v323 = vadd.f32 %v65, %v301
    %v324 = vadd.f32 %v66, %v304
    %v325 = vadd.f32 %v67, %v309
    %v326 = vadd.f32 %v68, %v312
    %327 = vst [vmem:[#allocation2] sm:$0xff] %v315
    %328 = vst [vmem:[#allocation2 + $0x8] sm:$0xff] %v316
    %329 = vst [vmem:[#allocation2 + $0x10] sm:$0xff] %v317
    %330 = vst [vmem:[#allocation2 + $0x18] sm:$0xff] %v318
    %331 = vst [vmem:[#allocation2 + $0x20] sm:$0xff] %v319
    %332 = vst [vmem:[#allocation2 + $0x28] sm:$0xff] %v320
    %333 = vst [vmem:[#allocation2 + $0x30] sm:$0xff] %v321
    %334 = vst [vmem:[#allocation2 + $0x38] sm:$0xff] %v322
    %335 = vst [vmem:[#allocation2 + $0x40] sm:$0xff] %v323
    %336 = vst [vmem:[#allocation2 + $0x48] sm:$0xff] %v324
    %337 = vst [vmem:[#allocation2 + $0x50] sm:$0xff] %v325
    %338 = vst [vmem:[#allocation2 + $0x58] sm:$0xff] %v326
    // Predicated region
    $region26: #{discriminator_p_forward.7} parent=1 // pred_check
      %p339 = pneg %p41
    $region27: #{discriminator_p_forward.7} parent=1 // pred_check_branch
      %341 = sbr.rel (%p339) target = $region29
    $region28: #{discriminator_p_forward.7} parent=1 // pred_region
      %v342 = vld [vmem:[#allocation2] sm:$0xff]
      %v343 = vld [vmem:[#allocation2 + $0x8] sm:$0xff]
      %v344 = vld [vmem:[#allocation2 + $0x10] sm:$0xff]
      %v345 = vld [vmem:[#allocation2 + $0x18] sm:$0xff]
      %v346 = vld [vmem:[#allocation2 + $0x20] sm:$0xff]
      %v347 = vld [vmem:[#allocation2 + $0x28] sm:$0xff]
      %v348 = vld [vmem:[#allocation2 + $0x30] sm:$0xff]
      %v349 = vld [vmem:[#allocation2 + $0x38] sm:$0xff]
      %v350 = vld [vmem:[#allocation2 + $0x40] sm:$0xff]
      %v351 = vld [vmem:[#allocation2 + $0x48] sm:$0xff]
      %v352 = vld [vmem:[#allocation2 + $0x50] sm:$0xff]
      %v353 = vld [vmem:[#allocation2 + $0x58] sm:$0xff]
      %v354 = vld [vmem:[#allocation5] sm:$0x1]
      %v356 = vlaneseq
      %v357 = vshrl.u32 %v356, 7
      %v358 = vsub.s32 0, %v357
      %v359 = vrot.slane %v354, %v358
      %v361 = vadd.f32 %v342, %v359
      %v362 = vadd.f32 %v343, %v359
      %v363 = vadd.f32 %v344, %v359
      %v364 = vadd.f32 %v345, %v359
      %v365 = vadd.f32 %v346, %v359
      %v366 = vadd.f32 %v347, %v359
      %v367 = vadd.f32 %v348, %v359
      %v368 = vadd.f32 %v349, %v359
      %v369 = vadd.f32 %v350, %v359
      %v370 = vadd.f32 %v351, %v359
      %v371 = vadd.f32 %v352, %v359
      %v372 = vadd.f32 %v353, %v359
      %vm373 = vcmp.ge.f32.partialorder %v361, 0.0
      %vm374 = vcmp.ge.f32.partialorder %v362, 0.0
      %vm375 = vcmp.ge.f32.partialorder %v363, 0.0
      %vm376 = vcmp.ge.f32.partialorder %v364, 0.0
      %vm377 = vcmp.ge.f32.partialorder %v365, 0.0
      %vm378 = vcmp.ge.f32.partialorder %v366, 0.0
      %vm379 = vcmp.ge.f32.partialorder %v367, 0.0
      %vm380 = vcmp.ge.f32.partialorder %v368, 0.0
      %vm381 = vcmp.ge.f32.partialorder %v369, 0.0
      %vm382 = vcmp.ge.f32.partialorder %v370, 0.0
      %vm383 = vcmp.ge.f32.partialorder %v371, 0.0
      %vm384 = vcmp.ge.f32.partialorder %v372, 0.0
      %v385 = vmul.f32 %v361, 0.1
      %v386 = vmul.f32 %v362, 0.1
      %v387 = vmul.f32 %v363, 0.1
      %v388 = vmul.f32 %v364, 0.1
      %v389 = vmul.f32 %v365, 0.1
      %v390 = vmul.f32 %v366, 0.1
      %v391 = vmul.f32 %v367, 0.1
      %v392 = vmul.f32 %v368, 0.1
      %v393 = vmul.f32 %v369, 0.1
      %v394 = vmul.f32 %v370, 0.1
      %v395 = vmul.f32 %v371, 0.1
      %v396 = vmul.f32 %v372, 0.1
      %v397 = vsel %vm373, %v361, %v385
      %v398 = vsel %vm374, %v362, %v386
      %v399 = vsel %vm375, %v363, %v387
      %v400 = vsel %vm376, %v364, %v388
      %v401 = vsel %vm377, %v365, %v389
      %v402 = vsel %vm378, %v366, %v390
      %v403 = vsel %vm379, %v367, %v391
      %v404 = vsel %vm380, %v368, %v392
      %v405 = vsel %vm381, %v369, %v393
      %v406 = vsel %vm382, %v370, %v394
      %v407 = vsel %vm383, %v371, %v395
      %v408 = vsel %vm384, %v372, %v396
      %v409 = vpack.c.bf16 %v398, %v397
      %v410 = vpack.c.bf16 %v400, %v399
      %v411 = vpack.c.bf16 %v402, %v401
      %v412 = vpack.c.bf16 %v404, %v403
      %v413 = vpack.c.bf16 %v406, %v405
      %v414 = vpack.c.bf16 %v408, %v407
      %v421 = vunpack.c.l.b16 %v409
      %v422 = vunpack.c.h.b16 %v409
      %v423 = vunpack.c.l.b16 %v410
      %v424 = vunpack.c.h.b16 %v410
      %v425 = vunpack.c.l.b16 %v411
      %v426 = vunpack.c.h.b16 %v411
      %v427 = vunpack.c.l.b16 %v412
      %v428 = vunpack.c.h.b16 %v412
      %v429 = vunpack.c.l.b16 %v413
      %v430 = vunpack.c.h.b16 %v413
      %v431 = vunpack.c.l.b16 %v414
      %v432 = vunpack.c.h.b16 %v414
      %v433 = vpack.c.b16 %v421, %v421
      %v434 = vpack.c.b16 %v422, %v422
      %v435 = vpack.c.b16 %v423, %v423
      %v436 = vpack.c.b16 %v424, %v424
      %v437 = vpack.c.b16 %v425, %v425
      %v438 = vpack.c.b16 %v426, %v426
      %v439 = vpack.c.b16 %v427, %v427
      %v440 = vpack.c.b16 %v428, %v428
      %v441 = vpack.c.b16 %v429, %v429
      %v442 = vpack.c.b16 %v430, %v430
      %v443 = vpack.c.b16 %v431, %v431
      %v444 = vpack.c.b16 %v432, %v432
      %457 = vst [vmem:[%s3] sm:$0xf] %v433
      %458 = vst [vmem:[%s3 + $0x4] sm:$0xf] %v434
      %459 = vst [vmem:[%s3 + $0x8] sm:$0xf] %v435
      %460 = vst [vmem:[%s3 + $0xc] sm:$0xf] %v436
      %461 = vst [vmem:[%s3 + $0x10] sm:$0xf] %v437
      %462 = vst [vmem:[%s3 + $0x14] sm:$0xf] %v438
      %463 = vst [vmem:[%s3 + $0x18] sm:$0xf] %v439
      %464 = vst [vmem:[%s3 + $0x1c] sm:$0xf] %v440
      %465 = vst [vmem:[%s3 + $0x20] sm:$0xf] %v441
      %466 = vst [vmem:[%s3 + $0x24] sm:$0xf] %v442
      %467 = vst [vmem:[%s3 + $0x28] sm:$0xf] %v443
      %468 = vst [vmem:[%s3 + $0x2c] sm:$0xf] %v444
    $region29: #{discriminator_p_forward.7} parent=1 // pred_fallthru
      _
    // Predicated region
    $region30: #{discriminator_p_forward.7} parent=1 // pred_check
      _
    $region31: #{discriminator_p_forward.7} parent=1 // pred_check_branch
      %470 = sbr.rel (0) target = $region33
    $region32: #{discriminator_p_forward.7} parent=1 // pred_region
      _
    $region33: #{discriminator_p_forward.7} parent=1 // pred_fallthru
      _
    // Predicated region
    $region34: #{discriminator_p_forward.7} parent=1 // pred_check
      _
    $region35: #{discriminator_p_forward.7} parent=1 // pred_check_branch
      %472 = sbr.rel (0) target = $region37
    $region36: #{discriminator_p_forward.7} parent=1 // pred_region
      _
    $region37: #{discriminator_p_forward.7} parent=1 // pred_fallthru
      _
    %473 = vsyncpa [#allocation4], 1
    %474 = vsyncpa [#allocation6], 1

// kernel: discriminator_p_forward.8
$region0: #{discriminator_p_forward.8}
  #allocation0 [shape = 'u32[]', space=smem, size = 0x4, offset = 0x4, fixed_abs, tag = 'smem constant byte address 0x4 - core index']
  #allocation1 [shape = 'u32[144,128]{1,0:T(1,128)}', space=vmem, size = 0x12000, scoped, tag = 'internal scratch']
  #allocation2 [shape = 'f32[6,8,512]{2,1,0:T(8,128)}', space=vmem, size = 0x18000, scoped, tag = 'scratch operand']
  %s0 = inlined_call_operand.vmem [shape: bf16[5,6,8,128], index: 0, kind: input, shape index: {}]
  %s1 = inlined_call_operand.hbm [shape: bf16[5,128,512], index: 1, kind: input, shape index: {}]
  %s2 = inlined_call_operand.hbm [shape: f32[1,512], index: 2, kind: input, shape index: {}]
  %s3 = inlined_call_operand.vmem [shape: bf16[6,8,512], index: 3, kind: output, shape index: {}]
  %s4 = sld [smem:[#allocation0]]
  $region61: #{discriminator_p_forward.8} parent=0
    _
  %s6 = ssub.s32 1, %s4
  %s7 = scalar_select 0, %s6, %s4
  $region1: #{discriminator_p_forward.8} parent=0
    #allocation3 [shape = 'u8[262144]{0}', space=vmem, size = 0x40000, scoped, tag = 'input window, operand 1']
    #allocation4 [shape = 's32[2]{0}', space=sflag, size = 0x8, scoped, tag = 'scoped memory for discriminator_p_forward.8']
    #allocation5 [shape = 'u8[2048]{0}', space=vmem, size = 0x800, scoped, tag = 'input window, operand 2, single buffered']
    #allocation6 [shape = 's32[1]{0}', space=sflag, size = 0x4, scoped, tag = 'scoped memory for discriminator_p_forward.8']
    %8 = vsyncpa [#allocation4], 0
    %s9 = scalar_lea.sflag [#allocation4], 1
    %10 = vsyncpa %s9, 0
    %11 = vsyncpa [#allocation6], 0
    loop: start=0, step=1, limit=7
    $region2: #{discriminator_p_forward.8} parent=1 // loop_pre_header
      _
    $region3: #{discriminator_p_forward.8} parent=1 // loop_header
      %s13 = sphi 0, %s17
      %p14 = scmp.ge.s32.totalorder %s13, 7
      %s20 = sphi 0, %s32
      %s21 = sphi 0, %s28
      %s22 = sphi 0, %s20
      %s23 = sphi 0, %s21
      %s24 = sphi 0, %s22
      %s25 = sphi 0, %s23
      %s37 = sphi 0, %s39
      %s40 = sphi 0, %s37
      %s41 = sphi 0, %s40
      %s57 = sphi 0, %s41
      %s63 = sphi 0, %s65
      %s66 = sphi 0, %s63
      %s67 = sphi 0, %s66
      %s83 = sphi 0, %s67
      %s87 = sphi 0, %s87
      %s89 = sphi 0, %s87
      %s90 = sphi 0, %s89
      %s104 = sphi 0, %s90
      %s110 = sphi 0, %s112
      %s113 = sphi 0, %s110
      %s114 = sphi 0, %s113
      %s130 = sphi 0, %s114
    $region4: #{discriminator_p_forward.8} parent=1 // loop_header_branch
      %16 = sbr.rel (%p14) target = $region8
    $region5: #{discriminator_p_forward.8} parent=1 // loop_body
      %s18 = ssub.s32 %s13, 1
      %s19 = ssub.s32 %s13, 2
      %s26 = sadd.s32 1, %s21
      %p27 = scmp.ge.s32.totalorder %s26, 5
      %s28 = scalar_select %p27, 0, %s26
      %s29 = sadd.s32 1, %s20
      %s30 = scalar_select %p27, %s29, %s20
      %p31 = scmp.ge.s32.totalorder %s30, 1
      %s32 = scalar_select %p31, 0, %s30
      %s33 = ssub.s32 %s21, %s28
      %s34 = ssub.s32 %s20, %s32
      %s35 = sor.u32 %s33, %s34
      %p36 = scmp.eq.s32.totalorder %s35, 0
      %s38 = sadd.s32 %s37, 1
      %s39 = scalar_select %p36, %s37, %s38
      %p42 = pneg %p36
      %p43 = scmp.eq.s32.totalorder %s13, 4
      %p44 = por %p42, %p43
      %p45 = scmp.ne.s32.totalorder %s37, %s40
      %p46 = scmp.eq.s32.totalorder %s13, 0
      %p47 = por %p45, %p46
      %p48 = scmp.ne.s32.totalorder %s37, %s40
      %p49 = scmp.eq.s32.totalorder %s18, 4
      %p50 = por %p48, %p49
      %p51 = scmp.ne.s32.totalorder %s40, %s41
      %p52 = scmp.eq.s32.totalorder %s18, 0
      %p53 = por %p51, %p52
      %p54 = scmp.ne.s32.totalorder %s40, %s41
      %p55 = scmp.eq.s32.totalorder %s19, 4
      %p56 = por %p54, %p55
      %p58 = scmp.ne.s32.totalorder %s41, %s57
      %p59 = scmp.eq.s32.totalorder %s19, 0
      %p60 = por %p58, %p59
      %s61 = ssub.s32 %s21, %s28
      %p62 = scmp.eq.s32.totalorder %s61, 0
      %s64 = sadd.s32 %s63, 1
      %s65 = scalar_select %p62, %s63, %s64
      %p68 = pneg %p62
      %p69 = scmp.eq.s32.totalorder %s13, 4
      %p70 = por %p68, %p69
      %p71 = scmp.ne.s32.totalorder %s63, %s66
      %p72 = scmp.eq.s32.totalorder %s13, 0
      %p73 = por %p71, %p72
      %p74 = scmp.ne.s32.totalorder %s63, %s66
      %p75 = scmp.eq.s32.totalorder %s18, 4
      %p76 = por %p74, %p75
      %p77 = scmp.ne.s32.totalorder %s66, %s67
      %p78 = scmp.eq.s32.totalorder %s18, 0
      %p79 = por %p77, %p78
      %p80 = scmp.ne.s32.totalorder %s66, %s67
      %p81 = scmp.eq.s32.totalorder %s19, 4
      %p82 = por %p80, %p81
      %p84 = scmp.ne.s32.totalorder %s67, %s83
      %p85 = scmp.eq.s32.totalorder %s19, 0
      %p86 = por %p84, %p85
      %s88 = sadd.s32 %s87, 1
      %p91 = scmp.eq.s32.totalorder %s13, 4
      %p92 = scmp.ne.s32.totalorder %s87, %s89
      %p93 = scmp.eq.s32.totalorder %s13, 0
      %p94 = por %p92, %p93
      %p95 = scmp.ne.s32.totalorder %s87, %s89
      %p96 = scmp.eq.s32.totalorder %s18, 4
      %p97 = por %p95, %p96
      %p98 = scmp.ne.s32.totalorder %s89, %s90
      %p99 = scmp.eq.s32.totalorder %s18, 0
      %p100 = por %p98, %p99
      %p101 = scmp.ne.s32.totalorder %s89, %s90
      %p102 = scmp.eq.s32.totalorder %s19, 4
      %p103 = por %p101, %p102
      %p105 = scmp.ne.s32.totalorder %s90, %s104
      %p106 = scmp.eq.s32.totalorder %s19, 0
      %p107 = por %p105, %p106
      %s108 = ssub.s32 %s20, %s32
      %p109 = scmp.eq.s32.totalorder %s108, 0
      %s111 = sadd.s32 %s110, 1
      %s112 = scalar_select %p109, %s110, %s111
      %p115 = pneg %p109
      %p116 = scmp.eq.s32.totalorder %s13, 4
      %p117 = por %p115, %p116
      %p118 = scmp.ne.s32.totalorder %s110, %s113
      %p119 = scmp.eq.s32.totalorder %s13, 0
      %p120 = por %p118, %p119
      %p121 = scmp.ne.s32.totalorder %s110, %s113
      %p122 = scmp.eq.s32.totalorder %s18, 4
      %p123 = por %p121, %p122
      %p124 = scmp.ne.s32.totalorder %s113, %s114
      %p125 = scmp.eq.s32.totalorder %s18, 0
      %p126 = por %p124, %p125
      %p127 = scmp.ne.s32.totalorder %s113, %s114
      %p128 = scmp.eq.s32.totalorder %s19, 4
      %p129 = por %p127, %p128
      %p131 = scmp.ne.s32.totalorder %s114, %s130
      %p132 = scmp.eq.s32.totalorder %s19, 0
      %p133 = por %p131, %p132
      %p134 = scmp.le.s32.totalorder 1, %s13
      %p135 = scmp.lt.s32.totalorder %s13, 6
      %p136 = pnand %p134, %p135
      %p137 = pneg %p136
      // Predicated region
      $region9: #{discriminator_p_forward.8} parent=5 // pred_check
        _
      $region10: #{discriminator_p_forward.8} parent=5 // pred_check_branch
        %139 = sbr.rel (%p136) target = $region12
      $region11: #{discriminator_p_forward.8} parent=5 // pred_region
        %s140 = ssub.s32 %s13, 1
        // Predicated region
        $region13: #{discriminator_p_forward.8} parent=11 // pred_check
          %p141 = pneg %p100
        $region14: #{discriminator_p_forward.8} parent=11 // pred_check_branch
          %143 = sbr.rel (%p141) target = $region16
        $region15: #{discriminator_p_forward.8} parent=11 // pred_region
          %s145 = ssub.s32 64, 64
          %146 = vsyncadd [#allocation6], %s145
          %s148 = sshll.u32 [#allocation5], 4
          %s149 = int_to_ptr.vmem [resolvable:$true] %s148
          %151 = dma.hbm_to_vmem [thread:$0]  %s2, 64, %s149, [#allocation6]
        $region16: #{discriminator_p_forward.8} parent=11 // pred_fallthru
          _
      $region12: #{discriminator_p_forward.8} parent=5 // pred_fallthru
        _
      %p152 = scmp.lt.s32.totalorder %s13, 5
      // Predicated region
      $region17: #{discriminator_p_forward.8} parent=5 // pred_check
        %p153 = pneg %p152
      $region18: #{discriminator_p_forward.8} parent=5 // pred_check_branch
        %155 = sbr.rel (%p153) target = $region20
      $region19: #{discriminator_p_forward.8} parent=5 // pred_region
        // Predicated region
        $region21: #{discriminator_p_forward.8} parent=19 // pred_check
          %p156 = pneg %p47
        $region22: #{discriminator_p_forward.8} parent=19 // pred_check_branch
          %158 = sbr.rel (%p156) target = $region24
        $region23: #{discriminator_p_forward.8} parent=19 // pred_region
          %p159 = scmp.lt.s32.totalorder %s21, 4
          %s160 = scalar_select %p159, %s21, 4
          %p161 = scmp.lt.s32.totalorder %s20, 0
          %s162 = scalar_select %p161, %s20, 0
          %s163 = smul.addr %s160, 6
          %s164 = sadd.s32 %s162, %s163
          %s165 = smul.addr %s164, 4
          %s166 = scalar_lea.vmem %s0, %s165
        $region24: #{discriminator_p_forward.8} parent=19 // pred_fallthru
          _
        // Predicated region
        $region25: #{discriminator_p_forward.8} parent=19 // pred_check
          %p167 = pneg %p73
        $region26: #{discriminator_p_forward.8} parent=19 // pred_check_branch
          %169 = sbr.rel (%p167) target = $region28
        $region27: #{discriminator_p_forward.8} parent=19 // pred_region
          %s170 = sand.u32 %s63, 1
          %s171 = scalar_lea.sflag [#allocation4], %s170
          %s172 = sand.u32 %s63, 1
          %s173 = smul.addr %s172, 256
          %s174 = scalar_lea.vmem [#allocation3], %s173
          %s176 = ssub.s32 4096, 4096
          %177 = vsyncadd %s171, %s176
          %s178 = smul.addr %s21, 64
          %s179 = smul.addr %s178, 64
          %s180 = scalar_lea.hbm %s1, %s179
          %s181 = sshll.u32 %s174, 4
          %s182 = int_to_ptr.vmem [resolvable:$true] %s181
          %187 = dma.hbm_to_vmem [thread:$0]  %s180, 4096, %s182, %s171, 256, 256, 16
        $region28: #{discriminator_p_forward.8} parent=19 // pred_fallthru
          _
      $region20: #{discriminator_p_forward.8} parent=5 // pred_fallthru
        _
      %p188 = scmp.le.s32.totalorder 1, %s13
      %p189 = scmp.lt.s32.totalorder %s13, 6
      %p190 = pnand %p188, %p189
      %p191 = pneg %p190
      // Predicated region
      $region29: #{discriminator_p_forward.8} parent=5 // pred_check
        _
      $region30: #{discriminator_p_forward.8} parent=5 // pred_check_branch
        %193 = sbr.rel (%p190) target = $region32
      $region31: #{discriminator_p_forward.8} parent=5 // pred_region
        %s194 = ssub.s32 %s13, 1
        %s195 = sand.u32 %s66, 1
        %s196 = scalar_lea.sflag [#allocation4], %s195
        %s197 = sand.u32 %s66, 1
        %s198 = smul.addr %s197, 256
        %s199 = scalar_lea.vmem [#allocation3], %s198
        // Predicated region
        $region33: #{discriminator_p_forward.8} parent=31 // pred_check
          %p200 = pneg %p79
        $region34: #{discriminator_p_forward.8} parent=31 // pred_check_branch
          %202 = sbr.rel (%p200) target = $region36
        $region35: #{discriminator_p_forward.8} parent=31 // pred_region
          %203 = dma.done %s196, 4096
        $region36: #{discriminator_p_forward.8} parent=31 // pred_fallthru
          _
        // Predicated region
        $region37: #{discriminator_p_forward.8} parent=31 // pred_check
          %p204 = pneg %p100
        $region38: #{discriminator_p_forward.8} parent=31 // pred_check_branch
          %206 = sbr.rel (%p204) target = $region40
        $region39: #{discriminator_p_forward.8} parent=31 // pred_region
          %207 = dma.done [#allocation6], 64
        $region40: #{discriminator_p_forward.8} parent=31 // pred_fallthru
          _
        %p208 = scmp.lt.s32.totalorder %s23, 4
        %s209 = scalar_select %p208, %s23, 4
        %p210 = scmp.lt.s32.totalorder %s22, 0
        %s211 = scalar_select %p210, %s22, 0
        %s212 = smul.addr %s209, 6
        %s213 = sadd.s32 %s211, %s212
        %s214 = smul.addr %s213, 4
        %s215 = scalar_lea.vmem %s0, %s214
        %p216 = pneg %p53
        %p217 = pneg %p50
        %s218 = sand.u32 %s66, 1
        %s219 = scalar_lea.sflag [#allocation4], %s218
        %s220 = sand.u32 %s66, 1
        %s221 = smul.addr %s220, 256
        %s222 = scalar_lea.vmem [#allocation3], %s221
        %p223 = pneg %p79
        %p224 = pneg %p76
        %p225 = pneg %p100
        %p226 = pneg %p97
        %p227 = pneg %p126
        %p228 = pneg %p123
        %p229 = scmp.lt.s32.totalorder %s22, 0
        %s230 = scalar_select %p229, %s22, 0
        %s231 = smul.addr %s230, 4
        %s232 = smul.addr %s231, 4
        %s233 = scalar_lea.vmem %s3, %s232
        %p234 = scmp.lt.s32.totalorder %s23, 4
        %s235 = scalar_select %p234, %s23, 4
        %p236 = scmp.lt.s32.totalorder %s22, 0
        %s237 = scalar_select %p236, %s22, 0
        %s238 = smul.addr %s235, 6
        %s239 = sadd.s32 %s237, %s238
        %s240 = smul.addr %s239, 4
        %s241 = scalar_lea.vmem %s0, %s240
        %p242 = scmp.lt.s32.totalorder %s22, 0
        %s243 = scalar_select %p242, %s22, 0
        %s244 = smul.addr %s243, 4
        %s245 = smul.addr %s244, 4
        %s246 = scalar_lea.vmem %s3, %s245
        %p248 = scmp.eq.s32.totalorder %s23, 0
        // Predicated region
        $region41: #{discriminator_p_forward.8} parent=31 // pred_check
          %p249 = pneg %p248
        $region42: #{discriminator_p_forward.8} parent=31 // pred_check_branch
          %251 = sbr.rel (%p249) target = $region44
        $region43: #{discriminator_p_forward.8} parent=31 // pred_region
          %252 = vst [vmem:[#allocation2] sm:$0xff] 0.0
          %253 = vst [vmem:[#allocation2 + $0x8] sm:$0xff] 0.0
          %254 = vst [vmem:[#allocation2 + $0x10] sm:$0xff] 0.0
          %255 = vst [vmem:[#allocation2 + $0x18] sm:$0xff] 0.0
          %256 = vst [vmem:[#allocation2 + $0x20] sm:$0xff] 0.0
          %257 = vst [vmem:[#allocation2 + $0x28] sm:$0xff] 0.0
          %258 = vst [vmem:[#allocation2 + $0x30] sm:$0xff] 0.0
          %259 = vst [vmem:[#allocation2 + $0x38] sm:$0xff] 0.0
          %260 = vst [vmem:[#allocation2 + $0x40] sm:$0xff] 0.0
          %261 = vst [vmem:[#allocation2 + $0x48] sm:$0xff] 0.0
          %262 = vst [vmem:[#allocation2 + $0x50] sm:$0xff] 0.0
          %263 = vst [vmem:[#allocation2 + $0x58] sm:$0xff] 0.0
          %264 = vst [vmem:[#allocation2 + $0x60] sm:$0xff] 0.0
          %265 = vst [vmem:[#allocation2 + $0x68] sm:$0xff] 0.0
          %266 = vst [vmem:[#allocation2 + $0x70] sm:$0xff] 0.0
          %267 = vst [vmem:[#allocation2 + $0x78] sm:$0xff] 0.0
          %268 = vst [vmem:[#allocation2 + $0x80] sm:$0xff] 0.0
          %269 = vst [vmem:[#allocation2 + $0x88] sm:$0xff] 0.0
          %270 = vst [vmem:[#allocation2 + $0x90] sm:$0xff] 0.0
          %271 = vst [vmem:[#allocation2 + $0x98] sm:$0xff] 0.0
          %272 = vst [vmem:[#allocation2 + $0xa0] sm:$0xff] 0.0
          %273 = vst [vmem:[#allocation2 + $0xa8] sm:$0xff] 0.0
          %274 = vst [vmem:[#allocation2 + $0xb0] sm:$0xff] 0.0
          %275 = vst [vmem:[#allocation2 + $0xb8] sm:$0xff] 0.0
        $region44: #{discriminator_p_forward.8} parent=31 // pred_fallthru
          _
        %v276 = vld [vmem:[#allocation2] sm:$0xff]
        %v277 = vld [vmem:[#allocation2 + $0x8] sm:$0xff]
        %v278 = vld [vmem:[#allocation2 + $0x10] sm:$0xff]
        %v279 = vld [vmem:[#allocation2 + $0x18] sm:$0xff]
        %v280 = vld [vmem:[#allocation2 + $0x20] sm:$0xff]
        %v281 = vld [vmem:[#allocation2 + $0x28] sm:$0xff]
        %v282 = vld [vmem:[#allocation2 + $0x30] sm:$0xff]
        %v283 = vld [vmem:[#allocation2 + $0x38] sm:$0xff]
        %v284 = vld [vmem:[#allocation2 + $0x40] sm:$0xff]
        %v285 = vld [vmem:[#allocation2 + $0x48] sm:$0xff]
        %v286 = vld [vmem:[#allocation2 + $0x50] sm:$0xff]
        %v287 = vld [vmem:[#allocation2 + $0x58] sm:$0xff]
        %v288 = vld [vmem:[#allocation2 + $0x60] sm:$0xff]
        %v289 = vld [vmem:[#allocation2 + $0x68] sm:$0xff]
        %v290 = vld [vmem:[#allocation2 + $0x70] sm:$0xff]
        %v291 = vld [vmem:[#allocation2 + $0x78] sm:$0xff]
        %v292 = vld [vmem:[#allocation2 + $0x80] sm:$0xff]
        %v293 = vld [vmem:[#allocation2 + $0x88] sm:$0xff]
        %v294 = vld [vmem:[#allocation2 + $0x90] sm:$0xff]
        %v295 = vld [vmem:[#allocation2 + $0x98] sm:$0xff]
        %v296 = vld [vmem:[#allocation2 + $0xa0] sm:$0xff]
        %v297 = vld [vmem:[#allocation2 + $0xa8] sm:$0xff]
        %v298 = vld [vmem:[#allocation2 + $0xb0] sm:$0xff]
        %v299 = vld [vmem:[#allocation2 + $0xb8] sm:$0xff]
        %v300 = vld [vmem:[%s241] sm:$0xf]
        %v301 = vld [vmem:[%s241 + $0x4] sm:$0xf]
        %v302 = vld [vmem:[%s241 + $0x8] sm:$0xf]
        %v303 = vld [vmem:[%s241 + $0xc] sm:$0xf]
        %v304 = vld [vmem:[%s241 + $0x10] sm:$0xf]
        %v305 = vld [vmem:[%s241 + $0x14] sm:$0xf]
        %v306 = vld [vmem:[%s199] sm:$0xff]
        %v307 = vld [vmem:[%s199 + $0x8] sm:$0xff]
        %v308 = vld [vmem:[%s199 + $0x10] sm:$0xff]
        %v309 = vld [vmem:[%s199 + $0x18] sm:$0xff]
        %v310 = vld [vmem:[%s199 + $0x20] sm:$0xff]
        %v311 = vld [vmem:[%s199 + $0x28] sm:$0xff]
        %v312 = vld [vmem:[%s199 + $0x30] sm:$0xff]
        %v313 = vld [vmem:[%s199 + $0x38] sm:$0xff]
        %v314 = vld [vmem:[%s199 + $0x40] sm:$0xff]
        %v315 = vld [vmem:[%s199 + $0x48] sm:$0xff]
        %v316 = vld [vmem:[%s199 + $0x50] sm:$0xff]
        %v317 = vld [vmem:[%s199 + $0x58] sm:$0xff]
        %v318 = vld [vmem:[%s199 + $0x60] sm:$0xff]
        %v319 = vld [vmem:[%s199 + $0x68] sm:$0xff]
        %v320 = vld [vmem:[%s199 + $0x70] sm:$0xff]
        %v321 = vld [vmem:[%s199 + $0x78] sm:$0xff]
        %v322 = vld [vmem:[%s199 + $0x80] sm:$0xff]
        %v323 = vld [vmem:[%s199 + $0x88] sm:$0xff]
        %v324 = vld [vmem:[%s199 + $0x90] sm:$0xff]
        %v325 = vld [vmem:[%s199 + $0x98] sm:$0xff]
        %v326 = vld [vmem:[%s199 + $0xa0] sm:$0xff]
        %v327 = vld [vmem:[%s199 + $0xa8] sm:$0xff]
        %v328 = vld [vmem:[%s199 + $0xb0] sm:$0xff]
        %v329 = vld [vmem:[%s199 + $0xb8] sm:$0xff]
        %v330 = vld [vmem:[%s199 + $0xc0] sm:$0xff]
        %v331 = vld [vmem:[%s199 + $0xc8] sm:$0xff]
        %v332 = vld [vmem:[%s199 + $0xd0] sm:$0xff]
        %v333 = vld [vmem:[%s199 + $0xd8] sm:$0xff]
        %v334 = vld [vmem:[%s199 + $0xe0] sm:$0xff]
        %v335 = vld [vmem:[%s199 + $0xe8] sm:$0xff]
        %v336 = vld [vmem:[%s199 + $0xf0] sm:$0xff]
        %v337 = vld [vmem:[%s199 + $0xf8] sm:$0xff]
        %v344 = vunpack.c.l.b16 %v300
        %v345 = vunpack.c.l.b16 %v301
        %v346 = vunpack.c.l.b16 %v302
        %v347 = vunpack.c.l.b16 %v303
        %v348 = vunpack.c.l.b16 %v304
        %v349 = vunpack.c.l.b16 %v305
        %v350 = vpack.c.b16 %v345, %v344
        %v351 = vpack.c.b16 %v347, %v346
        %v352 = vpack.c.b16 %v349, %v348
        %v388 = vunpack.c.l.b16 %v306
        %v389 = vunpack.c.h.b16 %v306
        %v390 = vunpack.c.l.b16 %v307
        %v391 = vunpack.c.h.b16 %v307
        %v392 = vunpack.c.l.b16 %v308
        %v393 = vunpack.c.h.b16 %v308
        %v394 = vunpack.c.l.b16 %v309
        %v395 = vunpack.c.h.b16 %v309
        %v396 = vunpack.c.l.b16 %v310
        %v397 = vunpack.c.h.b16 %v310
        %v398 = vunpack.c.l.b16 %v311
        %v399 = vunpack.c.h.b16 %v311
        %v400 = vunpack.c.l.b16 %v312
        %v401 = vunpack.c.h.b16 %v312
        %v402 = vunpack.c.l.b16 %v313
        %v403 = vunpack.c.h.b16 %v313
        %v404 = vunpack.c.l.b16 %v314
        %v405 = vunpack.c.h.b16 %v314
        %v406 = vunpack.c.l.b16 %v315
        %v407 = vunpack.c.h.b16 %v315
        %v408 = vunpack.c.l.b16 %v316
        %v409 = vunpack.c.h.b16 %v316
        %v410 = vunpack.c.l.b16 %v317
        %v411 = vunpack.c.h.b16 %v317
        %v412 = vunpack.c.l.b16 %v318
        %v413 = vunpack.c.h.b16 %v318
        %v414 = vunpack.c.l.b16 %v319
        %v415 = vunpack.c.h.b16 %v319
        %v416 = vunpack.c.l.b16 %v320
        %v417 = vunpack.c.h.b16 %v320
        %v418 = vunpack.c.l.b16 %v321
        %v419 = vunpack.c.h.b16 %v321
        %v420 = vunpack.c.l.b16 %v322
        %v421 = vunpack.c.h.b16 %v322
        %v422 = vunpack.c.l.b16 %v323
        %v423 = vunpack.c.h.b16 %v323
        %v424 = vunpack.c.l.b16 %v324
        %v425 = vunpack.c.h.b16 %v324
        %v426 = vunpack.c.l.b16 %v325
        %v427 = vunpack.c.h.b16 %v325
        %v428 = vunpack.c.l.b16 %v326
        %v429 = vunpack.c.h.b16 %v326
        %v430 = vunpack.c.l.b16 %v327
        %v431 = vunpack.c.h.b16 %v327
        %v432 = vunpack.c.l.b16 %v328
        %v433 = vunpack.c.h.b16 %v328
        %v434 = vunpack.c.l.b16 %v329
        %v435 = vunpack.c.h.b16 %v329
        %v436 = vunpack.c.l.b16 %v330
        %v437 = vunpack.c.h.b16 %v330
        %v438 = vunpack.c.l.b16 %v331
        %v439 = vunpack.c.h.b16 %v331
        %v440 = vunpack.c.l.b16 %v332
        %v441 = vunpack.c.h.b16 %v332
        %v442 = vunpack.c.l.b16 %v333
        %v443 = vunpack.c.h.b16 %v333
        %v444 = vunpack.c.l.b16 %v334
        %v445 = vunpack.c.h.b16 %v334
        %v446 = vunpack.c.l.b16 %v335
        %v447 = vunpack.c.h.b16 %v335
        %v448 = vunpack.c.l.b16 %v336
        %v449 = vunpack.c.h.b16 %v336
        %v450 = vunpack.c.l.b16 %v337
        %v451 = vunpack.c.h.b16 %v337
        %v452 = vpack.c.b16 %v392, %v388
        %v453 = vpack.c.b16 %v393, %v389
        %v454 = vpack.c.b16 %v394, %v390
        %v455 = vpack.c.b16 %v395, %v391
        %v456 = vpack.c.b16 %v400, %v396
        %v457 = vpack.c.b16 %v401, %v397
        %v458 = vpack.c.b16 %v402, %v398
        %v459 = vpack.c.b16 %v403, %v399
        %v460 = vpack.c.b16 %v408, %v404
        %v461 = vpack.c.b16 %v409, %v405
        %v462 = vpack.c.b16 %v410, %v406
        %v463 = vpack.c.b16 %v411, %v407
        %v464 = vpack.c.b16 %v416, %v412
        %v465 = vpack.c.b16 %v417, %v413
        %v466 = vpack.c.b16 %v418, %v414
        %v467 = vpack.c.b16 %v419, %v415
        %v468 = vpack.c.b16 %v424, %v420
        %v469 = vpack.c.b16 %v425, %v421
        %v470 = vpack.c.b16 %v426, %v422
        %v471 = vpack.c.b16 %v427, %v423
        %v472 = vpack.c.b16 %v432, %v428
        %v473 = vpack.c.b16 %v433, %v429
        %v474 = vpack.c.b16 %v434, %v430
        %v475 = vpack.c.b16 %v435, %v431
        %v476 = vpack.c.b16 %v440, %v436
        %v477 = vpack.c.b16 %v441, %v437
        %v478 = vpack.c.b16 %v442, %v438
        %v479 = vpack.c.b16 %v443, %v439
        %v480 = vpack.c.b16 %v448, %v444
        %v481 = vpack.c.b16 %v449, %v445
        %v482 = vpack.c.b16 %v450, %v446
        %v483 = vpack.c.b16 %v451, %v447
        %516 = vmatprep.subr.bf16.mxu0 %v453
        %517 = vmatpush1.bf16.msra.mxu0 %v452
        %518 = vmatprep.subr.bf16.mxu0 %v457
        %519 = vmatpush1.bf16.msra.mxu0 %v456
        %520 = vmatprep.subr.bf16.mxu0 %v461
        %521 = vmatpush1.bf16.msra.mxu0 %v460
        %522 = vmatprep.subr.bf16.mxu0 %v465
        %523 = vmatpush1.bf16.msra.mxu0 %v464
        %524 = vmatprep.subr.bf16.mxu0 %v469
        %525 = vmatpush1.bf16.msra.mxu0 %v468
        %526 = vmatprep.subr.bf16.mxu0 %v473
        %527 = vmatpush1.bf16.msra.mxu0 %v472
        %528 = vmatprep.subr.bf16.mxu0 %v477
        %529 = vmatpush1.bf16.msra.mxu0 %v476
        %530 = vmatprep.subr.bf16.mxu0 %v481
        %531 = vmatpush1.bf16.msra.mxu0 %v480
        %532 = vmatprep.subr.bf16.mxu0 0
        %533 = vmatpush1.bf16.msra.mxu0 0
        %534 = vmatprep.subr.bf16.mxu0 0
        %535 = vmatpush1.bf16.msra.mxu0 0
        %536 = vmatprep.subr.bf16.mxu0 0
        %537 = vmatpush1.bf16.msra.mxu0 0
        %538 = vmatprep.subr.bf16.mxu0 0
        %539 = vmatpush1.bf16.msra.mxu0 0
        %540 = vmatprep.subr.bf16.mxu0 0
        %541 = vmatpush1.bf16.msra.mxu0 0
        %542 = vmatprep.subr.bf16.mxu0 0
        %543 = vmatpush1.bf16.msra.mxu0 0
        %544 = vmatprep.subr.bf16.mxu0 0
        %545 = vmatpush1.bf16.msra.mxu0 0
        %546 = vmatprep.subr.bf16.mxu0 0
        %547 = vmatpush1.bf16.msra.mxu0 0
        %548 = vmatprep.mubr.bf16.mxu0 0
        %549 = vmatmul.mubr.bf16.gmra.mrb[0].mxu0 %v350
        %v550 = vpop.f32.mrb[0].mxu0
        %v551 = vadd.f32 0.0, %v550
        %v552 = vpop.f32.mrb[0].mxu0
        %v553 = vadd.f32 0.0, %v552
        %v554 = vpop.f32.mrb[0].mxu0
        %v555 = vadd.f32 0.0, %v554
        %v556 = vpop.f32.mrb[0].mxu0
        %v557 = vadd.f32 0.0, %v556
        %558 = vmatprep.mubr.bf16.mxu0 0
        %559 = vmatmul.mubr.bf16.gmra.mrb[0].mxu0 %v351
        %v560 = vpop.f32.mrb[0].mxu0
        %v561 = vadd.f32 0.0, %v560
        %v562 = vpop.f32.mrb[0].mxu0
        %v563 = vadd.f32 0.0, %v562
        %v564 = vpop.f32.mrb[0].mxu0
        %v565 = vadd.f32 0.0, %v564
        %v566 = vpop.f32.mrb[0].mxu0
        %v567 = vadd.f32 0.0, %v566
        %568 = vmatprep.mubr.bf16.mxu0 0
        %569 = vmatmul.mubr.bf16.gmra.mrb[0].mxu0 %v352
        %v570 = vpop.f32.mrb[0].mxu0
        %v571 = vadd.f32 0.0, %v570
        %v572 = vpop.f32.mrb[0].mxu0
        %v573 = vadd.f32 0.0, %v572
        %v574 = vpop.f32.mrb[0].mxu0
        %v575 = vadd.f32 0.0, %v574
        %v576 = vpop.f32.mrb[0].mxu0
        %v577 = vadd.f32 0.0, %v576
        %578 = vdwg.mxu0
        %579 = vmatprep.subr.bf16.mxu0 %v455
        %580 = vmatpush1.bf16.msra.mxu0 %v454
        %581 = vmatprep.subr.bf16.mxu0 %v459
        %582 = vmatpush1.bf16.msra.mxu0 %v458
        %583 = vmatprep.subr.bf16.mxu0 %v463
        %584 = vmatpush1.bf16.msra.mxu0 %v462
        %585 = vmatprep.subr.bf16.mxu0 %v467
        %586 = vmatpush1.bf16.msra.mxu0 %v466
        %587 = vmatprep.subr.bf16.mxu0 %v471
        %588 = vmatpush1.bf16.msra.mxu0 %v470
        %589 = vmatprep.subr.bf16.mxu0 %v475
        %590 = vmatpush1.bf16.msra.mxu0 %v474
        %591 = vmatprep.subr.bf16.mxu0 %v479
        %592 = vmatpush1.bf16.msra.mxu0 %v478
        %593 = vmatprep.subr.bf16.mxu0 %v483
        %594 = vmatpush1.bf16.msra.mxu0 %v482
        %595 = vmatprep.subr.bf16.mxu0 0
        %596 = vmatpush1.bf16.msra.mxu0 0
        %597 = vmatprep.subr.bf16.mxu0 0
        %598 = vmatpush1.bf16.msra.mxu0 0
        %599 = vmatprep.subr.bf16.mxu0 0
        %600 = vmatpush1.bf16.msra.mxu0 0
        %601 = vmatprep.subr.bf16.mxu0 0
        %602 = vmatpush1.bf16.msra.mxu0 0
        %603 = vmatprep.subr.bf16.mxu0 0
        %604 = vmatpush1.bf16.msra.mxu0 0
        %605 = vmatprep.subr.bf16.mxu0 0
        %606 = vmatpush1.bf16.msra.mxu0 0
        %607 = vmatprep.subr.bf16.mxu0 0
        %608 = vmatpush1.bf16.msra.mxu0 0
        %609 = vmatprep.subr.bf16.mxu0 0
        %610 = vmatpush1.bf16.msra.mxu0 0
        %611 = vmatprep.mubr.bf16.mxu0 0
        %612 = vmatmul.mubr.bf16.gmra.mrb[0].mxu0 %v350
        %v613 = vpop.f32.mrb[0].mxu0
        %v614 = vadd.f32 0.0, %v613
        %v615 = vpop.f32.mrb[0].mxu0
        %v616 = vadd.f32 0.0, %v615
        %v617 = vpop.f32.mrb[0].mxu0
        %v618 = vadd.f32 0.0, %v617
        %v619 = vpop.f32.mrb[0].mxu0
        %v620 = vadd.f32 0.0, %v619
        %621 = vmatprep.mubr.bf16.mxu0 0
        %622 = vmatmul.mubr.bf16.gmra.mrb[0].mxu0 %v351
        %v623 = vpop.f32.mrb[0].mxu0
        %v624 = vadd.f32 0.0, %v623
        %v625 = vpop.f32.mrb[0].mxu0
        %v626 = vadd.f32 0.0, %v625
        %v627 = vpop.f32.mrb[0].mxu0
        %v628 = vadd.f32 0.0, %v627
        %v629 = vpop.f32.mrb[0].mxu0
        %v630 = vadd.f32 0.0, %v629
        %631 = vmatprep.mubr.bf16.mxu0 0
        %632 = vmatmul.mubr.bf16.gmra.mrb[0].mxu0 %v352
        %v633 = vpop.f32.mrb[0].mxu0
        %v634 = vadd.f32 0.0, %v633
        %v635 = vpop.f32.mrb[0].mxu0
        %v636 = vadd.f32 0.0, %v635
        %v637 = vpop.f32.mrb[0].mxu0
        %v638 = vadd.f32 0.0, %v637
        %v639 = vpop.f32.mrb[0].mxu0
        %v640 = vadd.f32 0.0, %v639
        %641 = vdwg.mxu0
        %v642 = vadd.f32 %v276, %v551
        %v643 = vadd.f32 %v277, %v553
        %v644 = vadd.f32 %v278, %v614
        %v645 = vadd.f32 %v279, %v616
        %v646 = vadd.f32 %v280, %v555
        %v647 = vadd.f32 %v281, %v557
        %v648 = vadd.f32 %v282, %v618
        %v649 = vadd.f32 %v283, %v620
        %v650 = vadd.f32 %v284, %v561
        %v651 = vadd.f32 %v285, %v563
        %v652 = vadd.f32 %v286, %v624
        %v653 = vadd.f32 %v287, %v626
        %v654 = vadd.f32 %v288, %v565
        %v655 = vadd.f32 %v289, %v567
        %v656 = vadd.f32 %v290, %v628
        %v657 = vadd.f32 %v291, %v630
        %v658 = vadd.f32 %v292, %v571
        %v659 = vadd.f32 %v293, %v573
        %v660 = vadd.f32 %v294, %v634
        %v661 = vadd.f32 %v295, %v636
        %v662 = vadd.f32 %v296, %v575
        %v663 = vadd.f32 %v297, %v577
        %v664 = vadd.f32 %v298, %v638
        %v665 = vadd.f32 %v299, %v640
        %666 = vst [vmem:[#allocation2] sm:$0xff] %v642
        %667 = vst [vmem:[#allocation2 + $0x8] sm:$0xff] %v643
        %668 = vst [vmem:[#allocation2 + $0x10] sm:$0xff] %v644
        %669 = vst [vmem:[#allocation2 + $0x18] sm:$0xff] %v645
        %670 = vst [vmem:[#allocation2 + $0x20] sm:$0xff] %v646
        %671 = vst [vmem:[#allocation2 + $0x28] sm:$0xff] %v647
        %672 = vst [vmem:[#allocation2 + $0x30] sm:$0xff] %v648
        %673 = vst [vmem:[#allocation2 + $0x38] sm:$0xff] %v649
        %674 = vst [vmem:[#allocation2 + $0x40] sm:$0xff] %v650
        %675 = vst [vmem:[#allocation2 + $0x48] sm:$0xff] %v651
        %676 = vst [vmem:[#allocation2 + $0x50] sm:$0xff] %v652
        %677 = vst [vmem:[#allocation2 + $0x58] sm:$0xff] %v653
        %678 = vst [vmem:[#allocation2 + $0x60] sm:$0xff] %v654
        %679 = vst [vmem:[#allocation2 + $0x68] sm:$0xff] %v655
        %680 = vst [vmem:[#allocation2 + $0x70] sm:$0xff] %v656
        %681 = vst [vmem:[#allocation2 + $0x78] sm:$0xff] %v657
        %682 = vst [vmem:[#allocation2 + $0x80] sm:$0xff] %v658
        %683 = vst [vmem:[#allocation2 + $0x88] sm:$0xff] %v659
        %684 = vst [vmem:[#allocation2 + $0x90] sm:$0xff] %v660
        %685 = vst [vmem:[#allocation2 + $0x98] sm:$0xff] %v661
        %686 = vst [vmem:[#allocation2 + $0xa0] sm:$0xff] %v662
        %687 = vst [vmem:[#allocation2 + $0xa8] sm:$0xff] %v663
        %688 = vst [vmem:[#allocation2 + $0xb0] sm:$0xff] %v664
        %689 = vst [vmem:[#allocation2 + $0xb8] sm:$0xff] %v665
        %p690 = scmp.eq.s32.totalorder %s23, 4
        // Predicated region
        $region45: #{discriminator_p_forward.8} parent=31 // pred_check
          %p691 = pneg %p690
        $region46: #{discriminator_p_forward.8} parent=31 // pred_check_branch
          %693 = sbr.rel (%p691) target = $region48
        $region47: #{discriminator_p_forward.8} parent=31 // pred_region
          %v694 = vld [vmem:[#allocation2] sm:$0xff]
          %v695 = vld [vmem:[#allocation2 + $0x8] sm:$0xff]
          %v696 = vld [vmem:[#allocation2 + $0x10] sm:$0xff]
          %v697 = vld [vmem:[#allocation2 + $0x18] sm:$0xff]
          %v698 = vld [vmem:[#allocation2 + $0x20] sm:$0xff]
          %v699 = vld [vmem:[#allocation2 + $0x28] sm:$0xff]
          %v700 = vld [vmem:[#allocation2 + $0x30] sm:$0xff]
          %v701 = vld [vmem:[#allocation2 + $0x38] sm:$0xff]
          %v702 = vld [vmem:[#allocation2 + $0x40] sm:$0xff]
          %v703 = vld [vmem:[#allocation2 + $0x48] sm:$0xff]
          %v704 = vld [vmem:[#allocation2 + $0x50] sm:$0xff]
          %v705 = vld [vmem:[#allocation2 + $0x58] sm:$0xff]
          %v706 = vld [vmem:[#allocation2 + $0x60] sm:$0xff]
          %v707 = vld [vmem:[#allocation2 + $0x68] sm:$0xff]
          %v708 = vld [vmem:[#allocation2 + $0x70] sm:$0xff]
          %v709 = vld [vmem:[#allocation2 + $0x78] sm:$0xff]
          %v710 = vld [vmem:[#allocation2 + $0x80] sm:$0xff]
          %v711 = vld [vmem:[#allocation2 + $0x88] sm:$0xff]
          %v712 = vld [vmem:[#allocation2 + $0x90] sm:$0xff]
          %v713 = vld [vmem:[#allocation2 + $0x98] sm:$0xff]
          %v714 = vld [vmem:[#allocation2 + $0xa0] sm:$0xff]
          %v715 = vld [vmem:[#allocation2 + $0xa8] sm:$0xff]
          %v716 = vld [vmem:[#allocation2 + $0xb0] sm:$0xff]
          %v717 = vld [vmem:[#allocation2 + $0xb8] sm:$0xff]
          %v718 = vld [vmem:[#allocation5] sm:$0xf]
          %v720 = vlaneseq
          %v721 = vshrl.u32 %v720, 7
          %v722 = vsub.s32 0, %v721
          %v723 = vrot.slane %v718, %v722
          %v724 = vlaneseq
          %v725 = vshrl.u32 %v724, 7
          %v726 = vsub.s32 1, %v725
          %v727 = vrot.slane %v718, %v726
          %v728 = vlaneseq
          %v729 = vshrl.u32 %v728, 7
          %v730 = vsub.s32 2, %v729
          %v731 = vrot.slane %v718, %v730
          %v732 = vlaneseq
          %v733 = vshrl.u32 %v732, 7
          %v734 = vsub.s32 3, %v733
          %v735 = vrot.slane %v718, %v734
          %v740 = vadd.f32 %v694, %v723
          %v741 = vadd.f32 %v695, %v727
          %v742 = vadd.f32 %v696, %v731
          %v743 = vadd.f32 %v697, %v735
          %v744 = vadd.f32 %v698, %v723
          %v745 = vadd.f32 %v699, %v727
          %v746 = vadd.f32 %v700, %v731
          %v747 = vadd.f32 %v701, %v735
          %v748 = vadd.f32 %v702, %v723
          %v749 = vadd.f32 %v703, %v727
          %v750 = vadd.f32 %v704, %v731
          %v751 = vadd.f32 %v705, %v735
          %v752 = vadd.f32 %v706, %v723
          %v753 = vadd.f32 %v707, %v727
          %v754 = vadd.f32 %v708, %v731
          %v755 = vadd.f32 %v709, %v735
          %v756 = vadd.f32 %v710, %v723
          %v757 = vadd.f32 %v711, %v727
          %v758 = vadd.f32 %v712, %v731
          %v759 = vadd.f32 %v713, %v735
          %v760 = vadd.f32 %v714, %v723
          %v761 = vadd.f32 %v715, %v727
          %v762 = vadd.f32 %v716, %v731
          %v763 = vadd.f32 %v717, %v735
          %vm764 = vcmp.ge.f32.partialorder %v740, 0.0
          %vm765 = vcmp.ge.f32.partialorder %v741, 0.0
          %vm766 = vcmp.ge.f32.partialorder %v742, 0.0
          %vm767 = vcmp.ge.f32.partialorder %v743, 0.0
          %vm768 = vcmp.ge.f32.partialorder %v744, 0.0
          %vm769 = vcmp.ge.f32.partialorder %v745, 0.0
          %vm770 = vcmp.ge.f32.partialorder %v746, 0.0
          %vm771 = vcmp.ge.f32.partialorder %v747, 0.0
          %vm772 = vcmp.ge.f32.partialorder %v748, 0.0
          %vm773 = vcmp.ge.f32.partialorder %v749, 0.0
          %vm774 = vcmp.ge.f32.partialorder %v750, 0.0
          %vm775 = vcmp.ge.f32.partialorder %v751, 0.0
          %vm776 = vcmp.ge.f32.partialorder %v752, 0.0
          %vm777 = vcmp.ge.f32.partialorder %v753, 0.0
          %vm778 = vcmp.ge.f32.partialorder %v754, 0.0
          %vm779 = vcmp.ge.f32.partialorder %v755, 0.0
          %vm780 = vcmp.ge.f32.partialorder %v756, 0.0
          %vm781 = vcmp.ge.f32.partialorder %v757, 0.0
          %vm782 = vcmp.ge.f32.partialorder %v758, 0.0
          %vm783 = vcmp.ge.f32.partialorder %v759, 0.0
          %vm784 = vcmp.ge.f32.partialorder %v760, 0.0
          %vm785 = vcmp.ge.f32.partialorder %v761, 0.0
          %vm786 = vcmp.ge.f32.partialorder %v762, 0.0
          %vm787 = vcmp.ge.f32.partialorder %v763, 0.0
          %v788 = vmul.f32 %v740, 0.1
          %v789 = vmul.f32 %v741, 0.1
          %v790 = vmul.f32 %v742, 0.1
          %v791 = vmul.f32 %v743, 0.1
          %v792 = vmul.f32 %v744, 0.1
          %v793 = vmul.f32 %v745, 0.1
          %v794 = vmul.f32 %v746, 0.1
          %v795 = vmul.f32 %v747, 0.1
          %v796 = vmul.f32 %v748, 0.1
          %v797 = vmul.f32 %v749, 0.1
          %v798 = vmul.f32 %v750, 0.1
          %v799 = vmul.f32 %v751, 0.1
          %v800 = vmul.f32 %v752, 0.1
          %v801 = vmul.f32 %v753, 0.1
          %v802 = vmul.f32 %v754, 0.1
          %v803 = vmul.f32 %v755, 0.1
          %v804 = vmul.f32 %v756, 0.1
          %v805 = vmul.f32 %v757, 0.1
          %v806 = vmul.f32 %v758, 0.1
          %v807 = vmul.f32 %v759, 0.1
          %v808 = vmul.f32 %v760, 0.1
          %v809 = vmul.f32 %v761, 0.1
          %v810 = vmul.f32 %v762, 0.1
          %v811 = vmul.f32 %v763, 0.1
          %v812 = vsel %vm764, %v740, %v788
          %v813 = vsel %vm765, %v741, %v789
          %v814 = vsel %vm766, %v742, %v790
          %v815 = vsel %vm767, %v743, %v791
          %v816 = vsel %vm768, %v744, %v792
          %v817 = vsel %vm769, %v745, %v793
          %v818 = vsel %vm770, %v746, %v794
          %v819 = vsel %vm771, %v747, %v795
          %v820 = vsel %vm772, %v748, %v796
          %v821 = vsel %vm773, %v749, %v797
          %v822 = vsel %vm774, %v750, %v798
          %v823 = vsel %vm775, %v751, %v799
          %v824 = vsel %vm776, %v752, %v800
          %v825 = vsel %vm777, %v753, %v801
          %v826 = vsel %vm778, %v754, %v802
          %v827 = vsel %vm779, %v755, %v803
          %v828 = vsel %vm780, %v756, %v804
          %v829 = vsel %vm781, %v757, %v805
          %v830 = vsel %vm782, %v758, %v806
          %v831 = vsel %vm783, %v759, %v807
          %v832 = vsel %vm784, %v760, %v808
          %v833 = vsel %vm785, %v761, %v809
          %v834 = vsel %vm786, %v762, %v810
          %v835 = vsel %vm787, %v763, %v811
          %v836 = vpack.c.bf16 %v812, %v812
          %v837 = vpack.c.bf16 %v813, %v813
          %v838 = vpack.c.bf16 %v814, %v814
          %v839 = vpack.c.bf16 %v815, %v815
          %v840 = vpack.c.bf16 %v816, %v816
          %v841 = vpack.c.bf16 %v817, %v817
          %v842 = vpack.c.bf16 %v818, %v818
          %v843 = vpack.c.bf16 %v819, %v819
          %v844 = vpack.c.bf16 %v820, %v820
          %v845 = vpack.c.bf16 %v821, %v821
          %v846 = vpack.c.bf16 %v822, %v822
          %v847 = vpack.c.bf16 %v823, %v823
          %v848 = vpack.c.bf16 %v824, %v824
          %v849 = vpack.c.bf16 %v825, %v825
          %v850 = vpack.c.bf16 %v826, %v826
          %v851 = vpack.c.bf16 %v827, %v827
          %v852 = vpack.c.bf16 %v828, %v828
          %v853 = vpack.c.bf16 %v829, %v829
          %v854 = vpack.c.bf16 %v830, %v830
          %v855 = vpack.c.bf16 %v831, %v831
          %v856 = vpack.c.bf16 %v832, %v832
          %v857 = vpack.c.bf16 %v833, %v833
          %v858 = vpack.c.bf16 %v834, %v834
          %v859 = vpack.c.bf16 %v835, %v835
          %v884 = vunpack.c.l.b16 %v836
          %v885 = vunpack.c.l.b16 %v837
          %v886 = vunpack.c.l.b16 %v838
          %v887 = vunpack.c.l.b16 %v839
          %v888 = vunpack.c.l.b16 %v840
          %v889 = vunpack.c.l.b16 %v841
          %v890 = vunpack.c.l.b16 %v842
          %v891 = vunpack.c.l.b16 %v843
          %v892 = vunpack.c.l.b16 %v844
          %v893 = vunpack.c.l.b16 %v845
          %v894 = vunpack.c.l.b16 %v846
          %v895 = vunpack.c.l.b16 %v847
          %v896 = vunpack.c.l.b16 %v848
          %v897 = vunpack.c.l.b16 %v849
          %v898 = vunpack.c.l.b16 %v850
          %v899 = vunpack.c.l.b16 %v851
          %v900 = vunpack.c.l.b16 %v852
          %v901 = vunpack.c.l.b16 %v853
          %v902 = vunpack.c.l.b16 %v854
          %v903 = vunpack.c.l.b16 %v855
          %v904 = vunpack.c.l.b16 %v856
          %v905 = vunpack.c.l.b16 %v857
          %v906 = vunpack.c.l.b16 %v858
          %v907 = vunpack.c.l.b16 %v859
          %v908 = vpack.c.b16 %v885, %v884
          %v909 = vpack.c.b16 %v887, %v886
          %v910 = vpack.c.b16 %v889, %v888
          %v911 = vpack.c.b16 %v891, %v890
          %v912 = vpack.c.b16 %v893, %v892
          %v913 = vpack.c.b16 %v895, %v894
          %v914 = vpack.c.b16 %v897, %v896
          %v915 = vpack.c.b16 %v899, %v898
          %v916 = vpack.c.b16 %v901, %v900
          %v917 = vpack.c.b16 %v903, %v902
          %v918 = vpack.c.b16 %v905, %v904
          %v919 = vpack.c.b16 %v907, %v906
          %932 = vst [vmem:[%s246] sm:$0xff] %v908
          %933 = vst [vmem:[%s246 + $0x8] sm:$0xff] %v909
          %934 = vst [vmem:[%s246 + $0x10] sm:$0xff] %v910
          %935 = vst [vmem:[%s246 + $0x18] sm:$0xff] %v911
          %936 = vst [vmem:[%s246 + $0x20] sm:$0xff] %v912
          %937 = vst [vmem:[%s246 + $0x28] sm:$0xff] %v913
          %938 = vst [vmem:[%s246 + $0x30] sm:$0xff] %v914
          %939 = vst [vmem:[%s246 + $0x38] sm:$0xff] %v915
          %940 = vst [vmem:[%s246 + $0x40] sm:$0xff] %v916
          %941 = vst [vmem:[%s246 + $0x48] sm:$0xff] %v917
          %942 = vst [vmem:[%s246 + $0x50] sm:$0xff] %v918
          %943 = vst [vmem:[%s246 + $0x58] sm:$0xff] %v919
        $region48: #{discriminator_p_forward.8} parent=31 // pred_fallthru
          _
        %p944 = scmp.lt.s32.totalorder %s22, 0
        %s945 = scalar_select %p944, %s22, 0
        %s946 = smul.addr %s945, 4
        %s947 = smul.addr %s946, 4
        %s948 = scalar_lea.vmem %s3, %s947
        // Predicated region
        $region49: #{discriminator_p_forward.8} parent=31 // pred_check
          %p949 = pneg %p123
        $region50: #{discriminator_p_forward.8} parent=31 // pred_check_branch
          %951 = sbr.rel (%p949) target = $region52
        $region51: #{discriminator_p_forward.8} parent=31 // pred_region
          _
        $region52: #{discriminator_p_forward.8} parent=31 // pred_fallthru
          _
        // Predicated region
        $region53: #{discriminator_p_forward.8} parent=31 // pred_check
          %p952 = pneg %p123
        $region54: #{discriminator_p_forward.8} parent=31 // pred_check_branch
          %954 = sbr.rel (%p952) target = $region56
        $region55: #{discriminator_p_forward.8} parent=31 // pred_region
          %p955 = scmp.lt.s32.totalorder %s22, 0
          %s956 = scalar_select %p955, %s22, 0
          %s957 = smul.addr %s956, 4
          %s958 = smul.addr %s957, 4
          %s959 = scalar_lea.vmem %s3, %s958
        $region56: #{discriminator_p_forward.8} parent=31 // pred_fallthru
          _
      $region32: #{discriminator_p_forward.8} parent=5 // pred_fallthru
        _
      %p960 = scmp.le.s32.totalorder 2, %s13
      // Predicated region
      $region57: #{discriminator_p_forward.8} parent=5 // pred_check
        %p961 = pneg %p960
      $region58: #{discriminator_p_forward.8} parent=5 // pred_check_branch
        %963 = sbr.rel (%p961) target = $region60
      $region59: #{discriminator_p_forward.8} parent=5 // pred_region
        %s964 = ssub.s32 %s13, 2
      $region60: #{discriminator_p_forward.8} parent=5 // pred_fallthru
        _
    $region6: #{discriminator_p_forward.8} parent=1 // loop_footer
      %s17 = sadd.s32 1, %s13
    $region7: #{discriminator_p_forward.8} parent=1 // loop_footer_branch
      %12 = sbr.rel target = $region3
    $region8: #{discriminator_p_forward.8} parent=1 // loop_exit
      _
    %965 = vsyncpa [#allocation4], 1
    %s966 = scalar_lea.sflag [#allocation4], 1
    %967 = vsyncpa %s966, 1
    %968 = vsyncpa [#allocation6], 1

// kernel: discriminator_p_forward.9
$region0: #{discriminator_p_forward.9}
  #allocation0 [shape = 'u32[]', space=smem, size = 0x4, offset = 0x4, fixed_abs, tag = 'smem constant byte address 0x4 - core index']
  #allocation1 [shape = 'u32[144,128]{1,0:T(1,128)}', space=vmem, size = 0x12000, scoped, tag = 'internal scratch']
  #allocation2 [shape = 'f32[6,8,1024]{2,1,0:T(8,128)}', space=vmem, size = 0x30000, scoped, tag = 'scratch operand']
  %s0 = inlined_call_operand.vmem [shape: bf16[5,6,8,512], index: 0, kind: input, shape index: {}]
  %s1 = inlined_call_operand.hbm [shape: bf16[5,512,1024], index: 1, kind: input, shape index: {}]
  %s2 = inlined_call_operand.hbm [shape: f32[1,1024], index: 2, kind: input, shape index: {}]
  %s3 = inlined_call_operand.vmem [shape: bf16[6,8,1024], index: 3, kind: output, shape index: {}]
  %s4 = sld [smem:[#allocation0]]
  $region61: #{discriminator_p_forward.9} parent=0
    _
  %s6 = ssub.s32 1, %s4
  %s7 = scalar_select 0, %s6, %s4
  $region1: #{discriminator_p_forward.9} parent=0
    #allocation3 [shape = 'u8[2097152]{0}', space=vmem, size = 0x200000, scoped, tag = 'input window, operand 1']
    #allocation4 [shape = 's32[2]{0}', space=sflag, size = 0x8, scoped, tag = 'scoped memory for discriminator_p_forward.9']
    #allocation5 [shape = 'u8[4096]{0}', space=vmem, size = 0x1000, scoped, tag = 'input window, operand 2, single buffered']
    #allocation6 [shape = 's32[1]{0}', space=sflag, size = 0x4, scoped, tag = 'scoped memory for discriminator_p_forward.9']
    %8 = vsyncpa [#allocation4], 0
    %s9 = scalar_lea.sflag [#allocation4], 1
    %10 = vsyncpa %s9, 0
    %11 = vsyncpa [#allocation6], 0
    loop: start=0, step=1, limit=7
    $region2: #{discriminator_p_forward.9} parent=1 // loop_pre_header
      _
    $region3: #{discriminator_p_forward.9} parent=1 // loop_header
      %s13 = sphi 0, %s17
      %p14 = scmp.ge.s32.totalorder %s13, 7
      %s20 = sphi 0, %s32
      %s21 = sphi 0, %s28
      %s22 = sphi 0, %s20
      %s23 = sphi 0, %s21
      %s24 = sphi 0, %s22
      %s25 = sphi 0, %s23
      %s37 = sphi 0, %s39
      %s40 = sphi 0, %s37
      %s41 = sphi 0, %s40
      %s57 = sphi 0, %s41
      %s63 = sphi 0, %s65
      %s66 = sphi 0, %s63
      %s67 = sphi 0, %s66
      %s83 = sphi 0, %s67
      %s87 = sphi 0, %s87
      %s89 = sphi 0, %s87
      %s90 = sphi 0, %s89
      %s104 = sphi 0, %s90
      %s110 = sphi 0, %s112
      %s113 = sphi 0, %s110
      %s114 = sphi 0, %s113
      %s130 = sphi 0, %s114
    $region4: #{discriminator_p_forward.9} parent=1 // loop_header_branch
      %16 = sbr.rel (%p14) target = $region8
    $region5: #{discriminator_p_forward.9} parent=1 // loop_body
      %s18 = ssub.s32 %s13, 1
      %s19 = ssub.s32 %s13, 2
      %s26 = sadd.s32 1, %s21
      %p27 = scmp.ge.s32.totalorder %s26, 5
      %s28 = scalar_select %p27, 0, %s26
      %s29 = sadd.s32 1, %s20
      %s30 = scalar_select %p27, %s29, %s20
      %p31 = scmp.ge.s32.totalorder %s30, 1
      %s32 = scalar_select %p31, 0, %s30
      %s33 = ssub.s32 %s21, %s28
      %s34 = ssub.s32 %s20, %s32
      %s35 = sor.u32 %s33, %s34
      %p36 = scmp.eq.s32.totalorder %s35, 0
      %s38 = sadd.s32 %s37, 1
      %s39 = scalar_select %p36, %s37, %s38
      %p42 = pneg %p36
      %p43 = scmp.eq.s32.totalorder %s13, 4
      %p44 = por %p42, %p43
      %p45 = scmp.ne.s32.totalorder %s37, %s40
      %p46 = scmp.eq.s32.totalorder %s13, 0
      %p47 = por %p45, %p46
      %p48 = scmp.ne.s32.totalorder %s37, %s40
      %p49 = scmp.eq.s32.totalorder %s18, 4
      %p50 = por %p48, %p49
      %p51 = scmp.ne.s32.totalorder %s40, %s41
      %p52 = scmp.eq.s32.totalorder %s18, 0
      %p53 = por %p51, %p52
      %p54 = scmp.ne.s32.totalorder %s40, %s41
      %p55 = scmp.eq.s32.totalorder %s19, 4
      %p56 = por %p54, %p55
      %p58 = scmp.ne.s32.totalorder %s41, %s57
      %p59 = scmp.eq.s32.totalorder %s19, 0
      %p60 = por %p58, %p59
      %s61 = ssub.s32 %s21, %s28
      %p62 = scmp.eq.s32.totalorder %s61, 0
      %s64 = sadd.s32 %s63, 1
      %s65 = scalar_select %p62, %s63, %s64
      %p68 = pneg %p62
      %p69 = scmp.eq.s32.totalorder %s13, 4
      %p70 = por %p68, %p69
      %p71 = scmp.ne.s32.totalorder %s63, %s66
      %p72 = scmp.eq.s32.totalorder %s13, 0
      %p73 = por %p71, %p72
      %p74 = scmp.ne.s32.totalorder %s63, %s66
      %p75 = scmp.eq.s32.totalorder %s18, 4
      %p76 = por %p74, %p75
      %p77 = scmp.ne.s32.totalorder %s66, %s67
      %p78 = scmp.eq.s32.totalorder %s18, 0
      %p79 = por %p77, %p78
      %p80 = scmp.ne.s32.totalorder %s66, %s67
      %p81 = scmp.eq.s32.totalorder %s19, 4
      %p82 = por %p80, %p81
      %p84 = scmp.ne.s32.totalorder %s67, %s83
      %p85 = scmp.eq.s32.totalorder %s19, 0
      %p86 = por %p84, %p85
      %s88 = sadd.s32 %s87, 1
      %p91 = scmp.eq.s32.totalorder %s13, 4
      %p92 = scmp.ne.s32.totalorder %s87, %s89
      %p93 = scmp.eq.s32.totalorder %s13, 0
      %p94 = por %p92, %p93
      %p95 = scmp.ne.s32.totalorder %s87, %s89
      %p96 = scmp.eq.s32.totalorder %s18, 4
      %p97 = por %p95, %p96
      %p98 = scmp.ne.s32.totalorder %s89, %s90
      %p99 = scmp.eq.s32.totalorder %s18, 0
      %p100 = por %p98, %p99
      %p101 = scmp.ne.s32.totalorder %s89, %s90
      %p102 = scmp.eq.s32.totalorder %s19, 4
      %p103 = por %p101, %p102
      %p105 = scmp.ne.s32.totalorder %s90, %s104
      %p106 = scmp.eq.s32.totalorder %s19, 0
      %p107 = por %p105, %p106
      %s108 = ssub.s32 %s20, %s32
      %p109 = scmp.eq.s32.totalorder %s108, 0
      %s111 = sadd.s32 %s110, 1
      %s112 = scalar_select %p109, %s110, %s111
      %p115 = pneg %p109
      %p116 = scmp.eq.s32.totalorder %s13, 4
      %p117 = por %p115, %p116
      %p118 = scmp.ne.s32.totalorder %s110, %s113
      %p119 = scmp.eq.s32.totalorder %s13, 0
      %p120 = por %p118, %p119
      %p121 = scmp.ne.s32.totalorder %s110, %s113
      %p122 = scmp.eq.s32.totalorder %s18, 4
      %p123 = por %p121, %p122
      %p124 = scmp.ne.s32.totalorder %s113, %s114
      %p125 = scmp.eq.s32.totalorder %s18, 0
      %p126 = por %p124, %p125
      %p127 = scmp.ne.s32.totalorder %s113, %s114
      %p128 = scmp.eq.s32.totalorder %s19, 4
      %p129 = por %p127, %p128
      %p131 = scmp.ne.s32.totalorder %s114, %s130
      %p132 = scmp.eq.s32.totalorder %s19, 0
      %p133 = por %p131, %p132
      %p134 = scmp.le.s32.totalorder 1, %s13
      %p135 = scmp.lt.s32.totalorder %s13, 6
      %p136 = pnand %p134, %p135
      %p137 = pneg %p136
      // Predicated region
      $region9: #{discriminator_p_forward.9} parent=5 // pred_check
        _
      $region10: #{discriminator_p_forward.9} parent=5 // pred_check_branch
        %139 = sbr.rel (%p136) target = $region12
      $region11: #{discriminator_p_forward.9} parent=5 // pred_region
        %s140 = ssub.s32 %s13, 1
        // Predicated region
        $region13: #{discriminator_p_forward.9} parent=11 // pred_check
          %p141 = pneg %p100
        $region14: #{discriminator_p_forward.9} parent=11 // pred_check_branch
          %143 = sbr.rel (%p141) target = $region16
        $region15: #{discriminator_p_forward.9} parent=11 // pred_region
          %s145 = ssub.s32 128, 128
          %146 = vsyncadd [#allocation6], %s145
          %s148 = sshll.u32 [#allocation5], 4
          %s149 = int_to_ptr.vmem [resolvable:$true] %s148
          %151 = dma.hbm_to_vmem [thread:$0]  %s2, 128, %s149, [#allocation6]
        $region16: #{discriminator_p_forward.9} parent=11 // pred_fallthru
          _
      $region12: #{discriminator_p_forward.9} parent=5 // pred_fallthru
        _
      %p152 = scmp.lt.s32.totalorder %s13, 5
      // Predicated region
      $region17: #{discriminator_p_forward.9} parent=5 // pred_check
        %p153 = pneg %p152
      $region18: #{discriminator_p_forward.9} parent=5 // pred_check_branch
        %155 = sbr.rel (%p153) target = $region20
      $region19: #{discriminator_p_forward.9} parent=5 // pred_region
        // Predicated region
        $region21: #{discriminator_p_forward.9} parent=19 // pred_check
          %p156 = pneg %p47
        $region22: #{discriminator_p_forward.9} parent=19 // pred_check_branch
          %158 = sbr.rel (%p156) target = $region24
        $region23: #{discriminator_p_forward.9} parent=19 // pred_region
          %p159 = scmp.lt.s32.totalorder %s21, 4
          %s160 = scalar_select %p159, %s21, 4
          %p161 = scmp.lt.s32.totalorder %s20, 0
          %s162 = scalar_select %p161, %s20, 0
          %s163 = smul.addr %s162, 4
          %s164 = smul.addr %s160, 24
          %s165 = sadd.s32 %s163, %s164
          %s166 = smul.addr %s165, 4
          %s167 = scalar_lea.vmem %s0, %s166
        $region24: #{discriminator_p_forward.9} parent=19 // pred_fallthru
          _
        // Predicated region
        $region25: #{discriminator_p_forward.9} parent=19 // pred_check
          %p168 = pneg %p73
        $region26: #{discriminator_p_forward.9} parent=19 // pred_check_branch
          %170 = sbr.rel (%p168) target = $region28
        $region27: #{discriminator_p_forward.9} parent=19 // pred_region
          %s171 = sand.u32 %s63, 1
          %s172 = scalar_lea.sflag [#allocation4], %s171
          %s173 = sand.u32 %s63, 1
          %s174 = smul.addr %s173, 2048
          %s175 = scalar_lea.vmem [#allocation3], %s174
          %s177 = ssub.s32 32768, 32768
          %178 = vsyncadd %s172, %s177
          %s179 = smul.addr %s21, 512
          %s180 = smul.addr %s179, 64
          %s181 = scalar_lea.hbm %s1, %s180
          %s182 = sshll.u32 %s175, 4
          %s183 = int_to_ptr.vmem [resolvable:$true] %s182
          %188 = dma.hbm_to_vmem [thread:$0]  %s181, 32768, %s183, %s172, 512, 512, 32
        $region28: #{discriminator_p_forward.9} parent=19 // pred_fallthru
          _
      $region20: #{discriminator_p_forward.9} parent=5 // pred_fallthru
        _
      %p189 = scmp.le.s32.totalorder 1, %s13
      %p190 = scmp.lt.s32.totalorder %s13, 6
      %p191 = pnand %p189, %p190
      %p192 = pneg %p191
      // Predicated region
      $region29: #{discriminator_p_forward.9} parent=5 // pred_check
        _
      $region30: #{discriminator_p_forward.9} parent=5 // pred_check_branch
        %194 = sbr.rel (%p191) target = $region32
      $region31: #{discriminator_p_forward.9} parent=5 // pred_region
        %s195 = ssub.s32 %s13, 1
        %s196 = sand.u32 %s66, 1
        %s197 = scalar_lea.sflag [#allocation4], %s196
        %s198 = sand.u32 %s66, 1
        %s199 = smul.addr %s198, 2048
        %s200 = scalar_lea.vmem [#allocation3], %s199
        // Predicated region
        $region33: #{discriminator_p_forward.9} parent=31 // pred_check
          %p201 = pneg %p79
        $region34: #{discriminator_p_forward.9} parent=31 // pred_check_branch
          %203 = sbr.rel (%p201) target = $region36
        $region35: #{discriminator_p_forward.9} parent=31 // pred_region
          %204 = dma.done %s197, 32768
        $region36: #{discriminator_p_forward.9} parent=31 // pred_fallthru
          _
        // Predicated region
        $region37: #{discriminator_p_forward.9} parent=31 // pred_check
          %p205 = pneg %p100
        $region38: #{discriminator_p_forward.9} parent=31 // pred_check_branch
          %207 = sbr.rel (%p205) target = $region40
        $region39: #{discriminator_p_forward.9} parent=31 // pred_region
          %208 = dma.done [#allocation6], 128
        $region40: #{discriminator_p_forward.9} parent=31 // pred_fallthru
          _
        %p209 = scmp.lt.s32.totalorder %s23, 4
        %s210 = scalar_select %p209, %s23, 4
        %p211 = scmp.lt.s32.totalorder %s22, 0
        %s212 = scalar_select %p211, %s22, 0
        %s213 = smul.addr %s212, 4
        %s214 = smul.addr %s210, 24
        %s215 = sadd.s32 %s213, %s214
        %s216 = smul.addr %s215, 4
        %s217 = scalar_lea.vmem %s0, %s216
        %p218 = pneg %p53
        %p219 = pneg %p50
        %s220 = sand.u32 %s66, 1
        %s221 = scalar_lea.sflag [#allocation4], %s220
        %s222 = sand.u32 %s66, 1
        %s223 = smul.addr %s222, 2048
        %s224 = scalar_lea.vmem [#allocation3], %s223
        %p225 = pneg %p79
        %p226 = pneg %p76
        %p227 = pneg %p100
        %p228 = pneg %p97
        %p229 = pneg %p126
        %p230 = pneg %p123
        %p231 = scmp.lt.s32.totalorder %s22, 0
        %s232 = scalar_select %p231, %s22, 0
        %s233 = smul.addr %s232, 8
        %s234 = smul.addr %s233, 4
        %s235 = scalar_lea.vmem %s3, %s234
        %p236 = scmp.lt.s32.totalorder %s23, 4
        %s237 = scalar_select %p236, %s23, 4
        %p238 = scmp.lt.s32.totalorder %s22, 0
        %s239 = scalar_select %p238, %s22, 0
        %s240 = smul.addr %s239, 4
        %s241 = smul.addr %s237, 24
        %s242 = sadd.s32 %s240, %s241
        %s243 = smul.addr %s242, 4
        %s244 = scalar_lea.vmem %s0, %s243
        %p245 = scmp.lt.s32.totalorder %s22, 0
        %s246 = scalar_select %p245, %s22, 0
        %s247 = smul.addr %s246, 8
        %s248 = smul.addr %s247, 4
        %s249 = scalar_lea.vmem %s3, %s248
        %p250 = scmp.eq.s32.totalorder %s23, 0
        // Predicated region
        $region41: #{discriminator_p_forward.9} parent=31 // pred_check
          %p251 = pneg %p250
        $region42: #{discriminator_p_forward.9} parent=31 // pred_check_branch
          %253 = sbr.rel (%p251) target = $region44
        $region43: #{discriminator_p_forward.9} parent=31 // pred_region
          %254 = vst [vmem:[#allocation2] sm:$0xff] 0.0
          %255 = vst [vmem:[#allocation2 + $0x8] sm:$0xff] 0.0
          %256 = vst [vmem:[#allocation2 + $0x10] sm:$0xff] 0.0
          %257 = vst [vmem:[#allocation2 + $0x18] sm:$0xff] 0.0
          %258 = vst [vmem:[#allocation2 + $0x20] sm:$0xff] 0.0
          %259 = vst [vmem:[#allocation2 + $0x28] sm:$0xff] 0.0
          %260 = vst [vmem:[#allocation2 + $0x30] sm:$0xff] 0.0
          %261 = vst [vmem:[#allocation2 + $0x38] sm:$0xff] 0.0
          %262 = vst [vmem:[#allocation2 + $0x40] sm:$0xff] 0.0
          %263 = vst [vmem:[#allocation2 + $0x48] sm:$0xff] 0.0
          %264 = vst [vmem:[#allocation2 + $0x50] sm:$0xff] 0.0
          %265 = vst [vmem:[#allocation2 + $0x58] sm:$0xff] 0.0
          %266 = vst [vmem:[#allocation2 + $0x60] sm:$0xff] 0.0
          %267 = vst [vmem:[#allocation2 + $0x68] sm:$0xff] 0.0
          %268 = vst [vmem:[#allocation2 + $0x70] sm:$0xff] 0.0
          %269 = vst [vmem:[#allocation2 + $0x78] sm:$0xff] 0.0
          %270 = vst [vmem:[#allocation2 + $0x80] sm:$0xff] 0.0
          %271 = vst [vmem:[#allocation2 + $0x88] sm:$0xff] 0.0
          %272 = vst [vmem:[#allocation2 + $0x90] sm:$0xff] 0.0
          %273 = vst [vmem:[#allocation2 + $0x98] sm:$0xff] 0.0
          %274 = vst [vmem:[#allocation2 + $0xa0] sm:$0xff] 0.0
          %275 = vst [vmem:[#allocation2 + $0xa8] sm:$0xff] 0.0
          %276 = vst [vmem:[#allocation2 + $0xb0] sm:$0xff] 0.0
          %277 = vst [vmem:[#allocation2 + $0xb8] sm:$0xff] 0.0
          %278 = vst [vmem:[#allocation2 + $0xc0] sm:$0xff] 0.0
          %279 = vst [vmem:[#allocation2 + $0xc8] sm:$0xff] 0.0
          %280 = vst [vmem:[#allocation2 + $0xd0] sm:$0xff] 0.0
          %281 = vst [vmem:[#allocation2 + $0xd8] sm:$0xff] 0.0
          %282 = vst [vmem:[#allocation2 + $0xe0] sm:$0xff] 0.0
          %283 = vst [vmem:[#allocation2 + $0xe8] sm:$0xff] 0.0
          %284 = vst [vmem:[#allocation2 + $0xf0] sm:$0xff] 0.0
          %285 = vst [vmem:[#allocation2 + $0xf8] sm:$0xff] 0.0
          %286 = vst [vmem:[#allocation2 + $0x100] sm:$0xff] 0.0
          %287 = vst [vmem:[#allocation2 + $0x108] sm:$0xff] 0.0
          %288 = vst [vmem:[#allocation2 + $0x110] sm:$0xff] 0.0
          %289 = vst [vmem:[#allocation2 + $0x118] sm:$0xff] 0.0
          %290 = vst [vmem:[#allocation2 + $0x120] sm:$0xff] 0.0
          %291 = vst [vmem:[#allocation2 + $0x128] sm:$0xff] 0.0
          %292 = vst [vmem:[#allocation2 + $0x130] sm:$0xff] 0.0
          %293 = vst [vmem:[#allocation2 + $0x138] sm:$0xff] 0.0
          %294 = vst [vmem:[#allocation2 + $0x140] sm:$0xff] 0.0
          %295 = vst [vmem:[#allocation2 + $0x148] sm:$0xff] 0.0
          %296 = vst [vmem:[#allocation2 + $0x150] sm:$0xff] 0.0
          %297 = vst [vmem:[#allocation2 + $0x158] sm:$0xff] 0.0
          %298 = vst [vmem:[#allocation2 + $0x160] sm:$0xff] 0.0
          %299 = vst [vmem:[#allocation2 + $0x168] sm:$0xff] 0.0
          %300 = vst [vmem:[#allocation2 + $0x170] sm:$0xff] 0.0
          %301 = vst [vmem:[#allocation2 + $0x178] sm:$0xff] 0.0
        $region44: #{discriminator_p_forward.9} parent=31 // pred_fallthru
          _
        %v302 = vld [vmem:[#allocation2] sm:$0xff]
        %v303 = vld [vmem:[#allocation2 + $0x8] sm:$0xff]
        %v304 = vld [vmem:[#allocation2 + $0x10] sm:$0xff]
        %v305 = vld [vmem:[#allocation2 + $0x18] sm:$0xff]
        %v306 = vld [vmem:[#allocation2 + $0x20] sm:$0xff]
        %v307 = vld [vmem:[#allocation2 + $0x28] sm:$0xff]
        %v308 = vld [vmem:[#allocation2 + $0x30] sm:$0xff]
        %v309 = vld [vmem:[#allocation2 + $0x38] sm:$0xff]
        %v310 = vld [vmem:[#allocation2 + $0x40] sm:$0xff]
        %v311 = vld [vmem:[#allocation2 + $0x48] sm:$0xff]
        %v312 = vld [vmem:[#allocation2 + $0x50] sm:$0xff]
        %v313 = vld [vmem:[#allocation2 + $0x58] sm:$0xff]
        %v314 = vld [vmem:[#allocation2 + $0x60] sm:$0xff]
        %v315 = vld [vmem:[#allocation2 + $0x68] sm:$0xff]
        %v316 = vld [vmem:[#allocation2 + $0x70] sm:$0xff]
        %v317 = vld [vmem:[#allocation2 + $0x78] sm:$0xff]
        %v318 = vld [vmem:[#allocation2 + $0x80] sm:$0xff]
        %v319 = vld [vmem:[#allocation2 + $0x88] sm:$0xff]
        %v320 = vld [vmem:[#allocation2 + $0x90] sm:$0xff]
        %v321 = vld [vmem:[#allocation2 + $0x98] sm:$0xff]
        %v322 = vld [vmem:[#allocation2 + $0xa0] sm:$0xff]
        %v323 = vld [vmem:[#allocation2 + $0xa8] sm:$0xff]
        %v324 = vld [vmem:[#allocation2 + $0xb0] sm:$0xff]
        %v325 = vld [vmem:[#allocation2 + $0xb8] sm:$0xff]
        %v326 = vld [vmem:[#allocation2 + $0xc0] sm:$0xff]
        %v327 = vld [vmem:[#allocation2 + $0xc8] sm:$0xff]
        %v328 = vld [vmem:[#allocation2 + $0xd0] sm:$0xff]
        %v329 = vld [vmem:[#allocation2 + $0xd8] sm:$0xff]
        %v330 = vld [vmem:[#allocation2 + $0xe0] sm:$0xff]
        %v331 = vld [vmem:[#allocation2 + $0xe8] sm:$0xff]
        %v332 = vld [vmem:[#allocation2 + $0xf0] sm:$0xff]
        %v333 = vld [vmem:[#allocation2 + $0xf8] sm:$0xff]
        %v334 = vld [vmem:[#allocation2 + $0x100] sm:$0xff]
        %v335 = vld [vmem:[#allocation2 + $0x108] sm:$0xff]
        %v336 = vld [vmem:[#allocation2 + $0x110] sm:$0xff]
        %v337 = vld [vmem:[#allocation2 + $0x118] sm:$0xff]
        %v338 = vld [vmem:[#allocation2 + $0x120] sm:$0xff]
        %v339 = vld [vmem:[#allocation2 + $0x128] sm:$0xff]
        %v340 = vld [vmem:[#allocation2 + $0x130] sm:$0xff]
        %v341 = vld [vmem:[#allocation2 + $0x138] sm:$0xff]
        %v342 = vld [vmem:[#allocation2 + $0x140] sm:$0xff]
        %v343 = vld [vmem:[#allocation2 + $0x148] sm:$0xff]
        %v344 = vld [vmem:[#allocation2 + $0x150] sm:$0xff]
        %v345 = vld [vmem:[#allocation2 + $0x158] sm:$0xff]
        %v346 = vld [vmem:[#allocation2 + $0x160] sm:$0xff]
        %v347 = vld [vmem:[#allocation2 + $0x168] sm:$0xff]
        %v348 = vld [vmem:[#allocation2 + $0x170] sm:$0xff]
        %v349 = vld [vmem:[#allocation2 + $0x178] sm:$0xff]
        %v350 = vld [vmem:[%s244] sm:$0xff]
        %v351 = vld [vmem:[%s244 + $0x8] sm:$0xff]
        %v352 = vld [vmem:[%s244 + $0x10] sm:$0xff]
        %v353 = vld [vmem:[%s244 + $0x18] sm:$0xff]
        %v354 = vld [vmem:[%s244 + $0x20] sm:$0xff]
        %v355 = vld [vmem:[%s244 + $0x28] sm:$0xff]
        %v356 = vld [vmem:[%s244 + $0x30] sm:$0xff]
        %v357 = vld [vmem:[%s244 + $0x38] sm:$0xff]
        %v358 = vld [vmem:[%s244 + $0x40] sm:$0xff]
        %v359 = vld [vmem:[%s244 + $0x48] sm:$0xff]
        %v360 = vld [vmem:[%s244 + $0x50] sm:$0xff]
        %v361 = vld [vmem:[%s244 + $0x58] sm:$0xff]
        %v362 = vld [vmem:[%s200] sm:$0xff]
        %v363 = vld [vmem:[%s200 + $0x8] sm:$0xff]
        %v364 = vld [vmem:[%s200 + $0x10] sm:$0xff]
        %v365 = vld [vmem:[%s200 + $0x18] sm:$0xff]
        %v366 = vld [vmem:[%s200 + $0x20] sm:$0xff]
        %v367 = vld [vmem:[%s200 + $0x28] sm:$0xff]
        %v368 = vld [vmem:[%s200 + $0x30] sm:$0xff]
        %v369 = vld [vmem:[%s200 + $0x38] sm:$0xff]
        %v370 = vld [vmem:[%s200 + $0x40] sm:$0xff]
        %v371 = vld [vmem:[%s200 + $0x48] sm:$0xff]
        %v372 = vld [vmem:[%s200 + $0x50] sm:$0xff]
        %v373 = vld [vmem:[%s200 + $0x58] sm:$0xff]
        %v374 = vld [vmem:[%s200 + $0x60] sm:$0xff]
        %v375 = vld [vmem:[%s200 + $0x68] sm:$0xff]
        %v376 = vld [vmem:[%s200 + $0x70] sm:$0xff]
        %v377 = vld [vmem:[%s200 + $0x78] sm:$0xff]
        %v378 = vld [vmem:[%s200 + $0x80] sm:$0xff]
        %v379 = vld [vmem:[%s200 + $0x88] sm:$0xff]
        %v380 = vld [vmem:[%s200 + $0x90] sm:$0xff]
        %v381 = vld [vmem:[%s200 + $0x98] sm:$0xff]
        %v382 = vld [vmem:[%s200 + $0xa0] sm:$0xff]
        %v383 = vld [vmem:[%s200 + $0xa8] sm:$0xff]
        %v384 = vld [vmem:[%s200 + $0xb0] sm:$0xff]
        %v385 = vld [vmem:[%s200 + $0xb8] sm:$0xff]
        %v386 = vld [vmem:[%s200 + $0xc0] sm:$0xff]
        %v387 = vld [vmem:[%s200 + $0xc8] sm:$0xff]
        %v388 = vld [vmem:[%s200 + $0xd0] sm:$0xff]
        %v389 = vld [vmem:[%s200 + $0xd8] sm:$0xff]
        %v390 = vld [vmem:[%s200 + $0xe0] sm:$0xff]
        %v391 = vld [vmem:[%s200 + $0xe8] sm:$0xff]
        %v392 = vld [vmem:[%s200 + $0xf0] sm:$0xff]
        %v393 = vld [vmem:[%s200 + $0xf8] sm:$0xff]
        %v394 = vld [vmem:[%s200 + $0x100] sm:$0xff]
        %v395 = vld [vmem:[%s200 + $0x108] sm:$0xff]
        %v396 = vld [vmem:[%s200 + $0x110] sm:$0xff]
        %v397 = vld [vmem:[%s200 + $0x118] sm:$0xff]
        %v398 = vld [vmem:[%s200 + $0x120] sm:$0xff]
        %v399 = vld [vmem:[%s200 + $0x128] sm:$0xff]
        %v400 = vld [vmem:[%s200 + $0x130] sm:$0xff]
        %v401 = vld [vmem:[%s200 + $0x138] sm:$0xff]
        %v402 = vld [vmem:[%s200 + $0x140] sm:$0xff]
        %v403 = vld [vmem:[%s200 + $0x148] sm:$0xff]
        %v404 = vld [vmem:[%s200 + $0x150] sm:$0xff]
        %v405 = vld [vmem:[%s200 + $0x158] sm:$0xff]
        %v406 = vld [vmem:[%s200 + $0x160] sm:$0xff]
        %v407 = vld [vmem:[%s200 + $0x168] sm:$0xff]
        %v408 = vld [vmem:[%s200 + $0x170] sm:$0xff]
        %v409 = vld [vmem:[%s200 + $0x178] sm:$0xff]
        %v410 = vld [vmem:[%s200 + $0x180] sm:$0xff]
        %v411 = vld [vmem:[%s200 + $0x188] sm:$0xff]
        %v412 = vld [vmem:[%s200 + $0x190] sm:$0xff]
        %v413 = vld [vmem:[%s200 + $0x198] sm:$0xff]
        %v414 = vld [vmem:[%s200 + $0x1a0] sm:$0xff]
        %v415 = vld [vmem:[%s200 + $0x1a8] sm:$0xff]
        %v416 = vld [vmem:[%s200 + $0x1b0] sm:$0xff]
        %v417 = vld [vmem:[%s200 + $0x1b8] sm:$0xff]
        %v418 = vld [vmem:[%s200 + $0x1c0] sm:$0xff]
        %v419 = vld [vmem:[%s200 + $0x1c8] sm:$0xff]
        %v420 = vld [vmem:[%s200 + $0x1d0] sm:$0xff]
        %v421 = vld [vmem:[%s200 + $0x1d8] sm:$0xff]
        %v422 = vld [vmem:[%s200 + $0x1e0] sm:$0xff]
        %v423 = vld [vmem:[%s200 + $0x1e8] sm:$0xff]
        %v424 = vld [vmem:[%s200 + $0x1f0] sm:$0xff]
        %v425 = vld [vmem:[%s200 + $0x1f8] sm:$0xff]
        %v426 = vld [vmem:[%s200 + $0x200] sm:$0xff]
        %v427 = vld [vmem:[%s200 + $0x208] sm:$0xff]
        %v428 = vld [vmem:[%s200 + $0x210] sm:$0xff]
        %v429 = vld [vmem:[%s200 + $0x218] sm:$0xff]
        %v430 = vld [vmem:[%s200 + $0x220] sm:$0xff]
        %v431 = vld [vmem:[%s200 + $0x228] sm:$0xff]
        %v432 = vld [vmem:[%s200 + $0x230] sm:$0xff]
        %v433 = vld [vmem:[%s200 + $0x238] sm:$0xff]
        %v434 = vld [vmem:[%s200 + $0x240] sm:$0xff]
        %v435 = vld [vmem:[%s200 + $0x248] sm:$0xff]
        %v436 = vld [vmem:[%s200 + $0x250] sm:$0xff]
        %v437 = vld [vmem:[%s200 + $0x258] sm:$0xff]
        %v438 = vld [vmem:[%s200 + $0x260] sm:$0xff]
        %v439 = vld [vmem:[%s200 + $0x268] sm:$0xff]
        %v440 = vld [vmem:[%s200 + $0x270] sm:$0xff]
        %v441 = vld [vmem:[%s200 + $0x278] sm:$0xff]
        %v442 = vld [vmem:[%s200 + $0x280] sm:$0xff]
        %v443 = vld [vmem:[%s200 + $0x288] sm:$0xff]
        %v444 = vld [vmem:[%s200 + $0x290] sm:$0xff]
        %v445 = vld [vmem:[%s200 + $0x298] sm:$0xff]
        %v446 = vld [vmem:[%s200 + $0x2a0] sm:$0xff]
        %v447 = vld [vmem:[%s200 + $0x2a8] sm:$0xff]
        %v448 = vld [vmem:[%s200 + $0x2b0] sm:$0xff]
        %v449 = vld [vmem:[%s200 + $0x2b8] sm:$0xff]
        %v450 = vld [vmem:[%s200 + $0x2c0] sm:$0xff]
        %v451 = vld [vmem:[%s200 + $0x2c8] sm:$0xff]
        %v452 = vld [vmem:[%s200 + $0x2d0] sm:$0xff]
        %v453 = vld [vmem:[%s200 + $0x2d8] sm:$0xff]
        %v454 = vld [vmem:[%s200 + $0x2e0] sm:$0xff]
        %v455 = vld [vmem:[%s200 + $0x2e8] sm:$0xff]
        %v456 = vld [vmem:[%s200 + $0x2f0] sm:$0xff]
        %v457 = vld [vmem:[%s200 + $0x2f8] sm:$0xff]
        %v458 = vld [vmem:[%s200 + $0x300] sm:$0xff]
        %v459 = vld [vmem:[%s200 + $0x308] sm:$0xff]
        %v460 = vld [vmem:[%s200 + $0x310] sm:$0xff]
        %v461 = vld [vmem:[%s200 + $0x318] sm:$0xff]
        %v462 = vld [vmem:[%s200 + $0x320] sm:$0xff]
        %v463 = vld [vmem:[%s200 + $0x328] sm:$0xff]
        %v464 = vld [vmem:[%s200 + $0x330] sm:$0xff]
        %v465 = vld [vmem:[%s200 + $0x338] sm:$0xff]
        %v466 = vld [vmem:[%s200 + $0x340] sm:$0xff]
        %v467 = vld [vmem:[%s200 + $0x348] sm:$0xff]
        %v468 = vld [vmem:[%s200 + $0x350] sm:$0xff]
        %v469 = vld [vmem:[%s200 + $0x358] sm:$0xff]
        %v470 = vld [vmem:[%s200 + $0x360] sm:$0xff]
        %v471 = vld [vmem:[%s200 + $0x368] sm:$0xff]
        %v472 = vld [vmem:[%s200 + $0x370] sm:$0xff]
        %v473 = vld [vmem:[%s200 + $0x378] sm:$0xff]
        %v474 = vld [vmem:[%s200 + $0x380] sm:$0xff]
        %v475 = vld [vmem:[%s200 + $0x388] sm:$0xff]
        %v476 = vld [vmem:[%s200 + $0x390] sm:$0xff]
        %v477 = vld [vmem:[%s200 + $0x398] sm:$0xff]
        %v478 = vld [vmem:[%s200 + $0x3a0] sm:$0xff]
        %v479 = vld [vmem:[%s200 + $0x3a8] sm:$0xff]
        %v480 = vld [vmem:[%s200 + $0x3b0] sm:$0xff]
        %v481 = vld [vmem:[%s200 + $0x3b8] sm:$0xff]
        %v482 = vld [vmem:[%s200 + $0x3c0] sm:$0xff]
        %v483 = vld [vmem:[%s200 + $0x3c8] sm:$0xff]
        %v484 = vld [vmem:[%s200 + $0x3d0] sm:$0xff]
        %v485 = vld [vmem:[%s200 + $0x3d8] sm:$0xff]
        %v486 = vld [vmem:[%s200 + $0x3e0] sm:$0xff]
        %v487 = vld [vmem:[%s200 + $0x3e8] sm:$0xff]
        %v488 = vld [vmem:[%s200 + $0x3f0] sm:$0xff]
        %v489 = vld [vmem:[%s200 + $0x3f8] sm:$0xff]
        %v490 = vld [vmem:[%s200 + $0x400] sm:$0xff]
        %v491 = vld [vmem:[%s200 + $0x408] sm:$0xff]
        %v492 = vld [vmem:[%s200 + $0x410] sm:$0xff]
        %v493 = vld [vmem:[%s200 + $0x418] sm:$0xff]
        %v494 = vld [vmem:[%s200 + $0x420] sm:$0xff]
        %v495 = vld [vmem:[%s200 + $0x428] sm:$0xff]
        %v496 = vld [vmem:[%s200 + $0x430] sm:$0xff]
        %v497 = vld [vmem:[%s200 + $0x438] sm:$0xff]
        %v498 = vld [vmem:[%s200 + $0x440] sm:$0xff]
        %v499 = vld [vmem:[%s200 + $0x448] sm:$0xff]
        %v500 = vld [vmem:[%s200 + $0x450] sm:$0xff]
        %v501 = vld [vmem:[%s200 + $0x458] sm:$0xff]
        %v502 = vld [vmem:[%s200 + $0x460] sm:$0xff]
        %v503 = vld [vmem:[%s200 + $0x468] sm:$0xff]
        %v504 = vld [vmem:[%s200 + $0x470] sm:$0xff]
        %v505 = vld [vmem:[%s200 + $0x478] sm:$0xff]
        %v506 = vld [vmem:[%s200 + $0x480] sm:$0xff]
        %v507 = vld [vmem:[%s200 + $0x488] sm:$0xff]
        %v508 = vld [vmem:[%s200 + $0x490] sm:$0xff]
        %v509 = vld [vmem:[%s200 + $0x498] sm:$0xff]
        %v510 = vld [vmem:[%s200 + $0x4a0] sm:$0xff]
        %v511 = vld [vmem:[%s200 + $0x4a8] sm:$0xff]
        %v512 = vld [vmem:[%s200 + $0x4b0] sm:$0xff]
        %v513 = vld [vmem:[%s200 + $0x4b8] sm:$0xff]
        %v514 = vld [vmem:[%s200 + $0x4c0] sm:$0xff]
        %v515 = vld [vmem:[%s200 + $0x4c8] sm:$0xff]
        %v516 = vld [vmem:[%s200 + $0x4d0] sm:$0xff]
        %v517 = vld [vmem:[%s200 + $0x4d8] sm:$0xff]
        %v518 = vld [vmem:[%s200 + $0x4e0] sm:$0xff]
        %v519 = vld [vmem:[%s200 + $0x4e8] sm:$0xff]
        %v520 = vld [vmem:[%s200 + $0x4f0] sm:$0xff]
        %v521 = vld [vmem:[%s200 + $0x4f8] sm:$0xff]
        %v522 = vld [vmem:[%s200 + $0x500] sm:$0xff]
        %v523 = vld [vmem:[%s200 + $0x508] sm:$0xff]
        %v524 = vld [vmem:[%s200 + $0x510] sm:$0xff]
        %v525 = vld [vmem:[%s200 + $0x518] sm:$0xff]
        %v526 = vld [vmem:[%s200 + $0x520] sm:$0xff]
        %v527 = vld [vmem:[%s200 + $0x528] sm:$0xff]
        %v528 = vld [vmem:[%s200 + $0x530] sm:$0xff]
        %v529 = vld [vmem:[%s200 + $0x538] sm:$0xff]
        %v530 = vld [vmem:[%s200 + $0x540] sm:$0xff]
        %v531 = vld [vmem:[%s200 + $0x548] sm:$0xff]
        %v532 = vld [vmem:[%s200 + $0x550] sm:$0xff]
        %v533 = vld [vmem:[%s200 + $0x558] sm:$0xff]
        %v534 = vld [vmem:[%s200 + $0x560] sm:$0xff]
        %v535 = vld [vmem:[%s200 + $0x568] sm:$0xff]
        %v536 = vld [vmem:[%s200 + $0x570] sm:$0xff]
        %v537 = vld [vmem:[%s200 + $0x578] sm:$0xff]
        %v538 = vld [vmem:[%s200 + $0x580] sm:$0xff]
        %v539 = vld [vmem:[%s200 + $0x588] sm:$0xff]
        %v540 = vld [vmem:[%s200 + $0x590] sm:$0xff]
        %v541 = vld [vmem:[%s200 + $0x598] sm:$0xff]
        %v542 = vld [vmem:[%s200 + $0x5a0] sm:$0xff]
        %v543 = vld [vmem:[%s200 + $0x5a8] sm:$0xff]
        %v544 = vld [vmem:[%s200 + $0x5b0] sm:$0xff]
        %v545 = vld [vmem:[%s200 + $0x5b8] sm:$0xff]
        %v546 = vld [vmem:[%s200 + $0x5c0] sm:$0xff]
        %v547 = vld [vmem:[%s200 + $0x5c8] sm:$0xff]
        %v548 = vld [vmem:[%s200 + $0x5d0] sm:$0xff]
        %v549 = vld [vmem:[%s200 + $0x5d8] sm:$0xff]
        %v550 = vld [vmem:[%s200 + $0x5e0] sm:$0xff]
        %v551 = vld [vmem:[%s200 + $0x5e8] sm:$0xff]
        %v552 = vld [vmem:[%s200 + $0x5f0] sm:$0xff]
        %v553 = vld [vmem:[%s200 + $0x5f8] sm:$0xff]
        %v554 = vld [vmem:[%s200 + $0x600] sm:$0xff]
        %v555 = vld [vmem:[%s200 + $0x608] sm:$0xff]
        %v556 = vld [vmem:[%s200 + $0x610] sm:$0xff]
        %v557 = vld [vmem:[%s200 + $0x618] sm:$0xff]
        %v558 = vld [vmem:[%s200 + $0x620] sm:$0xff]
        %v559 = vld [vmem:[%s200 + $0x628] sm:$0xff]
        %v560 = vld [vmem:[%s200 + $0x630] sm:$0xff]
        %v561 = vld [vmem:[%s200 + $0x638] sm:$0xff]
        %v562 = vld [vmem:[%s200 + $0x640] sm:$0xff]
        %v563 = vld [vmem:[%s200 + $0x648] sm:$0xff]
        %v564 = vld [vmem:[%s200 + $0x650] sm:$0xff]
        %v565 = vld [vmem:[%s200 + $0x658] sm:$0xff]
        %v566 = vld [vmem:[%s200 + $0x660] sm:$0xff]
        %v567 = vld [vmem:[%s200 + $0x668] sm:$0xff]
        %v568 = vld [vmem:[%s200 + $0x670] sm:$0xff]
        %v569 = vld [vmem:[%s200 + $0x678] sm:$0xff]
        %v570 = vld [vmem:[%s200 + $0x680] sm:$0xff]
        %v571 = vld [vmem:[%s200 + $0x688] sm:$0xff]
        %v572 = vld [vmem:[%s200 + $0x690] sm:$0xff]
        %v573 = vld [vmem:[%s200 + $0x698] sm:$0xff]
        %v574 = vld [vmem:[%s200 + $0x6a0] sm:$0xff]
        %v575 = vld [vmem:[%s200 + $0x6a8] sm:$0xff]
        %v576 = vld [vmem:[%s200 + $0x6b0] sm:$0xff]
        %v577 = vld [vmem:[%s200 + $0x6b8] sm:$0xff]
        %v578 = vld [vmem:[%s200 + $0x6c0] sm:$0xff]
        %v579 = vld [vmem:[%s200 + $0x6c8] sm:$0xff]
        %v580 = vld [vmem:[%s200 + $0x6d0] sm:$0xff]
        %v581 = vld [vmem:[%s200 + $0x6d8] sm:$0xff]
        %v582 = vld [vmem:[%s200 + $0x6e0] sm:$0xff]
        %v583 = vld [vmem:[%s200 + $0x6e8] sm:$0xff]
        %v584 = vld [vmem:[%s200 + $0x6f0] sm:$0xff]
        %v585 = vld [vmem:[%s200 + $0x6f8] sm:$0xff]
        %v586 = vld [vmem:[%s200 + $0x700] sm:$0xff]
        %v587 = vld [vmem:[%s200 + $0x708] sm:$0xff]
        %v588 = vld [vmem:[%s200 + $0x710] sm:$0xff]
        %v589 = vld [vmem:[%s200 + $0x718] sm:$0xff]
        %v590 = vld [vmem:[%s200 + $0x720] sm:$0xff]
        %v591 = vld [vmem:[%s200 + $0x728] sm:$0xff]
        %v592 = vld [vmem:[%s200 + $0x730] sm:$0xff]
        %v593 = vld [vmem:[%s200 + $0x738] sm:$0xff]
        %v594 = vld [vmem:[%s200 + $0x740] sm:$0xff]
        %v595 = vld [vmem:[%s200 + $0x748] sm:$0xff]
        %v596 = vld [vmem:[%s200 + $0x750] sm:$0xff]
        %v597 = vld [vmem:[%s200 + $0x758] sm:$0xff]
        %v598 = vld [vmem:[%s200 + $0x760] sm:$0xff]
        %v599 = vld [vmem:[%s200 + $0x768] sm:$0xff]
        %v600 = vld [vmem:[%s200 + $0x770] sm:$0xff]
        %v601 = vld [vmem:[%s200 + $0x778] sm:$0xff]
        %v602 = vld [vmem:[%s200 + $0x780] sm:$0xff]
        %v603 = vld [vmem:[%s200 + $0x788] sm:$0xff]
        %v604 = vld [vmem:[%s200 + $0x790] sm:$0xff]
        %v605 = vld [vmem:[%s200 + $0x798] sm:$0xff]
        %v606 = vld [vmem:[%s200 + $0x7a0] sm:$0xff]
        %v607 = vld [vmem:[%s200 + $0x7a8] sm:$0xff]
        %v608 = vld [vmem:[%s200 + $0x7b0] sm:$0xff]
        %v609 = vld [vmem:[%s200 + $0x7b8] sm:$0xff]
        %v610 = vld [vmem:[%s200 + $0x7c0] sm:$0xff]
        %v611 = vld [vmem:[%s200 + $0x7c8] sm:$0xff]
        %v612 = vld [vmem:[%s200 + $0x7d0] sm:$0xff]
        %v613 = vld [vmem:[%s200 + $0x7d8] sm:$0xff]
        %v614 = vld [vmem:[%s200 + $0x7e0] sm:$0xff]
        %v615 = vld [vmem:[%s200 + $0x7e8] sm:$0xff]
        %v616 = vld [vmem:[%s200 + $0x7f0] sm:$0xff]
        %v617 = vld [vmem:[%s200 + $0x7f8] sm:$0xff]
        %v630 = vunpack.c.l.b16 %v350
        %v631 = vunpack.c.h.b16 %v350
        %v632 = vunpack.c.l.b16 %v351
        %v633 = vunpack.c.h.b16 %v351
        %v634 = vunpack.c.l.b16 %v352
        %v635 = vunpack.c.h.b16 %v352
        %v636 = vunpack.c.l.b16 %v353
        %v637 = vunpack.c.h.b16 %v353
        %v638 = vunpack.c.l.b16 %v354
        %v639 = vunpack.c.h.b16 %v354
        %v640 = vunpack.c.l.b16 %v355
        %v641 = vunpack.c.h.b16 %v355
        %v642 = vunpack.c.l.b16 %v356
        %v643 = vunpack.c.h.b16 %v356
        %v644 = vunpack.c.l.b16 %v357
        %v645 = vunpack.c.h.b16 %v357
        %v646 = vunpack.c.l.b16 %v358
        %v647 = vunpack.c.h.b16 %v358
        %v648 = vunpack.c.l.b16 %v359
        %v649 = vunpack.c.h.b16 %v359
        %v650 = vunpack.c.l.b16 %v360
        %v651 = vunpack.c.h.b16 %v360
        %v652 = vunpack.c.l.b16 %v361
        %v653 = vunpack.c.h.b16 %v361
        %v654 = vpack.c.b16 %v634, %v630
        %v655 = vpack.c.b16 %v635, %v631
        %v656 = vpack.c.b16 %v636, %v632
        %v657 = vpack.c.b16 %v637, %v633
        %v658 = vpack.c.b16 %v642, %v638
        %v659 = vpack.c.b16 %v643, %v639
        %v660 = vpack.c.b16 %v644, %v640
        %v661 = vpack.c.b16 %v645, %v641
        %v662 = vpack.c.b16 %v650, %v646
        %v663 = vpack.c.b16 %v651, %v647
        %v664 = vpack.c.b16 %v652, %v648
        %v665 = vpack.c.b16 %v653, %v649
        %v934 = vunpack.c.l.b16 %v362
        %v935 = vunpack.c.h.b16 %v362
        %v936 = vunpack.c.l.b16 %v363
        %v937 = vunpack.c.h.b16 %v363
        %v938 = vunpack.c.l.b16 %v364
        %v939 = vunpack.c.h.b16 %v364
        %v940 = vunpack.c.l.b16 %v365
        %v941 = vunpack.c.h.b16 %v365
        %v942 = vunpack.c.l.b16 %v366
        %v943 = vunpack.c.h.b16 %v366
        %v944 = vunpack.c.l.b16 %v367
        %v945 = vunpack.c.h.b16 %v367
        %v946 = vunpack.c.l.b16 %v368
        %v947 = vunpack.c.h.b16 %v368
        %v948 = vunpack.c.l.b16 %v369
        %v949 = vunpack.c.h.b16 %v369
        %v950 = vunpack.c.l.b16 %v370
        %v951 = vunpack.c.h.b16 %v370
        %v952 = vunpack.c.l.b16 %v371
        %v953 = vunpack.c.h.b16 %v371
        %v954 = vunpack.c.l.b16 %v372
        %v955 = vunpack.c.h.b16 %v372
        %v956 = vunpack.c.l.b16 %v373
        %v957 = vunpack.c.h.b16 %v373
        %v958 = vunpack.c.l.b16 %v374
        %v959 = vunpack.c.h.b16 %v374
        %v960 = vunpack.c.l.b16 %v375
        %v961 = vunpack.c.h.b16 %v375
        %v962 = vunpack.c.l.b16 %v376
        %v963 = vunpack.c.h.b16 %v376
        %v964 = vunpack.c.l.b16 %v377
        %v965 = vunpack.c.h.b16 %v377
        %v966 = vunpack.c.l.b16 %v378
        %v967 = vunpack.c.h.b16 %v378
        %v968 = vunpack.c.l.b16 %v379
        %v969 = vunpack.c.h.b16 %v379
        %v970 = vunpack.c.l.b16 %v380
        %v971 = vunpack.c.h.b16 %v380
        %v972 = vunpack.c.l.b16 %v381
        %v973 = vunpack.c.h.b16 %v381
        %v974 = vunpack.c.l.b16 %v382
        %v975 = vunpack.c.h.b16 %v382
        %v976 = vunpack.c.l.b16 %v383
        %v977 = vunpack.c.h.b16 %v383
        %v978 = vunpack.c.l.b16 %v384
        %v979 = vunpack.c.h.b16 %v384
        %v980 = vunpack.c.l.b16 %v385
        %v981 = vunpack.c.h.b16 %v385
        %v982 = vunpack.c.l.b16 %v386
        %v983 = vunpack.c.h.b16 %v386
        %v984 = vunpack.c.l.b16 %v387
        %v985 = vunpack.c.h.b16 %v387
        %v986 = vunpack.c.l.b16 %v388
        %v987 = vunpack.c.h.b16 %v388
        %v988 = vunpack.c.l.b16 %v389
        %v989 = vunpack.c.h.b16 %v389
        %v990 = vunpack.c.l.b16 %v390
        %v991 = vunpack.c.h.b16 %v390
        %v992 = vunpack.c.l.b16 %v391
        %v993 = vunpack.c.h.b16 %v391
        %v994 = vunpack.c.l.b16 %v392
        %v995 = vunpack.c.h.b16 %v392
        %v996 = vunpack.c.l.b16 %v393
        %v997 = vunpack.c.h.b16 %v393
        %v998 = vunpack.c.l.b16 %v394
        %v999 = vunpack.c.h.b16 %v394
        %v1000 = vunpack.c.l.b16 %v395
        %v1001 = vunpack.c.h.b16 %v395
        %v1002 = vunpack.c.l.b16 %v396
        %v1003 = vunpack.c.h.b16 %v396
        %v1004 = vunpack.c.l.b16 %v397
        %v1005 = vunpack.c.h.b16 %v397
        %v1006 = vunpack.c.l.b16 %v398
        %v1007 = vunpack.c.h.b16 %v398
        %v1008 = vunpack.c.l.b16 %v399
        %v1009 = vunpack.c.h.b16 %v399
        %v1010 = vunpack.c.l.b16 %v400
        %v1011 = vunpack.c.h.b16 %v400
        %v1012 = vunpack.c.l.b16 %v401
        %v1013 = vunpack.c.h.b16 %v401
        %v1014 = vunpack.c.l.b16 %v402
        %v1015 = vunpack.c.h.b16 %v402
        %v1016 = vunpack.c.l.b16 %v403
        %v1017 = vunpack.c.h.b16 %v403
        %v1018 = vunpack.c.l.b16 %v404
        %v1019 = vunpack.c.h.b16 %v404
        %v1020 = vunpack.c.l.b16 %v405
        %v1021 = vunpack.c.h.b16 %v405
        %v1022 = vunpack.c.l.b16 %v406
        %v1023 = vunpack.c.h.b16 %v406
        %v1024 = vunpack.c.l.b16 %v407
        %v1025 = vunpack.c.h.b16 %v407
        %v1026 = vunpack.c.l.b16 %v408
        %v1027 = vunpack.c.h.b16 %v408
        %v1028 = vunpack.c.l.b16 %v409
        %v1029 = vunpack.c.h.b16 %v409
        %v1030 = vunpack.c.l.b16 %v410
        %v1031 = vunpack.c.h.b16 %v410
        %v1032 = vunpack.c.l.b16 %v411
        %v1033 = vunpack.c.h.b16 %v411
        %v1034 = vunpack.c.l.b16 %v412
        %v1035 = vunpack.c.h.b16 %v412
        %v1036 = vunpack.c.l.b16 %v413
        %v1037 = vunpack.c.h.b16 %v413
        %v1038 = vunpack.c.l.b16 %v414
        %v1039 = vunpack.c.h.b16 %v414
        %v1040 = vunpack.c.l.b16 %v415
        %v1041 = vunpack.c.h.b16 %v415
        %v1042 = vunpack.c.l.b16 %v416
        %v1043 = vunpack.c.h.b16 %v416
        %v1044 = vunpack.c.l.b16 %v417
        %v1045 = vunpack.c.h.b16 %v417
        %v1046 = vunpack.c.l.b16 %v418
        %v1047 = vunpack.c.h.b16 %v418
        %v1048 = vunpack.c.l.b16 %v419
        %v1049 = vunpack.c.h.b16 %v419
        %v1050 = vunpack.c.l.b16 %v420
        %v1051 = vunpack.c.h.b16 %v420
        %v1052 = vunpack.c.l.b16 %v421
        %v1053 = vunpack.c.h.b16 %v421
        %v1054 = vunpack.c.l.b16 %v422
        %v1055 = vunpack.c.h.b16 %v422
        %v1056 = vunpack.c.l.b16 %v423
        %v1057 = vunpack.c.h.b16 %v423
        %v1058 = vunpack.c.l.b16 %v424
        %v1059 = vunpack.c.h.b16 %v424
        %v1060 = vunpack.c.l.b16 %v425
        %v1061 = vunpack.c.h.b16 %v425
        %v1062 = vunpack.c.l.b16 %v426
        %v1063 = vunpack.c.h.b16 %v426
        %v1064 = vunpack.c.l.b16 %v427
        %v1065 = vunpack.c.h.b16 %v427
        %v1066 = vunpack.c.l.b16 %v428
        %v1067 = vunpack.c.h.b16 %v428
        %v1068 = vunpack.c.l.b16 %v429
        %v1069 = vunpack.c.h.b16 %v429
        %v1070 = vunpack.c.l.b16 %v430
        %v1071 = vunpack.c.h.b16 %v430
        %v1072 = vunpack.c.l.b16 %v431
        %v1073 = vunpack.c.h.b16 %v431
        %v1074 = vunpack.c.l.b16 %v432
        %v1075 = vunpack.c.h.b16 %v432
        %v1076 = vunpack.c.l.b16 %v433
        %v1077 = vunpack.c.h.b16 %v433
        %v1078 = vunpack.c.l.b16 %v434
        %v1079 = vunpack.c.h.b16 %v434
        %v1080 = vunpack.c.l.b16 %v435
        %v1081 = vunpack.c.h.b16 %v435
        %v1082 = vunpack.c.l.b16 %v436
        %v1083 = vunpack.c.h.b16 %v436
        %v1084 = vunpack.c.l.b16 %v437
        %v1085 = vunpack.c.h.b16 %v437
        %v1086 = vunpack.c.l.b16 %v438
        %v1087 = vunpack.c.h.b16 %v438
        %v1088 = vunpack.c.l.b16 %v439
        %v1089 = vunpack.c.h.b16 %v439
        %v1090 = vunpack.c.l.b16 %v440
        %v1091 = vunpack.c.h.b16 %v440
        %v1092 = vunpack.c.l.b16 %v441
        %v1093 = vunpack.c.h.b16 %v441
        %v1094 = vunpack.c.l.b16 %v442
        %v1095 = vunpack.c.h.b16 %v442
        %v1096 = vunpack.c.l.b16 %v443
        %v1097 = vunpack.c.h.b16 %v443
        %v1098 = vunpack.c.l.b16 %v444
        %v1099 = vunpack.c.h.b16 %v444
        %v1100 = vunpack.c.l.b16 %v445
        %v1101 = vunpack.c.h.b16 %v445
        %v1102 = vunpack.c.l.b16 %v446
        %v1103 = vunpack.c.h.b16 %v446
        %v1104 = vunpack.c.l.b16 %v447
        %v1105 = vunpack.c.h.b16 %v447
        %v1106 = vunpack.c.l.b16 %v448
        %v1107 = vunpack.c.h.b16 %v448
        %v1108 = vunpack.c.l.b16 %v449
        %v1109 = vunpack.c.h.b16 %v449
        %v1110 = vunpack.c.l.b16 %v450
        %v1111 = vunpack.c.h.b16 %v450
        %v1112 = vunpack.c.l.b16 %v451
        %v1113 = vunpack.c.h.b16 %v451
        %v1114 = vunpack.c.l.b16 %v452
        %v1115 = vunpack.c.h.b16 %v452
        %v1116 = vunpack.c.l.b16 %v453
        %v1117 = vunpack.c.h.b16 %v453
        %v1118 = vunpack.c.l.b16 %v454
        %v1119 = vunpack.c.h.b16 %v454
        %v1120 = vunpack.c.l.b16 %v455
        %v1121 = vunpack.c.h.b16 %v455
        %v1122 = vunpack.c.l.b16 %v456
        %v1123 = vunpack.c.h.b16 %v456
        %v1124 = vunpack.c.l.b16 %v457
        %v1125 = vunpack.c.h.b16 %v457
        %v1126 = vunpack.c.l.b16 %v458
        %v1127 = vunpack.c.h.b16 %v458
        %v1128 = vunpack.c.l.b16 %v459
        %v1129 = vunpack.c.h.b16 %v459
        %v1130 = vunpack.c.l.b16 %v460
        %v1131 = vunpack.c.h.b16 %v460
        %v1132 = vunpack.c.l.b16 %v461
        %v1133 = vunpack.c.h.b16 %v461
        %v1134 = vunpack.c.l.b16 %v462
        %v1135 = vunpack.c.h.b16 %v462
        %v1136 = vunpack.c.l.b16 %v463
        %v1137 = vunpack.c.h.b16 %v463
        %v1138 = vunpack.c.l.b16 %v464
        %v1139 = vunpack.c.h.b16 %v464
        %v1140 = vunpack.c.l.b16 %v465
        %v1141 = vunpack.c.h.b16 %v465
        %v1142 = vunpack.c.l.b16 %v466
        %v1143 = vunpack.c.h.b16 %v466
        %v1144 = vunpack.c.l.b16 %v467
        %v1145 = vunpack.c.h.b16 %v467
        %v1146 = vunpack.c.l.b16 %v468
        %v1147 = vunpack.c.h.b16 %v468
        %v1148 = vunpack.c.l.b16 %v469
        %v1149 = vunpack.c.h.b16 %v469
        %v1150 = vunpack.c.l.b16 %v470
        %v1151 = vunpack.c.h.b16 %v470
        %v1152 = vunpack.c.l.b16 %v471
        %v1153 = vunpack.c.h.b16 %v471
        %v1154 = vunpack.c.l.b16 %v472
        %v1155 = vunpack.c.h.b16 %v472
        %v1156 = vunpack.c.l.b16 %v473
        %v1157 = vunpack.c.h.b16 %v473
        %v1158 = vunpack.c.l.b16 %v474
        %v1159 = vunpack.c.h.b16 %v474
        %v1160 = vunpack.c.l.b16 %v475
        %v1161 = vunpack.c.h.b16 %v475
        %v1162 = vunpack.c.l.b16 %v476
        %v1163 = vunpack.c.h.b16 %v476
        %v1164 = vunpack.c.l.b16 %v477
        %v1165 = vunpack.c.h.b16 %v477
        %v1166 = vunpack.c.l.b16 %v478
        %v1167 = vunpack.c.h.b16 %v478
        %v1168 = vunpack.c.l.b16 %v479
        %v1169 = vunpack.c.h.b16 %v479
        %v1170 = vunpack.c.l.b16 %v480
        %v1171 = vunpack.c.h.b16 %v480
        %v1172 = vunpack.c.l.b16 %v481
        %v1173 = vunpack.c.h.b16 %v481
        %v1174 = vunpack.c.l.b16 %v482
        %v1175 = vunpack.c.h.b16 %v482
        %v1176 = vunpack.c.l.b16 %v483
        %v1177 = vunpack.c.h.b16 %v483
        %v1178 = vunpack.c.l.b16 %v484
        %v1179 = vunpack.c.h.b16 %v484
        %v1180 = vunpack.c.l.b16 %v485
        %v1181 = vunpack.c.h.b16 %v485
        %v1182 = vunpack.c.l.b16 %v486
        %v1183 = vunpack.c.h.b16 %v486
        %v1184 = vunpack.c.l.b16 %v487
        %v1185 = vunpack.c.h.b16 %v487
        %v1186 = vunpack.c.l.b16 %v488
        %v1187 = vunpack.c.h.b16 %v488
        %v1188 = vunpack.c.l.b16 %v489
        %v1189 = vunpack.c.h.b16 %v489
        %v1190 = vunpack.c.l.b16 %v490
        %v1191 = vunpack.c.h.b16 %v490
        %v1192 = vunpack.c.l.b16 %v491
        %v1193 = vunpack.c.h.b16 %v491
        %v1194 = vunpack.c.l.b16 %v492
        %v1195 = vunpack.c.h.b16 %v492
        %v1196 = vunpack.c.l.b16 %v493
        %v1197 = vunpack.c.h.b16 %v493
        %v1198 = vunpack.c.l.b16 %v494
        %v1199 = vunpack.c.h.b16 %v494
        %v1200 = vunpack.c.l.b16 %v495
        %v1201 = vunpack.c.h.b16 %v495
        %v1202 = vunpack.c.l.b16 %v496
        %v1203 = vunpack.c.h.b16 %v496
        %v1204 = vunpack.c.l.b16 %v497
        %v1205 = vunpack.c.h.b16 %v497
        %v1206 = vunpack.c.l.b16 %v498
        %v1207 = vunpack.c.h.b16 %v498
        %v1208 = vunpack.c.l.b16 %v499
        %v1209 = vunpack.c.h.b16 %v499
        %v1210 = vunpack.c.l.b16 %v500
        %v1211 = vunpack.c.h.b16 %v500
        %v1212 = vunpack.c.l.b16 %v501
        %v1213 = vunpack.c.h.b16 %v501
        %v1214 = vunpack.c.l.b16 %v502
        %v1215 = vunpack.c.h.b16 %v502
        %v1216 = vunpack.c.l.b16 %v503
        %v1217 = vunpack.c.h.b16 %v503
        %v1218 = vunpack.c.l.b16 %v504
        %v1219 = vunpack.c.h.b16 %v504
        %v1220 = vunpack.c.l.b16 %v505
        %v1221 = vunpack.c.h.b16 %v505
        %v1222 = vunpack.c.l.b16 %v506
        %v1223 = vunpack.c.h.b16 %v506
        %v1224 = vunpack.c.l.b16 %v507
        %v1225 = vunpack.c.h.b16 %v507
        %v1226 = vunpack.c.l.b16 %v508
        %v1227 = vunpack.c.h.b16 %v508
        %v1228 = vunpack.c.l.b16 %v509
        %v1229 = vunpack.c.h.b16 %v509
        %v1230 = vunpack.c.l.b16 %v510
        %v1231 = vunpack.c.h.b16 %v510
        %v1232 = vunpack.c.l.b16 %v511
        %v1233 = vunpack.c.h.b16 %v511
        %v1234 = vunpack.c.l.b16 %v512
        %v1235 = vunpack.c.h.b16 %v512
        %v1236 = vunpack.c.l.b16 %v513
        %v1237 = vunpack.c.h.b16 %v513
        %v1238 = vunpack.c.l.b16 %v514
        %v1239 = vunpack.c.h.b16 %v514
        %v1240 = vunpack.c.l.b16 %v515
        %v1241 = vunpack.c.h.b16 %v515
        %v1242 = vunpack.c.l.b16 %v516
        %v1243 = vunpack.c.h.b16 %v516
        %v1244 = vunpack.c.l.b16 %v517
        %v1245 = vunpack.c.h.b16 %v517
        %v1246 = vunpack.c.l.b16 %v518
        %v1247 = vunpack.c.h.b16 %v518
        %v1248 = vunpack.c.l.b16 %v519
        %v1249 = vunpack.c.h.b16 %v519
        %v1250 = vunpack.c.l.b16 %v520
        %v1251 = vunpack.c.h.b16 %v520
        %v1252 = vunpack.c.l.b16 %v521
        %v1253 = vunpack.c.h.b16 %v521
        %v1254 = vunpack.c.l.b16 %v522
        %v1255 = vunpack.c.h.b16 %v522
        %v1256 = vunpack.c.l.b16 %v523
        %v1257 = vunpack.c.h.b16 %v523
        %v1258 = vunpack.c.l.b16 %v524
        %v1259 = vunpack.c.h.b16 %v524
        %v1260 = vunpack.c.l.b16 %v525
        %v1261 = vunpack.c.h.b16 %v525
        %v1262 = vunpack.c.l.b16 %v526
        %v1263 = vunpack.c.h.b16 %v526
        %v1264 = vunpack.c.l.b16 %v527
        %v1265 = vunpack.c.h.b16 %v527
        %v1266 = vunpack.c.l.b16 %v528
        %v1267 = vunpack.c.h.b16 %v528
        %v1268 = vunpack.c.l.b16 %v529
        %v1269 = vunpack.c.h.b16 %v529
        %v1270 = vunpack.c.l.b16 %v530
        %v1271 = vunpack.c.h.b16 %v530
        %v1272 = vunpack.c.l.b16 %v531
        %v1273 = vunpack.c.h.b16 %v531
        %v1274 = vunpack.c.l.b16 %v532
        %v1275 = vunpack.c.h.b16 %v532
        %v1276 = vunpack.c.l.b16 %v533
        %v1277 = vunpack.c.h.b16 %v533
        %v1278 = vunpack.c.l.b16 %v534
        %v1279 = vunpack.c.h.b16 %v534
        %v1280 = vunpack.c.l.b16 %v535
        %v1281 = vunpack.c.h.b16 %v535
        %v1282 = vunpack.c.l.b16 %v536
        %v1283 = vunpack.c.h.b16 %v536
        %v1284 = vunpack.c.l.b16 %v537
        %v1285 = vunpack.c.h.b16 %v537
        %v1286 = vunpack.c.l.b16 %v538
        %v1287 = vunpack.c.h.b16 %v538
        %v1288 = vunpack.c.l.b16 %v539
        %v1289 = vunpack.c.h.b16 %v539
        %v1290 = vunpack.c.l.b16 %v540
        %v1291 = vunpack.c.h.b16 %v540
        %v1292 = vunpack.c.l.b16 %v541
        %v1293 = vunpack.c.h.b16 %v541
        %v1294 = vunpack.c.l.b16 %v542
        %v1295 = vunpack.c.h.b16 %v542
        %v1296 = vunpack.c.l.b16 %v543
        %v1297 = vunpack.c.h.b16 %v543
        %v1298 = vunpack.c.l.b16 %v544
        %v1299 = vunpack.c.h.b16 %v544
        %v1300 = vunpack.c.l.b16 %v545
        %v1301 = vunpack.c.h.b16 %v545
        %v1302 = vunpack.c.l.b16 %v546
        %v1303 = vunpack.c.h.b16 %v546
        %v1304 = vunpack.c.l.b16 %v547
        %v1305 = vunpack.c.h.b16 %v547
        %v1306 = vunpack.c.l.b16 %v548
        %v1307 = vunpack.c.h.b16 %v548
        %v1308 = vunpack.c.l.b16 %v549
        %v1309 = vunpack.c.h.b16 %v549
        %v1310 = vunpack.c.l.b16 %v550
        %v1311 = vunpack.c.h.b16 %v550
        %v1312 = vunpack.c.l.b16 %v551
        %v1313 = vunpack.c.h.b16 %v551
        %v1314 = vunpack.c.l.b16 %v552
        %v1315 = vunpack.c.h.b16 %v552
        %v1316 = vunpack.c.l.b16 %v553
        %v1317 = vunpack.c.h.b16 %v553
        %v1318 = vunpack.c.l.b16 %v554
        %v1319 = vunpack.c.h.b16 %v554
        %v1320 = vunpack.c.l.b16 %v555
        %v1321 = vunpack.c.h.b16 %v555
        %v1322 = vunpack.c.l.b16 %v556
        %v1323 = vunpack.c.h.b16 %v556
        %v1324 = vunpack.c.l.b16 %v557
        %v1325 = vunpack.c.h.b16 %v557
        %v1326 = vunpack.c.l.b16 %v558
        %v1327 = vunpack.c.h.b16 %v558
        %v1328 = vunpack.c.l.b16 %v559
        %v1329 = vunpack.c.h.b16 %v559
        %v1330 = vunpack.c.l.b16 %v560
        %v1331 = vunpack.c.h.b16 %v560
        %v1332 = vunpack.c.l.b16 %v561
        %v1333 = vunpack.c.h.b16 %v561
        %v1334 = vunpack.c.l.b16 %v562
        %v1335 = vunpack.c.h.b16 %v562
        %v1336 = vunpack.c.l.b16 %v563
        %v1337 = vunpack.c.h.b16 %v563
        %v1338 = vunpack.c.l.b16 %v564
        %v1339 = vunpack.c.h.b16 %v564
        %v1340 = vunpack.c.l.b16 %v565
        %v1341 = vunpack.c.h.b16 %v565
        %v1342 = vunpack.c.l.b16 %v566
        %v1343 = vunpack.c.h.b16 %v566
        %v1344 = vunpack.c.l.b16 %v567
        %v1345 = vunpack.c.h.b16 %v567
        %v1346 = vunpack.c.l.b16 %v568
        %v1347 = vunpack.c.h.b16 %v568
        %v1348 = vunpack.c.l.b16 %v569
        %v1349 = vunpack.c.h.b16 %v569
        %v1350 = vunpack.c.l.b16 %v570
        %v1351 = vunpack.c.h.b16 %v570
        %v1352 = vunpack.c.l.b16 %v571
        %v1353 = vunpack.c.h.b16 %v571
        %v1354 = vunpack.c.l.b16 %v572
        %v1355 = vunpack.c.h.b16 %v572
        %v1356 = vunpack.c.l.b16 %v573
        %v1357 = vunpack.c.h.b16 %v573
        %v1358 = vunpack.c.l.b16 %v574
        %v1359 = vunpack.c.h.b16 %v574
        %v1360 = vunpack.c.l.b16 %v575
        %v1361 = vunpack.c.h.b16 %v575
        %v1362 = vunpack.c.l.b16 %v576
        %v1363 = vunpack.c.h.b16 %v576
        %v1364 = vunpack.c.l.b16 %v577
        %v1365 = vunpack.c.h.b16 %v577
        %v1366 = vunpack.c.l.b16 %v578
        %v1367 = vunpack.c.h.b16 %v578
        %v1368 = vunpack.c.l.b16 %v579
        %v1369 = vunpack.c.h.b16 %v579
        %v1370 = vunpack.c.l.b16 %v580
        %v1371 = vunpack.c.h.b16 %v580
        %v1372 = vunpack.c.l.b16 %v581
        %v1373 = vunpack.c.h.b16 %v581
        %v1374 = vunpack.c.l.b16 %v582
        %v1375 = vunpack.c.h.b16 %v582
        %v1376 = vunpack.c.l.b16 %v583
        %v1377 = vunpack.c.h.b16 %v583
        %v1378 = vunpack.c.l.b16 %v584
        %v1379 = vunpack.c.h.b16 %v584
        %v1380 = vunpack.c.l.b16 %v585
        %v1381 = vunpack.c.h.b16 %v585
        %v1382 = vunpack.c.l.b16 %v586
        %v1383 = vunpack.c.h.b16 %v586
        %v1384 = vunpack.c.l.b16 %v587
        %v1385 = vunpack.c.h.b16 %v587
        %v1386 = vunpack.c.l.b16 %v588
        %v1387 = vunpack.c.h.b16 %v588
        %v1388 = vunpack.c.l.b16 %v589
        %v1389 = vunpack.c.h.b16 %v589
        %v1390 = vunpack.c.l.b16 %v590
        %v1391 = vunpack.c.h.b16 %v590
        %v1392 = vunpack.c.l.b16 %v591
        %v1393 = vunpack.c.h.b16 %v591
        %v1394 = vunpack.c.l.b16 %v592
        %v1395 = vunpack.c.h.b16 %v592
        %v1396 = vunpack.c.l.b16 %v593
        %v1397 = vunpack.c.h.b16 %v593
        %v1398 = vunpack.c.l.b16 %v594
        %v1399 = vunpack.c.h.b16 %v594
        %v1400 = vunpack.c.l.b16 %v595
        %v1401 = vunpack.c.h.b16 %v595
        %v1402 = vunpack.c.l.b16 %v596
        %v1403 = vunpack.c.h.b16 %v596
        %v1404 = vunpack.c.l.b16 %v597
        %v1405 = vunpack.c.h.b16 %v597
        %v1406 = vunpack.c.l.b16 %v598
        %v1407 = vunpack.c.h.b16 %v598
        %v1408 = vunpack.c.l.b16 %v599
        %v1409 = vunpack.c.h.b16 %v599
        %v1410 = vunpack.c.l.b16 %v600
        %v1411 = vunpack.c.h.b16 %v600
        %v1412 = vunpack.c.l.b16 %v601
        %v1413 = vunpack.c.h.b16 %v601
        %v1414 = vunpack.c.l.b16 %v602
        %v1415 = vunpack.c.h.b16 %v602
        %v1416 = vunpack.c.l.b16 %v603
        %v1417 = vunpack.c.h.b16 %v603
        %v1418 = vunpack.c.l.b16 %v604
        %v1419 = vunpack.c.h.b16 %v604
        %v1420 = vunpack.c.l.b16 %v605
        %v1421 = vunpack.c.h.b16 %v605
        %v1422 = vunpack.c.l.b16 %v606
        %v1423 = vunpack.c.h.b16 %v606
        %v1424 = vunpack.c.l.b16 %v607
        %v1425 = vunpack.c.h.b16 %v607
        %v1426 = vunpack.c.l.b16 %v608
        %v1427 = vunpack.c.h.b16 %v608
        %v1428 = vunpack.c.l.b16 %v609
        %v1429 = vunpack.c.h.b16 %v609
        %v1430 = vunpack.c.l.b16 %v610
        %v1431 = vunpack.c.h.b16 %v610
        %v1432 = vunpack.c.l.b16 %v611
        %v1433 = vunpack.c.h.b16 %v611
        %v1434 = vunpack.c.l.b16 %v612
        %v1435 = vunpack.c.h.b16 %v612
        %v1436 = vunpack.c.l.b16 %v613
        %v1437 = vunpack.c.h.b16 %v613
        %v1438 = vunpack.c.l.b16 %v614
        %v1439 = vunpack.c.h.b16 %v614
        %v1440 = vunpack.c.l.b16 %v615
        %v1441 = vunpack.c.h.b16 %v615
        %v1442 = vunpack.c.l.b16 %v616
        %v1443 = vunpack.c.h.b16 %v616
        %v1444 = vunpack.c.l.b16 %v617
        %v1445 = vunpack.c.h.b16 %v617
        %v1446 = vpack.c.b16 %v942, %v934
        %v1447 = vpack.c.b16 %v943, %v935
        %v1448 = vpack.c.b16 %v944, %v936
        %v1449 = vpack.c.b16 %v945, %v937
        %v1450 = vpack.c.b16 %v946, %v938
        %v1451 = vpack.c.b16 %v947, %v939
        %v1452 = vpack.c.b16 %v948, %v940
        %v1453 = vpack.c.b16 %v949, %v941
        %v1454 = vpack.c.b16 %v958, %v950
        %v1455 = vpack.c.b16 %v959, %v951
        %v1456 = vpack.c.b16 %v960, %v952
        %v1457 = vpack.c.b16 %v961, %v953
        %v1458 = vpack.c.b16 %v962, %v954
        %v1459 = vpack.c.b16 %v963, %v955
        %v1460 = vpack.c.b16 %v964, %v956
        %v1461 = vpack.c.b16 %v965, %v957
        %v1462 = vpack.c.b16 %v974, %v966
        %v1463 = vpack.c.b16 %v975, %v967
        %v1464 = vpack.c.b16 %v976, %v968
        %v1465 = vpack.c.b16 %v977, %v969
        %v1466 = vpack.c.b16 %v978, %v970
        %v1467 = vpack.c.b16 %v979, %v971
        %v1468 = vpack.c.b16 %v980, %v972
        %v1469 = vpack.c.b16 %v981, %v973
        %v1470 = vpack.c.b16 %v990, %v982
        %v1471 = vpack.c.b16 %v991, %v983
        %v1472 = vpack.c.b16 %v992, %v984
        %v1473 = vpack.c.b16 %v993, %v985
        %v1474 = vpack.c.b16 %v994, %v986
        %v1475 = vpack.c.b16 %v995, %v987
        %v1476 = vpack.c.b16 %v996, %v988
        %v1477 = vpack.c.b16 %v997, %v989
        %v1478 = vpack.c.b16 %v1006, %v998
        %v1479 = vpack.c.b16 %v1007, %v999
        %v1480 = vpack.c.b16 %v1008, %v1000
        %v1481 = vpack.c.b16 %v1009, %v1001
        %v1482 = vpack.c.b16 %v1010, %v1002
        %v1483 = vpack.c.b16 %v1011, %v1003
        %v1484 = vpack.c.b16 %v1012, %v1004
        %v1485 = vpack.c.b16 %v1013, %v1005
        %v1486 = vpack.c.b16 %v1022, %v1014
        %v1487 = vpack.c.b16 %v1023, %v1015
        %v1488 = vpack.c.b16 %v1024, %v1016
        %v1489 = vpack.c.b16 %v1025, %v1017
        %v1490 = vpack.c.b16 %v1026, %v1018
        %v1491 = vpack.c.b16 %v1027, %v1019
        %v1492 = vpack.c.b16 %v1028, %v1020
        %v1493 = vpack.c.b16 %v1029, %v1021
        %v1494 = vpack.c.b16 %v1038, %v1030
        %v1495 = vpack.c.b16 %v1039, %v1031
        %v1496 = vpack.c.b16 %v1040, %v1032
        %v1497 = vpack.c.b16 %v1041, %v1033
        %v1498 = vpack.c.b16 %v1042, %v1034
        %v1499 = vpack.c.b16 %v1043, %v1035
        %v1500 = vpack.c.b16 %v1044, %v1036
        %v1501 = vpack.c.b16 %v1045, %v1037
        %v1502 = vpack.c.b16 %v1054, %v1046
        %v1503 = vpack.c.b16 %v1055, %v1047
        %v1504 = vpack.c.b16 %v1056, %v1048
        %v1505 = vpack.c.b16 %v1057, %v1049
        %v1506 = vpack.c.b16 %v1058, %v1050
        %v1507 = vpack.c.b16 %v1059, %v1051
        %v1508 = vpack.c.b16 %v1060, %v1052
        %v1509 = vpack.c.b16 %v1061, %v1053
        %v1510 = vpack.c.b16 %v1070, %v1062
        %v1511 = vpack.c.b16 %v1071, %v1063
        %v1512 = vpack.c.b16 %v1072, %v1064
        %v1513 = vpack.c.b16 %v1073, %v1065
        %v1514 = vpack.c.b16 %v1074, %v1066
        %v1515 = vpack.c.b16 %v1075, %v1067
        %v1516 = vpack.c.b16 %v1076, %v1068
        %v1517 = vpack.c.b16 %v1077, %v1069
        %v1518 = vpack.c.b16 %v1086, %v1078
        %v1519 = vpack.c.b16 %v1087, %v1079
        %v1520 = vpack.c.b16 %v1088, %v1080
        %v1521 = vpack.c.b16 %v1089, %v1081
        %v1522 = vpack.c.b16 %v1090, %v1082
        %v1523 = vpack.c.b16 %v1091, %v1083
        %v1524 = vpack.c.b16 %v1092, %v1084
        %v1525 = vpack.c.b16 %v1093, %v1085
        %v1526 = vpack.c.b16 %v1102, %v1094
        %v1527 = vpack.c.b16 %v1103, %v1095
        %v1528 = vpack.c.b16 %v1104, %v1096
        %v1529 = vpack.c.b16 %v1105, %v1097
        %v1530 = vpack.c.b16 %v1106, %v1098
        %v1531 = vpack.c.b16 %v1107, %v1099
        %v1532 = vpack.c.b16 %v1108, %v1100
        %v1533 = vpack.c.b16 %v1109, %v1101
        %v1534 = vpack.c.b16 %v1118, %v1110
        %v1535 = vpack.c.b16 %v1119, %v1111
        %v1536 = vpack.c.b16 %v1120, %v1112
        %v1537 = vpack.c.b16 %v1121, %v1113
        %v1538 = vpack.c.b16 %v1122, %v1114
        %v1539 = vpack.c.b16 %v1123, %v1115
        %v1540 = vpack.c.b16 %v1124, %v1116
        %v1541 = vpack.c.b16 %v1125, %v1117
        %v1542 = vpack.c.b16 %v1134, %v1126
        %v1543 = vpack.c.b16 %v1135, %v1127
        %v1544 = vpack.c.b16 %v1136, %v1128
        %v1545 = vpack.c.b16 %v1137, %v1129
        %v1546 = vpack.c.b16 %v1138, %v1130
        %v1547 = vpack.c.b16 %v1139, %v1131
        %v1548 = vpack.c.b16 %v1140, %v1132
        %v1549 = vpack.c.b16 %v1141, %v1133
        %v1550 = vpack.c.b16 %v1150, %v1142
        %v1551 = vpack.c.b16 %v1151, %v1143
        %v1552 = vpack.c.b16 %v1152, %v1144
        %v1553 = vpack.c.b16 %v1153, %v1145
        %v1554 = vpack.c.b16 %v1154, %v1146
        %v1555 = vpack.c.b16 %v1155, %v1147
        %v1556 = vpack.c.b16 %v1156, %v1148
        %v1557 = vpack.c.b16 %v1157, %v1149
        %v1558 = vpack.c.b16 %v1166, %v1158
        %v1559 = vpack.c.b16 %v1167, %v1159
        %v1560 = vpack.c.b16 %v1168, %v1160
        %v1561 = vpack.c.b16 %v1169, %v1161
        %v1562 = vpack.c.b16 %v1170, %v1162
        %v1563 = vpack.c.b16 %v1171, %v1163
        %v1564 = vpack.c.b16 %v1172, %v1164
        %v1565 = vpack.c.b16 %v1173, %v1165
        %v1566 = vpack.c.b16 %v1182, %v1174
        %v1567 = vpack.c.b16 %v1183, %v1175
        %v1568 = vpack.c.b16 %v1184, %v1176
        %v1569 = vpack.c.b16 %v1185, %v1177
        %v1570 = vpack.c.b16 %v1186, %v1178
        %v1571 = vpack.c.b16 %v1187, %v1179
        %v1572 = vpack.c.b16 %v1188, %v1180
        %v1573 = vpack.c.b16 %v1189, %v1181
        %v1574 = vpack.c.b16 %v1198, %v1190
        %v1575 = vpack.c.b16 %v1199, %v1191
        %v1576 = vpack.c.b16 %v1200, %v1192
        %v1577 = vpack.c.b16 %v1201, %v1193
        %v1578 = vpack.c.b16 %v1202, %v1194
        %v1579 = vpack.c.b16 %v1203, %v1195
        %v1580 = vpack.c.b16 %v1204, %v1196
        %v1581 = vpack.c.b16 %v1205, %v1197
        %v1582 = vpack.c.b16 %v1214, %v1206
        %v1583 = vpack.c.b16 %v1215, %v1207
        %v1584 = vpack.c.b16 %v1216, %v1208
        %v1585 = vpack.c.b16 %v1217, %v1209
        %v1586 = vpack.c.b16 %v1218, %v1210
        %v1587 = vpack.c.b16 %v1219, %v1211
        %v1588 = vpack.c.b16 %v1220, %v1212
        %v1589 = vpack.c.b16 %v1221, %v1213
        %v1590 = vpack.c.b16 %v1230, %v1222
        %v1591 = vpack.c.b16 %v1231, %v1223
        %v1592 = vpack.c.b16 %v1232, %v1224
        %v1593 = vpack.c.b16 %v1233, %v1225
        %v1594 = vpack.c.b16 %v1234, %v1226
        %v1595 = vpack.c.b16 %v1235, %v1227
        %v1596 = vpack.c.b16 %v1236, %v1228
        %v1597 = vpack.c.b16 %v1237, %v1229
        %v1598 = vpack.c.b16 %v1246, %v1238
        %v1599 = vpack.c.b16 %v1247, %v1239
        %v1600 = vpack.c.b16 %v1248, %v1240
        %v1601 = vpack.c.b16 %v1249, %v1241
        %v1602 = vpack.c.b16 %v1250, %v1242
        %v1603 = vpack.c.b16 %v1251, %v1243
        %v1604 = vpack.c.b16 %v1252, %v1244
        %v1605 = vpack.c.b16 %v1253, %v1245
        %v1606 = vpack.c.b16 %v1262, %v1254
        %v1607 = vpack.c.b16 %v1263, %v1255
        %v1608 = vpack.c.b16 %v1264, %v1256
        %v1609 = vpack.c.b16 %v1265, %v1257
        %v1610 = vpack.c.b16 %v1266, %v1258
        %v1611 = vpack.c.b16 %v1267, %v1259
        %v1612 = vpack.c.b16 %v1268, %v1260
        %v1613 = vpack.c.b16 %v1269, %v1261
        %v1614 = vpack.c.b16 %v1278, %v1270
        %v1615 = vpack.c.b16 %v1279, %v1271
        %v1616 = vpack.c.b16 %v1280, %v1272
        %v1617 = vpack.c.b16 %v1281, %v1273
        %v1618 = vpack.c.b16 %v1282, %v1274
        %v1619 = vpack.c.b16 %v1283, %v1275
        %v1620 = vpack.c.b16 %v1284, %v1276
        %v1621 = vpack.c.b16 %v1285, %v1277
        %v1622 = vpack.c.b16 %v1294, %v1286
        %v1623 = vpack.c.b16 %v1295, %v1287
        %v1624 = vpack.c.b16 %v1296, %v1288
        %v1625 = vpack.c.b16 %v1297, %v1289
        %v1626 = vpack.c.b16 %v1298, %v1290
        %v1627 = vpack.c.b16 %v1299, %v1291
        %v1628 = vpack.c.b16 %v1300, %v1292
        %v1629 = vpack.c.b16 %v1301, %v1293
        %v1630 = vpack.c.b16 %v1310, %v1302
        %v1631 = vpack.c.b16 %v1311, %v1303
        %v1632 = vpack.c.b16 %v1312, %v1304
        %v1633 = vpack.c.b16 %v1313, %v1305
        %v1634 = vpack.c.b16 %v1314, %v1306
        %v1635 = vpack.c.b16 %v1315, %v1307
        %v1636 = vpack.c.b16 %v1316, %v1308
        %v1637 = vpack.c.b16 %v1317, %v1309
        %v1638 = vpack.c.b16 %v1326, %v1318
        %v1639 = vpack.c.b16 %v1327, %v1319
        %v1640 = vpack.c.b16 %v1328, %v1320
        %v1641 = vpack.c.b16 %v1329, %v1321
        %v1642 = vpack.c.b16 %v1330, %v1322
        %v1643 = vpack.c.b16 %v1331, %v1323
        %v1644 = vpack.c.b16 %v1332, %v1324
        %v1645 = vpack.c.b16 %v1333, %v1325
        %v1646 = vpack.c.b16 %v1342, %v1334
        %v1647 = vpack.c.b16 %v1343, %v1335
        %v1648 = vpack.c.b16 %v1344, %v1336
        %v1649 = vpack.c.b16 %v1345, %v1337
        %v1650 = vpack.c.b16 %v1346, %v1338
        %v1651 = vpack.c.b16 %v1347, %v1339
        %v1652 = vpack.c.b16 %v1348, %v1340
        %v1653 = vpack.c.b16 %v1349, %v1341
        %v1654 = vpack.c.b16 %v1358, %v1350
        %v1655 = vpack.c.b16 %v1359, %v1351
        %v1656 = vpack.c.b16 %v1360, %v1352
        %v1657 = vpack.c.b16 %v1361, %v1353
        %v1658 = vpack.c.b16 %v1362, %v1354
        %v1659 = vpack.c.b16 %v1363, %v1355
        %v1660 = vpack.c.b16 %v1364, %v1356
        %v1661 = vpack.c.b16 %v1365, %v1357
        %v1662 = vpack.c.b16 %v1374, %v1366
        %v1663 = vpack.c.b16 %v1375, %v1367
        %v1664 = vpack.c.b16 %v1376, %v1368
        %v1665 = vpack.c.b16 %v1377, %v1369
        %v1666 = vpack.c.b16 %v1378, %v1370
        %v1667 = vpack.c.b16 %v1379, %v1371
        %v1668 = vpack.c.b16 %v1380, %v1372
        %v1669 = vpack.c.b16 %v1381, %v1373
        %v1670 = vpack.c.b16 %v1390, %v1382
        %v1671 = vpack.c.b16 %v1391, %v1383
        %v1672 = vpack.c.b16 %v1392, %v1384
        %v1673 = vpack.c.b16 %v1393, %v1385
        %v1674 = vpack.c.b16 %v1394, %v1386
        %v1675 = vpack.c.b16 %v1395, %v1387
        %v1676 = vpack.c.b16 %v1396, %v1388
        %v1677 = vpack.c.b16 %v1397, %v1389
        %v1678 = vpack.c.b16 %v1406, %v1398
        %v1679 = vpack.c.b16 %v1407, %v1399
        %v1680 = vpack.c.b16 %v1408, %v1400
        %v1681 = vpack.c.b16 %v1409, %v1401
        %v1682 = vpack.c.b16 %v1410, %v1402
        %v1683 = vpack.c.b16 %v1411, %v1403
        %v1684 = vpack.c.b16 %v1412, %v1404
        %v1685 = vpack.c.b16 %v1413, %v1405
        %v1686 = vpack.c.b16 %v1422, %v1414
        %v1687 = vpack.c.b16 %v1423, %v1415
        %v1688 = vpack.c.b16 %v1424, %v1416
        %v1689 = vpack.c.b16 %v1425, %v1417
        %v1690 = vpack.c.b16 %v1426, %v1418
        %v1691 = vpack.c.b16 %v1427, %v1419
        %v1692 = vpack.c.b16 %v1428, %v1420
        %v1693 = vpack.c.b16 %v1429, %v1421
        %v1694 = vpack.c.b16 %v1438, %v1430
        %v1695 = vpack.c.b16 %v1439, %v1431
        %v1696 = vpack.c.b16 %v1440, %v1432
        %v1697 = vpack.c.b16 %v1441, %v1433
        %v1698 = vpack.c.b16 %v1442, %v1434
        %v1699 = vpack.c.b16 %v1443, %v1435
        %v1700 = vpack.c.b16 %v1444, %v1436
        %v1701 = vpack.c.b16 %v1445, %v1437
        %1958 = vmatprep.subr.bf16.mxu0 %v1447
        %1959 = vmatpush1.bf16.msra.mxu0 %v1446
        %1960 = vmatprep.subr.bf16.mxu0 %v1455
        %1961 = vmatpush1.bf16.msra.mxu0 %v1454
        %1962 = vmatprep.subr.bf16.mxu0 %v1463
        %1963 = vmatpush1.bf16.msra.mxu0 %v1462
        %1964 = vmatprep.subr.bf16.mxu0 %v1471
        %1965 = vmatpush1.bf16.msra.mxu0 %v1470
        %1966 = vmatprep.subr.bf16.mxu0 %v1479
        %1967 = vmatpush1.bf16.msra.mxu0 %v1478
        %1968 = vmatprep.subr.bf16.mxu0 %v1487
        %1969 = vmatpush1.bf16.msra.mxu0 %v1486
        %1970 = vmatprep.subr.bf16.mxu0 %v1495
        %1971 = vmatpush1.bf16.msra.mxu0 %v1494
        %1972 = vmatprep.subr.bf16.mxu0 %v1503
        %1973 = vmatpush1.bf16.msra.mxu0 %v1502
        %1974 = vmatprep.subr.bf16.mxu0 %v1511
        %1975 = vmatpush1.bf16.msra.mxu0 %v1510
        %1976 = vmatprep.subr.bf16.mxu0 %v1519
        %1977 = vmatpush1.bf16.msra.mxu0 %v1518
        %1978 = vmatprep.subr.bf16.mxu0 %v1527
        %1979 = vmatpush1.bf16.msra.mxu0 %v1526
        %1980 = vmatprep.subr.bf16.mxu0 %v1535
        %1981 = vmatpush1.bf16.msra.mxu0 %v1534
        %1982 = vmatprep.subr.bf16.mxu0 %v1543
        %1983 = vmatpush1.bf16.msra.mxu0 %v1542
        %1984 = vmatprep.subr.bf16.mxu0 %v1551
        %1985 = vmatpush1.bf16.msra.mxu0 %v1550
        %1986 = vmatprep.subr.bf16.mxu0 %v1559
        %1987 = vmatpush1.bf16.msra.mxu0 %v1558
        %1988 = vmatprep.subr.bf16.mxu0 %v1567
        %1989 = vmatpush1.bf16.msra.mxu0 %v1566
        %1990 = vmatprep.mubr.bf16.mxu0 %v655
        %1991 = vmatmul.mubr.bf16.gmra.mrb[0].mxu0 %v654
        %v1992 = vpop.f32.mrb[0].mxu0
        %v1993 = vadd.f32 0.0, %v1992
        %v1994 = vpop.f32.mrb[0].mxu0
        %v1995 = vadd.f32 0.0, %v1994
        %v1996 = vpop.f32.mrb[0].mxu0
        %v1997 = vadd.f32 0.0, %v1996
        %v1998 = vpop.f32.mrb[0].mxu0
        %v1999 = vadd.f32 0.0, %v1998
        %2000 = vmatprep.mubr.bf16.mxu0 %v659
        %2001 = vmatmul.mubr.bf16.gmra.mrb[0].mxu0 %v658
        %v2002 = vpop.f32.mrb[0].mxu0
        %v2003 = vadd.f32 0.0, %v2002
        %v2004 = vpop.f32.mrb[0].mxu0
        %v2005 = vadd.f32 0.0, %v2004
        %v2006 = vpop.f32.mrb[0].mxu0
        %v2007 = vadd.f32 0.0, %v2006
        %v2008 = vpop.f32.mrb[0].mxu0
        %v2009 = vadd.f32 0.0, %v2008
        %2010 = vmatprep.mubr.bf16.mxu0 %v663
        %2011 = vmatmul.mubr.bf16.gmra.mrb[0].mxu0 %v662
        %v2012 = vpop.f32.mrb[0].mxu0
        %v2013 = vadd.f32 0.0, %v2012
        %v2014 = vpop.f32.mrb[0].mxu0
        %v2015 = vadd.f32 0.0, %v2014
        %v2016 = vpop.f32.mrb[0].mxu0
        %v2017 = vadd.f32 0.0, %v2016
        %v2018 = vpop.f32.mrb[0].mxu0
        %v2019 = vadd.f32 0.0, %v2018
        %2020 = vdwg.mxu0
        %2021 = vmatprep.subr.bf16.mxu0 %v1575
        %2022 = vmatpush1.bf16.msra.mxu0 %v1574
        %2023 = vmatprep.subr.bf16.mxu0 %v1583
        %2024 = vmatpush1.bf16.msra.mxu0 %v1582
        %2025 = vmatprep.subr.bf16.mxu0 %v1591
        %2026 = vmatpush1.bf16.msra.mxu0 %v1590
        %2027 = vmatprep.subr.bf16.mxu0 %v1599
        %2028 = vmatpush1.bf16.msra.mxu0 %v1598
        %2029 = vmatprep.subr.bf16.mxu0 %v1607
        %2030 = vmatpush1.bf16.msra.mxu0 %v1606
        %2031 = vmatprep.subr.bf16.mxu0 %v1615
        %2032 = vmatpush1.bf16.msra.mxu0 %v1614
        %2033 = vmatprep.subr.bf16.mxu0 %v1623
        %2034 = vmatpush1.bf16.msra.mxu0 %v1622
        %2035 = vmatprep.subr.bf16.mxu0 %v1631
        %2036 = vmatpush1.bf16.msra.mxu0 %v1630
        %2037 = vmatprep.subr.bf16.mxu0 %v1639
        %2038 = vmatpush1.bf16.msra.mxu0 %v1638
        %2039 = vmatprep.subr.bf16.mxu0 %v1647
        %2040 = vmatpush1.bf16.msra.mxu0 %v1646
        %2041 = vmatprep.subr.bf16.mxu0 %v1655
        %2042 = vmatpush1.bf16.msra.mxu0 %v1654
        %2043 = vmatprep.subr.bf16.mxu0 %v1663
        %2044 = vmatpush1.bf16.msra.mxu0 %v1662
        %2045 = vmatprep.subr.bf16.mxu0 %v1671
        %2046 = vmatpush1.bf16.msra.mxu0 %v1670
        %2047 = vmatprep.subr.bf16.mxu0 %v1679
        %2048 = vmatpush1.bf16.msra.mxu0 %v1678
        %2049 = vmatprep.subr.bf16.mxu0 %v1687
        %2050 = vmatpush1.bf16.msra.mxu0 %v1686
        %2051 = vmatprep.subr.bf16.mxu0 %v1695
        %2052 = vmatpush1.bf16.msra.mxu0 %v1694
        %2053 = vmatprep.mubr.bf16.mxu0 %v657
        %2054 = vmatmul.mubr.bf16.gmra.mrb[0].mxu0 %v656
        %v2055 = vpop.f32.mrb[0].mxu0
        %v2056 = vadd.f32 %v1993, %v2055
        %v2057 = vpop.f32.mrb[0].mxu0
        %v2058 = vadd.f32 %v1995, %v2057
        %v2059 = vpop.f32.mrb[0].mxu0
        %v2060 = vadd.f32 %v1997, %v2059
        %v2061 = vpop.f32.mrb[0].mxu0
        %v2062 = vadd.f32 %v1999, %v2061
        %2063 = vmatprep.mubr.bf16.mxu0 %v661
        %2064 = vmatmul.mubr.bf16.gmra.mrb[0].mxu0 %v660
        %v2065 = vpop.f32.mrb[0].mxu0
        %v2066 = vadd.f32 %v2003, %v2065
        %v2067 = vpop.f32.mrb[0].mxu0
        %v2068 = vadd.f32 %v2005, %v2067
        %v2069 = vpop.f32.mrb[0].mxu0
        %v2070 = vadd.f32 %v2007, %v2069
        %v2071 = vpop.f32.mrb[0].mxu0
        %v2072 = vadd.f32 %v2009, %v2071
        %2073 = vmatprep.mubr.bf16.mxu0 %v665
        %2074 = vmatmul.mubr.bf16.gmra.mrb[0].mxu0 %v664
        %v2075 = vpop.f32.mrb[0].mxu0
        %v2076 = vadd.f32 %v2013, %v2075
        %v2077 = vpop.f32.mrb[0].mxu0
        %v2078 = vadd.f32 %v2015, %v2077
        %v2079 = vpop.f32.mrb[0].mxu0
        %v2080 = vadd.f32 %v2017, %v2079
        %v2081 = vpop.f32.mrb[0].mxu0
        %v2082 = vadd.f32 %v2019, %v2081
        %2083 = vdwg.mxu0
        %2084 = vmatprep.subr.bf16.mxu0 %v1449
        %2085 = vmatpush1.bf16.msra.mxu0 %v1448
        %2086 = vmatprep.subr.bf16.mxu0 %v1457
        %2087 = vmatpush1.bf16.msra.mxu0 %v1456
        %2088 = vmatprep.subr.bf16.mxu0 %v1465
        %2089 = vmatpush1.bf16.msra.mxu0 %v1464
        %2090 = vmatprep.subr.bf16.mxu0 %v1473
        %2091 = vmatpush1.bf16.msra.mxu0 %v1472
        %2092 = vmatprep.subr.bf16.mxu0 %v1481
        %2093 = vmatpush1.bf16.msra.mxu0 %v1480
        %2094 = vmatprep.subr.bf16.mxu0 %v1489
        %2095 = vmatpush1.bf16.msra.mxu0 %v1488
        %2096 = vmatprep.subr.bf16.mxu0 %v1497
        %2097 = vmatpush1.bf16.msra.mxu0 %v1496
        %2098 = vmatprep.subr.bf16.mxu0 %v1505
        %2099 = vmatpush1.bf16.msra.mxu0 %v1504
        %2100 = vmatprep.subr.bf16.mxu0 %v1513
        %2101 = vmatpush1.bf16.msra.mxu0 %v1512
        %2102 = vmatprep.subr.bf16.mxu0 %v1521
        %2103 = vmatpush1.bf16.msra.mxu0 %v1520
        %2104 = vmatprep.subr.bf16.mxu0 %v1529
        %2105 = vmatpush1.bf16.msra.mxu0 %v1528
        %2106 = vmatprep.subr.bf16.mxu0 %v1537
        %2107 = vmatpush1.bf16.msra.mxu0 %v1536
        %2108 = vmatprep.subr.bf16.mxu0 %v1545
        %2109 = vmatpush1.bf16.msra.mxu0 %v1544
        %2110 = vmatprep.subr.bf16.mxu0 %v1553
        %2111 = vmatpush1.bf16.msra.mxu0 %v1552
        %2112 = vmatprep.subr.bf16.mxu0 %v1561
        %2113 = vmatpush1.bf16.msra.mxu0 %v1560
        %2114 = vmatprep.subr.bf16.mxu0 %v1569
        %2115 = vmatpush1.bf16.msra.mxu0 %v1568
        %2116 = vmatprep.mubr.bf16.mxu0 %v655
        %2117 = vmatmul.mubr.bf16.gmra.mrb[0].mxu0 %v654
        %v2118 = vpop.f32.mrb[0].mxu0
        %v2119 = vadd.f32 0.0, %v2118
        %v2120 = vpop.f32.mrb[0].mxu0
        %v2121 = vadd.f32 0.0, %v2120
        %v2122 = vpop.f32.mrb[0].mxu0
        %v2123 = vadd.f32 0.0, %v2122
        %v2124 = vpop.f32.mrb[0].mxu0
        %v2125 = vadd.f32 0.0, %v2124
        %2126 = vmatprep.mubr.bf16.mxu0 %v659
        %2127 = vmatmul.mubr.bf16.gmra.mrb[0].mxu0 %v658
        %v2128 = vpop.f32.mrb[0].mxu0
        %v2129 = vadd.f32 0.0, %v2128
        %v2130 = vpop.f32.mrb[0].mxu0
        %v2131 = vadd.f32 0.0, %v2130
        %v2132 = vpop.f32.mrb[0].mxu0
        %v2133 = vadd.f32 0.0, %v2132
        %v2134 = vpop.f32.mrb[0].mxu0
        %v2135 = vadd.f32 0.0, %v2134
        %2136 = vmatprep.mubr.bf16.mxu0 %v663
        %2137 = vmatmul.mubr.bf16.gmra.mrb[0].mxu0 %v662
        %v2138 = vpop.f32.mrb[0].mxu0
        %v2139 = vadd.f32 0.0, %v2138
        %v2140 = vpop.f32.mrb[0].mxu0
        %v2141 = vadd.f32 0.0, %v2140
        %v2142 = vpop.f32.mrb[0].mxu0
        %v2143 = vadd.f32 0.0, %v2142
        %v2144 = vpop.f32.mrb[0].mxu0
        %v2145 = vadd.f32 0.0, %v2144
        %2146 = vdwg.mxu0
        %2147 = vmatprep.subr.bf16.mxu0 %v1577
        %2148 = vmatpush1.bf16.msra.mxu0 %v1576
        %2149 = vmatprep.subr.bf16.mxu0 %v1585
        %2150 = vmatpush1.bf16.msra.mxu0 %v1584
        %2151 = vmatprep.subr.bf16.mxu0 %v1593
        %2152 = vmatpush1.bf16.msra.mxu0 %v1592
        %2153 = vmatprep.subr.bf16.mxu0 %v1601
        %2154 = vmatpush1.bf16.msra.mxu0 %v1600
        %2155 = vmatprep.subr.bf16.mxu0 %v1609
        %2156 = vmatpush1.bf16.msra.mxu0 %v1608
        %2157 = vmatprep.subr.bf16.mxu0 %v1617
        %2158 = vmatpush1.bf16.msra.mxu0 %v1616
        %2159 = vmatprep.subr.bf16.mxu0 %v1625
        %2160 = vmatpush1.bf16.msra.mxu0 %v1624
        %2161 = vmatprep.subr.bf16.mxu0 %v1633
        %2162 = vmatpush1.bf16.msra.mxu0 %v1632
        %2163 = vmatprep.subr.bf16.mxu0 %v1641
        %2164 = vmatpush1.bf16.msra.mxu0 %v1640
        %2165 = vmatprep.subr.bf16.mxu0 %v1649
        %2166 = vmatpush1.bf16.msra.mxu0 %v1648
        %2167 = vmatprep.subr.bf16.mxu0 %v1657
        %2168 = vmatpush1.bf16.msra.mxu0 %v1656
        %2169 = vmatprep.subr.bf16.mxu0 %v1665
        %2170 = vmatpush1.bf16.msra.mxu0 %v1664
        %2171 = vmatprep.subr.bf16.mxu0 %v1673
        %2172 = vmatpush1.bf16.msra.mxu0 %v1672
        %2173 = vmatprep.subr.bf16.mxu0 %v1681
        %2174 = vmatpush1.bf16.msra.mxu0 %v1680
        %2175 = vmatprep.subr.bf16.mxu0 %v1689
        %2176 = vmatpush1.bf16.msra.mxu0 %v1688
        %2177 = vmatprep.subr.bf16.mxu0 %v1697
        %2178 = vmatpush1.bf16.msra.mxu0 %v1696
        %2179 = vmatprep.mubr.bf16.mxu0 %v657
        %2180 = vmatmul.mubr.bf16.gmra.mrb[0].mxu0 %v656
        %v2181 = vpop.f32.mrb[0].mxu0
        %v2182 = vadd.f32 %v2119, %v2181
        %v2183 = vpop.f32.mrb[0].mxu0
        %v2184 = vadd.f32 %v2121, %v2183
        %v2185 = vpop.f32.mrb[0].mxu0
        %v2186 = vadd.f32 %v2123, %v2185
        %v2187 = vpop.f32.mrb[0].mxu0
        %v2188 = vadd.f32 %v2125, %v2187
        %2189 = vmatprep.mubr.bf16.mxu0 %v661
        %2190 = vmatmul.mubr.bf16.gmra.mrb[0].mxu0 %v660
        %v2191 = vpop.f32.mrb[0].mxu0
        %v2192 = vadd.f32 %v2129, %v2191
        %v2193 = vpop.f32.mrb[0].mxu0
        %v2194 = vadd.f32 %v2131, %v2193
        %v2195 = vpop.f32.mrb[0].mxu0
        %v2196 = vadd.f32 %v2133, %v2195
        %v2197 = vpop.f32.mrb[0].mxu0
        %v2198 = vadd.f32 %v2135, %v2197
        %2199 = vmatprep.mubr.bf16.mxu0 %v665
        %2200 = vmatmul.mubr.bf16.gmra.mrb[0].mxu0 %v664
        %v2201 = vpop.f32.mrb[0].mxu0
        %v2202 = vadd.f32 %v2139, %v2201
        %v2203 = vpop.f32.mrb[0].mxu0
        %v2204 = vadd.f32 %v2141, %v2203
        %v2205 = vpop.f32.mrb[0].mxu0
        %v2206 = vadd.f32 %v2143, %v2205
        %v2207 = vpop.f32.mrb[0].mxu0
        %v2208 = vadd.f32 %v2145, %v2207
        %2209 = vdwg.mxu0
        %2210 = vmatprep.subr.bf16.mxu0 %v1451
        %2211 = vmatpush1.bf16.msra.mxu0 %v1450
        %2212 = vmatprep.subr.bf16.mxu0 %v1459
        %2213 = vmatpush1.bf16.msra.mxu0 %v1458
        %2214 = vmatprep.subr.bf16.mxu0 %v1467
        %2215 = vmatpush1.bf16.msra.mxu0 %v1466
        %2216 = vmatprep.subr.bf16.mxu0 %v1475
        %2217 = vmatpush1.bf16.msra.mxu0 %v1474
        %2218 = vmatprep.subr.bf16.mxu0 %v1483
        %2219 = vmatpush1.bf16.msra.mxu0 %v1482
        %2220 = vmatprep.subr.bf16.mxu0 %v1491
        %2221 = vmatpush1.bf16.msra.mxu0 %v1490
        %2222 = vmatprep.subr.bf16.mxu0 %v1499
        %2223 = vmatpush1.bf16.msra.mxu0 %v1498
        %2224 = vmatprep.subr.bf16.mxu0 %v1507
        %2225 = vmatpush1.bf16.msra.mxu0 %v1506
        %2226 = vmatprep.subr.bf16.mxu0 %v1515
        %2227 = vmatpush1.bf16.msra.mxu0 %v1514
        %2228 = vmatprep.subr.bf16.mxu0 %v1523
        %2229 = vmatpush1.bf16.msra.mxu0 %v1522
        %2230 = vmatprep.subr.bf16.mxu0 %v1531
        %2231 = vmatpush1.bf16.msra.mxu0 %v1530
        %2232 = vmatprep.subr.bf16.mxu0 %v1539
        %2233 = vmatpush1.bf16.msra.mxu0 %v1538
        %2234 = vmatprep.subr.bf16.mxu0 %v1547
        %2235 = vmatpush1.bf16.msra.mxu0 %v1546
        %2236 = vmatprep.subr.bf16.mxu0 %v1555
        %2237 = vmatpush1.bf16.msra.mxu0 %v1554
        %2238 = vmatprep.subr.bf16.mxu0 %v1563
        %2239 = vmatpush1.bf16.msra.mxu0 %v1562
        %2240 = vmatprep.subr.bf16.mxu0 %v1571
        %2241 = vmatpush1.bf16.msra.mxu0 %v1570
        %2242 = vmatprep.mubr.bf16.mxu0 %v655
        %2243 = vmatmul.mubr.bf16.gmra.mrb[0].mxu0 %v654
        %v2244 = vpop.f32.mrb[0].mxu0
        %v2245 = vadd.f32 0.0, %v2244
        %v2246 = vpop.f32.mrb[0].mxu0
        %v2247 = vadd.f32 0.0, %v2246
        %v2248 = vpop.f32.mrb[0].mxu0
        %v2249 = vadd.f32 0.0, %v2248
        %v2250 = vpop.f32.mrb[0].mxu0
        %v2251 = vadd.f32 0.0, %v2250
        %2252 = vmatprep.mubr.bf16.mxu0 %v659
        %2253 = vmatmul.mubr.bf16.gmra.mrb[0].mxu0 %v658
        %v2254 = vpop.f32.mrb[0].mxu0
        %v2255 = vadd.f32 0.0, %v2254
        %v2256 = vpop.f32.mrb[0].mxu0
        %v2257 = vadd.f32 0.0, %v2256
        %v2258 = vpop.f32.mrb[0].mxu0
        %v2259 = vadd.f32 0.0, %v2258
        %v2260 = vpop.f32.mrb[0].mxu0
        %v2261 = vadd.f32 0.0, %v2260
        %2262 = vmatprep.mubr.bf16.mxu0 %v663
        %2263 = vmatmul.mubr.bf16.gmra.mrb[0].mxu0 %v662
        %v2264 = vpop.f32.mrb[0].mxu0
        %v2265 = vadd.f32 0.0, %v2264
        %v2266 = vpop.f32.mrb[0].mxu0
        %v2267 = vadd.f32 0.0, %v2266
        %v2268 = vpop.f32.mrb[0].mxu0
        %v2269 = vadd.f32 0.0, %v2268
        %v2270 = vpop.f32.mrb[0].mxu0
        %v2271 = vadd.f32 0.0, %v2270
        %2272 = vdwg.mxu0
        %2273 = vmatprep.subr.bf16.mxu0 %v1579
        %2274 = vmatpush1.bf16.msra.mxu0 %v1578
        %2275 = vmatprep.subr.bf16.mxu0 %v1587
        %2276 = vmatpush1.bf16.msra.mxu0 %v1586
        %2277 = vmatprep.subr.bf16.mxu0 %v1595
        %2278 = vmatpush1.bf16.msra.mxu0 %v1594
        %2279 = vmatprep.subr.bf16.mxu0 %v1603
        %2280 = vmatpush1.bf16.msra.mxu0 %v1602
        %2281 = vmatprep.subr.bf16.mxu0 %v1611
        %2282 = vmatpush1.bf16.msra.mxu0 %v1610
        %2283 = vmatprep.subr.bf16.mxu0 %v1619
        %2284 = vmatpush1.bf16.msra.mxu0 %v1618
        %2285 = vmatprep.subr.bf16.mxu0 %v1627
        %2286 = vmatpush1.bf16.msra.mxu0 %v1626
        %2287 = vmatprep.subr.bf16.mxu0 %v1635
        %2288 = vmatpush1.bf16.msra.mxu0 %v1634
        %2289 = vmatprep.subr.bf16.mxu0 %v1643
        %2290 = vmatpush1.bf16.msra.mxu0 %v1642
        %2291 = vmatprep.subr.bf16.mxu0 %v1651
        %2292 = vmatpush1.bf16.msra.mxu0 %v1650
        %2293 = vmatprep.subr.bf16.mxu0 %v1659
        %2294 = vmatpush1.bf16.msra.mxu0 %v1658
        %2295 = vmatprep.subr.bf16.mxu0 %v1667
        %2296 = vmatpush1.bf16.msra.mxu0 %v1666
        %2297 = vmatprep.subr.bf16.mxu0 %v1675
        %2298 = vmatpush1.bf16.msra.mxu0 %v1674
        %2299 = vmatprep.subr.bf16.mxu0 %v1683
        %2300 = vmatpush1.bf16.msra.mxu0 %v1682
        %2301 = vmatprep.subr.bf16.mxu0 %v1691
        %2302 = vmatpush1.bf16.msra.mxu0 %v1690
        %2303 = vmatprep.subr.bf16.mxu0 %v1699
        %2304 = vmatpush1.bf16.msra.mxu0 %v1698
        %2305 = vmatprep.mubr.bf16.mxu0 %v657
        %2306 = vmatmul.mubr.bf16.gmra.mrb[0].mxu0 %v656
        %v2307 = vpop.f32.mrb[0].mxu0
        %v2308 = vadd.f32 %v2245, %v2307
        %v2309 = vpop.f32.mrb[0].mxu0
        %v2310 = vadd.f32 %v2247, %v2309
        %v2311 = vpop.f32.mrb[0].mxu0
        %v2312 = vadd.f32 %v2249, %v2311
        %v2313 = vpop.f32.mrb[0].mxu0
        %v2314 = vadd.f32 %v2251, %v2313
        %2315 = vmatprep.mubr.bf16.mxu0 %v661
        %2316 = vmatmul.mubr.bf16.gmra.mrb[0].mxu0 %v660
        %v2317 = vpop.f32.mrb[0].mxu0
        %v2318 = vadd.f32 %v2255, %v2317
        %v2319 = vpop.f32.mrb[0].mxu0
        %v2320 = vadd.f32 %v2257, %v2319
        %v2321 = vpop.f32.mrb[0].mxu0
        %v2322 = vadd.f32 %v2259, %v2321
        %v2323 = vpop.f32.mrb[0].mxu0
        %v2324 = vadd.f32 %v2261, %v2323
        %2325 = vmatprep.mubr.bf16.mxu0 %v665
        %2326 = vmatmul.mubr.bf16.gmra.mrb[0].mxu0 %v664
        %v2327 = vpop.f32.mrb[0].mxu0
        %v2328 = vadd.f32 %v2265, %v2327
        %v2329 = vpop.f32.mrb[0].mxu0
        %v2330 = vadd.f32 %v2267, %v2329
        %v2331 = vpop.f32.mrb[0].mxu0
        %v2332 = vadd.f32 %v2269, %v2331
        %v2333 = vpop.f32.mrb[0].mxu0
        %v2334 = vadd.f32 %v2271, %v2333
        %2335 = vdwg.mxu0
        %2336 = vmatprep.subr.bf16.mxu0 %v1453
        %2337 = vmatpush1.bf16.msra.mxu0 %v1452
        %2338 = vmatprep.subr.bf16.mxu0 %v1461
        %2339 = vmatpush1.bf16.msra.mxu0 %v1460
        %2340 = vmatprep.subr.bf16.mxu0 %v1469
        %2341 = vmatpush1.bf16.msra.mxu0 %v1468
        %2342 = vmatprep.subr.bf16.mxu0 %v1477
        %2343 = vmatpush1.bf16.msra.mxu0 %v1476
        %2344 = vmatprep.subr.bf16.mxu0 %v1485
        %2345 = vmatpush1.bf16.msra.mxu0 %v1484
        %2346 = vmatprep.subr.bf16.mxu0 %v1493
        %2347 = vmatpush1.bf16.msra.mxu0 %v1492
        %2348 = vmatprep.subr.bf16.mxu0 %v1501
        %2349 = vmatpush1.bf16.msra.mxu0 %v1500
        %2350 = vmatprep.subr.bf16.mxu0 %v1509
        %2351 = vmatpush1.bf16.msra.mxu0 %v1508
        %2352 = vmatprep.subr.bf16.mxu0 %v1517
        %2353 = vmatpush1.bf16.msra.mxu0 %v1516
        %2354 = vmatprep.subr.bf16.mxu0 %v1525
        %2355 = vmatpush1.bf16.msra.mxu0 %v1524
        %2356 = vmatprep.subr.bf16.mxu0 %v1533
        %2357 = vmatpush1.bf16.msra.mxu0 %v1532
        %2358 = vmatprep.subr.bf16.mxu0 %v1541
        %2359 = vmatpush1.bf16.msra.mxu0 %v1540
        %2360 = vmatprep.subr.bf16.mxu0 %v1549
        %2361 = vmatpush1.bf16.msra.mxu0 %v1548
        %2362 = vmatprep.subr.bf16.mxu0 %v1557
        %2363 = vmatpush1.bf16.msra.mxu0 %v1556
        %2364 = vmatprep.subr.bf16.mxu0 %v1565
        %2365 = vmatpush1.bf16.msra.mxu0 %v1564
        %2366 = vmatprep.subr.bf16.mxu0 %v1573
        %2367 = vmatpush1.bf16.msra.mxu0 %v1572
        %2368 = vmatprep.mubr.bf16.mxu0 %v655
        %2369 = vmatmul.mubr.bf16.gmra.mrb[0].mxu0 %v654
        %v2370 = vpop.f32.mrb[0].mxu0
        %v2371 = vadd.f32 0.0, %v2370
        %v2372 = vpop.f32.mrb[0].mxu0
        %v2373 = vadd.f32 0.0, %v2372
        %v2374 = vpop.f32.mrb[0].mxu0
        %v2375 = vadd.f32 0.0, %v2374
        %v2376 = vpop.f32.mrb[0].mxu0
        %v2377 = vadd.f32 0.0, %v2376
        %2378 = vmatprep.mubr.bf16.mxu0 %v659
        %2379 = vmatmul.mubr.bf16.gmra.mrb[0].mxu0 %v658
        %v2380 = vpop.f32.mrb[0].mxu0
        %v2381 = vadd.f32 0.0, %v2380
        %v2382 = vpop.f32.mrb[0].mxu0
        %v2383 = vadd.f32 0.0, %v2382
        %v2384 = vpop.f32.mrb[0].mxu0
        %v2385 = vadd.f32 0.0, %v2384
        %v2386 = vpop.f32.mrb[0].mxu0
        %v2387 = vadd.f32 0.0, %v2386
        %2388 = vmatprep.mubr.bf16.mxu0 %v663
        %2389 = vmatmul.mubr.bf16.gmra.mrb[0].mxu0 %v662
        %v2390 = vpop.f32.mrb[0].mxu0
        %v2391 = vadd.f32 0.0, %v2390
        %v2392 = vpop.f32.mrb[0].mxu0
        %v2393 = vadd.f32 0.0, %v2392
        %v2394 = vpop.f32.mrb[0].mxu0
        %v2395 = vadd.f32 0.0, %v2394
        %v2396 = vpop.f32.mrb[0].mxu0
        %v2397 = vadd.f32 0.0, %v2396
        %2398 = vdwg.mxu0
        %2399 = vmatprep.subr.bf16.mxu0 %v1581
        %2400 = vmatpush1.bf16.msra.mxu0 %v1580
        %2401 = vmatprep.subr.bf16.mxu0 %v1589
        %2402 = vmatpush1.bf16.msra.mxu0 %v1588
        %2403 = vmatprep.subr.bf16.mxu0 %v1597
        %2404 = vmatpush1.bf16.msra.mxu0 %v1596
        %2405 = vmatprep.subr.bf16.mxu0 %v1605
        %2406 = vmatpush1.bf16.msra.mxu0 %v1604
        %2407 = vmatprep.subr.bf16.mxu0 %v1613
        %2408 = vmatpush1.bf16.msra.mxu0 %v1612
        %2409 = vmatprep.subr.bf16.mxu0 %v1621
        %2410 = vmatpush1.bf16.msra.mxu0 %v1620
        %2411 = vmatprep.subr.bf16.mxu0 %v1629
        %2412 = vmatpush1.bf16.msra.mxu0 %v1628
        %2413 = vmatprep.subr.bf16.mxu0 %v1637
        %2414 = vmatpush1.bf16.msra.mxu0 %v1636
        %2415 = vmatprep.subr.bf16.mxu0 %v1645
        %2416 = vmatpush1.bf16.msra.mxu0 %v1644
        %2417 = vmatprep.subr.bf16.mxu0 %v1653
        %2418 = vmatpush1.bf16.msra.mxu0 %v1652
        %2419 = vmatprep.subr.bf16.mxu0 %v1661
        %2420 = vmatpush1.bf16.msra.mxu0 %v1660
        %2421 = vmatprep.subr.bf16.mxu0 %v1669
        %2422 = vmatpush1.bf16.msra.mxu0 %v1668
        %2423 = vmatprep.subr.bf16.mxu0 %v1677
        %2424 = vmatpush1.bf16.msra.mxu0 %v1676
        %2425 = vmatprep.subr.bf16.mxu0 %v1685
        %2426 = vmatpush1.bf16.msra.mxu0 %v1684
        %2427 = vmatprep.subr.bf16.mxu0 %v1693
        %2428 = vmatpush1.bf16.msra.mxu0 %v1692
        %2429 = vmatprep.subr.bf16.mxu0 %v1701
        %2430 = vmatpush1.bf16.msra.mxu0 %v1700
        %2431 = vmatprep.mubr.bf16.mxu0 %v657
        %2432 = vmatmul.mubr.bf16.gmra.mrb[0].mxu0 %v656
        %v2433 = vpop.f32.mrb[0].mxu0
        %v2434 = vadd.f32 %v2371, %v2433
        %v2435 = vpop.f32.mrb[0].mxu0
        %v2436 = vadd.f32 %v2373, %v2435
        %v2437 = vpop.f32.mrb[0].mxu0
        %v2438 = vadd.f32 %v2375, %v2437
        %v2439 = vpop.f32.mrb[0].mxu0
        %v2440 = vadd.f32 %v2377, %v2439
        %2441 = vmatprep.mubr.bf16.mxu0 %v661
        %2442 = vmatmul.mubr.bf16.gmra.mrb[0].mxu0 %v660
        %v2443 = vpop.f32.mrb[0].mxu0
        %v2444 = vadd.f32 %v2381, %v2443
        %v2445 = vpop.f32.mrb[0].mxu0
        %v2446 = vadd.f32 %v2383, %v2445
        %v2447 = vpop.f32.mrb[0].mxu0
        %v2448 = vadd.f32 %v2385, %v2447
        %v2449 = vpop.f32.mrb[0].mxu0
        %v2450 = vadd.f32 %v2387, %v2449
        %2451 = vmatprep.mubr.bf16.mxu0 %v665
        %2452 = vmatmul.mubr.bf16.gmra.mrb[0].mxu0 %v664
        %v2453 = vpop.f32.mrb[0].mxu0
        %v2454 = vadd.f32 %v2391, %v2453
        %v2455 = vpop.f32.mrb[0].mxu0
        %v2456 = vadd.f32 %v2393, %v2455
        %v2457 = vpop.f32.mrb[0].mxu0
        %v2458 = vadd.f32 %v2395, %v2457
        %v2459 = vpop.f32.mrb[0].mxu0
        %v2460 = vadd.f32 %v2397, %v2459
        %2461 = vdwg.mxu0
        %v2462 = vadd.f32 %v302, %v2056
        %v2463 = vadd.f32 %v303, %v2058
        %v2464 = vadd.f32 %v304, %v2182
        %v2465 = vadd.f32 %v305, %v2184
        %v2466 = vadd.f32 %v306, %v2308
        %v2467 = vadd.f32 %v307, %v2310
        %v2468 = vadd.f32 %v308, %v2434
        %v2469 = vadd.f32 %v309, %v2436
        %v2470 = vadd.f32 %v310, %v2060
        %v2471 = vadd.f32 %v311, %v2062
        %v2472 = vadd.f32 %v312, %v2186
        %v2473 = vadd.f32 %v313, %v2188
        %v2474 = vadd.f32 %v314, %v2312
        %v2475 = vadd.f32 %v315, %v2314
        %v2476 = vadd.f32 %v316, %v2438
        %v2477 = vadd.f32 %v317, %v2440
        %v2478 = vadd.f32 %v318, %v2066
        %v2479 = vadd.f32 %v319, %v2068
        %v2480 = vadd.f32 %v320, %v2192
        %v2481 = vadd.f32 %v321, %v2194
        %v2482 = vadd.f32 %v322, %v2318
        %v2483 = vadd.f32 %v323, %v2320
        %v2484 = vadd.f32 %v324, %v2444
        %v2485 = vadd.f32 %v325, %v2446
        %v2486 = vadd.f32 %v326, %v2070
        %v2487 = vadd.f32 %v327, %v2072
        %v2488 = vadd.f32 %v328, %v2196
        %v2489 = vadd.f32 %v329, %v2198
        %v2490 = vadd.f32 %v330, %v2322
        %v2491 = vadd.f32 %v331, %v2324
        %v2492 = vadd.f32 %v332, %v2448
        %v2493 = vadd.f32 %v333, %v2450
        %v2494 = vadd.f32 %v334, %v2076
        %v2495 = vadd.f32 %v335, %v2078
        %v2496 = vadd.f32 %v336, %v2202
        %v2497 = vadd.f32 %v337, %v2204
        %v2498 = vadd.f32 %v338, %v2328
        %v2499 = vadd.f32 %v339, %v2330
        %v2500 = vadd.f32 %v340, %v2454
        %v2501 = vadd.f32 %v341, %v2456
        %v2502 = vadd.f32 %v342, %v2080
        %v2503 = vadd.f32 %v343, %v2082
        %v2504 = vadd.f32 %v344, %v2206
        %v2505 = vadd.f32 %v345, %v2208
        %v2506 = vadd.f32 %v346, %v2332
        %v2507 = vadd.f32 %v347, %v2334
        %v2508 = vadd.f32 %v348, %v2458
        %v2509 = vadd.f32 %v349, %v2460
        %2510 = vst [vmem:[#allocation2] sm:$0xff] %v2462
        %2511 = vst [vmem:[#allocation2 + $0x8] sm:$0xff] %v2463
        %2512 = vst [vmem:[#allocation2 + $0x10] sm:$0xff] %v2464
        %2513 = vst [vmem:[#allocation2 + $0x18] sm:$0xff] %v2465
        %2514 = vst [vmem:[#allocation2 + $0x20] sm:$0xff] %v2466
        %2515 = vst [vmem:[#allocation2 + $0x28] sm:$0xff] %v2467
        %2516 = vst [vmem:[#allocation2 + $0x30] sm:$0xff] %v2468
        %2517 = vst [vmem:[#allocation2 + $0x38] sm:$0xff] %v2469
        %2518 = vst [vmem:[#allocation2 + $0x40] sm:$0xff] %v2470
        %2519 = vst [vmem:[#allocation2 + $0x48] sm:$0xff] %v2471
        %2520 = vst [vmem:[#allocation2 + $0x50] sm:$0xff] %v2472
        %2521 = vst [vmem:[#allocation2 + $0x58] sm:$0xff] %v2473
        %2522 = vst [vmem:[#allocation2 + $0x60] sm:$0xff] %v2474
        %2523 = vst [vmem:[#allocation2 + $0x68] sm:$0xff] %v2475
        %2524 = vst [vmem:[#allocation2 + $0x70] sm:$0xff] %v2476
        %2525 = vst [vmem:[#allocation2 + $0x78] sm:$0xff] %v2477
        %2526 = vst [vmem:[#allocation2 + $0x80] sm:$0xff] %v2478
        %2527 = vst [vmem:[#allocation2 + $0x88] sm:$0xff] %v2479
        %2528 = vst [vmem:[#allocation2 + $0x90] sm:$0xff] %v2480
        %2529 = vst [vmem:[#allocation2 + $0x98] sm:$0xff] %v2481
        %2530 = vst [vmem:[#allocation2 + $0xa0] sm:$0xff] %v2482
        %2531 = vst [vmem:[#allocation2 + $0xa8] sm:$0xff] %v2483
        %2532 = vst [vmem:[#allocation2 + $0xb0] sm:$0xff] %v2484
        %2533 = vst [vmem:[#allocation2 + $0xb8] sm:$0xff] %v2485
        %2534 = vst [vmem:[#allocation2 + $0xc0] sm:$0xff] %v2486
        %2535 = vst [vmem:[#allocation2 + $0xc8] sm:$0xff] %v2487
        %2536 = vst [vmem:[#allocation2 + $0xd0] sm:$0xff] %v2488
        %2537 = vst [vmem:[#allocation2 + $0xd8] sm:$0xff] %v2489
        %2538 = vst [vmem:[#allocation2 + $0xe0] sm:$0xff] %v2490
        %2539 = vst [vmem:[#allocation2 + $0xe8] sm:$0xff] %v2491
        %2540 = vst [vmem:[#allocation2 + $0xf0] sm:$0xff] %v2492
        %2541 = vst [vmem:[#allocation2 + $0xf8] sm:$0xff] %v2493
        %2542 = vst [vmem:[#allocation2 + $0x100] sm:$0xff] %v2494
        %2543 = vst [vmem:[#allocation2 + $0x108] sm:$0xff] %v2495
        %2544 = vst [vmem:[#allocation2 + $0x110] sm:$0xff] %v2496
        %2545 = vst [vmem:[#allocation2 + $0x118] sm:$0xff] %v2497
        %2546 = vst [vmem:[#allocation2 + $0x120] sm:$0xff] %v2498
        %2547 = vst [vmem:[#allocation2 + $0x128] sm:$0xff] %v2499
        %2548 = vst [vmem:[#allocation2 + $0x130] sm:$0xff] %v2500
        %2549 = vst [vmem:[#allocation2 + $0x138] sm:$0xff] %v2501
        %2550 = vst [vmem:[#allocation2 + $0x140] sm:$0xff] %v2502
        %2551 = vst [vmem:[#allocation2 + $0x148] sm:$0xff] %v2503
        %2552 = vst [vmem:[#allocation2 + $0x150] sm:$0xff] %v2504
        %2553 = vst [vmem:[#allocation2 + $0x158] sm:$0xff] %v2505
        %2554 = vst [vmem:[#allocation2 + $0x160] sm:$0xff] %v2506
        %2555 = vst [vmem:[#allocation2 + $0x168] sm:$0xff] %v2507
        %2556 = vst [vmem:[#allocation2 + $0x170] sm:$0xff] %v2508
        %2557 = vst [vmem:[#allocation2 + $0x178] sm:$0xff] %v2509
        %p2558 = scmp.eq.s32.totalorder %s23, 4
        // Predicated region
        $region45: #{discriminator_p_forward.9} parent=31 // pred_check
          %p2559 = pneg %p2558
        $region46: #{discriminator_p_forward.9} parent=31 // pred_check_branch
          %2561 = sbr.rel (%p2559) target = $region48
        $region47: #{discriminator_p_forward.9} parent=31 // pred_region
          %v2562 = vld [vmem:[#allocation2] sm:$0xff]
          %v2563 = vld [vmem:[#allocation2 + $0x8] sm:$0xff]
          %v2564 = vld [vmem:[#allocation2 + $0x10] sm:$0xff]
          %v2565 = vld [vmem:[#allocation2 + $0x18] sm:$0xff]
          %v2566 = vld [vmem:[#allocation2 + $0x20] sm:$0xff]
          %v2567 = vld [vmem:[#allocation2 + $0x28] sm:$0xff]
          %v2568 = vld [vmem:[#allocation2 + $0x30] sm:$0xff]
          %v2569 = vld [vmem:[#allocation2 + $0x38] sm:$0xff]
          %v2570 = vld [vmem:[#allocation2 + $0x40] sm:$0xff]
          %v2571 = vld [vmem:[#allocation2 + $0x48] sm:$0xff]
          %v2572 = vld [vmem:[#allocation2 + $0x50] sm:$0xff]
          %v2573 = vld [vmem:[#allocation2 + $0x58] sm:$0xff]
          %v2574 = vld [vmem:[#allocation2 + $0x60] sm:$0xff]
          %v2575 = vld [vmem:[#allocation2 + $0x68] sm:$0xff]
          %v2576 = vld [vmem:[#allocation2 + $0x70] sm:$0xff]
          %v2577 = vld [vmem:[#allocation2 + $0x78] sm:$0xff]
          %v2578 = vld [vmem:[#allocation2 + $0x80] sm:$0xff]
          %v2579 = vld [vmem:[#allocation2 + $0x88] sm:$0xff]
          %v2580 = vld [vmem:[#allocation2 + $0x90] sm:$0xff]
          %v2581 = vld [vmem:[#allocation2 + $0x98] sm:$0xff]
          %v2582 = vld [vmem:[#allocation2 + $0xa0] sm:$0xff]
          %v2583 = vld [vmem:[#allocation2 + $0xa8] sm:$0xff]
          %v2584 = vld [vmem:[#allocation2 + $0xb0] sm:$0xff]
          %v2585 = vld [vmem:[#allocation2 + $0xb8] sm:$0xff]
          %v2586 = vld [vmem:[#allocation2 + $0xc0] sm:$0xff]
          %v2587 = vld [vmem:[#allocation2 + $0xc8] sm:$0xff]
          %v2588 = vld [vmem:[#allocation2 + $0xd0] sm:$0xff]
          %v2589 = vld [vmem:[#allocation2 + $0xd8] sm:$0xff]
          %v2590 = vld [vmem:[#allocation2 + $0xe0] sm:$0xff]
          %v2591 = vld [vmem:[#allocation2 + $0xe8] sm:$0xff]
          %v2592 = vld [vmem:[#allocation2 + $0xf0] sm:$0xff]
          %v2593 = vld [vmem:[#allocation2 + $0xf8] sm:$0xff]
          %v2594 = vld [vmem:[#allocation2 + $0x100] sm:$0xff]
          %v2595 = vld [vmem:[#allocation2 + $0x108] sm:$0xff]
          %v2596 = vld [vmem:[#allocation2 + $0x110] sm:$0xff]
          %v2597 = vld [vmem:[#allocation2 + $0x118] sm:$0xff]
          %v2598 = vld [vmem:[#allocation2 + $0x120] sm:$0xff]
          %v2599 = vld [vmem:[#allocation2 + $0x128] sm:$0xff]
          %v2600 = vld [vmem:[#allocation2 + $0x130] sm:$0xff]
          %v2601 = vld [vmem:[#allocation2 + $0x138] sm:$0xff]
          %v2602 = vld [vmem:[#allocation2 + $0x140] sm:$0xff]
          %v2603 = vld [vmem:[#allocation2 + $0x148] sm:$0xff]
          %v2604 = vld [vmem:[#allocation2 + $0x150] sm:$0xff]
          %v2605 = vld [vmem:[#allocation2 + $0x158] sm:$0xff]
          %v2606 = vld [vmem:[#allocation2 + $0x160] sm:$0xff]
          %v2607 = vld [vmem:[#allocation2 + $0x168] sm:$0xff]
          %v2608 = vld [vmem:[#allocation2 + $0x170] sm:$0xff]
          %v2609 = vld [vmem:[#allocation2 + $0x178] sm:$0xff]
          %v2610 = vld [vmem:[#allocation5] sm:$0xff]
          %v2612 = vlaneseq
          %v2613 = vshrl.u32 %v2612, 7
          %v2614 = vsub.s32 0, %v2613
          %v2615 = vrot.slane %v2610, %v2614
          %v2616 = vlaneseq
          %v2617 = vshrl.u32 %v2616, 7
          %v2618 = vsub.s32 1, %v2617
          %v2619 = vrot.slane %v2610, %v2618
          %v2620 = vlaneseq
          %v2621 = vshrl.u32 %v2620, 7
          %v2622 = vsub.s32 2, %v2621
          %v2623 = vrot.slane %v2610, %v2622
          %v2624 = vlaneseq
          %v2625 = vshrl.u32 %v2624, 7
          %v2626 = vsub.s32 3, %v2625
          %v2627 = vrot.slane %v2610, %v2626
          %v2628 = vlaneseq
          %v2629 = vshrl.u32 %v2628, 7
          %v2630 = vsub.s32 4, %v2629
          %v2631 = vrot.slane %v2610, %v2630
          %v2632 = vlaneseq
          %v2633 = vshrl.u32 %v2632, 7
          %v2634 = vsub.s32 5, %v2633
          %v2635 = vrot.slane %v2610, %v2634
          %v2636 = vlaneseq
          %v2637 = vshrl.u32 %v2636, 7
          %v2638 = vsub.s32 6, %v2637
          %v2639 = vrot.slane %v2610, %v2638
          %v2640 = vlaneseq
          %v2641 = vshrl.u32 %v2640, 7
          %v2642 = vsub.s32 7, %v2641
          %v2643 = vrot.slane %v2610, %v2642
          %v2652 = vadd.f32 %v2562, %v2615
          %v2653 = vadd.f32 %v2563, %v2619
          %v2654 = vadd.f32 %v2564, %v2623
          %v2655 = vadd.f32 %v2565, %v2627
          %v2656 = vadd.f32 %v2566, %v2631
          %v2657 = vadd.f32 %v2567, %v2635
          %v2658 = vadd.f32 %v2568, %v2639
          %v2659 = vadd.f32 %v2569, %v2643
          %v2660 = vadd.f32 %v2570, %v2615
          %v2661 = vadd.f32 %v2571, %v2619
          %v2662 = vadd.f32 %v2572, %v2623
          %v2663 = vadd.f32 %v2573, %v2627
          %v2664 = vadd.f32 %v2574, %v2631
          %v2665 = vadd.f32 %v2575, %v2635
          %v2666 = vadd.f32 %v2576, %v2639
          %v2667 = vadd.f32 %v2577, %v2643
          %v2668 = vadd.f32 %v2578, %v2615
          %v2669 = vadd.f32 %v2579, %v2619
          %v2670 = vadd.f32 %v2580, %v2623
          %v2671 = vadd.f32 %v2581, %v2627
          %v2672 = vadd.f32 %v2582, %v2631
          %v2673 = vadd.f32 %v2583, %v2635
          %v2674 = vadd.f32 %v2584, %v2639
          %v2675 = vadd.f32 %v2585, %v2643
          %v2676 = vadd.f32 %v2586, %v2615
          %v2677 = vadd.f32 %v2587, %v2619
          %v2678 = vadd.f32 %v2588, %v2623
          %v2679 = vadd.f32 %v2589, %v2627
          %v2680 = vadd.f32 %v2590, %v2631
          %v2681 = vadd.f32 %v2591, %v2635
          %v2682 = vadd.f32 %v2592, %v2639
          %v2683 = vadd.f32 %v2593, %v2643
          %v2684 = vadd.f32 %v2594, %v2615
          %v2685 = vadd.f32 %v2595, %v2619
          %v2686 = vadd.f32 %v2596, %v2623
          %v2687 = vadd.f32 %v2597, %v2627
          %v2688 = vadd.f32 %v2598, %v2631
          %v2689 = vadd.f32 %v2599, %v2635
          %v2690 = vadd.f32 %v2600, %v2639
          %v2691 = vadd.f32 %v2601, %v2643
          %v2692 = vadd.f32 %v2602, %v2615
          %v2693 = vadd.f32 %v2603, %v2619
          %v2694 = vadd.f32 %v2604, %v2623
          %v2695 = vadd.f32 %v2605, %v2627
          %v2696 = vadd.f32 %v2606, %v2631
          %v2697 = vadd.f32 %v2607, %v2635
          %v2698 = vadd.f32 %v2608, %v2639
          %v2699 = vadd.f32 %v2609, %v2643
          %vm2700 = vcmp.ge.f32.partialorder %v2652, 0.0
          %vm2701 = vcmp.ge.f32.partialorder %v2653, 0.0
          %vm2702 = vcmp.ge.f32.partialorder %v2654, 0.0
          %vm2703 = vcmp.ge.f32.partialorder %v2655, 0.0
          %vm2704 = vcmp.ge.f32.partialorder %v2656, 0.0
          %vm2705 = vcmp.ge.f32.partialorder %v2657, 0.0
          %vm2706 = vcmp.ge.f32.partialorder %v2658, 0.0
          %vm2707 = vcmp.ge.f32.partialorder %v2659, 0.0
          %vm2708 = vcmp.ge.f32.partialorder %v2660, 0.0
          %vm2709 = vcmp.ge.f32.partialorder %v2661, 0.0
          %vm2710 = vcmp.ge.f32.partialorder %v2662, 0.0
          %vm2711 = vcmp.ge.f32.partialorder %v2663, 0.0
          %vm2712 = vcmp.ge.f32.partialorder %v2664, 0.0
          %vm2713 = vcmp.ge.f32.partialorder %v2665, 0.0
          %vm2714 = vcmp.ge.f32.partialorder %v2666, 0.0
          %vm2715 = vcmp.ge.f32.partialorder %v2667, 0.0
          %vm2716 = vcmp.ge.f32.partialorder %v2668, 0.0
          %vm2717 = vcmp.ge.f32.partialorder %v2669, 0.0
          %vm2718 = vcmp.ge.f32.partialorder %v2670, 0.0
          %vm2719 = vcmp.ge.f32.partialorder %v2671, 0.0
          %vm2720 = vcmp.ge.f32.partialorder %v2672, 0.0
          %vm2721 = vcmp.ge.f32.partialorder %v2673, 0.0
          %vm2722 = vcmp.ge.f32.partialorder %v2674, 0.0
          %vm2723 = vcmp.ge.f32.partialorder %v2675, 0.0
          %vm2724 = vcmp.ge.f32.partialorder %v2676, 0.0
          %vm2725 = vcmp.ge.f32.partialorder %v2677, 0.0
          %vm2726 = vcmp.ge.f32.partialorder %v2678, 0.0
          %vm2727 = vcmp.ge.f32.partialorder %v2679, 0.0
          %vm2728 = vcmp.ge.f32.partialorder %v2680, 0.0
          %vm2729 = vcmp.ge.f32.partialorder %v2681, 0.0
          %vm2730 = vcmp.ge.f32.partialorder %v2682, 0.0
          %vm2731 = vcmp.ge.f32.partialorder %v2683, 0.0
          %vm2732 = vcmp.ge.f32.partialorder %v2684, 0.0
          %vm2733 = vcmp.ge.f32.partialorder %v2685, 0.0
          %vm2734 = vcmp.ge.f32.partialorder %v2686, 0.0
          %vm2735 = vcmp.ge.f32.partialorder %v2687, 0.0
          %vm2736 = vcmp.ge.f32.partialorder %v2688, 0.0
          %vm2737 = vcmp.ge.f32.partialorder %v2689, 0.0
          %vm2738 = vcmp.ge.f32.partialorder %v2690, 0.0
          %vm2739 = vcmp.ge.f32.partialorder %v2691, 0.0
          %vm2740 = vcmp.ge.f32.partialorder %v2692, 0.0
          %vm2741 = vcmp.ge.f32.partialorder %v2693, 0.0
          %vm2742 = vcmp.ge.f32.partialorder %v2694, 0.0
          %vm2743 = vcmp.ge.f32.partialorder %v2695, 0.0
          %vm2744 = vcmp.ge.f32.partialorder %v2696, 0.0
          %vm2745 = vcmp.ge.f32.partialorder %v2697, 0.0
          %vm2746 = vcmp.ge.f32.partialorder %v2698, 0.0
          %vm2747 = vcmp.ge.f32.partialorder %v2699, 0.0
          %v2748 = vmul.f32 %v2652, 0.1
          %v2749 = vmul.f32 %v2653, 0.1
          %v2750 = vmul.f32 %v2654, 0.1
          %v2751 = vmul.f32 %v2655, 0.1
          %v2752 = vmul.f32 %v2656, 0.1
          %v2753 = vmul.f32 %v2657, 0.1
          %v2754 = vmul.f32 %v2658, 0.1
          %v2755 = vmul.f32 %v2659, 0.1
          %v2756 = vmul.f32 %v2660, 0.1
          %v2757 = vmul.f32 %v2661, 0.1
          %v2758 = vmul.f32 %v2662, 0.1
          %v2759 = vmul.f32 %v2663, 0.1
          %v2760 = vmul.f32 %v2664, 0.1
          %v2761 = vmul.f32 %v2665, 0.1
          %v2762 = vmul.f32 %v2666, 0.1
          %v2763 = vmul.f32 %v2667, 0.1
          %v2764 = vmul.f32 %v2668, 0.1
          %v2765 = vmul.f32 %v2669, 0.1
          %v2766 = vmul.f32 %v2670, 0.1
          %v2767 = vmul.f32 %v2671, 0.1
          %v2768 = vmul.f32 %v2672, 0.1
          %v2769 = vmul.f32 %v2673, 0.1
          %v2770 = vmul.f32 %v2674, 0.1
          %v2771 = vmul.f32 %v2675, 0.1
          %v2772 = vmul.f32 %v2676, 0.1
          %v2773 = vmul.f32 %v2677, 0.1
          %v2774 = vmul.f32 %v2678, 0.1
          %v2775 = vmul.f32 %v2679, 0.1
          %v2776 = vmul.f32 %v2680, 0.1
          %v2777 = vmul.f32 %v2681, 0.1
          %v2778 = vmul.f32 %v2682, 0.1
          %v2779 = vmul.f32 %v2683, 0.1
          %v2780 = vmul.f32 %v2684, 0.1
          %v2781 = vmul.f32 %v2685, 0.1
          %v2782 = vmul.f32 %v2686, 0.1
          %v2783 = vmul.f32 %v2687, 0.1
          %v2784 = vmul.f32 %v2688, 0.1
          %v2785 = vmul.f32 %v2689, 0.1
          %v2786 = vmul.f32 %v2690, 0.1
          %v2787 = vmul.f32 %v2691, 0.1
          %v2788 = vmul.f32 %v2692, 0.1
          %v2789 = vmul.f32 %v2693, 0.1
          %v2790 = vmul.f32 %v2694, 0.1
          %v2791 = vmul.f32 %v2695, 0.1
          %v2792 = vmul.f32 %v2696, 0.1
          %v2793 = vmul.f32 %v2697, 0.1
          %v2794 = vmul.f32 %v2698, 0.1
          %v2795 = vmul.f32 %v2699, 0.1
          %v2796 = vsel %vm2700, %v2652, %v2748
          %v2797 = vsel %vm2701, %v2653, %v2749
          %v2798 = vsel %vm2702, %v2654, %v2750
          %v2799 = vsel %vm2703, %v2655, %v2751
          %v2800 = vsel %vm2704, %v2656, %v2752
          %v2801 = vsel %vm2705, %v2657, %v2753
          %v2802 = vsel %vm2706, %v2658, %v2754
          %v2803 = vsel %vm2707, %v2659, %v2755
          %v2804 = vsel %vm2708, %v2660, %v2756
          %v2805 = vsel %vm2709, %v2661, %v2757
          %v2806 = vsel %vm2710, %v2662, %v2758
          %v2807 = vsel %vm2711, %v2663, %v2759
          %v2808 = vsel %vm2712, %v2664, %v2760
          %v2809 = vsel %vm2713, %v2665, %v2761
          %v2810 = vsel %vm2714, %v2666, %v2762
          %v2811 = vsel %vm2715, %v2667, %v2763
          %v2812 = vsel %vm2716, %v2668, %v2764
          %v2813 = vsel %vm2717, %v2669, %v2765
          %v2814 = vsel %vm2718, %v2670, %v2766
          %v2815 = vsel %vm2719, %v2671, %v2767
          %v2816 = vsel %vm2720, %v2672, %v2768
          %v2817 = vsel %vm2721, %v2673, %v2769
          %v2818 = vsel %vm2722, %v2674, %v2770
          %v2819 = vsel %vm2723, %v2675, %v2771
          %v2820 = vsel %vm2724, %v2676, %v2772
          %v2821 = vsel %vm2725, %v2677, %v2773
          %v2822 = vsel %vm2726, %v2678, %v2774
          %v2823 = vsel %vm2727, %v2679, %v2775
          %v2824 = vsel %vm2728, %v2680, %v2776
          %v2825 = vsel %vm2729, %v2681, %v2777
          %v2826 = vsel %vm2730, %v2682, %v2778
          %v2827 = vsel %vm2731, %v2683, %v2779
          %v2828 = vsel %vm2732, %v2684, %v2780
          %v2829 = vsel %vm2733, %v2685, %v2781
          %v2830 = vsel %vm2734, %v2686, %v2782
          %v2831 = vsel %vm2735, %v2687, %v2783
          %v2832 = vsel %vm2736, %v2688, %v2784
          %v2833 = vsel %vm2737, %v2689, %v2785
          %v2834 = vsel %vm2738, %v2690, %v2786
          %v2835 = vsel %vm2739, %v2691, %v2787
          %v2836 = vsel %vm2740, %v2692, %v2788
          %v2837 = vsel %vm2741, %v2693, %v2789
          %v2838 = vsel %vm2742, %v2694, %v2790
          %v2839 = vsel %vm2743, %v2695, %v2791
          %v2840 = vsel %vm2744, %v2696, %v2792
          %v2841 = vsel %vm2745, %v2697, %v2793
          %v2842 = vsel %vm2746, %v2698, %v2794
          %v2843 = vsel %vm2747, %v2699, %v2795
          %v2844 = vpack.c.bf16 %v2796, %v2796
          %v2845 = vpack.c.bf16 %v2797, %v2797
          %v2846 = vpack.c.bf16 %v2798, %v2798
          %v2847 = vpack.c.bf16 %v2799, %v2799
          %v2848 = vpack.c.bf16 %v2800, %v2800
          %v2849 = vpack.c.bf16 %v2801, %v2801
          %v2850 = vpack.c.bf16 %v2802, %v2802
          %v2851 = vpack.c.bf16 %v2803, %v2803
          %v2852 = vpack.c.bf16 %v2804, %v2804
          %v2853 = vpack.c.bf16 %v2805, %v2805
          %v2854 = vpack.c.bf16 %v2806, %v2806
          %v2855 = vpack.c.bf16 %v2807, %v2807
          %v2856 = vpack.c.bf16 %v2808, %v2808
          %v2857 = vpack.c.bf16 %v2809, %v2809
          %v2858 = vpack.c.bf16 %v2810, %v2810
          %v2859 = vpack.c.bf16 %v2811, %v2811
          %v2860 = vpack.c.bf16 %v2812, %v2812
          %v2861 = vpack.c.bf16 %v2813, %v2813
          %v2862 = vpack.c.bf16 %v2814, %v2814
          %v2863 = vpack.c.bf16 %v2815, %v2815
          %v2864 = vpack.c.bf16 %v2816, %v2816
          %v2865 = vpack.c.bf16 %v2817, %v2817
          %v2866 = vpack.c.bf16 %v2818, %v2818
          %v2867 = vpack.c.bf16 %v2819, %v2819
          %v2868 = vpack.c.bf16 %v2820, %v2820
          %v2869 = vpack.c.bf16 %v2821, %v2821
          %v2870 = vpack.c.bf16 %v2822, %v2822
          %v2871 = vpack.c.bf16 %v2823, %v2823
          %v2872 = vpack.c.bf16 %v2824, %v2824
          %v2873 = vpack.c.bf16 %v2825, %v2825
          %v2874 = vpack.c.bf16 %v2826, %v2826
          %v2875 = vpack.c.bf16 %v2827, %v2827
          %v2876 = vpack.c.bf16 %v2828, %v2828
          %v2877 = vpack.c.bf16 %v2829, %v2829
          %v2878 = vpack.c.bf16 %v2830, %v2830
          %v2879 = vpack.c.bf16 %v2831, %v2831
          %v2880 = vpack.c.bf16 %v2832, %v2832
          %v2881 = vpack.c.bf16 %v2833, %v2833
          %v2882 = vpack.c.bf16 %v2834, %v2834
          %v2883 = vpack.c.bf16 %v2835, %v2835
          %v2884 = vpack.c.bf16 %v2836, %v2836
          %v2885 = vpack.c.bf16 %v2837, %v2837
          %v2886 = vpack.c.bf16 %v2838, %v2838
          %v2887 = vpack.c.bf16 %v2839, %v2839
          %v2888 = vpack.c.bf16 %v2840, %v2840
          %v2889 = vpack.c.bf16 %v2841, %v2841
          %v2890 = vpack.c.bf16 %v2842, %v2842
          %v2891 = vpack.c.bf16 %v2843, %v2843
          %v2940 = vunpack.c.l.b16 %v2844
          %v2941 = vunpack.c.l.b16 %v2845
          %v2942 = vunpack.c.l.b16 %v2846
          %v2943 = vunpack.c.l.b16 %v2847
          %v2944 = vunpack.c.l.b16 %v2848
          %v2945 = vunpack.c.l.b16 %v2849
          %v2946 = vunpack.c.l.b16 %v2850
          %v2947 = vunpack.c.l.b16 %v2851
          %v2948 = vunpack.c.l.b16 %v2852
          %v2949 = vunpack.c.l.b16 %v2853
          %v2950 = vunpack.c.l.b16 %v2854
          %v2951 = vunpack.c.l.b16 %v2855
          %v2952 = vunpack.c.l.b16 %v2856
          %v2953 = vunpack.c.l.b16 %v2857
          %v2954 = vunpack.c.l.b16 %v2858
          %v2955 = vunpack.c.l.b16 %v2859
          %v2956 = vunpack.c.l.b16 %v2860
          %v2957 = vunpack.c.l.b16 %v2861
          %v2958 = vunpack.c.l.b16 %v2862
          %v2959 = vunpack.c.l.b16 %v2863
          %v2960 = vunpack.c.l.b16 %v2864
          %v2961 = vunpack.c.l.b16 %v2865
          %v2962 = vunpack.c.l.b16 %v2866
          %v2963 = vunpack.c.l.b16 %v2867
          %v2964 = vunpack.c.l.b16 %v2868
          %v2965 = vunpack.c.l.b16 %v2869
          %v2966 = vunpack.c.l.b16 %v2870
          %v2967 = vunpack.c.l.b16 %v2871
          %v2968 = vunpack.c.l.b16 %v2872
          %v2969 = vunpack.c.l.b16 %v2873
          %v2970 = vunpack.c.l.b16 %v2874
          %v2971 = vunpack.c.l.b16 %v2875
          %v2972 = vunpack.c.l.b16 %v2876
          %v2973 = vunpack.c.l.b16 %v2877
          %v2974 = vunpack.c.l.b16 %v2878
          %v2975 = vunpack.c.l.b16 %v2879
          %v2976 = vunpack.c.l.b16 %v2880
          %v2977 = vunpack.c.l.b16 %v2881
          %v2978 = vunpack.c.l.b16 %v2882
          %v2979 = vunpack.c.l.b16 %v2883
          %v2980 = vunpack.c.l.b16 %v2884
          %v2981 = vunpack.c.l.b16 %v2885
          %v2982 = vunpack.c.l.b16 %v2886
          %v2983 = vunpack.c.l.b16 %v2887
          %v2984 = vunpack.c.l.b16 %v2888
          %v2985 = vunpack.c.l.b16 %v2889
          %v2986 = vunpack.c.l.b16 %v2890
          %v2987 = vunpack.c.l.b16 %v2891
          %v2988 = vpack.c.b16 %v2941, %v2940
          %v2989 = vpack.c.b16 %v2943, %v2942
          %v2990 = vpack.c.b16 %v2945, %v2944
          %v2991 = vpack.c.b16 %v2947, %v2946
          %v2992 = vpack.c.b16 %v2949, %v2948
          %v2993 = vpack.c.b16 %v2951, %v2950
          %v2994 = vpack.c.b16 %v2953, %v2952
          %v2995 = vpack.c.b16 %v2955, %v2954
          %v2996 = vpack.c.b16 %v2957, %v2956
          %v2997 = vpack.c.b16 %v2959, %v2958
          %v2998 = vpack.c.b16 %v2961, %v2960
          %v2999 = vpack.c.b16 %v2963, %v2962
          %v3000 = vpack.c.b16 %v2965, %v2964
          %v3001 = vpack.c.b16 %v2967, %v2966
          %v3002 = vpack.c.b16 %v2969, %v2968
          %v3003 = vpack.c.b16 %v2971, %v2970
          %v3004 = vpack.c.b16 %v2973, %v2972
          %v3005 = vpack.c.b16 %v2975, %v2974
          %v3006 = vpack.c.b16 %v2977, %v2976
          %v3007 = vpack.c.b16 %v2979, %v2978
          %v3008 = vpack.c.b16 %v2981, %v2980
          %v3009 = vpack.c.b16 %v2983, %v2982
          %v3010 = vpack.c.b16 %v2985, %v2984
          %v3011 = vpack.c.b16 %v2987, %v2986
          %3036 = vst [vmem:[%s249] sm:$0xff] %v2988
          %3037 = vst [vmem:[%s249 + $0x8] sm:$0xff] %v2989
          %3038 = vst [vmem:[%s249 + $0x10] sm:$0xff] %v2990
          %3039 = vst [vmem:[%s249 + $0x18] sm:$0xff] %v2991
          %3040 = vst [vmem:[%s249 + $0x20] sm:$0xff] %v2992
          %3041 = vst [vmem:[%s249 + $0x28] sm:$0xff] %v2993
          %3042 = vst [vmem:[%s249 + $0x30] sm:$0xff] %v2994
          %3043 = vst [vmem:[%s249 + $0x38] sm:$0xff] %v2995
          %3044 = vst [vmem:[%s249 + $0x40] sm:$0xff] %v2996
          %3045 = vst [vmem:[%s249 + $0x48] sm:$0xff] %v2997
          %3046 = vst [vmem:[%s249 + $0x50] sm:$0xff] %v2998
          %3047 = vst [vmem:[%s249 + $0x58] sm:$0xff] %v2999
          %3048 = vst [vmem:[%s249 + $0x60] sm:$0xff] %v3000
          %3049 = vst [vmem:[%s249 + $0x68] sm:$0xff] %v3001
          %3050 = vst [vmem:[%s249 + $0x70] sm:$0xff] %v3002
          %3051 = vst [vmem:[%s249 + $0x78] sm:$0xff] %v3003
          %3052 = vst [vmem:[%s249 + $0x80] sm:$0xff] %v3004
          %3053 = vst [vmem:[%s249 + $0x88] sm:$0xff] %v3005
          %3054 = vst [vmem:[%s249 + $0x90] sm:$0xff] %v3006
          %3055 = vst [vmem:[%s249 + $0x98] sm:$0xff] %v3007
          %3056 = vst [vmem:[%s249 + $0xa0] sm:$0xff] %v3008
          %3057 = vst [vmem:[%s249 + $0xa8] sm:$0xff] %v3009
          %3058 = vst [vmem:[%s249 + $0xb0] sm:$0xff] %v3010
          %3059 = vst [vmem:[%s249 + $0xb8] sm:$0xff] %v3011
        $region48: #{discriminator_p_forward.9} parent=31 // pred_fallthru
          _
        %p3060 = scmp.lt.s32.totalorder %s22, 0
        %s3061 = scalar_select %p3060, %s22, 0
        %s3062 = smul.addr %s3061, 8
        %s3063 = smul.addr %s3062, 4
        %s3064 = scalar_lea.vmem %s3, %s3063
        // Predicated region
        $region49: #{discriminator_p_forward.9} parent=31 // pred_check
          %p3065 = pneg %p123
        $region50: #{discriminator_p_forward.9} parent=31 // pred_check_branch
          %3067 = sbr.rel (%p3065) target = $region52
        $region51: #{discriminator_p_forward.9} parent=31 // pred_region
          _
        $region52: #{discriminator_p_forward.9} parent=31 // pred_fallthru
          _
        // Predicated region
        $region53: #{discriminator_p_forward.9} parent=31 // pred_check
          %p3068 = pneg %p123
        $region54: #{discriminator_p_forward.9} parent=31 // pred_check_branch
          %3070 = sbr.rel (%p3068) target = $region56
        $region55: #{discriminator_p_forward.9} parent=31 // pred_region
          %p3071 = scmp.lt.s32.totalorder %s22, 0
          %s3072 = scalar_select %p3071, %s22, 0
          %s3073 = smul.addr %s3072, 8
          %s3074 = smul.addr %s3073, 4
          %s3075 = scalar_lea.vmem %s3, %s3074
        $region56: #{discriminator_p_forward.9} parent=31 // pred_fallthru
          _
      $region32: #{discriminator_p_forward.9} parent=5 // pred_fallthru
        _
      %p3076 = scmp.le.s32.totalorder 2, %s13
      // Predicated region
      $region57: #{discriminator_p_forward.9} parent=5 // pred_check
        %p3077 = pneg %p3076
      $region58: #{discriminator_p_forward.9} parent=5 // pred_check_branch
        %3079 = sbr.rel (%p3077) target = $region60
      $region59: #{discriminator_p_forward.9} parent=5 // pred_region
        %s3080 = ssub.s32 %s13, 2
      $region60: #{discriminator_p_forward.9} parent=5 // pred_fallthru
        _
    $region6: #{discriminator_p_forward.9} parent=1 // loop_footer
      %s17 = sadd.s32 1, %s13
    $region7: #{discriminator_p_forward.9} parent=1 // loop_footer_branch
      %12 = sbr.rel target = $region3
    $region8: #{discriminator_p_forward.9} parent=1 // loop_exit
      _
    %3081 = vsyncpa [#allocation4], 1
    %s3082 = scalar_lea.sflag [#allocation4], 1
    %3083 = vsyncpa %s3082, 1
    %3084 = vsyncpa [#allocation6], 1

// kernel: discriminator_p_forward.11
$region0: #{discriminator_p_forward.11}
  #allocation0 [shape = 'u32[]', space=smem, size = 0x4, offset = 0x4, fixed_abs, tag = 'smem constant byte address 0x4 - core index']
  #allocation1 [shape = 'u32[144,128]{1,0:T(1,128)}', space=vmem, size = 0x12000, scoped, tag = 'internal scratch']
  #allocation2 [shape = 'f32[6,8,1]{2,1,0:T(8,128)}', space=vmem, size = 0x6000, scoped, tag = 'scratch operand']
  #allocation3 [shape = 'f32[1,1]{1,0:T(1,128)S(1)}', space=vmem, size = 0x200, scoped, tag = 'scoped memory for discriminator_p_forward.11']
  %s0 = inlined_call_operand.vmem [shape: bf16[3,6,8,1024], index: 0, kind: input, shape index: {}]
  %s1 = inlined_call_operand.vmem [shape: bf16[3,1024,1], index: 1, kind: input, shape index: {}]
  %s2 = inlined_call_operand.<no memory space> [shape: f32[1,1], index: 2, kind: input, shape index: {}]
  %s3 = inlined_call_operand.vmem [shape: bf16[6,8,1], index: 3, kind: output, shape index: {}]
  %s4 = sld [smem:[#allocation0]]
  $region53: #{discriminator_p_forward.11} parent=0
    _
  %s6 = ssub.s32 1, %s4
  %s7 = scalar_select 0, %s6, %s4
  %v8 = vstv %s2
  %9 = vst [vmem:[#allocation3] sm:$0x1] %v8
  loop: start=0, step=1, limit=5
  $region2: #{discriminator_p_forward.11} parent=0 // loop_pre_header
    _
  $region3: #{discriminator_p_forward.11} parent=0 // loop_header
    %s11 = sphi 0, %s15
    %p12 = scmp.ge.s32.totalorder %s11, 5
    %s18 = sphi 0, %s30
    %s19 = sphi 0, %s26
    %s20 = sphi 0, %s18
    %s21 = sphi 0, %s19
    %s22 = sphi 0, %s20
    %s23 = sphi 0, %s21
    %s35 = sphi 0, %s37
    %s38 = sphi 0, %s35
    %s39 = sphi 0, %s38
    %s55 = sphi 0, %s39
    %s61 = sphi 0, %s63
    %s64 = sphi 0, %s61
    %s65 = sphi 0, %s64
    %s81 = sphi 0, %s65
    %s85 = sphi 0, %s85
    %s87 = sphi 0, %s85
    %s88 = sphi 0, %s87
    %s102 = sphi 0, %s88
    %s108 = sphi 0, %s110
    %s111 = sphi 0, %s108
    %s112 = sphi 0, %s111
    %s128 = sphi 0, %s112
  $region4: #{discriminator_p_forward.11} parent=0 // loop_header_branch
    %14 = sbr.rel (%p12) target = $region8
  $region5: #{discriminator_p_forward.11} parent=0 // loop_body
    %s16 = ssub.s32 %s11, 1
    %s17 = ssub.s32 %s11, 2
    %s24 = sadd.s32 1, %s19
    %p25 = scmp.ge.s32.totalorder %s24, 3
    %s26 = scalar_select %p25, 0, %s24
    %s27 = sadd.s32 1, %s18
    %s28 = scalar_select %p25, %s27, %s18
    %p29 = scmp.ge.s32.totalorder %s28, 1
    %s30 = scalar_select %p29, 0, %s28
    %s31 = ssub.s32 %s19, %s26
    %s32 = ssub.s32 %s18, %s30
    %s33 = sor.u32 %s31, %s32
    %p34 = scmp.eq.s32.totalorder %s33, 0
    %s36 = sadd.s32 %s35, 1
    %s37 = scalar_select %p34, %s35, %s36
    %p40 = pneg %p34
    %p41 = scmp.eq.s32.totalorder %s11, 2
    %p42 = por %p40, %p41
    %p43 = scmp.ne.s32.totalorder %s35, %s38
    %p44 = scmp.eq.s32.totalorder %s11, 0
    %p45 = por %p43, %p44
    %p46 = scmp.ne.s32.totalorder %s35, %s38
    %p47 = scmp.eq.s32.totalorder %s16, 2
    %p48 = por %p46, %p47
    %p49 = scmp.ne.s32.totalorder %s38, %s39
    %p50 = scmp.eq.s32.totalorder %s16, 0
    %p51 = por %p49, %p50
    %p52 = scmp.ne.s32.totalorder %s38, %s39
    %p53 = scmp.eq.s32.totalorder %s17, 2
    %p54 = por %p52, %p53
    %p56 = scmp.ne.s32.totalorder %s39, %s55
    %p57 = scmp.eq.s32.totalorder %s17, 0
    %p58 = por %p56, %p57
    %s59 = ssub.s32 %s19, %s26
    %p60 = scmp.eq.s32.totalorder %s59, 0
    %s62 = sadd.s32 %s61, 1
    %s63 = scalar_select %p60, %s61, %s62
    %p66 = pneg %p60
    %p67 = scmp.eq.s32.totalorder %s11, 2
    %p68 = por %p66, %p67
    %p69 = scmp.ne.s32.totalorder %s61, %s64
    %p70 = scmp.eq.s32.totalorder %s11, 0
    %p71 = por %p69, %p70
    %p72 = scmp.ne.s32.totalorder %s61, %s64
    %p73 = scmp.eq.s32.totalorder %s16, 2
    %p74 = por %p72, %p73
    %p75 = scmp.ne.s32.totalorder %s64, %s65
    %p76 = scmp.eq.s32.totalorder %s16, 0
    %p77 = por %p75, %p76
    %p78 = scmp.ne.s32.totalorder %s64, %s65
    %p79 = scmp.eq.s32.totalorder %s17, 2
    %p80 = por %p78, %p79
    %p82 = scmp.ne.s32.totalorder %s65, %s81
    %p83 = scmp.eq.s32.totalorder %s17, 0
    %p84 = por %p82, %p83
    %s86 = sadd.s32 %s85, 1
    %p89 = scmp.eq.s32.totalorder %s11, 2
    %p90 = scmp.ne.s32.totalorder %s85, %s87
    %p91 = scmp.eq.s32.totalorder %s11, 0
    %p92 = por %p90, %p91
    %p93 = scmp.ne.s32.totalorder %s85, %s87
    %p94 = scmp.eq.s32.totalorder %s16, 2
    %p95 = por %p93, %p94
    %p96 = scmp.ne.s32.totalorder %s87, %s88
    %p97 = scmp.eq.s32.totalorder %s16, 0
    %p98 = por %p96, %p97
    %p99 = scmp.ne.s32.totalorder %s87, %s88
    %p100 = scmp.eq.s32.totalorder %s17, 2
    %p101 = por %p99, %p100
    %p103 = scmp.ne.s32.totalorder %s88, %s102
    %p104 = scmp.eq.s32.totalorder %s17, 0
    %p105 = por %p103, %p104
    %s106 = ssub.s32 %s18, %s30
    %p107 = scmp.eq.s32.totalorder %s106, 0
    %s109 = sadd.s32 %s108, 1
    %s110 = scalar_select %p107, %s108, %s109
    %p113 = pneg %p107
    %p114 = scmp.eq.s32.totalorder %s11, 2
    %p115 = por %p113, %p114
    %p116 = scmp.ne.s32.totalorder %s108, %s111
    %p117 = scmp.eq.s32.totalorder %s11, 0
    %p118 = por %p116, %p117
    %p119 = scmp.ne.s32.totalorder %s108, %s111
    %p120 = scmp.eq.s32.totalorder %s16, 2
    %p121 = por %p119, %p120
    %p122 = scmp.ne.s32.totalorder %s111, %s112
    %p123 = scmp.eq.s32.totalorder %s16, 0
    %p124 = por %p122, %p123
    %p125 = scmp.ne.s32.totalorder %s111, %s112
    %p126 = scmp.eq.s32.totalorder %s17, 2
    %p127 = por %p125, %p126
    %p129 = scmp.ne.s32.totalorder %s112, %s128
    %p130 = scmp.eq.s32.totalorder %s17, 0
    %p131 = por %p129, %p130
    %p132 = scmp.le.s32.totalorder 1, %s11
    %p133 = scmp.lt.s32.totalorder %s11, 4
    %p134 = pnand %p132, %p133
    %p135 = pneg %p134
    // Predicated region
    $region9: #{discriminator_p_forward.11} parent=5 // pred_check
      _
    $region10: #{discriminator_p_forward.11} parent=5 // pred_check_branch
      %137 = sbr.rel (%p134) target = $region12
    $region11: #{discriminator_p_forward.11} parent=5 // pred_region
      %s138 = ssub.s32 %s11, 1
      // Predicated region
      $region13: #{discriminator_p_forward.11} parent=11 // pred_check
        %p139 = pneg %p98
      $region14: #{discriminator_p_forward.11} parent=11 // pred_check_branch
        %141 = sbr.rel (%p139) target = $region16
      $region15: #{discriminator_p_forward.11} parent=11 // pred_region
        _
      $region16: #{discriminator_p_forward.11} parent=11 // pred_fallthru
        _
    $region12: #{discriminator_p_forward.11} parent=5 // pred_fallthru
      _
    %p142 = scmp.lt.s32.totalorder %s11, 3
    // Predicated region
    $region17: #{discriminator_p_forward.11} parent=5 // pred_check
      %p143 = pneg %p142
    $region18: #{discriminator_p_forward.11} parent=5 // pred_check_branch
      %145 = sbr.rel (%p143) target = $region20
    $region19: #{discriminator_p_forward.11} parent=5 // pred_region
      // Predicated region
      $region21: #{discriminator_p_forward.11} parent=19 // pred_check
        %p146 = pneg %p45
      $region22: #{discriminator_p_forward.11} parent=19 // pred_check_branch
        %148 = sbr.rel (%p146) target = $region24
      $region23: #{discriminator_p_forward.11} parent=19 // pred_region
        %p149 = scmp.lt.s32.totalorder %s19, 2
        %s150 = scalar_select %p149, %s19, 2
        %p151 = scmp.lt.s32.totalorder %s18, 0
        %s152 = scalar_select %p151, %s18, 0
        %s153 = smul.addr %s152, 8
        %s154 = smul.addr %s150, 48
        %s155 = sadd.s32 %s153, %s154
        %s156 = smul.addr %s155, 4
        %s157 = scalar_lea.vmem %s0, %s156
      $region24: #{discriminator_p_forward.11} parent=19 // pred_fallthru
        _
      // Predicated region
      $region25: #{discriminator_p_forward.11} parent=19 // pred_check
        %p158 = pneg %p71
      $region26: #{discriminator_p_forward.11} parent=19 // pred_check_branch
        %160 = sbr.rel (%p158) target = $region28
      $region27: #{discriminator_p_forward.11} parent=19 // pred_region
        %p161 = scmp.lt.s32.totalorder %s19, 2
        %s162 = scalar_select %p161, %s19, 2
        %s163 = smul.addr %s162, 128
        %s164 = smul.addr %s163, 4
        %s165 = scalar_lea.vmem %s1, %s164
      $region28: #{discriminator_p_forward.11} parent=19 // pred_fallthru
        _
    $region20: #{discriminator_p_forward.11} parent=5 // pred_fallthru
      _
    %p166 = scmp.le.s32.totalorder 1, %s11
    %p167 = scmp.lt.s32.totalorder %s11, 4
    %p168 = pnand %p166, %p167
    %p169 = pneg %p168
    // Predicated region
    $region29: #{discriminator_p_forward.11} parent=5 // pred_check
      _
    $region30: #{discriminator_p_forward.11} parent=5 // pred_check_branch
      %171 = sbr.rel (%p168) target = $region32
    $region31: #{discriminator_p_forward.11} parent=5 // pred_region
      %s172 = ssub.s32 %s11, 1
      %p173 = scmp.lt.s32.totalorder %s21, 2
      %s174 = scalar_select %p173, %s21, 2
      %p175 = scmp.lt.s32.totalorder %s20, 0
      %s176 = scalar_select %p175, %s20, 0
      %s177 = smul.addr %s176, 8
      %s178 = smul.addr %s174, 48
      %s179 = sadd.s32 %s177, %s178
      %s180 = smul.addr %s179, 4
      %s181 = scalar_lea.vmem %s0, %s180
      %p182 = pneg %p51
      %p183 = pneg %p48
      %p184 = scmp.lt.s32.totalorder %s21, 2
      %s185 = scalar_select %p184, %s21, 2
      %s186 = smul.addr %s185, 128
      %s187 = smul.addr %s186, 4
      %s188 = scalar_lea.vmem %s1, %s187
      %p189 = pneg %p77
      %p190 = pneg %p74
      %p191 = pneg %p98
      %p192 = pneg %p95
      %p193 = pneg %p124
      %p194 = pneg %p121
      %p195 = scmp.lt.s32.totalorder %s20, 0
      %s196 = scalar_select %p195, %s20, 0
      %s197 = smul.addr %s196, 4
      %s198 = scalar_lea.vmem %s3, %s197
      %p199 = scmp.lt.s32.totalorder %s21, 2
      %s200 = scalar_select %p199, %s21, 2
      %p201 = scmp.lt.s32.totalorder %s20, 0
      %s202 = scalar_select %p201, %s20, 0
      %s203 = smul.addr %s202, 8
      %s204 = smul.addr %s200, 48
      %s205 = sadd.s32 %s203, %s204
      %s206 = smul.addr %s205, 4
      %s207 = scalar_lea.vmem %s0, %s206
      %p208 = scmp.lt.s32.totalorder %s21, 2
      %s209 = scalar_select %p208, %s21, 2
      %s210 = smul.addr %s209, 128
      %s211 = smul.addr %s210, 4
      %s212 = scalar_lea.vmem %s1, %s211
      %p213 = scmp.lt.s32.totalorder %s20, 0
      %s214 = scalar_select %p213, %s20, 0
      %s215 = smul.addr %s214, 4
      %s216 = scalar_lea.vmem %s3, %s215
      %p218 = scmp.eq.s32.totalorder %s21, 0
      // Predicated region
      $region33: #{discriminator_p_forward.11} parent=31 // pred_check
        %p219 = pneg %p218
      $region34: #{discriminator_p_forward.11} parent=31 // pred_check_branch
        %221 = sbr.rel (%p219) target = $region36
      $region35: #{discriminator_p_forward.11} parent=31 // pred_region
        %vm222 = vcmask 7168
        %223 = vst.msk [vmem:[#allocation2] sm:$0xff] %vm222, 0.0
        %224 = vst.msk [vmem:[#allocation2 + $0x8] sm:$0xff] %vm222, 0.0
        %225 = vst.msk [vmem:[#allocation2 + $0x10] sm:$0xff] %vm222, 0.0
        %226 = vst.msk [vmem:[#allocation2 + $0x18] sm:$0xff] %vm222, 0.0
        %227 = vst.msk [vmem:[#allocation2 + $0x20] sm:$0xff] %vm222, 0.0
        %228 = vst.msk [vmem:[#allocation2 + $0x28] sm:$0xff] %vm222, 0.0
      $region36: #{discriminator_p_forward.11} parent=31 // pred_fallthru
        _
      %v229 = vld [vmem:[#allocation2] sm:$0xff]
      %v230 = vld [vmem:[#allocation2 + $0x8] sm:$0xff]
      %v231 = vld [vmem:[#allocation2 + $0x10] sm:$0xff]
      %v232 = vld [vmem:[#allocation2 + $0x18] sm:$0xff]
      %v233 = vld [vmem:[#allocation2 + $0x20] sm:$0xff]
      %v234 = vld [vmem:[#allocation2 + $0x28] sm:$0xff]
      %v235 = vld [vmem:[%s207] sm:$0xff]
      %v236 = vld [vmem:[%s207 + $0x8] sm:$0xff]
      %v237 = vld [vmem:[%s207 + $0x10] sm:$0xff]
      %v238 = vld [vmem:[%s207 + $0x18] sm:$0xff]
      %v239 = vld [vmem:[%s207 + $0x20] sm:$0xff]
      %v240 = vld [vmem:[%s207 + $0x28] sm:$0xff]
      %v241 = vld [vmem:[%s207 + $0x30] sm:$0xff]
      %v242 = vld [vmem:[%s207 + $0x38] sm:$0xff]
      %v243 = vld [vmem:[%s207 + $0x40] sm:$0xff]
      %v244 = vld [vmem:[%s207 + $0x48] sm:$0xff]
      %v245 = vld [vmem:[%s207 + $0x50] sm:$0xff]
      %v246 = vld [vmem:[%s207 + $0x58] sm:$0xff]
      %v247 = vld [vmem:[%s207 + $0x60] sm:$0xff]
      %v248 = vld [vmem:[%s207 + $0x68] sm:$0xff]
      %v249 = vld [vmem:[%s207 + $0x70] sm:$0xff]
      %v250 = vld [vmem:[%s207 + $0x78] sm:$0xff]
      %v251 = vld [vmem:[%s207 + $0x80] sm:$0xff]
      %v252 = vld [vmem:[%s207 + $0x88] sm:$0xff]
      %v253 = vld [vmem:[%s207 + $0x90] sm:$0xff]
      %v254 = vld [vmem:[%s207 + $0x98] sm:$0xff]
      %v255 = vld [vmem:[%s207 + $0xa0] sm:$0xff]
      %v256 = vld [vmem:[%s207 + $0xa8] sm:$0xff]
      %v257 = vld [vmem:[%s207 + $0xb0] sm:$0xff]
      %v258 = vld [vmem:[%s207 + $0xb8] sm:$0xff]
      %v259 = vld [vmem:[%s212] sm:$0xf]
      %v260 = vld [vmem:[%s212 + $0x4] sm:$0xf]
      %v261 = vld [vmem:[%s212 + $0x8] sm:$0xf]
      %v262 = vld [vmem:[%s212 + $0xc] sm:$0xf]
      %v263 = vld [vmem:[%s212 + $0x10] sm:$0xf]
      %v264 = vld [vmem:[%s212 + $0x14] sm:$0xf]
      %v265 = vld [vmem:[%s212 + $0x18] sm:$0xf]
      %v266 = vld [vmem:[%s212 + $0x1c] sm:$0xf]
      %v267 = vld [vmem:[%s212 + $0x20] sm:$0xf]
      %v268 = vld [vmem:[%s212 + $0x24] sm:$0xf]
      %v269 = vld [vmem:[%s212 + $0x28] sm:$0xf]
      %v270 = vld [vmem:[%s212 + $0x2c] sm:$0xf]
      %v271 = vld [vmem:[%s212 + $0x30] sm:$0xf]
      %v272 = vld [vmem:[%s212 + $0x34] sm:$0xf]
      %v273 = vld [vmem:[%s212 + $0x38] sm:$0xf]
      %v274 = vld [vmem:[%s212 + $0x3c] sm:$0xf]
      %v275 = vld [vmem:[%s212 + $0x40] sm:$0xf]
      %v276 = vld [vmem:[%s212 + $0x44] sm:$0xf]
      %v277 = vld [vmem:[%s212 + $0x48] sm:$0xf]
      %v278 = vld [vmem:[%s212 + $0x4c] sm:$0xf]
      %v279 = vld [vmem:[%s212 + $0x50] sm:$0xf]
      %v280 = vld [vmem:[%s212 + $0x54] sm:$0xf]
      %v281 = vld [vmem:[%s212 + $0x58] sm:$0xf]
      %v282 = vld [vmem:[%s212 + $0x5c] sm:$0xf]
      %v283 = vld [vmem:[%s212 + $0x60] sm:$0xf]
      %v284 = vld [vmem:[%s212 + $0x64] sm:$0xf]
      %v285 = vld [vmem:[%s212 + $0x68] sm:$0xf]
      %v286 = vld [vmem:[%s212 + $0x6c] sm:$0xf]
      %v287 = vld [vmem:[%s212 + $0x70] sm:$0xf]
      %v288 = vld [vmem:[%s212 + $0x74] sm:$0xf]
      %v289 = vld [vmem:[%s212 + $0x78] sm:$0xf]
      %v290 = vld [vmem:[%s212 + $0x7c] sm:$0xf]
      %v291 = vld [vmem:[%s212 + $0x80] sm:$0xf]
      %v292 = vld [vmem:[%s212 + $0x84] sm:$0xf]
      %v293 = vld [vmem:[%s212 + $0x88] sm:$0xf]
      %v294 = vld [vmem:[%s212 + $0x8c] sm:$0xf]
      %v295 = vld [vmem:[%s212 + $0x90] sm:$0xf]
      %v296 = vld [vmem:[%s212 + $0x94] sm:$0xf]
      %v297 = vld [vmem:[%s212 + $0x98] sm:$0xf]
      %v298 = vld [vmem:[%s212 + $0x9c] sm:$0xf]
      %v299 = vld [vmem:[%s212 + $0xa0] sm:$0xf]
      %v300 = vld [vmem:[%s212 + $0xa4] sm:$0xf]
      %v301 = vld [vmem:[%s212 + $0xa8] sm:$0xf]
      %v302 = vld [vmem:[%s212 + $0xac] sm:$0xf]
      %v303 = vld [vmem:[%s212 + $0xb0] sm:$0xf]
      %v304 = vld [vmem:[%s212 + $0xb4] sm:$0xf]
      %v305 = vld [vmem:[%s212 + $0xb8] sm:$0xf]
      %v306 = vld [vmem:[%s212 + $0xbc] sm:$0xf]
      %v307 = vld [vmem:[%s212 + $0xc0] sm:$0xf]
      %v308 = vld [vmem:[%s212 + $0xc4] sm:$0xf]
      %v309 = vld [vmem:[%s212 + $0xc8] sm:$0xf]
      %v310 = vld [vmem:[%s212 + $0xcc] sm:$0xf]
      %v311 = vld [vmem:[%s212 + $0xd0] sm:$0xf]
      %v312 = vld [vmem:[%s212 + $0xd4] sm:$0xf]
      %v313 = vld [vmem:[%s212 + $0xd8] sm:$0xf]
      %v314 = vld [vmem:[%s212 + $0xdc] sm:$0xf]
      %v315 = vld [vmem:[%s212 + $0xe0] sm:$0xf]
      %v316 = vld [vmem:[%s212 + $0xe4] sm:$0xf]
      %v317 = vld [vmem:[%s212 + $0xe8] sm:$0xf]
      %v318 = vld [vmem:[%s212 + $0xec] sm:$0xf]
      %v319 = vld [vmem:[%s212 + $0xf0] sm:$0xf]
      %v320 = vld [vmem:[%s212 + $0xf4] sm:$0xf]
      %v321 = vld [vmem:[%s212 + $0xf8] sm:$0xf]
      %v322 = vld [vmem:[%s212 + $0xfc] sm:$0xf]
      %v323 = vld [vmem:[%s212 + $0x100] sm:$0xf]
      %v324 = vld [vmem:[%s212 + $0x104] sm:$0xf]
      %v325 = vld [vmem:[%s212 + $0x108] sm:$0xf]
      %v326 = vld [vmem:[%s212 + $0x10c] sm:$0xf]
      %v327 = vld [vmem:[%s212 + $0x110] sm:$0xf]
      %v328 = vld [vmem:[%s212 + $0x114] sm:$0xf]
      %v329 = vld [vmem:[%s212 + $0x118] sm:$0xf]
      %v330 = vld [vmem:[%s212 + $0x11c] sm:$0xf]
      %v331 = vld [vmem:[%s212 + $0x120] sm:$0xf]
      %v332 = vld [vmem:[%s212 + $0x124] sm:$0xf]
      %v333 = vld [vmem:[%s212 + $0x128] sm:$0xf]
      %v334 = vld [vmem:[%s212 + $0x12c] sm:$0xf]
      %v335 = vld [vmem:[%s212 + $0x130] sm:$0xf]
      %v336 = vld [vmem:[%s212 + $0x134] sm:$0xf]
      %v337 = vld [vmem:[%s212 + $0x138] sm:$0xf]
      %v338 = vld [vmem:[%s212 + $0x13c] sm:$0xf]
      %v339 = vld [vmem:[%s212 + $0x140] sm:$0xf]
      %v340 = vld [vmem:[%s212 + $0x144] sm:$0xf]
      %v341 = vld [vmem:[%s212 + $0x148] sm:$0xf]
      %v342 = vld [vmem:[%s212 + $0x14c] sm:$0xf]
      %v343 = vld [vmem:[%s212 + $0x150] sm:$0xf]
      %v344 = vld [vmem:[%s212 + $0x154] sm:$0xf]
      %v345 = vld [vmem:[%s212 + $0x158] sm:$0xf]
      %v346 = vld [vmem:[%s212 + $0x15c] sm:$0xf]
      %v347 = vld [vmem:[%s212 + $0x160] sm:$0xf]
      %v348 = vld [vmem:[%s212 + $0x164] sm:$0xf]
      %v349 = vld [vmem:[%s212 + $0x168] sm:$0xf]
      %v350 = vld [vmem:[%s212 + $0x16c] sm:$0xf]
      %v351 = vld [vmem:[%s212 + $0x170] sm:$0xf]
      %v352 = vld [vmem:[%s212 + $0x174] sm:$0xf]
      %v353 = vld [vmem:[%s212 + $0x178] sm:$0xf]
      %v354 = vld [vmem:[%s212 + $0x17c] sm:$0xf]
      %v355 = vld [vmem:[%s212 + $0x180] sm:$0xf]
      %v356 = vld [vmem:[%s212 + $0x184] sm:$0xf]
      %v357 = vld [vmem:[%s212 + $0x188] sm:$0xf]
      %v358 = vld [vmem:[%s212 + $0x18c] sm:$0xf]
      %v359 = vld [vmem:[%s212 + $0x190] sm:$0xf]
      %v360 = vld [vmem:[%s212 + $0x194] sm:$0xf]
      %v361 = vld [vmem:[%s212 + $0x198] sm:$0xf]
      %v362 = vld [vmem:[%s212 + $0x19c] sm:$0xf]
      %v363 = vld [vmem:[%s212 + $0x1a0] sm:$0xf]
      %v364 = vld [vmem:[%s212 + $0x1a4] sm:$0xf]
      %v365 = vld [vmem:[%s212 + $0x1a8] sm:$0xf]
      %v366 = vld [vmem:[%s212 + $0x1ac] sm:$0xf]
      %v367 = vld [vmem:[%s212 + $0x1b0] sm:$0xf]
      %v368 = vld [vmem:[%s212 + $0x1b4] sm:$0xf]
      %v369 = vld [vmem:[%s212 + $0x1b8] sm:$0xf]
      %v370 = vld [vmem:[%s212 + $0x1bc] sm:$0xf]
      %v371 = vld [vmem:[%s212 + $0x1c0] sm:$0xf]
      %v372 = vld [vmem:[%s212 + $0x1c4] sm:$0xf]
      %v373 = vld [vmem:[%s212 + $0x1c8] sm:$0xf]
      %v374 = vld [vmem:[%s212 + $0x1cc] sm:$0xf]
      %v375 = vld [vmem:[%s212 + $0x1d0] sm:$0xf]
      %v376 = vld [vmem:[%s212 + $0x1d4] sm:$0xf]
      %v377 = vld [vmem:[%s212 + $0x1d8] sm:$0xf]
      %v378 = vld [vmem:[%s212 + $0x1dc] sm:$0xf]
      %v379 = vld [vmem:[%s212 + $0x1e0] sm:$0xf]
      %v380 = vld [vmem:[%s212 + $0x1e4] sm:$0xf]
      %v381 = vld [vmem:[%s212 + $0x1e8] sm:$0xf]
      %v382 = vld [vmem:[%s212 + $0x1ec] sm:$0xf]
      %v383 = vld [vmem:[%s212 + $0x1f0] sm:$0xf]
      %v384 = vld [vmem:[%s212 + $0x1f4] sm:$0xf]
      %v385 = vld [vmem:[%s212 + $0x1f8] sm:$0xf]
      %v386 = vld [vmem:[%s212 + $0x1fc] sm:$0xf]
      %v411 = vunpack.c.l.b16 %v235
      %v412 = vunpack.c.h.b16 %v235
      %v413 = vunpack.c.l.b16 %v236
      %v414 = vunpack.c.h.b16 %v236
      %v415 = vunpack.c.l.b16 %v237
      %v416 = vunpack.c.h.b16 %v237
      %v417 = vunpack.c.l.b16 %v238
      %v418 = vunpack.c.h.b16 %v238
      %v419 = vunpack.c.l.b16 %v239
      %v420 = vunpack.c.h.b16 %v239
      %v421 = vunpack.c.l.b16 %v240
      %v422 = vunpack.c.h.b16 %v240
      %v423 = vunpack.c.l.b16 %v241
      %v424 = vunpack.c.h.b16 %v241
      %v425 = vunpack.c.l.b16 %v242
      %v426 = vunpack.c.h.b16 %v242
      %v427 = vunpack.c.l.b16 %v243
      %v428 = vunpack.c.h.b16 %v243
      %v429 = vunpack.c.l.b16 %v244
      %v430 = vunpack.c.h.b16 %v244
      %v431 = vunpack.c.l.b16 %v245
      %v432 = vunpack.c.h.b16 %v245
      %v433 = vunpack.c.l.b16 %v246
      %v434 = vunpack.c.h.b16 %v246
      %v435 = vunpack.c.l.b16 %v247
      %v436 = vunpack.c.h.b16 %v247
      %v437 = vunpack.c.l.b16 %v248
      %v438 = vunpack.c.h.b16 %v248
      %v439 = vunpack.c.l.b16 %v249
      %v440 = vunpack.c.h.b16 %v249
      %v441 = vunpack.c.l.b16 %v250
      %v442 = vunpack.c.h.b16 %v250
      %v443 = vunpack.c.l.b16 %v251
      %v444 = vunpack.c.h.b16 %v251
      %v445 = vunpack.c.l.b16 %v252
      %v446 = vunpack.c.h.b16 %v252
      %v447 = vunpack.c.l.b16 %v253
      %v448 = vunpack.c.h.b16 %v253
      %v449 = vunpack.c.l.b16 %v254
      %v450 = vunpack.c.h.b16 %v254
      %v451 = vunpack.c.l.b16 %v255
      %v452 = vunpack.c.h.b16 %v255
      %v453 = vunpack.c.l.b16 %v256
      %v454 = vunpack.c.h.b16 %v256
      %v455 = vunpack.c.l.b16 %v257
      %v456 = vunpack.c.h.b16 %v257
      %v457 = vunpack.c.l.b16 %v258
      %v458 = vunpack.c.h.b16 %v258
      %v459 = vpack.c.b16 %v419, %v411
      %v460 = vpack.c.b16 %v420, %v412
      %v461 = vpack.c.b16 %v421, %v413
      %v462 = vpack.c.b16 %v422, %v414
      %v463 = vpack.c.b16 %v423, %v415
      %v464 = vpack.c.b16 %v424, %v416
      %v465 = vpack.c.b16 %v425, %v417
      %v466 = vpack.c.b16 %v426, %v418
      %v467 = vpack.c.b16 %v435, %v427
      %v468 = vpack.c.b16 %v436, %v428
      %v469 = vpack.c.b16 %v437, %v429
      %v470 = vpack.c.b16 %v438, %v430
      %v471 = vpack.c.b16 %v439, %v431
      %v472 = vpack.c.b16 %v440, %v432
      %v473 = vpack.c.b16 %v441, %v433
      %v474 = vpack.c.b16 %v442, %v434
      %v475 = vpack.c.b16 %v451, %v443
      %v476 = vpack.c.b16 %v452, %v444
      %v477 = vpack.c.b16 %v453, %v445
      %v478 = vpack.c.b16 %v454, %v446
      %v479 = vpack.c.b16 %v455, %v447
      %v480 = vpack.c.b16 %v456, %v448
      %v481 = vpack.c.b16 %v457, %v449
      %v482 = vpack.c.b16 %v458, %v450
      %v635 = vunpack.c.l.b16 %v259
      %v636 = vunpack.c.l.b16 %v260
      %v637 = vunpack.c.l.b16 %v261
      %v638 = vunpack.c.l.b16 %v262
      %v639 = vunpack.c.l.b16 %v263
      %v640 = vunpack.c.l.b16 %v264
      %v641 = vunpack.c.l.b16 %v265
      %v642 = vunpack.c.l.b16 %v266
      %v643 = vunpack.c.l.b16 %v267
      %v644 = vunpack.c.l.b16 %v268
      %v645 = vunpack.c.l.b16 %v269
      %v646 = vunpack.c.l.b16 %v270
      %v647 = vunpack.c.l.b16 %v271
      %v648 = vunpack.c.l.b16 %v272
      %v649 = vunpack.c.l.b16 %v273
      %v650 = vunpack.c.l.b16 %v274
      %v651 = vunpack.c.l.b16 %v275
      %v652 = vunpack.c.l.b16 %v276
      %v653 = vunpack.c.l.b16 %v277
      %v654 = vunpack.c.l.b16 %v278
      %v655 = vunpack.c.l.b16 %v279
      %v656 = vunpack.c.l.b16 %v280
      %v657 = vunpack.c.l.b16 %v281
      %v658 = vunpack.c.l.b16 %v282
      %v659 = vunpack.c.l.b16 %v283
      %v660 = vunpack.c.l.b16 %v284
      %v661 = vunpack.c.l.b16 %v285
      %v662 = vunpack.c.l.b16 %v286
      %v663 = vunpack.c.l.b16 %v287
      %v664 = vunpack.c.l.b16 %v288
      %v665 = vunpack.c.l.b16 %v289
      %v666 = vunpack.c.l.b16 %v290
      %v667 = vunpack.c.l.b16 %v291
      %v668 = vunpack.c.l.b16 %v292
      %v669 = vunpack.c.l.b16 %v293
      %v670 = vunpack.c.l.b16 %v294
      %v671 = vunpack.c.l.b16 %v295
      %v672 = vunpack.c.l.b16 %v296
      %v673 = vunpack.c.l.b16 %v297
      %v674 = vunpack.c.l.b16 %v298
      %v675 = vunpack.c.l.b16 %v299
      %v676 = vunpack.c.l.b16 %v300
      %v677 = vunpack.c.l.b16 %v301
      %v678 = vunpack.c.l.b16 %v302
      %v679 = vunpack.c.l.b16 %v303
      %v680 = vunpack.c.l.b16 %v304
      %v681 = vunpack.c.l.b16 %v305
      %v682 = vunpack.c.l.b16 %v306
      %v683 = vunpack.c.l.b16 %v307
      %v684 = vunpack.c.l.b16 %v308
      %v685 = vunpack.c.l.b16 %v309
      %v686 = vunpack.c.l.b16 %v310
      %v687 = vunpack.c.l.b16 %v311
      %v688 = vunpack.c.l.b16 %v312
      %v689 = vunpack.c.l.b16 %v313
      %v690 = vunpack.c.l.b16 %v314
      %v691 = vunpack.c.l.b16 %v315
      %v692 = vunpack.c.l.b16 %v316
      %v693 = vunpack.c.l.b16 %v317
      %v694 = vunpack.c.l.b16 %v318
      %v695 = vunpack.c.l.b16 %v319
      %v696 = vunpack.c.l.b16 %v320
      %v697 = vunpack.c.l.b16 %v321
      %v698 = vunpack.c.l.b16 %v322
      %v699 = vunpack.c.l.b16 %v323
      %v700 = vunpack.c.l.b16 %v324
      %v701 = vunpack.c.l.b16 %v325
      %v702 = vunpack.c.l.b16 %v326
      %v703 = vunpack.c.l.b16 %v327
      %v704 = vunpack.c.l.b16 %v328
      %v705 = vunpack.c.l.b16 %v329
      %v706 = vunpack.c.l.b16 %v330
      %v707 = vunpack.c.l.b16 %v331
      %v708 = vunpack.c.l.b16 %v332
      %v709 = vunpack.c.l.b16 %v333
      %v710 = vunpack.c.l.b16 %v334
      %v711 = vunpack.c.l.b16 %v335
      %v712 = vunpack.c.l.b16 %v336
      %v713 = vunpack.c.l.b16 %v337
      %v714 = vunpack.c.l.b16 %v338
      %v715 = vunpack.c.l.b16 %v339
      %v716 = vunpack.c.l.b16 %v340
      %v717 = vunpack.c.l.b16 %v341
      %v718 = vunpack.c.l.b16 %v342
      %v719 = vunpack.c.l.b16 %v343
      %v720 = vunpack.c.l.b16 %v344
      %v721 = vunpack.c.l.b16 %v345
      %v722 = vunpack.c.l.b16 %v346
      %v723 = vunpack.c.l.b16 %v347
      %v724 = vunpack.c.l.b16 %v348
      %v725 = vunpack.c.l.b16 %v349
      %v726 = vunpack.c.l.b16 %v350
      %v727 = vunpack.c.l.b16 %v351
      %v728 = vunpack.c.l.b16 %v352
      %v729 = vunpack.c.l.b16 %v353
      %v730 = vunpack.c.l.b16 %v354
      %v731 = vunpack.c.l.b16 %v355
      %v732 = vunpack.c.l.b16 %v356
      %v733 = vunpack.c.l.b16 %v357
      %v734 = vunpack.c.l.b16 %v358
      %v735 = vunpack.c.l.b16 %v359
      %v736 = vunpack.c.l.b16 %v360
      %v737 = vunpack.c.l.b16 %v361
      %v738 = vunpack.c.l.b16 %v362
      %v739 = vunpack.c.l.b16 %v363
      %v740 = vunpack.c.l.b16 %v364
      %v741 = vunpack.c.l.b16 %v365
      %v742 = vunpack.c.l.b16 %v366
      %v743 = vunpack.c.l.b16 %v367
      %v744 = vunpack.c.l.b16 %v368
      %v745 = vunpack.c.l.b16 %v369
      %v746 = vunpack.c.l.b16 %v370
      %v747 = vunpack.c.l.b16 %v371
      %v748 = vunpack.c.l.b16 %v372
      %v749 = vunpack.c.l.b16 %v373
      %v750 = vunpack.c.l.b16 %v374
      %v751 = vunpack.c.l.b16 %v375
      %v752 = vunpack.c.l.b16 %v376
      %v753 = vunpack.c.l.b16 %v377
      %v754 = vunpack.c.l.b16 %v378
      %v755 = vunpack.c.l.b16 %v379
      %v756 = vunpack.c.l.b16 %v380
      %v757 = vunpack.c.l.b16 %v381
      %v758 = vunpack.c.l.b16 %v382
      %v759 = vunpack.c.l.b16 %v383
      %v760 = vunpack.c.l.b16 %v384
      %v761 = vunpack.c.l.b16 %v385
      %v762 = vunpack.c.l.b16 %v386
      %v763 = vpack.c.b16 %v636, %v635
      %v764 = vpack.c.b16 %v638, %v637
      %v765 = vpack.c.b16 %v640, %v639
      %v766 = vpack.c.b16 %v642, %v641
      %v767 = vpack.c.b16 %v644, %v643
      %v768 = vpack.c.b16 %v646, %v645
      %v769 = vpack.c.b16 %v648, %v647
      %v770 = vpack.c.b16 %v650, %v649
      %v771 = vpack.c.b16 %v652, %v651
      %v772 = vpack.c.b16 %v654, %v653
      %v773 = vpack.c.b16 %v656, %v655
      %v774 = vpack.c.b16 %v658, %v657
      %v775 = vpack.c.b16 %v660, %v659
      %v776 = vpack.c.b16 %v662, %v661
      %v777 = vpack.c.b16 %v664, %v663
      %v778 = vpack.c.b16 %v666, %v665
      %v779 = vpack.c.b16 %v668, %v667
      %v780 = vpack.c.b16 %v670, %v669
      %v781 = vpack.c.b16 %v672, %v671
      %v782 = vpack.c.b16 %v674, %v673
      %v783 = vpack.c.b16 %v676, %v675
      %v784 = vpack.c.b16 %v678, %v677
      %v785 = vpack.c.b16 %v680, %v679
      %v786 = vpack.c.b16 %v682, %v681
      %v787 = vpack.c.b16 %v684, %v683
      %v788 = vpack.c.b16 %v686, %v685
      %v789 = vpack.c.b16 %v688, %v687
      %v790 = vpack.c.b16 %v690, %v689
      %v791 = vpack.c.b16 %v692, %v691
      %v792 = vpack.c.b16 %v694, %v693
      %v793 = vpack.c.b16 %v696, %v695
      %v794 = vpack.c.b16 %v698, %v697
      %v795 = vpack.c.b16 %v700, %v699
      %v796 = vpack.c.b16 %v702, %v701
      %v797 = vpack.c.b16 %v704, %v703
      %v798 = vpack.c.b16 %v706, %v705
      %v799 = vpack.c.b16 %v708, %v707
      %v800 = vpack.c.b16 %v710, %v709
      %v801 = vpack.c.b16 %v712, %v711
      %v802 = vpack.c.b16 %v714, %v713
      %v803 = vpack.c.b16 %v716, %v715
      %v804 = vpack.c.b16 %v718, %v717
      %v805 = vpack.c.b16 %v720, %v719
      %v806 = vpack.c.b16 %v722, %v721
      %v807 = vpack.c.b16 %v724, %v723
      %v808 = vpack.c.b16 %v726, %v725
      %v809 = vpack.c.b16 %v728, %v727
      %v810 = vpack.c.b16 %v730, %v729
      %v811 = vpack.c.b16 %v732, %v731
      %v812 = vpack.c.b16 %v734, %v733
      %v813 = vpack.c.b16 %v736, %v735
      %v814 = vpack.c.b16 %v738, %v737
      %v815 = vpack.c.b16 %v740, %v739
      %v816 = vpack.c.b16 %v742, %v741
      %v817 = vpack.c.b16 %v744, %v743
      %v818 = vpack.c.b16 %v746, %v745
      %v819 = vpack.c.b16 %v748, %v747
      %v820 = vpack.c.b16 %v750, %v749
      %v821 = vpack.c.b16 %v752, %v751
      %v822 = vpack.c.b16 %v754, %v753
      %v823 = vpack.c.b16 %v756, %v755
      %v824 = vpack.c.b16 %v758, %v757
      %v825 = vpack.c.b16 %v760, %v759
      %v826 = vpack.c.b16 %v762, %v761
      %891 = vmatprep.subr.bf16.mxu0 0
      %892 = vmatpush1.bf16.msra.mxu0 %v763
      %893 = vmatprep.subr.bf16.mxu0 0
      %894 = vmatpush1.bf16.msra.mxu0 %v764
      %895 = vmatprep.subr.bf16.mxu0 0
      %896 = vmatpush1.bf16.msra.mxu0 %v765
      %897 = vmatprep.subr.bf16.mxu0 0
      %898 = vmatpush1.bf16.msra.mxu0 %v766
      %899 = vmatprep.subr.bf16.mxu0 0
      %900 = vmatpush1.bf16.msra.mxu0 %v767
      %901 = vmatprep.subr.bf16.mxu0 0
      %902 = vmatpush1.bf16.msra.mxu0 %v768
      %903 = vmatprep.subr.bf16.mxu0 0
      %904 = vmatpush1.bf16.msra.mxu0 %v769
      %905 = vmatprep.subr.bf16.mxu0 0
      %906 = vmatpush1.bf16.msra.mxu0 %v770
      %907 = vmatprep.subr.bf16.mxu0 0
      %908 = vmatpush1.bf16.msra.mxu0 %v771
      %909 = vmatprep.subr.bf16.mxu0 0
      %910 = vmatpush1.bf16.msra.mxu0 %v772
      %911 = vmatprep.subr.bf16.mxu0 0
      %912 = vmatpush1.bf16.msra.mxu0 %v773
      %913 = vmatprep.subr.bf16.mxu0 0
      %914 = vmatpush1.bf16.msra.mxu0 %v774
      %915 = vmatprep.subr.bf16.mxu0 0
      %916 = vmatpush1.bf16.msra.mxu0 %v775
      %917 = vmatprep.subr.bf16.mxu0 0
      %918 = vmatpush1.bf16.msra.mxu0 %v776
      %919 = vmatprep.subr.bf16.mxu0 0
      %920 = vmatpush1.bf16.msra.mxu0 %v777
      %921 = vmatprep.subr.bf16.mxu0 0
      %922 = vmatpush1.bf16.msra.mxu0 %v778
      %923 = vmatprep.mubr.bf16.mxu0 %v460
      %924 = vmatmul.mubr.bf16.gmra.mrb[0].mxu0 %v459
      %v925 = vpop.f32.mrb[0].mxu0
      %v926 = vadd.f32 0.0, %v925
      %v927 = vpop.f32.mrb[0].mxu0
      %v928 = vpop.f32.mrb[0].mxu0
      %v929 = vadd.f32 0.0, %v928
      %v930 = vpop.f32.mrb[0].mxu0
      %931 = vmatprep.mubr.bf16.mxu0 %v468
      %932 = vmatmul.mubr.bf16.gmra.mrb[0].mxu0 %v467
      %v933 = vpop.f32.mrb[0].mxu0
      %v934 = vadd.f32 0.0, %v933
      %v935 = vpop.f32.mrb[0].mxu0
      %v936 = vpop.f32.mrb[0].mxu0
      %v937 = vadd.f32 0.0, %v936
      %v938 = vpop.f32.mrb[0].mxu0
      %939 = vmatprep.mubr.bf16.mxu0 %v476
      %940 = vmatmul.mubr.bf16.gmra.mrb[0].mxu0 %v475
      %v941 = vpop.f32.mrb[0].mxu0
      %v942 = vadd.f32 0.0, %v941
      %v943 = vpop.f32.mrb[0].mxu0
      %v944 = vpop.f32.mrb[0].mxu0
      %v945 = vadd.f32 0.0, %v944
      %v946 = vpop.f32.mrb[0].mxu0
      %947 = vdwg.mxu0
      %948 = vmatprep.subr.bf16.mxu0 0
      %949 = vmatpush1.bf16.msra.mxu0 %v779
      %950 = vmatprep.subr.bf16.mxu0 0
      %951 = vmatpush1.bf16.msra.mxu0 %v780
      %952 = vmatprep.subr.bf16.mxu0 0
      %953 = vmatpush1.bf16.msra.mxu0 %v781
      %954 = vmatprep.subr.bf16.mxu0 0
      %955 = vmatpush1.bf16.msra.mxu0 %v782
      %956 = vmatprep.subr.bf16.mxu0 0
      %957 = vmatpush1.bf16.msra.mxu0 %v783
      %958 = vmatprep.subr.bf16.mxu0 0
      %959 = vmatpush1.bf16.msra.mxu0 %v784
      %960 = vmatprep.subr.bf16.mxu0 0
      %961 = vmatpush1.bf16.msra.mxu0 %v785
      %962 = vmatprep.subr.bf16.mxu0 0
      %963 = vmatpush1.bf16.msra.mxu0 %v786
      %964 = vmatprep.subr.bf16.mxu0 0
      %965 = vmatpush1.bf16.msra.mxu0 %v787
      %966 = vmatprep.subr.bf16.mxu0 0
      %967 = vmatpush1.bf16.msra.mxu0 %v788
      %968 = vmatprep.subr.bf16.mxu0 0
      %969 = vmatpush1.bf16.msra.mxu0 %v789
      %970 = vmatprep.subr.bf16.mxu0 0
      %971 = vmatpush1.bf16.msra.mxu0 %v790
      %972 = vmatprep.subr.bf16.mxu0 0
      %973 = vmatpush1.bf16.msra.mxu0 %v791
      %974 = vmatprep.subr.bf16.mxu0 0
      %975 = vmatpush1.bf16.msra.mxu0 %v792
      %976 = vmatprep.subr.bf16.mxu0 0
      %977 = vmatpush1.bf16.msra.mxu0 %v793
      %978 = vmatprep.subr.bf16.mxu0 0
      %979 = vmatpush1.bf16.msra.mxu0 %v794
      %980 = vmatprep.mubr.bf16.mxu0 %v462
      %981 = vmatmul.mubr.bf16.gmra.mrb[0].mxu0 %v461
      %v982 = vpop.f32.mrb[0].mxu0
      %v983 = vadd.f32 %v926, %v982
      %v984 = vpop.f32.mrb[0].mxu0
      %v985 = vpop.f32.mrb[0].mxu0
      %v986 = vadd.f32 %v929, %v985
      %v987 = vpop.f32.mrb[0].mxu0
      %988 = vmatprep.mubr.bf16.mxu0 %v470
      %989 = vmatmul.mubr.bf16.gmra.mrb[0].mxu0 %v469
      %v990 = vpop.f32.mrb[0].mxu0
      %v991 = vadd.f32 %v934, %v990
      %v992 = vpop.f32.mrb[0].mxu0
      %v993 = vpop.f32.mrb[0].mxu0
      %v994 = vadd.f32 %v937, %v993
      %v995 = vpop.f32.mrb[0].mxu0
      %996 = vmatprep.mubr.bf16.mxu0 %v478
      %997 = vmatmul.mubr.bf16.gmra.mrb[0].mxu0 %v477
      %v998 = vpop.f32.mrb[0].mxu0
      %v999 = vadd.f32 %v942, %v998
      %v1000 = vpop.f32.mrb[0].mxu0
      %v1001 = vpop.f32.mrb[0].mxu0
      %v1002 = vadd.f32 %v945, %v1001
      %v1003 = vpop.f32.mrb[0].mxu0
      %1004 = vdwg.mxu0
      %1005 = vmatprep.subr.bf16.mxu0 0
      %1006 = vmatpush1.bf16.msra.mxu0 %v795
      %1007 = vmatprep.subr.bf16.mxu0 0
      %1008 = vmatpush1.bf16.msra.mxu0 %v796
      %1009 = vmatprep.subr.bf16.mxu0 0
      %1010 = vmatpush1.bf16.msra.mxu0 %v797
      %1011 = vmatprep.subr.bf16.mxu0 0
      %1012 = vmatpush1.bf16.msra.mxu0 %v798
      %1013 = vmatprep.subr.bf16.mxu0 0
      %1014 = vmatpush1.bf16.msra.mxu0 %v799
      %1015 = vmatprep.subr.bf16.mxu0 0
      %1016 = vmatpush1.bf16.msra.mxu0 %v800
      %1017 = vmatprep.subr.bf16.mxu0 0
      %1018 = vmatpush1.bf16.msra.mxu0 %v801
      %1019 = vmatprep.subr.bf16.mxu0 0
      %1020 = vmatpush1.bf16.msra.mxu0 %v802
      %1021 = vmatprep.subr.bf16.mxu0 0
      %1022 = vmatpush1.bf16.msra.mxu0 %v803
      %1023 = vmatprep.subr.bf16.mxu0 0
      %1024 = vmatpush1.bf16.msra.mxu0 %v804
      %1025 = vmatprep.subr.bf16.mxu0 0
      %1026 = vmatpush1.bf16.msra.mxu0 %v805
      %1027 = vmatprep.subr.bf16.mxu0 0
      %1028 = vmatpush1.bf16.msra.mxu0 %v806
      %1029 = vmatprep.subr.bf16.mxu0 0
      %1030 = vmatpush1.bf16.msra.mxu0 %v807
      %1031 = vmatprep.subr.bf16.mxu0 0
      %1032 = vmatpush1.bf16.msra.mxu0 %v808
      %1033 = vmatprep.subr.bf16.mxu0 0
      %1034 = vmatpush1.bf16.msra.mxu0 %v809
      %1035 = vmatprep.subr.bf16.mxu0 0
      %1036 = vmatpush1.bf16.msra.mxu0 %v810
      %1037 = vmatprep.mubr.bf16.mxu0 %v464
      %1038 = vmatmul.mubr.bf16.gmra.mrb[0].mxu0 %v463
      %v1039 = vpop.f32.mrb[0].mxu0
      %v1040 = vadd.f32 %v983, %v1039
      %v1041 = vpop.f32.mrb[0].mxu0
      %v1042 = vpop.f32.mrb[0].mxu0
      %v1043 = vadd.f32 %v986, %v1042
      %v1044 = vpop.f32.mrb[0].mxu0
      %1045 = vmatprep.mubr.bf16.mxu0 %v472
      %1046 = vmatmul.mubr.bf16.gmra.mrb[0].mxu0 %v471
      %v1047 = vpop.f32.mrb[0].mxu0
      %v1048 = vadd.f32 %v991, %v1047
      %v1049 = vpop.f32.mrb[0].mxu0
      %v1050 = vpop.f32.mrb[0].mxu0
      %v1051 = vadd.f32 %v994, %v1050
      %v1052 = vpop.f32.mrb[0].mxu0
      %1053 = vmatprep.mubr.bf16.mxu0 %v480
      %1054 = vmatmul.mubr.bf16.gmra.mrb[0].mxu0 %v479
      %v1055 = vpop.f32.mrb[0].mxu0
      %v1056 = vadd.f32 %v999, %v1055
      %v1057 = vpop.f32.mrb[0].mxu0
      %v1058 = vpop.f32.mrb[0].mxu0
      %v1059 = vadd.f32 %v1002, %v1058
      %v1060 = vpop.f32.mrb[0].mxu0
      %1061 = vdwg.mxu0
      %1062 = vmatprep.subr.bf16.mxu0 0
      %1063 = vmatpush1.bf16.msra.mxu0 %v811
      %1064 = vmatprep.subr.bf16.mxu0 0
      %1065 = vmatpush1.bf16.msra.mxu0 %v812
      %1066 = vmatprep.subr.bf16.mxu0 0
      %1067 = vmatpush1.bf16.msra.mxu0 %v813
      %1068 = vmatprep.subr.bf16.mxu0 0
      %1069 = vmatpush1.bf16.msra.mxu0 %v814
      %1070 = vmatprep.subr.bf16.mxu0 0
      %1071 = vmatpush1.bf16.msra.mxu0 %v815
      %1072 = vmatprep.subr.bf16.mxu0 0
      %1073 = vmatpush1.bf16.msra.mxu0 %v816
      %1074 = vmatprep.subr.bf16.mxu0 0
      %1075 = vmatpush1.bf16.msra.mxu0 %v817
      %1076 = vmatprep.subr.bf16.mxu0 0
      %1077 = vmatpush1.bf16.msra.mxu0 %v818
      %1078 = vmatprep.subr.bf16.mxu0 0
      %1079 = vmatpush1.bf16.msra.mxu0 %v819
      %1080 = vmatprep.subr.bf16.mxu0 0
      %1081 = vmatpush1.bf16.msra.mxu0 %v820
      %1082 = vmatprep.subr.bf16.mxu0 0
      %1083 = vmatpush1.bf16.msra.mxu0 %v821
      %1084 = vmatprep.subr.bf16.mxu0 0
      %1085 = vmatpush1.bf16.msra.mxu0 %v822
      %1086 = vmatprep.subr.bf16.mxu0 0
      %1087 = vmatpush1.bf16.msra.mxu0 %v823
      %1088 = vmatprep.subr.bf16.mxu0 0
      %1089 = vmatpush1.bf16.msra.mxu0 %v824
      %1090 = vmatprep.subr.bf16.mxu0 0
      %1091 = vmatpush1.bf16.msra.mxu0 %v825
      %1092 = vmatprep.subr.bf16.mxu0 0
      %1093 = vmatpush1.bf16.msra.mxu0 %v826
      %1094 = vmatprep.mubr.bf16.mxu0 %v466
      %1095 = vmatmul.mubr.bf16.gmra.mrb[0].mxu0 %v465
      %v1096 = vpop.f32.mrb[0].mxu0
      %v1097 = vadd.f32 %v1040, %v1096
      %v1098 = vpop.f32.mrb[0].mxu0
      %v1099 = vpop.f32.mrb[0].mxu0
      %v1100 = vadd.f32 %v1043, %v1099
      %v1101 = vpop.f32.mrb[0].mxu0
      %1102 = vmatprep.mubr.bf16.mxu0 %v474
      %1103 = vmatmul.mubr.bf16.gmra.mrb[0].mxu0 %v473
      %v1104 = vpop.f32.mrb[0].mxu0
      %v1105 = vadd.f32 %v1048, %v1104
      %v1106 = vpop.f32.mrb[0].mxu0
      %v1107 = vpop.f32.mrb[0].mxu0
      %v1108 = vadd.f32 %v1051, %v1107
      %v1109 = vpop.f32.mrb[0].mxu0
      %1110 = vmatprep.mubr.bf16.mxu0 %v482
      %1111 = vmatmul.mubr.bf16.gmra.mrb[0].mxu0 %v481
      %v1112 = vpop.f32.mrb[0].mxu0
      %v1113 = vadd.f32 %v1056, %v1112
      %v1114 = vpop.f32.mrb[0].mxu0
      %v1115 = vpop.f32.mrb[0].mxu0
      %v1116 = vadd.f32 %v1059, %v1115
      %v1117 = vpop.f32.mrb[0].mxu0
      %1118 = vdwg.mxu0
      %v1119 = vadd.f32 %v229, %v1097
      %v1120 = vadd.f32 %v230, %v1100
      %v1121 = vadd.f32 %v231, %v1105
      %v1122 = vadd.f32 %v232, %v1108
      %v1123 = vadd.f32 %v233, %v1113
      %v1124 = vadd.f32 %v234, %v1116
      %vm1125 = vcmask 7168
      %1126 = vst.msk [vmem:[#allocation2] sm:$0xff] %vm1125, %v1119
      %1127 = vst.msk [vmem:[#allocation2 + $0x8] sm:$0xff] %vm1125, %v1120
      %1128 = vst.msk [vmem:[#allocation2 + $0x10] sm:$0xff] %vm1125, %v1121
      %1129 = vst.msk [vmem:[#allocation2 + $0x18] sm:$0xff] %vm1125, %v1122
      %1130 = vst.msk [vmem:[#allocation2 + $0x20] sm:$0xff] %vm1125, %v1123
      %1131 = vst.msk [vmem:[#allocation2 + $0x28] sm:$0xff] %vm1125, %v1124
      %p1132 = scmp.eq.s32.totalorder %s21, 2
      // Predicated region
      $region37: #{discriminator_p_forward.11} parent=31 // pred_check
        %p1133 = pneg %p1132
      $region38: #{discriminator_p_forward.11} parent=31 // pred_check_branch
        %1135 = sbr.rel (%p1133) target = $region40
      $region39: #{discriminator_p_forward.11} parent=31 // pred_region
        %v1136 = vld [vmem:[#allocation2] sm:$0xff]
        %v1137 = vld [vmem:[#allocation2 + $0x8] sm:$0xff]
        %v1138 = vld [vmem:[#allocation2 + $0x10] sm:$0xff]
        %v1139 = vld [vmem:[#allocation2 + $0x18] sm:$0xff]
        %v1140 = vld [vmem:[#allocation2 + $0x20] sm:$0xff]
        %v1141 = vld [vmem:[#allocation2 + $0x28] sm:$0xff]
        %v1142 = vld [vmem:[#allocation3] sm:$0x1]
        %v1144 = vlaneseq
        %v1145 = vshrl.u32 %v1144, 7
        %v1146 = vsub.s32 0, %v1145
        %v1147 = vrot.slane %v1142, %v1146
        %v1149 = vadd.f32 %v1136, %v1147
        %v1150 = vadd.f32 %v1137, %v1147
        %v1151 = vadd.f32 %v1138, %v1147
        %v1152 = vadd.f32 %v1139, %v1147
        %v1153 = vadd.f32 %v1140, %v1147
        %v1154 = vadd.f32 %v1141, %v1147
        %v1155 = vpack.c.bf16 %v1149, %v1149
        %v1156 = vpack.c.bf16 %v1150, %v1150
        %v1157 = vpack.c.bf16 %v1151, %v1151
        %v1158 = vpack.c.bf16 %v1152, %v1152
        %v1159 = vpack.c.bf16 %v1153, %v1153
        %v1160 = vpack.c.bf16 %v1154, %v1154
        %vm1161 = vcmask 3072
        %1162 = vst.msk [vmem:[%s216] sm:$0xf] %vm1161, %v1155
        %1163 = vst.msk [vmem:[%s216 + $0x4] sm:$0xf] %vm1161, %v1156
        %1164 = vst.msk [vmem:[%s216 + $0x8] sm:$0xf] %vm1161, %v1157
        %1165 = vst.msk [vmem:[%s216 + $0xc] sm:$0xf] %vm1161, %v1158
        %1166 = vst.msk [vmem:[%s216 + $0x10] sm:$0xf] %vm1161, %v1159
        %1167 = vst.msk [vmem:[%s216 + $0x14] sm:$0xf] %vm1161, %v1160
      $region40: #{discriminator_p_forward.11} parent=31 // pred_fallthru
        _
      %p1168 = scmp.lt.s32.totalorder %s20, 0
      %s1169 = scalar_select %p1168, %s20, 0
      %s1170 = smul.addr %s1169, 4
      %s1171 = scalar_lea.vmem %s3, %s1170
      // Predicated region
      $region41: #{discriminator_p_forward.11} parent=31 // pred_check
        %p1172 = pneg %p121
      $region42: #{discriminator_p_forward.11} parent=31 // pred_check_branch
        %1174 = sbr.rel (%p1172) target = $region44
      $region43: #{discriminator_p_forward.11} parent=31 // pred_region
        _
      $region44: #{discriminator_p_forward.11} parent=31 // pred_fallthru
        _
      // Predicated region
      $region45: #{discriminator_p_forward.11} parent=31 // pred_check
        %p1175 = pneg %p121
      $region46: #{discriminator_p_forward.11} parent=31 // pred_check_branch
        %1177 = sbr.rel (%p1175) target = $region48
      $region47: #{discriminator_p_forward.11} parent=31 // pred_region
        %p1178 = scmp.lt.s32.totalorder %s20, 0
        %s1179 = scalar_select %p1178, %s20, 0
        %s1180 = smul.addr %s1179, 4
        %s1181 = scalar_lea.vmem %s3, %s1180
      $region48: #{discriminator_p_forward.11} parent=31 // pred_fallthru
        _
    $region32: #{discriminator_p_forward.11} parent=5 // pred_fallthru
      _
    %p1182 = scmp.le.s32.totalorder 2, %s11
    // Predicated region
    $region49: #{discriminator_p_forward.11} parent=5 // pred_check
      %p1183 = pneg %p1182
    $region50: #{discriminator_p_forward.11} parent=5 // pred_check_branch
      %1185 = sbr.rel (%p1183) target = $region52
    $region51: #{discriminator_p_forward.11} parent=5 // pred_region
      %s1186 = ssub.s32 %s11, 2
    $region52: #{discriminator_p_forward.11} parent=5 // pred_fallthru
      _
  $region6: #{discriminator_p_forward.11} parent=0 // loop_footer
    %s15 = sadd.s32 1, %s11
  $region7: #{discriminator_p_forward.11} parent=0 // loop_footer_branch
    %10 = sbr.rel target = $region3
  $region8: #{discriminator_p_forward.11} parent=0 // loop_exit
    _

// kernel: discriminator_p_forward.10
$region0: #{discriminator_p_forward.10}
  #allocation0 [shape = 'u32[]', space=smem, size = 0x4, offset = 0x4, fixed_abs, tag = 'smem constant byte address 0x4 - core index']
  #allocation1 [shape = 'u32[144,128]{1,0:T(1,128)}', space=vmem, size = 0x12000, scoped, tag = 'internal scratch']
  #allocation2 [shape = 'f32[6,8,1024]{2,1,0:T(8,128)}', space=vmem, size = 0x30000, scoped, tag = 'scratch operand']
  %s0 = inlined_call_operand.vmem [shape: bf16[5,6,8,1024], index: 0, kind: input, shape index: {}]
  %s1 = inlined_call_operand.hbm [shape: bf16[5,1024,1024], index: 1, kind: input, shape index: {}]
  %s2 = inlined_call_operand.hbm [shape: f32[1,1024], index: 2, kind: input, shape index: {}]
  %s3 = inlined_call_operand.vmem [shape: bf16[6,8,1024], index: 3, kind: output, shape index: {}]
  %s4 = sld [smem:[#allocation0]]
  $region61: #{discriminator_p_forward.10} parent=0
    _
  %s6 = ssub.s32 1, %s4
  %s7 = scalar_select 0, %s6, %s4
  $region1: #{discriminator_p_forward.10} parent=0
    #allocation3 [shape = 'u8[4194304]{0}', space=vmem, size = 0x400000, scoped, tag = 'input window, operand 1']
    #allocation4 [shape = 's32[2]{0}', space=sflag, size = 0x8, scoped, tag = 'scoped memory for discriminator_p_forward.10']
    #allocation5 [shape = 'u8[4096]{0}', space=vmem, size = 0x1000, scoped, tag = 'input window, operand 2, single buffered']
    #allocation6 [shape = 's32[1]{0}', space=sflag, size = 0x4, scoped, tag = 'scoped memory for discriminator_p_forward.10']
    %8 = vsyncpa [#allocation4], 0
    %s9 = scalar_lea.sflag [#allocation4], 1
    %10 = vsyncpa %s9, 0
    %11 = vsyncpa [#allocation6], 0
    loop: start=0, step=1, limit=7
    $region2: #{discriminator_p_forward.10} parent=1 // loop_pre_header
      _
    $region3: #{discriminator_p_forward.10} parent=1 // loop_header
      %s13 = sphi 0, %s17
      %p14 = scmp.ge.s32.totalorder %s13, 7
      %s20 = sphi 0, %s32
      %s21 = sphi 0, %s28
      %s22 = sphi 0, %s20
      %s23 = sphi 0, %s21
      %s24 = sphi 0, %s22
      %s25 = sphi 0, %s23
      %s37 = sphi 0, %s39
      %s40 = sphi 0, %s37
      %s41 = sphi 0, %s40
      %s57 = sphi 0, %s41
      %s63 = sphi 0, %s65
      %s66 = sphi 0, %s63
      %s67 = sphi 0, %s66
      %s83 = sphi 0, %s67
      %s87 = sphi 0, %s87
      %s89 = sphi 0, %s87
      %s90 = sphi 0, %s89
      %s104 = sphi 0, %s90
      %s110 = sphi 0, %s112
      %s113 = sphi 0, %s110
      %s114 = sphi 0, %s113
      %s130 = sphi 0, %s114
    $region4: #{discriminator_p_forward.10} parent=1 // loop_header_branch
      %16 = sbr.rel (%p14) target = $region8
    $region5: #{discriminator_p_forward.10} parent=1 // loop_body
      %s18 = ssub.s32 %s13, 1
      %s19 = ssub.s32 %s13, 2
      %s26 = sadd.s32 1, %s21
      %p27 = scmp.ge.s32.totalorder %s26, 5
      %s28 = scalar_select %p27, 0, %s26
      %s29 = sadd.s32 1, %s20
      %s30 = scalar_select %p27, %s29, %s20
      %p31 = scmp.ge.s32.totalorder %s30, 1
      %s32 = scalar_select %p31, 0, %s30
      %s33 = ssub.s32 %s21, %s28
      %s34 = ssub.s32 %s20, %s32
      %s35 = sor.u32 %s33, %s34
      %p36 = scmp.eq.s32.totalorder %s35, 0
      %s38 = sadd.s32 %s37, 1
      %s39 = scalar_select %p36, %s37, %s38
      %p42 = pneg %p36
      %p43 = scmp.eq.s32.totalorder %s13, 4
      %p44 = por %p42, %p43
      %p45 = scmp.ne.s32.totalorder %s37, %s40
      %p46 = scmp.eq.s32.totalorder %s13, 0
      %p47 = por %p45, %p46
      %p48 = scmp.ne.s32.totalorder %s37, %s40
      %p49 = scmp.eq.s32.totalorder %s18, 4
      %p50 = por %p48, %p49
      %p51 = scmp.ne.s32.totalorder %s40, %s41
      %p52 = scmp.eq.s32.totalorder %s18, 0
      %p53 = por %p51, %p52
      %p54 = scmp.ne.s32.totalorder %s40, %s41
      %p55 = scmp.eq.s32.totalorder %s19, 4
      %p56 = por %p54, %p55
      %p58 = scmp.ne.s32.totalorder %s41, %s57
      %p59 = scmp.eq.s32.totalorder %s19, 0
      %p60 = por %p58, %p59
      %s61 = ssub.s32 %s21, %s28
      %p62 = scmp.eq.s32.totalorder %s61, 0
      %s64 = sadd.s32 %s63, 1
      %s65 = scalar_select %p62, %s63, %s64
      %p68 = pneg %p62
      %p69 = scmp.eq.s32.totalorder %s13, 4
      %p70 = por %p68, %p69
      %p71 = scmp.ne.s32.totalorder %s63, %s66
      %p72 = scmp.eq.s32.totalorder %s13, 0
      %p73 = por %p71, %p72
      %p74 = scmp.ne.s32.totalorder %s63, %s66
      %p75 = scmp.eq.s32.totalorder %s18, 4
      %p76 = por %p74, %p75
      %p77 = scmp.ne.s32.totalorder %s66, %s67
      %p78 = scmp.eq.s32.totalorder %s18, 0
      %p79 = por %p77, %p78
      %p80 = scmp.ne.s32.totalorder %s66, %s67
      %p81 = scmp.eq.s32.totalorder %s19, 4
      %p82 = por %p80, %p81
      %p84 = scmp.ne.s32.totalorder %s67, %s83
      %p85 = scmp.eq.s32.totalorder %s19, 0
      %p86 = por %p84, %p85
      %s88 = sadd.s32 %s87, 1
      %p91 = scmp.eq.s32.totalorder %s13, 4
      %p92 = scmp.ne.s32.totalorder %s87, %s89
      %p93 = scmp.eq.s32.totalorder %s13, 0
      %p94 = por %p92, %p93
      %p95 = scmp.ne.s32.totalorder %s87, %s89
      %p96 = scmp.eq.s32.totalorder %s18, 4
      %p97 = por %p95, %p96
      %p98 = scmp.ne.s32.totalorder %s89, %s90
      %p99 = scmp.eq.s32.totalorder %s18, 0
      %p100 = por %p98, %p99
      %p101 = scmp.ne.s32.totalorder %s89, %s90
      %p102 = scmp.eq.s32.totalorder %s19, 4
      %p103 = por %p101, %p102
      %p105 = scmp.ne.s32.totalorder %s90, %s104
      %p106 = scmp.eq.s32.totalorder %s19, 0
      %p107 = por %p105, %p106
      %s108 = ssub.s32 %s20, %s32
      %p109 = scmp.eq.s32.totalorder %s108, 0
      %s111 = sadd.s32 %s110, 1
      %s112 = scalar_select %p109, %s110, %s111
      %p115 = pneg %p109
      %p116 = scmp.eq.s32.totalorder %s13, 4
      %p117 = por %p115, %p116
      %p118 = scmp.ne.s32.totalorder %s110, %s113
      %p119 = scmp.eq.s32.totalorder %s13, 0
      %p120 = por %p118, %p119
      %p121 = scmp.ne.s32.totalorder %s110, %s113
      %p122 = scmp.eq.s32.totalorder %s18, 4
      %p123 = por %p121, %p122
      %p124 = scmp.ne.s32.totalorder %s113, %s114
      %p125 = scmp.eq.s32.totalorder %s18, 0
      %p126 = por %p124, %p125
      %p127 = scmp.ne.s32.totalorder %s113, %s114
      %p128 = scmp.eq.s32.totalorder %s19, 4
      %p129 = por %p127, %p128
      %p131 = scmp.ne.s32.totalorder %s114, %s130
      %p132 = scmp.eq.s32.totalorder %s19, 0
      %p133 = por %p131, %p132
      %p134 = scmp.le.s32.totalorder 1, %s13
      %p135 = scmp.lt.s32.totalorder %s13, 6
      %p136 = pnand %p134, %p135
      %p137 = pneg %p136
      // Predicated region
      $region9: #{discriminator_p_forward.10} parent=5 // pred_check
        _
      $region10: #{discriminator_p_forward.10} parent=5 // pred_check_branch
        %139 = sbr.rel (%p136) target = $region12
      $region11: #{discriminator_p_forward.10} parent=5 // pred_region
        %s140 = ssub.s32 %s13, 1
        // Predicated region
        $region13: #{discriminator_p_forward.10} parent=11 // pred_check
          %p141 = pneg %p100
        $region14: #{discriminator_p_forward.10} parent=11 // pred_check_branch
          %143 = sbr.rel (%p141) target = $region16
        $region15: #{discriminator_p_forward.10} parent=11 // pred_region
          %s145 = ssub.s32 128, 128
          %146 = vsyncadd [#allocation6], %s145
          %s148 = sshll.u32 [#allocation5], 4
          %s149 = int_to_ptr.vmem [resolvable:$true] %s148
          %151 = dma.hbm_to_vmem [thread:$0]  %s2, 128, %s149, [#allocation6]
        $region16: #{discriminator_p_forward.10} parent=11 // pred_fallthru
          _
      $region12: #{discriminator_p_forward.10} parent=5 // pred_fallthru
        _
      %p152 = scmp.lt.s32.totalorder %s13, 5
      // Predicated region
      $region17: #{discriminator_p_forward.10} parent=5 // pred_check
        %p153 = pneg %p152
      $region18: #{discriminator_p_forward.10} parent=5 // pred_check_branch
        %155 = sbr.rel (%p153) target = $region20
      $region19: #{discriminator_p_forward.10} parent=5 // pred_region
        // Predicated region
        $region21: #{discriminator_p_forward.10} parent=19 // pred_check
          %p156 = pneg %p47
        $region22: #{discriminator_p_forward.10} parent=19 // pred_check_branch
          %158 = sbr.rel (%p156) target = $region24
        $region23: #{discriminator_p_forward.10} parent=19 // pred_region
          %p159 = scmp.lt.s32.totalorder %s21, 4
          %s160 = scalar_select %p159, %s21, 4
          %p161 = scmp.lt.s32.totalorder %s20, 0
          %s162 = scalar_select %p161, %s20, 0
          %s163 = smul.addr %s162, 8
          %s164 = smul.addr %s160, 48
          %s165 = sadd.s32 %s163, %s164
          %s166 = smul.addr %s165, 4
          %s167 = scalar_lea.vmem %s0, %s166
        $region24: #{discriminator_p_forward.10} parent=19 // pred_fallthru
          _
        // Predicated region
        $region25: #{discriminator_p_forward.10} parent=19 // pred_check
          %p168 = pneg %p73
        $region26: #{discriminator_p_forward.10} parent=19 // pred_check_branch
          %170 = sbr.rel (%p168) target = $region28
        $region27: #{discriminator_p_forward.10} parent=19 // pred_region
          %s171 = sand.u32 %s63, 1
          %s172 = scalar_lea.sflag [#allocation4], %s171
          %s173 = sand.u32 %s63, 1
          %s174 = smul.addr %s173, 4096
          %s175 = scalar_lea.vmem [#allocation3], %s174
          %s177 = ssub.s32 65536, 65536
          %178 = vsyncadd %s172, %s177
          %s179 = smul.addr %s21, 1024
          %s180 = smul.addr %s179, 64
          %s181 = scalar_lea.hbm %s1, %s180
          %s182 = sshll.u32 %s175, 4
          %s183 = int_to_ptr.vmem [resolvable:$true] %s182
          %188 = dma.hbm_to_vmem [thread:$0]  %s181, 65536, %s183, %s172, 512, 512, 32
        $region28: #{discriminator_p_forward.10} parent=19 // pred_fallthru
          _
      $region20: #{discriminator_p_forward.10} parent=5 // pred_fallthru
        _
      %p189 = scmp.le.s32.totalorder 1, %s13
      %p190 = scmp.lt.s32.totalorder %s13, 6
      %p191 = pnand %p189, %p190
      %p192 = pneg %p191
      // Predicated region
      $region29: #{discriminator_p_forward.10} parent=5 // pred_check
        _
      $region30: #{discriminator_p_forward.10} parent=5 // pred_check_branch
        %194 = sbr.rel (%p191) target = $region32
      $region31: #{discriminator_p_forward.10} parent=5 // pred_region
        %s195 = ssub.s32 %s13, 1
        %s196 = sand.u32 %s66, 1
        %s197 = scalar_lea.sflag [#allocation4], %s196
        %s198 = sand.u32 %s66, 1
        %s199 = smul.addr %s198, 4096
        %s200 = scalar_lea.vmem [#allocation3], %s199
        // Predicated region
        $region33: #{discriminator_p_forward.10} parent=31 // pred_check
          %p201 = pneg %p79
        $region34: #{discriminator_p_forward.10} parent=31 // pred_check_branch
          %203 = sbr.rel (%p201) target = $region36
        $region35: #{discriminator_p_forward.10} parent=31 // pred_region
          %204 = dma.done %s197, 65536
        $region36: #{discriminator_p_forward.10} parent=31 // pred_fallthru
          _
        // Predicated region
        $region37: #{discriminator_p_forward.10} parent=31 // pred_check
          %p205 = pneg %p100
        $region38: #{discriminator_p_forward.10} parent=31 // pred_check_branch
          %207 = sbr.rel (%p205) target = $region40
        $region39: #{discriminator_p_forward.10} parent=31 // pred_region
          %208 = dma.done [#allocation6], 128
        $region40: #{discriminator_p_forward.10} parent=31 // pred_fallthru
          _
        %p209 = scmp.lt.s32.totalorder %s23, 4
        %s210 = scalar_select %p209, %s23, 4
        %p211 = scmp.lt.s32.totalorder %s22, 0
        %s212 = scalar_select %p211, %s22, 0
        %s213 = smul.addr %s212, 8
        %s214 = smul.addr %s210, 48
        %s215 = sadd.s32 %s213, %s214
        %s216 = smul.addr %s215, 4
        %s217 = scalar_lea.vmem %s0, %s216
        %p218 = pneg %p53
        %p219 = pneg %p50
        %s220 = sand.u32 %s66, 1
        %s221 = scalar_lea.sflag [#allocation4], %s220
        %s222 = sand.u32 %s66, 1
        %s223 = smul.addr %s222, 4096
        %s224 = scalar_lea.vmem [#allocation3], %s223
        %p225 = pneg %p79
        %p226 = pneg %p76
        %p227 = pneg %p100
        %p228 = pneg %p97
        %p229 = pneg %p126
        %p230 = pneg %p123
        %p231 = scmp.lt.s32.totalorder %s22, 0
        %s232 = scalar_select %p231, %s22, 0
        %s233 = smul.addr %s232, 8
        %s234 = smul.addr %s233, 4
        %s235 = scalar_lea.vmem %s3, %s234
        %p236 = scmp.lt.s32.totalorder %s23, 4
        %s237 = scalar_select %p236, %s23, 4
        %p238 = scmp.lt.s32.totalorder %s22, 0
        %s239 = scalar_select %p238, %s22, 0
        %s240 = smul.addr %s239, 8
        %s241 = smul.addr %s237, 48
        %s242 = sadd.s32 %s240, %s241
        %s243 = smul.addr %s242, 4
        %s244 = scalar_lea.vmem %s0, %s243
        %p245 = scmp.lt.s32.totalorder %s22, 0
        %s246 = scalar_select %p245, %s22, 0
        %s247 = smul.addr %s246, 8
        %s248 = smul.addr %s247, 4
        %s249 = scalar_lea.vmem %s3, %s248
        %p250 = scmp.eq.s32.totalorder %s23, 0
        // Predicated region
        $region41: #{discriminator_p_forward.10} parent=31 // pred_check
          %p251 = pneg %p250
        $region42: #{discriminator_p_forward.10} parent=31 // pred_check_branch
          %253 = sbr.rel (%p251) target = $region44
        $region43: #{discriminator_p_forward.10} parent=31 // pred_region
          %254 = vst [vmem:[#allocation2] sm:$0xff] 0.0
          %255 = vst [vmem:[#allocation2 + $0x8] sm:$0xff] 0.0
          %256 = vst [vmem:[#allocation2 + $0x10] sm:$0xff] 0.0
          %257 = vst [vmem:[#allocation2 + $0x18] sm:$0xff] 0.0
          %258 = vst [vmem:[#allocation2 + $0x20] sm:$0xff] 0.0
          %259 = vst [vmem:[#allocation2 + $0x28] sm:$0xff] 0.0
          %260 = vst [vmem:[#allocation2 + $0x30] sm:$0xff] 0.0
          %261 = vst [vmem:[#allocation2 + $0x38] sm:$0xff] 0.0
          %262 = vst [vmem:[#allocation2 + $0x40] sm:$0xff] 0.0
          %263 = vst [vmem:[#allocation2 + $0x48] sm:$0xff] 0.0
          %264 = vst [vmem:[#allocation2 + $0x50] sm:$0xff] 0.0
          %265 = vst [vmem:[#allocation2 + $0x58] sm:$0xff] 0.0
          %266 = vst [vmem:[#allocation2 + $0x60] sm:$0xff] 0.0
          %267 = vst [vmem:[#allocation2 + $0x68] sm:$0xff] 0.0
          %268 = vst [vmem:[#allocation2 + $0x70] sm:$0xff] 0.0
          %269 = vst [vmem:[#allocation2 + $0x78] sm:$0xff] 0.0
          %270 = vst [vmem:[#allocation2 + $0x80] sm:$0xff] 0.0
          %271 = vst [vmem:[#allocation2 + $0x88] sm:$0xff] 0.0
          %272 = vst [vmem:[#allocation2 + $0x90] sm:$0xff] 0.0
          %273 = vst [vmem:[#allocation2 + $0x98] sm:$0xff] 0.0
          %274 = vst [vmem:[#allocation2 + $0xa0] sm:$0xff] 0.0
          %275 = vst [vmem:[#allocation2 + $0xa8] sm:$0xff] 0.0
          %276 = vst [vmem:[#allocation2 + $0xb0] sm:$0xff] 0.0
          %277 = vst [vmem:[#allocation2 + $0xb8] sm:$0xff] 0.0
          %278 = vst [vmem:[#allocation2 + $0xc0] sm:$0xff] 0.0
          %279 = vst [vmem:[#allocation2 + $0xc8] sm:$0xff] 0.0
          %280 = vst [vmem:[#allocation2 + $0xd0] sm:$0xff] 0.0
          %281 = vst [vmem:[#allocation2 + $0xd8] sm:$0xff] 0.0
          %282 = vst [vmem:[#allocation2 + $0xe0] sm:$0xff] 0.0
          %283 = vst [vmem:[#allocation2 + $0xe8] sm:$0xff] 0.0
          %284 = vst [vmem:[#allocation2 + $0xf0] sm:$0xff] 0.0
          %285 = vst [vmem:[#allocation2 + $0xf8] sm:$0xff] 0.0
          %286 = vst [vmem:[#allocation2 + $0x100] sm:$0xff] 0.0
          %287 = vst [vmem:[#allocation2 + $0x108] sm:$0xff] 0.0
          %288 = vst [vmem:[#allocation2 + $0x110] sm:$0xff] 0.0
          %289 = vst [vmem:[#allocation2 + $0x118] sm:$0xff] 0.0
          %290 = vst [vmem:[#allocation2 + $0x120] sm:$0xff] 0.0
          %291 = vst [vmem:[#allocation2 + $0x128] sm:$0xff] 0.0
          %292 = vst [vmem:[#allocation2 + $0x130] sm:$0xff] 0.0
          %293 = vst [vmem:[#allocation2 + $0x138] sm:$0xff] 0.0
          %294 = vst [vmem:[#allocation2 + $0x140] sm:$0xff] 0.0
          %295 = vst [vmem:[#allocation2 + $0x148] sm:$0xff] 0.0
          %296 = vst [vmem:[#allocation2 + $0x150] sm:$0xff] 0.0
          %297 = vst [vmem:[#allocation2 + $0x158] sm:$0xff] 0.0
          %298 = vst [vmem:[#allocation2 + $0x160] sm:$0xff] 0.0
          %299 = vst [vmem:[#allocation2 + $0x168] sm:$0xff] 0.0
          %300 = vst [vmem:[#allocation2 + $0x170] sm:$0xff] 0.0
          %301 = vst [vmem:[#allocation2 + $0x178] sm:$0xff] 0.0
        $region44: #{discriminator_p_forward.10} parent=31 // pred_fallthru
          _
        %v302 = vld [vmem:[#allocation2] sm:$0xff]
        %v303 = vld [vmem:[#allocation2 + $0x8] sm:$0xff]
        %v304 = vld [vmem:[#allocation2 + $0x10] sm:$0xff]
        %v305 = vld [vmem:[#allocation2 + $0x18] sm:$0xff]
        %v306 = vld [vmem:[#allocation2 + $0x20] sm:$0xff]
        %v307 = vld [vmem:[#allocation2 + $0x28] sm:$0xff]
        %v308 = vld [vmem:[#allocation2 + $0x30] sm:$0xff]
        %v309 = vld [vmem:[#allocation2 + $0x38] sm:$0xff]
        %v310 = vld [vmem:[#allocation2 + $0x40] sm:$0xff]
        %v311 = vld [vmem:[#allocation2 + $0x48] sm:$0xff]
        %v312 = vld [vmem:[#allocation2 + $0x50] sm:$0xff]
        %v313 = vld [vmem:[#allocation2 + $0x58] sm:$0xff]
        %v314 = vld [vmem:[#allocation2 + $0x60] sm:$0xff]
        %v315 = vld [vmem:[#allocation2 + $0x68] sm:$0xff]
        %v316 = vld [vmem:[#allocation2 + $0x70] sm:$0xff]
        %v317 = vld [vmem:[#allocation2 + $0x78] sm:$0xff]
        %v318 = vld [vmem:[#allocation2 + $0x80] sm:$0xff]
        %v319 = vld [vmem:[#allocation2 + $0x88] sm:$0xff]
        %v320 = vld [vmem:[#allocation2 + $0x90] sm:$0xff]
        %v321 = vld [vmem:[#allocation2 + $0x98] sm:$0xff]
        %v322 = vld [vmem:[#allocation2 + $0xa0] sm:$0xff]
        %v323 = vld [vmem:[#allocation2 + $0xa8] sm:$0xff]
        %v324 = vld [vmem:[#allocation2 + $0xb0] sm:$0xff]
        %v325 = vld [vmem:[#allocation2 + $0xb8] sm:$0xff]
        %v326 = vld [vmem:[#allocation2 + $0xc0] sm:$0xff]
        %v327 = vld [vmem:[#allocation2 + $0xc8] sm:$0xff]
        %v328 = vld [vmem:[#allocation2 + $0xd0] sm:$0xff]
        %v329 = vld [vmem:[#allocation2 + $0xd8] sm:$0xff]
        %v330 = vld [vmem:[#allocation2 + $0xe0] sm:$0xff]
        %v331 = vld [vmem:[#allocation2 + $0xe8] sm:$0xff]
        %v332 = vld [vmem:[#allocation2 + $0xf0] sm:$0xff]
        %v333 = vld [vmem:[#allocation2 + $0xf8] sm:$0xff]
        %v334 = vld [vmem:[#allocation2 + $0x100] sm:$0xff]
        %v335 = vld [vmem:[#allocation2 + $0x108] sm:$0xff]
        %v336 = vld [vmem:[#allocation2 + $0x110] sm:$0xff]
        %v337 = vld [vmem:[#allocation2 + $0x118] sm:$0xff]
        %v338 = vld [vmem:[#allocation2 + $0x120] sm:$0xff]
        %v339 = vld [vmem:[#allocation2 + $0x128] sm:$0xff]
        %v340 = vld [vmem:[#allocation2 + $0x130] sm:$0xff]
        %v341 = vld [vmem:[#allocation2 + $0x138] sm:$0xff]
        %v342 = vld [vmem:[#allocation2 + $0x140] sm:$0xff]
        %v343 = vld [vmem:[#allocation2 + $0x148] sm:$0xff]
        %v344 = vld [vmem:[#allocation2 + $0x150] sm:$0xff]
        %v345 = vld [vmem:[#allocation2 + $0x158] sm:$0xff]
        %v346 = vld [vmem:[#allocation2 + $0x160] sm:$0xff]
        %v347 = vld [vmem:[#allocation2 + $0x168] sm:$0xff]
        %v348 = vld [vmem:[#allocation2 + $0x170] sm:$0xff]
        %v349 = vld [vmem:[#allocation2 + $0x178] sm:$0xff]
        %v350 = vld [vmem:[%s244] sm:$0xff]
        %v351 = vld [vmem:[%s244 + $0x8] sm:$0xff]
        %v352 = vld [vmem:[%s244 + $0x10] sm:$0xff]
        %v353 = vld [vmem:[%s244 + $0x18] sm:$0xff]
        %v354 = vld [vmem:[%s244 + $0x20] sm:$0xff]
        %v355 = vld [vmem:[%s244 + $0x28] sm:$0xff]
        %v356 = vld [vmem:[%s244 + $0x30] sm:$0xff]
        %v357 = vld [vmem:[%s244 + $0x38] sm:$0xff]
        %v358 = vld [vmem:[%s244 + $0x40] sm:$0xff]
        %v359 = vld [vmem:[%s244 + $0x48] sm:$0xff]
        %v360 = vld [vmem:[%s244 + $0x50] sm:$0xff]
        %v361 = vld [vmem:[%s244 + $0x58] sm:$0xff]
        %v362 = vld [vmem:[%s244 + $0x60] sm:$0xff]
        %v363 = vld [vmem:[%s244 + $0x68] sm:$0xff]
        %v364 = vld [vmem:[%s244 + $0x70] sm:$0xff]
        %v365 = vld [vmem:[%s244 + $0x78] sm:$0xff]
        %v366 = vld [vmem:[%s244 + $0x80] sm:$0xff]
        %v367 = vld [vmem:[%s244 + $0x88] sm:$0xff]
        %v368 = vld [vmem:[%s244 + $0x90] sm:$0xff]
        %v369 = vld [vmem:[%s244 + $0x98] sm:$0xff]
        %v370 = vld [vmem:[%s244 + $0xa0] sm:$0xff]
        %v371 = vld [vmem:[%s244 + $0xa8] sm:$0xff]
        %v372 = vld [vmem:[%s244 + $0xb0] sm:$0xff]
        %v373 = vld [vmem:[%s244 + $0xb8] sm:$0xff]
        %v374 = vld [vmem:[%s200] sm:$0xff]
        %v375 = vld [vmem:[%s200 + $0x8] sm:$0xff]
        %v376 = vld [vmem:[%s200 + $0x10] sm:$0xff]
        %v377 = vld [vmem:[%s200 + $0x18] sm:$0xff]
        %v378 = vld [vmem:[%s200 + $0x20] sm:$0xff]
        %v379 = vld [vmem:[%s200 + $0x28] sm:$0xff]
        %v380 = vld [vmem:[%s200 + $0x30] sm:$0xff]
        %v381 = vld [vmem:[%s200 + $0x38] sm:$0xff]
        %v382 = vld [vmem:[%s200 + $0x40] sm:$0xff]
        %v383 = vld [vmem:[%s200 + $0x48] sm:$0xff]
        %v384 = vld [vmem:[%s200 + $0x50] sm:$0xff]
        %v385 = vld [vmem:[%s200 + $0x58] sm:$0xff]
        %v386 = vld [vmem:[%s200 + $0x60] sm:$0xff]
        %v387 = vld [vmem:[%s200 + $0x68] sm:$0xff]
        %v388 = vld [vmem:[%s200 + $0x70] sm:$0xff]
        %v389 = vld [vmem:[%s200 + $0x78] sm:$0xff]
        %v390 = vld [vmem:[%s200 + $0x80] sm:$0xff]
        %v391 = vld [vmem:[%s200 + $0x88] sm:$0xff]
        %v392 = vld [vmem:[%s200 + $0x90] sm:$0xff]
        %v393 = vld [vmem:[%s200 + $0x98] sm:$0xff]
        %v394 = vld [vmem:[%s200 + $0xa0] sm:$0xff]
        %v395 = vld [vmem:[%s200 + $0xa8] sm:$0xff]
        %v396 = vld [vmem:[%s200 + $0xb0] sm:$0xff]
        %v397 = vld [vmem:[%s200 + $0xb8] sm:$0xff]
        %v398 = vld [vmem:[%s200 + $0xc0] sm:$0xff]
        %v399 = vld [vmem:[%s200 + $0xc8] sm:$0xff]
        %v400 = vld [vmem:[%s200 + $0xd0] sm:$0xff]
        %v401 = vld [vmem:[%s200 + $0xd8] sm:$0xff]
        %v402 = vld [vmem:[%s200 + $0xe0] sm:$0xff]
        %v403 = vld [vmem:[%s200 + $0xe8] sm:$0xff]
        %v404 = vld [vmem:[%s200 + $0xf0] sm:$0xff]
        %v405 = vld [vmem:[%s200 + $0xf8] sm:$0xff]
        %v406 = vld [vmem:[%s200 + $0x100] sm:$0xff]
        %v407 = vld [vmem:[%s200 + $0x108] sm:$0xff]
        %v408 = vld [vmem:[%s200 + $0x110] sm:$0xff]
        %v409 = vld [vmem:[%s200 + $0x118] sm:$0xff]
        %v410 = vld [vmem:[%s200 + $0x120] sm:$0xff]
        %v411 = vld [vmem:[%s200 + $0x128] sm:$0xff]
        %v412 = vld [vmem:[%s200 + $0x130] sm:$0xff]
        %v413 = vld [vmem:[%s200 + $0x138] sm:$0xff]
        %v414 = vld [vmem:[%s200 + $0x140] sm:$0xff]
        %v415 = vld [vmem:[%s200 + $0x148] sm:$0xff]
        %v416 = vld [vmem:[%s200 + $0x150] sm:$0xff]
        %v417 = vld [vmem:[%s200 + $0x158] sm:$0xff]
        %v418 = vld [vmem:[%s200 + $0x160] sm:$0xff]
        %v419 = vld [vmem:[%s200 + $0x168] sm:$0xff]
        %v420 = vld [vmem:[%s200 + $0x170] sm:$0xff]
        %v421 = vld [vmem:[%s200 + $0x178] sm:$0xff]
        %v422 = vld [vmem:[%s200 + $0x180] sm:$0xff]
        %v423 = vld [vmem:[%s200 + $0x188] sm:$0xff]
        %v424 = vld [vmem:[%s200 + $0x190] sm:$0xff]
        %v425 = vld [vmem:[%s200 + $0x198] sm:$0xff]
        %v426 = vld [vmem:[%s200 + $0x1a0] sm:$0xff]
        %v427 = vld [vmem:[%s200 + $0x1a8] sm:$0xff]
        %v428 = vld [vmem:[%s200 + $0x1b0] sm:$0xff]
        %v429 = vld [vmem:[%s200 + $0x1b8] sm:$0xff]
        %v430 = vld [vmem:[%s200 + $0x1c0] sm:$0xff]
        %v431 = vld [vmem:[%s200 + $0x1c8] sm:$0xff]
        %v432 = vld [vmem:[%s200 + $0x1d0] sm:$0xff]
        %v433 = vld [vmem:[%s200 + $0x1d8] sm:$0xff]
        %v434 = vld [vmem:[%s200 + $0x1e0] sm:$0xff]
        %v435 = vld [vmem:[%s200 + $0x1e8] sm:$0xff]
        %v436 = vld [vmem:[%s200 + $0x1f0] sm:$0xff]
        %v437 = vld [vmem:[%s200 + $0x1f8] sm:$0xff]
        %v438 = vld [vmem:[%s200 + $0x200] sm:$0xff]
        %v439 = vld [vmem:[%s200 + $0x208] sm:$0xff]
        %v440 = vld [vmem:[%s200 + $0x210] sm:$0xff]
        %v441 = vld [vmem:[%s200 + $0x218] sm:$0xff]
        %v442 = vld [vmem:[%s200 + $0x220] sm:$0xff]
        %v443 = vld [vmem:[%s200 + $0x228] sm:$0xff]
        %v444 = vld [vmem:[%s200 + $0x230] sm:$0xff]
        %v445 = vld [vmem:[%s200 + $0x238] sm:$0xff]
        %v446 = vld [vmem:[%s200 + $0x240] sm:$0xff]
        %v447 = vld [vmem:[%s200 + $0x248] sm:$0xff]
        %v448 = vld [vmem:[%s200 + $0x250] sm:$0xff]
        %v449 = vld [vmem:[%s200 + $0x258] sm:$0xff]
        %v450 = vld [vmem:[%s200 + $0x260] sm:$0xff]
        %v451 = vld [vmem:[%s200 + $0x268] sm:$0xff]
        %v452 = vld [vmem:[%s200 + $0x270] sm:$0xff]
        %v453 = vld [vmem:[%s200 + $0x278] sm:$0xff]
        %v454 = vld [vmem:[%s200 + $0x280] sm:$0xff]
        %v455 = vld [vmem:[%s200 + $0x288] sm:$0xff]
        %v456 = vld [vmem:[%s200 + $0x290] sm:$0xff]
        %v457 = vld [vmem:[%s200 + $0x298] sm:$0xff]
        %v458 = vld [vmem:[%s200 + $0x2a0] sm:$0xff]
        %v459 = vld [vmem:[%s200 + $0x2a8] sm:$0xff]
        %v460 = vld [vmem:[%s200 + $0x2b0] sm:$0xff]
        %v461 = vld [vmem:[%s200 + $0x2b8] sm:$0xff]
        %v462 = vld [vmem:[%s200 + $0x2c0] sm:$0xff]
        %v463 = vld [vmem:[%s200 + $0x2c8] sm:$0xff]
        %v464 = vld [vmem:[%s200 + $0x2d0] sm:$0xff]
        %v465 = vld [vmem:[%s200 + $0x2d8] sm:$0xff]
        %v466 = vld [vmem:[%s200 + $0x2e0] sm:$0xff]
        %v467 = vld [vmem:[%s200 + $0x2e8] sm:$0xff]
        %v468 = vld [vmem:[%s200 + $0x2f0] sm:$0xff]
        %v469 = vld [vmem:[%s200 + $0x2f8] sm:$0xff]
        %v470 = vld [vmem:[%s200 + $0x300] sm:$0xff]
        %v471 = vld [vmem:[%s200 + $0x308] sm:$0xff]
        %v472 = vld [vmem:[%s200 + $0x310] sm:$0xff]
        %v473 = vld [vmem:[%s200 + $0x318] sm:$0xff]
        %v474 = vld [vmem:[%s200 + $0x320] sm:$0xff]
        %v475 = vld [vmem:[%s200 + $0x328] sm:$0xff]
        %v476 = vld [vmem:[%s200 + $0x330] sm:$0xff]
        %v477 = vld [vmem:[%s200 + $0x338] sm:$0xff]
        %v478 = vld [vmem:[%s200 + $0x340] sm:$0xff]
        %v479 = vld [vmem:[%s200 + $0x348] sm:$0xff]
        %v480 = vld [vmem:[%s200 + $0x350] sm:$0xff]
        %v481 = vld [vmem:[%s200 + $0x358] sm:$0xff]
        %v482 = vld [vmem:[%s200 + $0x360] sm:$0xff]
        %v483 = vld [vmem:[%s200 + $0x368] sm:$0xff]
        %v484 = vld [vmem:[%s200 + $0x370] sm:$0xff]
        %v485 = vld [vmem:[%s200 + $0x378] sm:$0xff]
        %v486 = vld [vmem:[%s200 + $0x380] sm:$0xff]
        %v487 = vld [vmem:[%s200 + $0x388] sm:$0xff]
        %v488 = vld [vmem:[%s200 + $0x390] sm:$0xff]
        %v489 = vld [vmem:[%s200 + $0x398] sm:$0xff]
        %v490 = vld [vmem:[%s200 + $0x3a0] sm:$0xff]
        %v491 = vld [vmem:[%s200 + $0x3a8] sm:$0xff]
        %v492 = vld [vmem:[%s200 + $0x3b0] sm:$0xff]
        %v493 = vld [vmem:[%s200 + $0x3b8] sm:$0xff]
        %v494 = vld [vmem:[%s200 + $0x3c0] sm:$0xff]
        %v495 = vld [vmem:[%s200 + $0x3c8] sm:$0xff]
        %v496 = vld [vmem:[%s200 + $0x3d0] sm:$0xff]
        %v497 = vld [vmem:[%s200 + $0x3d8] sm:$0xff]
        %v498 = vld [vmem:[%s200 + $0x3e0] sm:$0xff]
        %v499 = vld [vmem:[%s200 + $0x3e8] sm:$0xff]
        %v500 = vld [vmem:[%s200 + $0x3f0] sm:$0xff]
        %v501 = vld [vmem:[%s200 + $0x3f8] sm:$0xff]
        %v502 = vld [vmem:[%s200 + $0x400] sm:$0xff]
        %v503 = vld [vmem:[%s200 + $0x408] sm:$0xff]
        %v504 = vld [vmem:[%s200 + $0x410] sm:$0xff]
        %v505 = vld [vmem:[%s200 + $0x418] sm:$0xff]
        %v506 = vld [vmem:[%s200 + $0x420] sm:$0xff]
        %v507 = vld [vmem:[%s200 + $0x428] sm:$0xff]
        %v508 = vld [vmem:[%s200 + $0x430] sm:$0xff]
        %v509 = vld [vmem:[%s200 + $0x438] sm:$0xff]
        %v510 = vld [vmem:[%s200 + $0x440] sm:$0xff]
        %v511 = vld [vmem:[%s200 + $0x448] sm:$0xff]
        %v512 = vld [vmem:[%s200 + $0x450] sm:$0xff]
        %v513 = vld [vmem:[%s200 + $0x458] sm:$0xff]
        %v514 = vld [vmem:[%s200 + $0x460] sm:$0xff]
        %v515 = vld [vmem:[%s200 + $0x468] sm:$0xff]
        %v516 = vld [vmem:[%s200 + $0x470] sm:$0xff]
        %v517 = vld [vmem:[%s200 + $0x478] sm:$0xff]
        %v518 = vld [vmem:[%s200 + $0x480] sm:$0xff]
        %v519 = vld [vmem:[%s200 + $0x488] sm:$0xff]
        %v520 = vld [vmem:[%s200 + $0x490] sm:$0xff]
        %v521 = vld [vmem:[%s200 + $0x498] sm:$0xff]
        %v522 = vld [vmem:[%s200 + $0x4a0] sm:$0xff]
        %v523 = vld [vmem:[%s200 + $0x4a8] sm:$0xff]
        %v524 = vld [vmem:[%s200 + $0x4b0] sm:$0xff]
        %v525 = vld [vmem:[%s200 + $0x4b8] sm:$0xff]
        %v526 = vld [vmem:[%s200 + $0x4c0] sm:$0xff]
        %v527 = vld [vmem:[%s200 + $0x4c8] sm:$0xff]
        %v528 = vld [vmem:[%s200 + $0x4d0] sm:$0xff]
        %v529 = vld [vmem:[%s200 + $0x4d8] sm:$0xff]
        %v530 = vld [vmem:[%s200 + $0x4e0] sm:$0xff]
        %v531 = vld [vmem:[%s200 + $0x4e8] sm:$0xff]
        %v532 = vld [vmem:[%s200 + $0x4f0] sm:$0xff]
        %v533 = vld [vmem:[%s200 + $0x4f8] sm:$0xff]
        %v534 = vld [vmem:[%s200 + $0x500] sm:$0xff]
        %v535 = vld [vmem:[%s200 + $0x508] sm:$0xff]
        %v536 = vld [vmem:[%s200 + $0x510] sm:$0xff]
        %v537 = vld [vmem:[%s200 + $0x518] sm:$0xff]
        %v538 = vld [vmem:[%s200 + $0x520] sm:$0xff]
        %v539 = vld [vmem:[%s200 + $0x528] sm:$0xff]
        %v540 = vld [vmem:[%s200 + $0x530] sm:$0xff]
        %v541 = vld [vmem:[%s200 + $0x538] sm:$0xff]
        %v542 = vld [vmem:[%s200 + $0x540] sm:$0xff]
        %v543 = vld [vmem:[%s200 + $0x548] sm:$0xff]
        %v544 = vld [vmem:[%s200 + $0x550] sm:$0xff]
        %v545 = vld [vmem:[%s200 + $0x558] sm:$0xff]
        %v546 = vld [vmem:[%s200 + $0x560] sm:$0xff]
        %v547 = vld [vmem:[%s200 + $0x568] sm:$0xff]
        %v548 = vld [vmem:[%s200 + $0x570] sm:$0xff]
        %v549 = vld [vmem:[%s200 + $0x578] sm:$0xff]
        %v550 = vld [vmem:[%s200 + $0x580] sm:$0xff]
        %v551 = vld [vmem:[%s200 + $0x588] sm:$0xff]
        %v552 = vld [vmem:[%s200 + $0x590] sm:$0xff]
        %v553 = vld [vmem:[%s200 + $0x598] sm:$0xff]
        %v554 = vld [vmem:[%s200 + $0x5a0] sm:$0xff]
        %v555 = vld [vmem:[%s200 + $0x5a8] sm:$0xff]
        %v556 = vld [vmem:[%s200 + $0x5b0] sm:$0xff]
        %v557 = vld [vmem:[%s200 + $0x5b8] sm:$0xff]
        %v558 = vld [vmem:[%s200 + $0x5c0] sm:$0xff]
        %v559 = vld [vmem:[%s200 + $0x5c8] sm:$0xff]
        %v560 = vld [vmem:[%s200 + $0x5d0] sm:$0xff]
        %v561 = vld [vmem:[%s200 + $0x5d8] sm:$0xff]
        %v562 = vld [vmem:[%s200 + $0x5e0] sm:$0xff]
        %v563 = vld [vmem:[%s200 + $0x5e8] sm:$0xff]
        %v564 = vld [vmem:[%s200 + $0x5f0] sm:$0xff]
        %v565 = vld [vmem:[%s200 + $0x5f8] sm:$0xff]
        %v566 = vld [vmem:[%s200 + $0x600] sm:$0xff]
        %v567 = vld [vmem:[%s200 + $0x608] sm:$0xff]
        %v568 = vld [vmem:[%s200 + $0x610] sm:$0xff]
        %v569 = vld [vmem:[%s200 + $0x618] sm:$0xff]
        %v570 = vld [vmem:[%s200 + $0x620] sm:$0xff]
        %v571 = vld [vmem:[%s200 + $0x628] sm:$0xff]
        %v572 = vld [vmem:[%s200 + $0x630] sm:$0xff]
        %v573 = vld [vmem:[%s200 + $0x638] sm:$0xff]
        %v574 = vld [vmem:[%s200 + $0x640] sm:$0xff]
        %v575 = vld [vmem:[%s200 + $0x648] sm:$0xff]
        %v576 = vld [vmem:[%s200 + $0x650] sm:$0xff]
        %v577 = vld [vmem:[%s200 + $0x658] sm:$0xff]
        %v578 = vld [vmem:[%s200 + $0x660] sm:$0xff]
        %v579 = vld [vmem:[%s200 + $0x668] sm:$0xff]
        %v580 = vld [vmem:[%s200 + $0x670] sm:$0xff]
        %v581 = vld [vmem:[%s200 + $0x678] sm:$0xff]
        %v582 = vld [vmem:[%s200 + $0x680] sm:$0xff]
        %v583 = vld [vmem:[%s200 + $0x688] sm:$0xff]
        %v584 = vld [vmem:[%s200 + $0x690] sm:$0xff]
        %v585 = vld [vmem:[%s200 + $0x698] sm:$0xff]
        %v586 = vld [vmem:[%s200 + $0x6a0] sm:$0xff]
        %v587 = vld [vmem:[%s200 + $0x6a8] sm:$0xff]
        %v588 = vld [vmem:[%s200 + $0x6b0] sm:$0xff]
        %v589 = vld [vmem:[%s200 + $0x6b8] sm:$0xff]
        %v590 = vld [vmem:[%s200 + $0x6c0] sm:$0xff]
        %v591 = vld [vmem:[%s200 + $0x6c8] sm:$0xff]
        %v592 = vld [vmem:[%s200 + $0x6d0] sm:$0xff]
        %v593 = vld [vmem:[%s200 + $0x6d8] sm:$0xff]
        %v594 = vld [vmem:[%s200 + $0x6e0] sm:$0xff]
        %v595 = vld [vmem:[%s200 + $0x6e8] sm:$0xff]
        %v596 = vld [vmem:[%s200 + $0x6f0] sm:$0xff]
        %v597 = vld [vmem:[%s200 + $0x6f8] sm:$0xff]
        %v598 = vld [vmem:[%s200 + $0x700] sm:$0xff]
        %v599 = vld [vmem:[%s200 + $0x708] sm:$0xff]
        %v600 = vld [vmem:[%s200 + $0x710] sm:$0xff]
        %v601 = vld [vmem:[%s200 + $0x718] sm:$0xff]
        %v602 = vld [vmem:[%s200 + $0x720] sm:$0xff]
        %v603 = vld [vmem:[%s200 + $0x728] sm:$0xff]
        %v604 = vld [vmem:[%s200 + $0x730] sm:$0xff]
        %v605 = vld [vmem:[%s200 + $0x738] sm:$0xff]
        %v606 = vld [vmem:[%s200 + $0x740] sm:$0xff]
        %v607 = vld [vmem:[%s200 + $0x748] sm:$0xff]
        %v608 = vld [vmem:[%s200 + $0x750] sm:$0xff]
        %v609 = vld [vmem:[%s200 + $0x758] sm:$0xff]
        %v610 = vld [vmem:[%s200 + $0x760] sm:$0xff]
        %v611 = vld [vmem:[%s200 + $0x768] sm:$0xff]
        %v612 = vld [vmem:[%s200 + $0x770] sm:$0xff]
        %v613 = vld [vmem:[%s200 + $0x778] sm:$0xff]
        %v614 = vld [vmem:[%s200 + $0x780] sm:$0xff]
        %v615 = vld [vmem:[%s200 + $0x788] sm:$0xff]
        %v616 = vld [vmem:[%s200 + $0x790] sm:$0xff]
        %v617 = vld [vmem:[%s200 + $0x798] sm:$0xff]
        %v618 = vld [vmem:[%s200 + $0x7a0] sm:$0xff]
        %v619 = vld [vmem:[%s200 + $0x7a8] sm:$0xff]
        %v620 = vld [vmem:[%s200 + $0x7b0] sm:$0xff]
        %v621 = vld [vmem:[%s200 + $0x7b8] sm:$0xff]
        %v622 = vld [vmem:[%s200 + $0x7c0] sm:$0xff]
        %v623 = vld [vmem:[%s200 + $0x7c8] sm:$0xff]
        %v624 = vld [vmem:[%s200 + $0x7d0] sm:$0xff]
        %v625 = vld [vmem:[%s200 + $0x7d8] sm:$0xff]
        %v626 = vld [vmem:[%s200 + $0x7e0] sm:$0xff]
        %v627 = vld [vmem:[%s200 + $0x7e8] sm:$0xff]
        %v628 = vld [vmem:[%s200 + $0x7f0] sm:$0xff]
        %v629 = vld [vmem:[%s200 + $0x7f8] sm:$0xff]
        %v630 = vld [vmem:[%s200 + $0x800] sm:$0xff]
        %v631 = vld [vmem:[%s200 + $0x808] sm:$0xff]
        %v632 = vld [vmem:[%s200 + $0x810] sm:$0xff]
        %v633 = vld [vmem:[%s200 + $0x818] sm:$0xff]
        %v634 = vld [vmem:[%s200 + $0x820] sm:$0xff]
        %v635 = vld [vmem:[%s200 + $0x828] sm:$0xff]
        %v636 = vld [vmem:[%s200 + $0x830] sm:$0xff]
        %v637 = vld [vmem:[%s200 + $0x838] sm:$0xff]
        %v638 = vld [vmem:[%s200 + $0x840] sm:$0xff]
        %v639 = vld [vmem:[%s200 + $0x848] sm:$0xff]
        %v640 = vld [vmem:[%s200 + $0x850] sm:$0xff]
        %v641 = vld [vmem:[%s200 + $0x858] sm:$0xff]
        %v642 = vld [vmem:[%s200 + $0x860] sm:$0xff]
        %v643 = vld [vmem:[%s200 + $0x868] sm:$0xff]
        %v644 = vld [vmem:[%s200 + $0x870] sm:$0xff]
        %v645 = vld [vmem:[%s200 + $0x878] sm:$0xff]
        %v646 = vld [vmem:[%s200 + $0x880] sm:$0xff]
        %v647 = vld [vmem:[%s200 + $0x888] sm:$0xff]
        %v648 = vld [vmem:[%s200 + $0x890] sm:$0xff]
        %v649 = vld [vmem:[%s200 + $0x898] sm:$0xff]
        %v650 = vld [vmem:[%s200 + $0x8a0] sm:$0xff]
        %v651 = vld [vmem:[%s200 + $0x8a8] sm:$0xff]
        %v652 = vld [vmem:[%s200 + $0x8b0] sm:$0xff]
        %v653 = vld [vmem:[%s200 + $0x8b8] sm:$0xff]
        %v654 = vld [vmem:[%s200 + $0x8c0] sm:$0xff]
        %v655 = vld [vmem:[%s200 + $0x8c8] sm:$0xff]
        %v656 = vld [vmem:[%s200 + $0x8d0] sm:$0xff]
        %v657 = vld [vmem:[%s200 + $0x8d8] sm:$0xff]
        %v658 = vld [vmem:[%s200 + $0x8e0] sm:$0xff]
        %v659 = vld [vmem:[%s200 + $0x8e8] sm:$0xff]
        %v660 = vld [vmem:[%s200 + $0x8f0] sm:$0xff]
        %v661 = vld [vmem:[%s200 + $0x8f8] sm:$0xff]
        %v662 = vld [vmem:[%s200 + $0x900] sm:$0xff]
        %v663 = vld [vmem:[%s200 + $0x908] sm:$0xff]
        %v664 = vld [vmem:[%s200 + $0x910] sm:$0xff]
        %v665 = vld [vmem:[%s200 + $0x918] sm:$0xff]
        %v666 = vld [vmem:[%s200 + $0x920] sm:$0xff]
        %v667 = vld [vmem:[%s200 + $0x928] sm:$0xff]
        %v668 = vld [vmem:[%s200 + $0x930] sm:$0xff]
        %v669 = vld [vmem:[%s200 + $0x938] sm:$0xff]
        %v670 = vld [vmem:[%s200 + $0x940] sm:$0xff]
        %v671 = vld [vmem:[%s200 + $0x948] sm:$0xff]
        %v672 = vld [vmem:[%s200 + $0x950] sm:$0xff]
        %v673 = vld [vmem:[%s200 + $0x958] sm:$0xff]
        %v674 = vld [vmem:[%s200 + $0x960] sm:$0xff]
        %v675 = vld [vmem:[%s200 + $0x968] sm:$0xff]
        %v676 = vld [vmem:[%s200 + $0x970] sm:$0xff]
        %v677 = vld [vmem:[%s200 + $0x978] sm:$0xff]
        %v678 = vld [vmem:[%s200 + $0x980] sm:$0xff]
        %v679 = vld [vmem:[%s200 + $0x988] sm:$0xff]
        %v680 = vld [vmem:[%s200 + $0x990] sm:$0xff]
        %v681 = vld [vmem:[%s200 + $0x998] sm:$0xff]
        %v682 = vld [vmem:[%s200 + $0x9a0] sm:$0xff]
        %v683 = vld [vmem:[%s200 + $0x9a8] sm:$0xff]
        %v684 = vld [vmem:[%s200 + $0x9b0] sm:$0xff]
        %v685 = vld [vmem:[%s200 + $0x9b8] sm:$0xff]
        %v686 = vld [vmem:[%s200 + $0x9c0] sm:$0xff]
        %v687 = vld [vmem:[%s200 + $0x9c8] sm:$0xff]
        %v688 = vld [vmem:[%s200 + $0x9d0] sm:$0xff]
        %v689 = vld [vmem:[%s200 + $0x9d8] sm:$0xff]
        %v690 = vld [vmem:[%s200 + $0x9e0] sm:$0xff]
        %v691 = vld [vmem:[%s200 + $0x9e8] sm:$0xff]
        %v692 = vld [vmem:[%s200 + $0x9f0] sm:$0xff]
        %v693 = vld [vmem:[%s200 + $0x9f8] sm:$0xff]
        %v694 = vld [vmem:[%s200 + $0xa00] sm:$0xff]
        %v695 = vld [vmem:[%s200 + $0xa08] sm:$0xff]
        %v696 = vld [vmem:[%s200 + $0xa10] sm:$0xff]
        %v697 = vld [vmem:[%s200 + $0xa18] sm:$0xff]
        %v698 = vld [vmem:[%s200 + $0xa20] sm:$0xff]
        %v699 = vld [vmem:[%s200 + $0xa28] sm:$0xff]
        %v700 = vld [vmem:[%s200 + $0xa30] sm:$0xff]
        %v701 = vld [vmem:[%s200 + $0xa38] sm:$0xff]
        %v702 = vld [vmem:[%s200 + $0xa40] sm:$0xff]
        %v703 = vld [vmem:[%s200 + $0xa48] sm:$0xff]
        %v704 = vld [vmem:[%s200 + $0xa50] sm:$0xff]
        %v705 = vld [vmem:[%s200 + $0xa58] sm:$0xff]
        %v706 = vld [vmem:[%s200 + $0xa60] sm:$0xff]
        %v707 = vld [vmem:[%s200 + $0xa68] sm:$0xff]
        %v708 = vld [vmem:[%s200 + $0xa70] sm:$0xff]
        %v709 = vld [vmem:[%s200 + $0xa78] sm:$0xff]
        %v710 = vld [vmem:[%s200 + $0xa80] sm:$0xff]
        %v711 = vld [vmem:[%s200 + $0xa88] sm:$0xff]
        %v712 = vld [vmem:[%s200 + $0xa90] sm:$0xff]
        %v713 = vld [vmem:[%s200 + $0xa98] sm:$0xff]
        %v714 = vld [vmem:[%s200 + $0xaa0] sm:$0xff]
        %v715 = vld [vmem:[%s200 + $0xaa8] sm:$0xff]
        %v716 = vld [vmem:[%s200 + $0xab0] sm:$0xff]
        %v717 = vld [vmem:[%s200 + $0xab8] sm:$0xff]
        %v718 = vld [vmem:[%s200 + $0xac0] sm:$0xff]
        %v719 = vld [vmem:[%s200 + $0xac8] sm:$0xff]
        %v720 = vld [vmem:[%s200 + $0xad0] sm:$0xff]
        %v721 = vld [vmem:[%s200 + $0xad8] sm:$0xff]
        %v722 = vld [vmem:[%s200 + $0xae0] sm:$0xff]
        %v723 = vld [vmem:[%s200 + $0xae8] sm:$0xff]
        %v724 = vld [vmem:[%s200 + $0xaf0] sm:$0xff]
        %v725 = vld [vmem:[%s200 + $0xaf8] sm:$0xff]
        %v726 = vld [vmem:[%s200 + $0xb00] sm:$0xff]
        %v727 = vld [vmem:[%s200 + $0xb08] sm:$0xff]
        %v728 = vld [vmem:[%s200 + $0xb10] sm:$0xff]
        %v729 = vld [vmem:[%s200 + $0xb18] sm:$0xff]
        %v730 = vld [vmem:[%s200 + $0xb20] sm:$0xff]
        %v731 = vld [vmem:[%s200 + $0xb28] sm:$0xff]
        %v732 = vld [vmem:[%s200 + $0xb30] sm:$0xff]
        %v733 = vld [vmem:[%s200 + $0xb38] sm:$0xff]
        %v734 = vld [vmem:[%s200 + $0xb40] sm:$0xff]
        %v735 = vld [vmem:[%s200 + $0xb48] sm:$0xff]
        %v736 = vld [vmem:[%s200 + $0xb50] sm:$0xff]
        %v737 = vld [vmem:[%s200 + $0xb58] sm:$0xff]
        %v738 = vld [vmem:[%s200 + $0xb60] sm:$0xff]
        %v739 = vld [vmem:[%s200 + $0xb68] sm:$0xff]
        %v740 = vld [vmem:[%s200 + $0xb70] sm:$0xff]
        %v741 = vld [vmem:[%s200 + $0xb78] sm:$0xff]
        %v742 = vld [vmem:[%s200 + $0xb80] sm:$0xff]
        %v743 = vld [vmem:[%s200 + $0xb88] sm:$0xff]
        %v744 = vld [vmem:[%s200 + $0xb90] sm:$0xff]
        %v745 = vld [vmem:[%s200 + $0xb98] sm:$0xff]
        %v746 = vld [vmem:[%s200 + $0xba0] sm:$0xff]
        %v747 = vld [vmem:[%s200 + $0xba8] sm:$0xff]
        %v748 = vld [vmem:[%s200 + $0xbb0] sm:$0xff]
        %v749 = vld [vmem:[%s200 + $0xbb8] sm:$0xff]
        %v750 = vld [vmem:[%s200 + $0xbc0] sm:$0xff]
        %v751 = vld [vmem:[%s200 + $0xbc8] sm:$0xff]
        %v752 = vld [vmem:[%s200 + $0xbd0] sm:$0xff]
        %v753 = vld [vmem:[%s200 + $0xbd8] sm:$0xff]
        %v754 = vld [vmem:[%s200 + $0xbe0] sm:$0xff]
        %v755 = vld [vmem:[%s200 + $0xbe8] sm:$0xff]
        %v756 = vld [vmem:[%s200 + $0xbf0] sm:$0xff]
        %v757 = vld [vmem:[%s200 + $0xbf8] sm:$0xff]
        %v758 = vld [vmem:[%s200 + $0xc00] sm:$0xff]
        %v759 = vld [vmem:[%s200 + $0xc08] sm:$0xff]
        %v760 = vld [vmem:[%s200 + $0xc10] sm:$0xff]
        %v761 = vld [vmem:[%s200 + $0xc18] sm:$0xff]
        %v762 = vld [vmem:[%s200 + $0xc20] sm:$0xff]
        %v763 = vld [vmem:[%s200 + $0xc28] sm:$0xff]
        %v764 = vld [vmem:[%s200 + $0xc30] sm:$0xff]
        %v765 = vld [vmem:[%s200 + $0xc38] sm:$0xff]
        %v766 = vld [vmem:[%s200 + $0xc40] sm:$0xff]
        %v767 = vld [vmem:[%s200 + $0xc48] sm:$0xff]
        %v768 = vld [vmem:[%s200 + $0xc50] sm:$0xff]
        %v769 = vld [vmem:[%s200 + $0xc58] sm:$0xff]
        %v770 = vld [vmem:[%s200 + $0xc60] sm:$0xff]
        %v771 = vld [vmem:[%s200 + $0xc68] sm:$0xff]
        %v772 = vld [vmem:[%s200 + $0xc70] sm:$0xff]
        %v773 = vld [vmem:[%s200 + $0xc78] sm:$0xff]
        %v774 = vld [vmem:[%s200 + $0xc80] sm:$0xff]
        %v775 = vld [vmem:[%s200 + $0xc88] sm:$0xff]
        %v776 = vld [vmem:[%s200 + $0xc90] sm:$0xff]
        %v777 = vld [vmem:[%s200 + $0xc98] sm:$0xff]
        %v778 = vld [vmem:[%s200 + $0xca0] sm:$0xff]
        %v779 = vld [vmem:[%s200 + $0xca8] sm:$0xff]
        %v780 = vld [vmem:[%s200 + $0xcb0] sm:$0xff]
        %v781 = vld [vmem:[%s200 + $0xcb8] sm:$0xff]
        %v782 = vld [vmem:[%s200 + $0xcc0] sm:$0xff]
        %v783 = vld [vmem:[%s200 + $0xcc8] sm:$0xff]
        %v784 = vld [vmem:[%s200 + $0xcd0] sm:$0xff]
        %v785 = vld [vmem:[%s200 + $0xcd8] sm:$0xff]
        %v786 = vld [vmem:[%s200 + $0xce0] sm:$0xff]
        %v787 = vld [vmem:[%s200 + $0xce8] sm:$0xff]
        %v788 = vld [vmem:[%s200 + $0xcf0] sm:$0xff]
        %v789 = vld [vmem:[%s200 + $0xcf8] sm:$0xff]
        %v790 = vld [vmem:[%s200 + $0xd00] sm:$0xff]
        %v791 = vld [vmem:[%s200 + $0xd08] sm:$0xff]
        %v792 = vld [vmem:[%s200 + $0xd10] sm:$0xff]
        %v793 = vld [vmem:[%s200 + $0xd18] sm:$0xff]
        %v794 = vld [vmem:[%s200 + $0xd20] sm:$0xff]
        %v795 = vld [vmem:[%s200 + $0xd28] sm:$0xff]
        %v796 = vld [vmem:[%s200 + $0xd30] sm:$0xff]
        %v797 = vld [vmem:[%s200 + $0xd38] sm:$0xff]
        %v798 = vld [vmem:[%s200 + $0xd40] sm:$0xff]
        %v799 = vld [vmem:[%s200 + $0xd48] sm:$0xff]
        %v800 = vld [vmem:[%s200 + $0xd50] sm:$0xff]
        %v801 = vld [vmem:[%s200 + $0xd58] sm:$0xff]
        %v802 = vld [vmem:[%s200 + $0xd60] sm:$0xff]
        %v803 = vld [vmem:[%s200 + $0xd68] sm:$0xff]
        %v804 = vld [vmem:[%s200 + $0xd70] sm:$0xff]
        %v805 = vld [vmem:[%s200 + $0xd78] sm:$0xff]
        %v806 = vld [vmem:[%s200 + $0xd80] sm:$0xff]
        %v807 = vld [vmem:[%s200 + $0xd88] sm:$0xff]
        %v808 = vld [vmem:[%s200 + $0xd90] sm:$0xff]
        %v809 = vld [vmem:[%s200 + $0xd98] sm:$0xff]
        %v810 = vld [vmem:[%s200 + $0xda0] sm:$0xff]
        %v811 = vld [vmem:[%s200 + $0xda8] sm:$0xff]
        %v812 = vld [vmem:[%s200 + $0xdb0] sm:$0xff]
        %v813 = vld [vmem:[%s200 + $0xdb8] sm:$0xff]
        %v814 = vld [vmem:[%s200 + $0xdc0] sm:$0xff]
        %v815 = vld [vmem:[%s200 + $0xdc8] sm:$0xff]
        %v816 = vld [vmem:[%s200 + $0xdd0] sm:$0xff]
        %v817 = vld [vmem:[%s200 + $0xdd8] sm:$0xff]
        %v818 = vld [vmem:[%s200 + $0xde0] sm:$0xff]
        %v819 = vld [vmem:[%s200 + $0xde8] sm:$0xff]
        %v820 = vld [vmem:[%s200 + $0xdf0] sm:$0xff]
        %v821 = vld [vmem:[%s200 + $0xdf8] sm:$0xff]
        %v822 = vld [vmem:[%s200 + $0xe00] sm:$0xff]
        %v823 = vld [vmem:[%s200 + $0xe08] sm:$0xff]
        %v824 = vld [vmem:[%s200 + $0xe10] sm:$0xff]
        %v825 = vld [vmem:[%s200 + $0xe18] sm:$0xff]
        %v826 = vld [vmem:[%s200 + $0xe20] sm:$0xff]
        %v827 = vld [vmem:[%s200 + $0xe28] sm:$0xff]
        %v828 = vld [vmem:[%s200 + $0xe30] sm:$0xff]
        %v829 = vld [vmem:[%s200 + $0xe38] sm:$0xff]
        %v830 = vld [vmem:[%s200 + $0xe40] sm:$0xff]
        %v831 = vld [vmem:[%s200 + $0xe48] sm:$0xff]
        %v832 = vld [vmem:[%s200 + $0xe50] sm:$0xff]
        %v833 = vld [vmem:[%s200 + $0xe58] sm:$0xff]
        %v834 = vld [vmem:[%s200 + $0xe60] sm:$0xff]
        %v835 = vld [vmem:[%s200 + $0xe68] sm:$0xff]
        %v836 = vld [vmem:[%s200 + $0xe70] sm:$0xff]
        %v837 = vld [vmem:[%s200 + $0xe78] sm:$0xff]
        %v838 = vld [vmem:[%s200 + $0xe80] sm:$0xff]
        %v839 = vld [vmem:[%s200 + $0xe88] sm:$0xff]
        %v840 = vld [vmem:[%s200 + $0xe90] sm:$0xff]
        %v841 = vld [vmem:[%s200 + $0xe98] sm:$0xff]
        %v842 = vld [vmem:[%s200 + $0xea0] sm:$0xff]
        %v843 = vld [vmem:[%s200 + $0xea8] sm:$0xff]
        %v844 = vld [vmem:[%s200 + $0xeb0] sm:$0xff]
        %v845 = vld [vmem:[%s200 + $0xeb8] sm:$0xff]
        %v846 = vld [vmem:[%s200 + $0xec0] sm:$0xff]
        %v847 = vld [vmem:[%s200 + $0xec8] sm:$0xff]
        %v848 = vld [vmem:[%s200 + $0xed0] sm:$0xff]
        %v849 = vld [vmem:[%s200 + $0xed8] sm:$0xff]
        %v850 = vld [vmem:[%s200 + $0xee0] sm:$0xff]
        %v851 = vld [vmem:[%s200 + $0xee8] sm:$0xff]
        %v852 = vld [vmem:[%s200 + $0xef0] sm:$0xff]
        %v853 = vld [vmem:[%s200 + $0xef8] sm:$0xff]
        %v854 = vld [vmem:[%s200 + $0xf00] sm:$0xff]
        %v855 = vld [vmem:[%s200 + $0xf08] sm:$0xff]
        %v856 = vld [vmem:[%s200 + $0xf10] sm:$0xff]
        %v857 = vld [vmem:[%s200 + $0xf18] sm:$0xff]
        %v858 = vld [vmem:[%s200 + $0xf20] sm:$0xff]
        %v859 = vld [vmem:[%s200 + $0xf28] sm:$0xff]
        %v860 = vld [vmem:[%s200 + $0xf30] sm:$0xff]
        %v861 = vld [vmem:[%s200 + $0xf38] sm:$0xff]
        %v862 = vld [vmem:[%s200 + $0xf40] sm:$0xff]
        %v863 = vld [vmem:[%s200 + $0xf48] sm:$0xff]
        %v864 = vld [vmem:[%s200 + $0xf50] sm:$0xff]
        %v865 = vld [vmem:[%s200 + $0xf58] sm:$0xff]
        %v866 = vld [vmem:[%s200 + $0xf60] sm:$0xff]
        %v867 = vld [vmem:[%s200 + $0xf68] sm:$0xff]
        %v868 = vld [vmem:[%s200 + $0xf70] sm:$0xff]
        %v869 = vld [vmem:[%s200 + $0xf78] sm:$0xff]
        %v870 = vld [vmem:[%s200 + $0xf80] sm:$0xff]
        %v871 = vld [vmem:[%s200 + $0xf88] sm:$0xff]
        %v872 = vld [vmem:[%s200 + $0xf90] sm:$0xff]
        %v873 = vld [vmem:[%s200 + $0xf98] sm:$0xff]
        %v874 = vld [vmem:[%s200 + $0xfa0] sm:$0xff]
        %v875 = vld [vmem:[%s200 + $0xfa8] sm:$0xff]
        %v876 = vld [vmem:[%s200 + $0xfb0] sm:$0xff]
        %v877 = vld [vmem:[%s200 + $0xfb8] sm:$0xff]
        %v878 = vld [vmem:[%s200 + $0xfc0] sm:$0xff]
        %v879 = vld [vmem:[%s200 + $0xfc8] sm:$0xff]
        %v880 = vld [vmem:[%s200 + $0xfd0] sm:$0xff]
        %v881 = vld [vmem:[%s200 + $0xfd8] sm:$0xff]
        %v882 = vld [vmem:[%s200 + $0xfe0] sm:$0xff]
        %v883 = vld [vmem:[%s200 + $0xfe8] sm:$0xff]
        %v884 = vld [vmem:[%s200 + $0xff0] sm:$0xff]
        %v885 = vld [vmem:[%s200 + $0xff8] sm:$0xff]
        %v910 = vunpack.c.l.b16 %v350
        %v911 = vunpack.c.h.b16 %v350
        %v912 = vunpack.c.l.b16 %v351
        %v913 = vunpack.c.h.b16 %v351
        %v914 = vunpack.c.l.b16 %v352
        %v915 = vunpack.c.h.b16 %v352
        %v916 = vunpack.c.l.b16 %v353
        %v917 = vunpack.c.h.b16 %v353
        %v918 = vunpack.c.l.b16 %v354
        %v919 = vunpack.c.h.b16 %v354
        %v920 = vunpack.c.l.b16 %v355
        %v921 = vunpack.c.h.b16 %v355
        %v922 = vunpack.c.l.b16 %v356
        %v923 = vunpack.c.h.b16 %v356
        %v924 = vunpack.c.l.b16 %v357
        %v925 = vunpack.c.h.b16 %v357
        %v926 = vunpack.c.l.b16 %v358
        %v927 = vunpack.c.h.b16 %v358
        %v928 = vunpack.c.l.b16 %v359
        %v929 = vunpack.c.h.b16 %v359
        %v930 = vunpack.c.l.b16 %v360
        %v931 = vunpack.c.h.b16 %v360
        %v932 = vunpack.c.l.b16 %v361
        %v933 = vunpack.c.h.b16 %v361
        %v934 = vunpack.c.l.b16 %v362
        %v935 = vunpack.c.h.b16 %v362
        %v936 = vunpack.c.l.b16 %v363
        %v937 = vunpack.c.h.b16 %v363
        %v938 = vunpack.c.l.b16 %v364
        %v939 = vunpack.c.h.b16 %v364
        %v940 = vunpack.c.l.b16 %v365
        %v941 = vunpack.c.h.b16 %v365
        %v942 = vunpack.c.l.b16 %v366
        %v943 = vunpack.c.h.b16 %v366
        %v944 = vunpack.c.l.b16 %v367
        %v945 = vunpack.c.h.b16 %v367
        %v946 = vunpack.c.l.b16 %v368
        %v947 = vunpack.c.h.b16 %v368
        %v948 = vunpack.c.l.b16 %v369
        %v949 = vunpack.c.h.b16 %v369
        %v950 = vunpack.c.l.b16 %v370
        %v951 = vunpack.c.h.b16 %v370
        %v952 = vunpack.c.l.b16 %v371
        %v953 = vunpack.c.h.b16 %v371
        %v954 = vunpack.c.l.b16 %v372
        %v955 = vunpack.c.h.b16 %v372
        %v956 = vunpack.c.l.b16 %v373
        %v957 = vunpack.c.h.b16 %v373
        %v958 = vpack.c.b16 %v918, %v910
        %v959 = vpack.c.b16 %v919, %v911
        %v960 = vpack.c.b16 %v920, %v912
        %v961 = vpack.c.b16 %v921, %v913
        %v962 = vpack.c.b16 %v922, %v914
        %v963 = vpack.c.b16 %v923, %v915
        %v964 = vpack.c.b16 %v924, %v916
        %v965 = vpack.c.b16 %v925, %v917
        %v966 = vpack.c.b16 %v934, %v926
        %v967 = vpack.c.b16 %v935, %v927
        %v968 = vpack.c.b16 %v936, %v928
        %v969 = vpack.c.b16 %v937, %v929
        %v970 = vpack.c.b16 %v938, %v930
        %v971 = vpack.c.b16 %v939, %v931
        %v972 = vpack.c.b16 %v940, %v932
        %v973 = vpack.c.b16 %v941, %v933
        %v974 = vpack.c.b16 %v950, %v942
        %v975 = vpack.c.b16 %v951, %v943
        %v976 = vpack.c.b16 %v952, %v944
        %v977 = vpack.c.b16 %v953, %v945
        %v978 = vpack.c.b16 %v954, %v946
        %v979 = vpack.c.b16 %v955, %v947
        %v980 = vpack.c.b16 %v956, %v948
        %v981 = vpack.c.b16 %v957, %v949
        %v1518 = vunpack.c.l.b16 %v374
        %v1519 = vunpack.c.h.b16 %v374
        %v1520 = vunpack.c.l.b16 %v375
        %v1521 = vunpack.c.h.b16 %v375
        %v1522 = vunpack.c.l.b16 %v376
        %v1523 = vunpack.c.h.b16 %v376
        %v1524 = vunpack.c.l.b16 %v377
        %v1525 = vunpack.c.h.b16 %v377
        %v1526 = vunpack.c.l.b16 %v378
        %v1527 = vunpack.c.h.b16 %v378
        %v1528 = vunpack.c.l.b16 %v379
        %v1529 = vunpack.c.h.b16 %v379
        %v1530 = vunpack.c.l.b16 %v380
        %v1531 = vunpack.c.h.b16 %v380
        %v1532 = vunpack.c.l.b16 %v381
        %v1533 = vunpack.c.h.b16 %v381
        %v1534 = vunpack.c.l.b16 %v382
        %v1535 = vunpack.c.h.b16 %v382
        %v1536 = vunpack.c.l.b16 %v383
        %v1537 = vunpack.c.h.b16 %v383
        %v1538 = vunpack.c.l.b16 %v384
        %v1539 = vunpack.c.h.b16 %v384
        %v1540 = vunpack.c.l.b16 %v385
        %v1541 = vunpack.c.h.b16 %v385
        %v1542 = vunpack.c.l.b16 %v386
        %v1543 = vunpack.c.h.b16 %v386
        %v1544 = vunpack.c.l.b16 %v387
        %v1545 = vunpack.c.h.b16 %v387
        %v1546 = vunpack.c.l.b16 %v388
        %v1547 = vunpack.c.h.b16 %v388
        %v1548 = vunpack.c.l.b16 %v389
        %v1549 = vunpack.c.h.b16 %v389
        %v1550 = vunpack.c.l.b16 %v390
        %v1551 = vunpack.c.h.b16 %v390
        %v1552 = vunpack.c.l.b16 %v391
        %v1553 = vunpack.c.h.b16 %v391
        %v1554 = vunpack.c.l.b16 %v392
        %v1555 = vunpack.c.h.b16 %v392
        %v1556 = vunpack.c.l.b16 %v393
        %v1557 = vunpack.c.h.b16 %v393
        %v1558 = vunpack.c.l.b16 %v394
        %v1559 = vunpack.c.h.b16 %v394
        %v1560 = vunpack.c.l.b16 %v395
        %v1561 = vunpack.c.h.b16 %v395
        %v1562 = vunpack.c.l.b16 %v396
        %v1563 = vunpack.c.h.b16 %v396
        %v1564 = vunpack.c.l.b16 %v397
        %v1565 = vunpack.c.h.b16 %v397
        %v1566 = vunpack.c.l.b16 %v398
        %v1567 = vunpack.c.h.b16 %v398
        %v1568 = vunpack.c.l.b16 %v399
        %v1569 = vunpack.c.h.b16 %v399
        %v1570 = vunpack.c.l.b16 %v400
        %v1571 = vunpack.c.h.b16 %v400
        %v1572 = vunpack.c.l.b16 %v401
        %v1573 = vunpack.c.h.b16 %v401
        %v1574 = vunpack.c.l.b16 %v402
        %v1575 = vunpack.c.h.b16 %v402
        %v1576 = vunpack.c.l.b16 %v403
        %v1577 = vunpack.c.h.b16 %v403
        %v1578 = vunpack.c.l.b16 %v404
        %v1579 = vunpack.c.h.b16 %v404
        %v1580 = vunpack.c.l.b16 %v405
        %v1581 = vunpack.c.h.b16 %v405
        %v1582 = vunpack.c.l.b16 %v406
        %v1583 = vunpack.c.h.b16 %v406
        %v1584 = vunpack.c.l.b16 %v407
        %v1585 = vunpack.c.h.b16 %v407
        %v1586 = vunpack.c.l.b16 %v408
        %v1587 = vunpack.c.h.b16 %v408
        %v1588 = vunpack.c.l.b16 %v409
        %v1589 = vunpack.c.h.b16 %v409
        %v1590 = vunpack.c.l.b16 %v410
        %v1591 = vunpack.c.h.b16 %v410
        %v1592 = vunpack.c.l.b16 %v411
        %v1593 = vunpack.c.h.b16 %v411
        %v1594 = vunpack.c.l.b16 %v412
        %v1595 = vunpack.c.h.b16 %v412
        %v1596 = vunpack.c.l.b16 %v413
        %v1597 = vunpack.c.h.b16 %v413
        %v1598 = vunpack.c.l.b16 %v414
        %v1599 = vunpack.c.h.b16 %v414
        %v1600 = vunpack.c.l.b16 %v415
        %v1601 = vunpack.c.h.b16 %v415
        %v1602 = vunpack.c.l.b16 %v416
        %v1603 = vunpack.c.h.b16 %v416
        %v1604 = vunpack.c.l.b16 %v417
        %v1605 = vunpack.c.h.b16 %v417
        %v1606 = vunpack.c.l.b16 %v418
        %v1607 = vunpack.c.h.b16 %v418
        %v1608 = vunpack.c.l.b16 %v419
        %v1609 = vunpack.c.h.b16 %v419
        %v1610 = vunpack.c.l.b16 %v420
        %v1611 = vunpack.c.h.b16 %v420
        %v1612 = vunpack.c.l.b16 %v421
        %v1613 = vunpack.c.h.b16 %v421
        %v1614 = vunpack.c.l.b16 %v422
        %v1615 = vunpack.c.h.b16 %v422
        %v1616 = vunpack.c.l.b16 %v423
        %v1617 = vunpack.c.h.b16 %v423
        %v1618 = vunpack.c.l.b16 %v424
        %v1619 = vunpack.c.h.b16 %v424
        %v1620 = vunpack.c.l.b16 %v425
        %v1621 = vunpack.c.h.b16 %v425
        %v1622 = vunpack.c.l.b16 %v426
        %v1623 = vunpack.c.h.b16 %v426
        %v1624 = vunpack.c.l.b16 %v427
        %v1625 = vunpack.c.h.b16 %v427
        %v1626 = vunpack.c.l.b16 %v428
        %v1627 = vunpack.c.h.b16 %v428
        %v1628 = vunpack.c.l.b16 %v429
        %v1629 = vunpack.c.h.b16 %v429
        %v1630 = vunpack.c.l.b16 %v430
        %v1631 = vunpack.c.h.b16 %v430
        %v1632 = vunpack.c.l.b16 %v431
        %v1633 = vunpack.c.h.b16 %v431
        %v1634 = vunpack.c.l.b16 %v432
        %v1635 = vunpack.c.h.b16 %v432
        %v1636 = vunpack.c.l.b16 %v433
        %v1637 = vunpack.c.h.b16 %v433
        %v1638 = vunpack.c.l.b16 %v434
        %v1639 = vunpack.c.h.b16 %v434
        %v1640 = vunpack.c.l.b16 %v435
        %v1641 = vunpack.c.h.b16 %v435
        %v1642 = vunpack.c.l.b16 %v436
        %v1643 = vunpack.c.h.b16 %v436
        %v1644 = vunpack.c.l.b16 %v437
        %v1645 = vunpack.c.h.b16 %v437
        %v1646 = vunpack.c.l.b16 %v438
        %v1647 = vunpack.c.h.b16 %v438
        %v1648 = vunpack.c.l.b16 %v439
        %v1649 = vunpack.c.h.b16 %v439
        %v1650 = vunpack.c.l.b16 %v440
        %v1651 = vunpack.c.h.b16 %v440
        %v1652 = vunpack.c.l.b16 %v441
        %v1653 = vunpack.c.h.b16 %v441
        %v1654 = vunpack.c.l.b16 %v442
        %v1655 = vunpack.c.h.b16 %v442
        %v1656 = vunpack.c.l.b16 %v443
        %v1657 = vunpack.c.h.b16 %v443
        %v1658 = vunpack.c.l.b16 %v444
        %v1659 = vunpack.c.h.b16 %v444
        %v1660 = vunpack.c.l.b16 %v445
        %v1661 = vunpack.c.h.b16 %v445
        %v1662 = vunpack.c.l.b16 %v446
        %v1663 = vunpack.c.h.b16 %v446
        %v1664 = vunpack.c.l.b16 %v447
        %v1665 = vunpack.c.h.b16 %v447
        %v1666 = vunpack.c.l.b16 %v448
        %v1667 = vunpack.c.h.b16 %v448
        %v1668 = vunpack.c.l.b16 %v449
        %v1669 = vunpack.c.h.b16 %v449
        %v1670 = vunpack.c.l.b16 %v450
        %v1671 = vunpack.c.h.b16 %v450
        %v1672 = vunpack.c.l.b16 %v451
        %v1673 = vunpack.c.h.b16 %v451
        %v1674 = vunpack.c.l.b16 %v452
        %v1675 = vunpack.c.h.b16 %v452
        %v1676 = vunpack.c.l.b16 %v453
        %v1677 = vunpack.c.h.b16 %v453
        %v1678 = vunpack.c.l.b16 %v454
        %v1679 = vunpack.c.h.b16 %v454
        %v1680 = vunpack.c.l.b16 %v455
        %v1681 = vunpack.c.h.b16 %v455
        %v1682 = vunpack.c.l.b16 %v456
        %v1683 = vunpack.c.h.b16 %v456
        %v1684 = vunpack.c.l.b16 %v457
        %v1685 = vunpack.c.h.b16 %v457
        %v1686 = vunpack.c.l.b16 %v458
        %v1687 = vunpack.c.h.b16 %v458
        %v1688 = vunpack.c.l.b16 %v459
        %v1689 = vunpack.c.h.b16 %v459
        %v1690 = vunpack.c.l.b16 %v460
        %v1691 = vunpack.c.h.b16 %v460
        %v1692 = vunpack.c.l.b16 %v461
        %v1693 = vunpack.c.h.b16 %v461
        %v1694 = vunpack.c.l.b16 %v462
        %v1695 = vunpack.c.h.b16 %v462
        %v1696 = vunpack.c.l.b16 %v463
        %v1697 = vunpack.c.h.b16 %v463
        %v1698 = vunpack.c.l.b16 %v464
        %v1699 = vunpack.c.h.b16 %v464
        %v1700 = vunpack.c.l.b16 %v465
        %v1701 = vunpack.c.h.b16 %v465
        %v1702 = vunpack.c.l.b16 %v466
        %v1703 = vunpack.c.h.b16 %v466
        %v1704 = vunpack.c.l.b16 %v467
        %v1705 = vunpack.c.h.b16 %v467
        %v1706 = vunpack.c.l.b16 %v468
        %v1707 = vunpack.c.h.b16 %v468
        %v1708 = vunpack.c.l.b16 %v469
        %v1709 = vunpack.c.h.b16 %v469
        %v1710 = vunpack.c.l.b16 %v470
        %v1711 = vunpack.c.h.b16 %v470
        %v1712 = vunpack.c.l.b16 %v471
        %v1713 = vunpack.c.h.b16 %v471
        %v1714 = vunpack.c.l.b16 %v472
        %v1715 = vunpack.c.h.b16 %v472
        %v1716 = vunpack.c.l.b16 %v473
        %v1717 = vunpack.c.h.b16 %v473
        %v1718 = vunpack.c.l.b16 %v474
        %v1719 = vunpack.c.h.b16 %v474
        %v1720 = vunpack.c.l.b16 %v475
        %v1721 = vunpack.c.h.b16 %v475
        %v1722 = vunpack.c.l.b16 %v476
        %v1723 = vunpack.c.h.b16 %v476
        %v1724 = vunpack.c.l.b16 %v477
        %v1725 = vunpack.c.h.b16 %v477
        %v1726 = vunpack.c.l.b16 %v478
        %v1727 = vunpack.c.h.b16 %v478
        %v1728 = vunpack.c.l.b16 %v479
        %v1729 = vunpack.c.h.b16 %v479
        %v1730 = vunpack.c.l.b16 %v480
        %v1731 = vunpack.c.h.b16 %v480
        %v1732 = vunpack.c.l.b16 %v481
        %v1733 = vunpack.c.h.b16 %v481
        %v1734 = vunpack.c.l.b16 %v482
        %v1735 = vunpack.c.h.b16 %v482
        %v1736 = vunpack.c.l.b16 %v483
        %v1737 = vunpack.c.h.b16 %v483
        %v1738 = vunpack.c.l.b16 %v484
        %v1739 = vunpack.c.h.b16 %v484
        %v1740 = vunpack.c.l.b16 %v485
        %v1741 = vunpack.c.h.b16 %v485
        %v1742 = vunpack.c.l.b16 %v486
        %v1743 = vunpack.c.h.b16 %v486
        %v1744 = vunpack.c.l.b16 %v487
        %v1745 = vunpack.c.h.b16 %v487
        %v1746 = vunpack.c.l.b16 %v488
        %v1747 = vunpack.c.h.b16 %v488
        %v1748 = vunpack.c.l.b16 %v489
        %v1749 = vunpack.c.h.b16 %v489
        %v1750 = vunpack.c.l.b16 %v490
        %v1751 = vunpack.c.h.b16 %v490
        %v1752 = vunpack.c.l.b16 %v491
        %v1753 = vunpack.c.h.b16 %v491
        %v1754 = vunpack.c.l.b16 %v492
        %v1755 = vunpack.c.h.b16 %v492
        %v1756 = vunpack.c.l.b16 %v493
        %v1757 = vunpack.c.h.b16 %v493
        %v1758 = vunpack.c.l.b16 %v494
        %v1759 = vunpack.c.h.b16 %v494
        %v1760 = vunpack.c.l.b16 %v495
        %v1761 = vunpack.c.h.b16 %v495
        %v1762 = vunpack.c.l.b16 %v496
        %v1763 = vunpack.c.h.b16 %v496
        %v1764 = vunpack.c.l.b16 %v497
        %v1765 = vunpack.c.h.b16 %v497
        %v1766 = vunpack.c.l.b16 %v498
        %v1767 = vunpack.c.h.b16 %v498
        %v1768 = vunpack.c.l.b16 %v499
        %v1769 = vunpack.c.h.b16 %v499
        %v1770 = vunpack.c.l.b16 %v500
        %v1771 = vunpack.c.h.b16 %v500
        %v1772 = vunpack.c.l.b16 %v501
        %v1773 = vunpack.c.h.b16 %v501
        %v1774 = vunpack.c.l.b16 %v502
        %v1775 = vunpack.c.h.b16 %v502
        %v1776 = vunpack.c.l.b16 %v503
        %v1777 = vunpack.c.h.b16 %v503
        %v1778 = vunpack.c.l.b16 %v504
        %v1779 = vunpack.c.h.b16 %v504
        %v1780 = vunpack.c.l.b16 %v505
        %v1781 = vunpack.c.h.b16 %v505
        %v1782 = vunpack.c.l.b16 %v506
        %v1783 = vunpack.c.h.b16 %v506
        %v1784 = vunpack.c.l.b16 %v507
        %v1785 = vunpack.c.h.b16 %v507
        %v1786 = vunpack.c.l.b16 %v508
        %v1787 = vunpack.c.h.b16 %v508
        %v1788 = vunpack.c.l.b16 %v509
        %v1789 = vunpack.c.h.b16 %v509
        %v1790 = vunpack.c.l.b16 %v510
        %v1791 = vunpack.c.h.b16 %v510
        %v1792 = vunpack.c.l.b16 %v511
        %v1793 = vunpack.c.h.b16 %v511
        %v1794 = vunpack.c.l.b16 %v512
        %v1795 = vunpack.c.h.b16 %v512
        %v1796 = vunpack.c.l.b16 %v513
        %v1797 = vunpack.c.h.b16 %v513
        %v1798 = vunpack.c.l.b16 %v514
        %v1799 = vunpack.c.h.b16 %v514
        %v1800 = vunpack.c.l.b16 %v515
        %v1801 = vunpack.c.h.b16 %v515
        %v1802 = vunpack.c.l.b16 %v516
        %v1803 = vunpack.c.h.b16 %v516
        %v1804 = vunpack.c.l.b16 %v517
        %v1805 = vunpack.c.h.b16 %v517
        %v1806 = vunpack.c.l.b16 %v518
        %v1807 = vunpack.c.h.b16 %v518
        %v1808 = vunpack.c.l.b16 %v519
        %v1809 = vunpack.c.h.b16 %v519
        %v1810 = vunpack.c.l.b16 %v520
        %v1811 = vunpack.c.h.b16 %v520
        %v1812 = vunpack.c.l.b16 %v521
        %v1813 = vunpack.c.h.b16 %v521
        %v1814 = vunpack.c.l.b16 %v522
        %v1815 = vunpack.c.h.b16 %v522
        %v1816 = vunpack.c.l.b16 %v523
        %v1817 = vunpack.c.h.b16 %v523
        %v1818 = vunpack.c.l.b16 %v524
        %v1819 = vunpack.c.h.b16 %v524
        %v1820 = vunpack.c.l.b16 %v525
        %v1821 = vunpack.c.h.b16 %v525
        %v1822 = vunpack.c.l.b16 %v526
        %v1823 = vunpack.c.h.b16 %v526
        %v1824 = vunpack.c.l.b16 %v527
        %v1825 = vunpack.c.h.b16 %v527
        %v1826 = vunpack.c.l.b16 %v528
        %v1827 = vunpack.c.h.b16 %v528
        %v1828 = vunpack.c.l.b16 %v529
        %v1829 = vunpack.c.h.b16 %v529
        %v1830 = vunpack.c.l.b16 %v530
        %v1831 = vunpack.c.h.b16 %v530
        %v1832 = vunpack.c.l.b16 %v531
        %v1833 = vunpack.c.h.b16 %v531
        %v1834 = vunpack.c.l.b16 %v532
        %v1835 = vunpack.c.h.b16 %v532
        %v1836 = vunpack.c.l.b16 %v533
        %v1837 = vunpack.c.h.b16 %v533
        %v1838 = vunpack.c.l.b16 %v534
        %v1839 = vunpack.c.h.b16 %v534
        %v1840 = vunpack.c.l.b16 %v535
        %v1841 = vunpack.c.h.b16 %v535
        %v1842 = vunpack.c.l.b16 %v536
        %v1843 = vunpack.c.h.b16 %v536
        %v1844 = vunpack.c.l.b16 %v537
        %v1845 = vunpack.c.h.b16 %v537
        %v1846 = vunpack.c.l.b16 %v538
        %v1847 = vunpack.c.h.b16 %v538
        %v1848 = vunpack.c.l.b16 %v539
        %v1849 = vunpack.c.h.b16 %v539
        %v1850 = vunpack.c.l.b16 %v540
        %v1851 = vunpack.c.h.b16 %v540
        %v1852 = vunpack.c.l.b16 %v541
        %v1853 = vunpack.c.h.b16 %v541
        %v1854 = vunpack.c.l.b16 %v542
        %v1855 = vunpack.c.h.b16 %v542
        %v1856 = vunpack.c.l.b16 %v543
        %v1857 = vunpack.c.h.b16 %v543
        %v1858 = vunpack.c.l.b16 %v544
        %v1859 = vunpack.c.h.b16 %v544
        %v1860 = vunpack.c.l.b16 %v545
        %v1861 = vunpack.c.h.b16 %v545
        %v1862 = vunpack.c.l.b16 %v546
        %v1863 = vunpack.c.h.b16 %v546
        %v1864 = vunpack.c.l.b16 %v547
        %v1865 = vunpack.c.h.b16 %v547
        %v1866 = vunpack.c.l.b16 %v548
        %v1867 = vunpack.c.h.b16 %v548
        %v1868 = vunpack.c.l.b16 %v549
        %v1869 = vunpack.c.h.b16 %v549
        %v1870 = vunpack.c.l.b16 %v550
        %v1871 = vunpack.c.h.b16 %v550
        %v1872 = vunpack.c.l.b16 %v551
        %v1873 = vunpack.c.h.b16 %v551
        %v1874 = vunpack.c.l.b16 %v552
        %v1875 = vunpack.c.h.b16 %v552
        %v1876 = vunpack.c.l.b16 %v553
        %v1877 = vunpack.c.h.b16 %v553
        %v1878 = vunpack.c.l.b16 %v554
        %v1879 = vunpack.c.h.b16 %v554
        %v1880 = vunpack.c.l.b16 %v555
        %v1881 = vunpack.c.h.b16 %v555
        %v1882 = vunpack.c.l.b16 %v556
        %v1883 = vunpack.c.h.b16 %v556
        %v1884 = vunpack.c.l.b16 %v557
        %v1885 = vunpack.c.h.b16 %v557
        %v1886 = vunpack.c.l.b16 %v558
        %v1887 = vunpack.c.h.b16 %v558
        %v1888 = vunpack.c.l.b16 %v559
        %v1889 = vunpack.c.h.b16 %v559
        %v1890 = vunpack.c.l.b16 %v560
        %v1891 = vunpack.c.h.b16 %v560
        %v1892 = vunpack.c.l.b16 %v561
        %v1893 = vunpack.c.h.b16 %v561
        %v1894 = vunpack.c.l.b16 %v562
        %v1895 = vunpack.c.h.b16 %v562
        %v1896 = vunpack.c.l.b16 %v563
        %v1897 = vunpack.c.h.b16 %v563
        %v1898 = vunpack.c.l.b16 %v564
        %v1899 = vunpack.c.h.b16 %v564
        %v1900 = vunpack.c.l.b16 %v565
        %v1901 = vunpack.c.h.b16 %v565
        %v1902 = vunpack.c.l.b16 %v566
        %v1903 = vunpack.c.h.b16 %v566
        %v1904 = vunpack.c.l.b16 %v567
        %v1905 = vunpack.c.h.b16 %v567
        %v1906 = vunpack.c.l.b16 %v568
        %v1907 = vunpack.c.h.b16 %v568
        %v1908 = vunpack.c.l.b16 %v569
        %v1909 = vunpack.c.h.b16 %v569
        %v1910 = vunpack.c.l.b16 %v570
        %v1911 = vunpack.c.h.b16 %v570
        %v1912 = vunpack.c.l.b16 %v571
        %v1913 = vunpack.c.h.b16 %v571
        %v1914 = vunpack.c.l.b16 %v572
        %v1915 = vunpack.c.h.b16 %v572
        %v1916 = vunpack.c.l.b16 %v573
        %v1917 = vunpack.c.h.b16 %v573
        %v1918 = vunpack.c.l.b16 %v574
        %v1919 = vunpack.c.h.b16 %v574
        %v1920 = vunpack.c.l.b16 %v575
        %v1921 = vunpack.c.h.b16 %v575
        %v1922 = vunpack.c.l.b16 %v576
        %v1923 = vunpack.c.h.b16 %v576
        %v1924 = vunpack.c.l.b16 %v577
        %v1925 = vunpack.c.h.b16 %v577
        %v1926 = vunpack.c.l.b16 %v578
        %v1927 = vunpack.c.h.b16 %v578
        %v1928 = vunpack.c.l.b16 %v579
        %v1929 = vunpack.c.h.b16 %v579
        %v1930 = vunpack.c.l.b16 %v580
        %v1931 = vunpack.c.h.b16 %v580
        %v1932 = vunpack.c.l.b16 %v581
        %v1933 = vunpack.c.h.b16 %v581
        %v1934 = vunpack.c.l.b16 %v582
        %v1935 = vunpack.c.h.b16 %v582
        %v1936 = vunpack.c.l.b16 %v583
        %v1937 = vunpack.c.h.b16 %v583
        %v1938 = vunpack.c.l.b16 %v584
        %v1939 = vunpack.c.h.b16 %v584
        %v1940 = vunpack.c.l.b16 %v585
        %v1941 = vunpack.c.h.b16 %v585
        %v1942 = vunpack.c.l.b16 %v586
        %v1943 = vunpack.c.h.b16 %v586
        %v1944 = vunpack.c.l.b16 %v587
        %v1945 = vunpack.c.h.b16 %v587
        %v1946 = vunpack.c.l.b16 %v588
        %v1947 = vunpack.c.h.b16 %v588
        %v1948 = vunpack.c.l.b16 %v589
        %v1949 = vunpack.c.h.b16 %v589
        %v1950 = vunpack.c.l.b16 %v590
        %v1951 = vunpack.c.h.b16 %v590
        %v1952 = vunpack.c.l.b16 %v591
        %v1953 = vunpack.c.h.b16 %v591
        %v1954 = vunpack.c.l.b16 %v592
        %v1955 = vunpack.c.h.b16 %v592
        %v1956 = vunpack.c.l.b16 %v593
        %v1957 = vunpack.c.h.b16 %v593
        %v1958 = vunpack.c.l.b16 %v594
        %v1959 = vunpack.c.h.b16 %v594
        %v1960 = vunpack.c.l.b16 %v595
        %v1961 = vunpack.c.h.b16 %v595
        %v1962 = vunpack.c.l.b16 %v596
        %v1963 = vunpack.c.h.b16 %v596
        %v1964 = vunpack.c.l.b16 %v597
        %v1965 = vunpack.c.h.b16 %v597
        %v1966 = vunpack.c.l.b16 %v598
        %v1967 = vunpack.c.h.b16 %v598
        %v1968 = vunpack.c.l.b16 %v599
        %v1969 = vunpack.c.h.b16 %v599
        %v1970 = vunpack.c.l.b16 %v600
        %v1971 = vunpack.c.h.b16 %v600
        %v1972 = vunpack.c.l.b16 %v601
        %v1973 = vunpack.c.h.b16 %v601
        %v1974 = vunpack.c.l.b16 %v602
        %v1975 = vunpack.c.h.b16 %v602
        %v1976 = vunpack.c.l.b16 %v603
        %v1977 = vunpack.c.h.b16 %v603
        %v1978 = vunpack.c.l.b16 %v604
        %v1979 = vunpack.c.h.b16 %v604
        %v1980 = vunpack.c.l.b16 %v605
        %v1981 = vunpack.c.h.b16 %v605
        %v1982 = vunpack.c.l.b16 %v606
        %v1983 = vunpack.c.h.b16 %v606
        %v1984 = vunpack.c.l.b16 %v607
        %v1985 = vunpack.c.h.b16 %v607
        %v1986 = vunpack.c.l.b16 %v608
        %v1987 = vunpack.c.h.b16 %v608
        %v1988 = vunpack.c.l.b16 %v609
        %v1989 = vunpack.c.h.b16 %v609
        %v1990 = vunpack.c.l.b16 %v610
        %v1991 = vunpack.c.h.b16 %v610
        %v1992 = vunpack.c.l.b16 %v611
        %v1993 = vunpack.c.h.b16 %v611
        %v1994 = vunpack.c.l.b16 %v612
        %v1995 = vunpack.c.h.b16 %v612
        %v1996 = vunpack.c.l.b16 %v613
        %v1997 = vunpack.c.h.b16 %v613
        %v1998 = vunpack.c.l.b16 %v614
        %v1999 = vunpack.c.h.b16 %v614
        %v2000 = vunpack.c.l.b16 %v615
        %v2001 = vunpack.c.h.b16 %v615
        %v2002 = vunpack.c.l.b16 %v616
        %v2003 = vunpack.c.h.b16 %v616
        %v2004 = vunpack.c.l.b16 %v617
        %v2005 = vunpack.c.h.b16 %v617
        %v2006 = vunpack.c.l.b16 %v618
        %v2007 = vunpack.c.h.b16 %v618
        %v2008 = vunpack.c.l.b16 %v619
        %v2009 = vunpack.c.h.b16 %v619
        %v2010 = vunpack.c.l.b16 %v620
        %v2011 = vunpack.c.h.b16 %v620
        %v2012 = vunpack.c.l.b16 %v621
        %v2013 = vunpack.c.h.b16 %v621
        %v2014 = vunpack.c.l.b16 %v622
        %v2015 = vunpack.c.h.b16 %v622
        %v2016 = vunpack.c.l.b16 %v623
        %v2017 = vunpack.c.h.b16 %v623
        %v2018 = vunpack.c.l.b16 %v624
        %v2019 = vunpack.c.h.b16 %v624
        %v2020 = vunpack.c.l.b16 %v625
        %v2021 = vunpack.c.h.b16 %v625
        %v2022 = vunpack.c.l.b16 %v626
        %v2023 = vunpack.c.h.b16 %v626
        %v2024 = vunpack.c.l.b16 %v627
        %v2025 = vunpack.c.h.b16 %v627
        %v2026 = vunpack.c.l.b16 %v628
        %v2027 = vunpack.c.h.b16 %v628
        %v2028 = vunpack.c.l.b16 %v629
        %v2029 = vunpack.c.h.b16 %v629
        %v2030 = vunpack.c.l.b16 %v630
        %v2031 = vunpack.c.h.b16 %v630
        %v2032 = vunpack.c.l.b16 %v631
        %v2033 = vunpack.c.h.b16 %v631
        %v2034 = vunpack.c.l.b16 %v632
        %v2035 = vunpack.c.h.b16 %v632
        %v2036 = vunpack.c.l.b16 %v633
        %v2037 = vunpack.c.h.b16 %v633
        %v2038 = vunpack.c.l.b16 %v634
        %v2039 = vunpack.c.h.b16 %v634
        %v2040 = vunpack.c.l.b16 %v635
        %v2041 = vunpack.c.h.b16 %v635
        %v2042 = vunpack.c.l.b16 %v636
        %v2043 = vunpack.c.h.b16 %v636
        %v2044 = vunpack.c.l.b16 %v637
        %v2045 = vunpack.c.h.b16 %v637
        %v2046 = vunpack.c.l.b16 %v638
        %v2047 = vunpack.c.h.b16 %v638
        %v2048 = vunpack.c.l.b16 %v639
        %v2049 = vunpack.c.h.b16 %v639
        %v2050 = vunpack.c.l.b16 %v640
        %v2051 = vunpack.c.h.b16 %v640
        %v2052 = vunpack.c.l.b16 %v641
        %v2053 = vunpack.c.h.b16 %v641
        %v2054 = vunpack.c.l.b16 %v642
        %v2055 = vunpack.c.h.b16 %v642
        %v2056 = vunpack.c.l.b16 %v643
        %v2057 = vunpack.c.h.b16 %v643
        %v2058 = vunpack.c.l.b16 %v644
        %v2059 = vunpack.c.h.b16 %v644
        %v2060 = vunpack.c.l.b16 %v645
        %v2061 = vunpack.c.h.b16 %v645
        %v2062 = vunpack.c.l.b16 %v646
        %v2063 = vunpack.c.h.b16 %v646
        %v2064 = vunpack.c.l.b16 %v647
        %v2065 = vunpack.c.h.b16 %v647
        %v2066 = vunpack.c.l.b16 %v648
        %v2067 = vunpack.c.h.b16 %v648
        %v2068 = vunpack.c.l.b16 %v649
        %v2069 = vunpack.c.h.b16 %v649
        %v2070 = vunpack.c.l.b16 %v650
        %v2071 = vunpack.c.h.b16 %v650
        %v2072 = vunpack.c.l.b16 %v651
        %v2073 = vunpack.c.h.b16 %v651
        %v2074 = vunpack.c.l.b16 %v652
        %v2075 = vunpack.c.h.b16 %v652
        %v2076 = vunpack.c.l.b16 %v653
        %v2077 = vunpack.c.h.b16 %v653
        %v2078 = vunpack.c.l.b16 %v654
        %v2079 = vunpack.c.h.b16 %v654
        %v2080 = vunpack.c.l.b16 %v655
        %v2081 = vunpack.c.h.b16 %v655
        %v2082 = vunpack.c.l.b16 %v656
        %v2083 = vunpack.c.h.b16 %v656
        %v2084 = vunpack.c.l.b16 %v657
        %v2085 = vunpack.c.h.b16 %v657
        %v2086 = vunpack.c.l.b16 %v658
        %v2087 = vunpack.c.h.b16 %v658
        %v2088 = vunpack.c.l.b16 %v659
        %v2089 = vunpack.c.h.b16 %v659
        %v2090 = vunpack.c.l.b16 %v660
        %v2091 = vunpack.c.h.b16 %v660
        %v2092 = vunpack.c.l.b16 %v661
        %v2093 = vunpack.c.h.b16 %v661
        %v2094 = vunpack.c.l.b16 %v662
        %v2095 = vunpack.c.h.b16 %v662
        %v2096 = vunpack.c.l.b16 %v663
        %v2097 = vunpack.c.h.b16 %v663
        %v2098 = vunpack.c.l.b16 %v664
        %v2099 = vunpack.c.h.b16 %v664
        %v2100 = vunpack.c.l.b16 %v665
        %v2101 = vunpack.c.h.b16 %v665
        %v2102 = vunpack.c.l.b16 %v666
        %v2103 = vunpack.c.h.b16 %v666
        %v2104 = vunpack.c.l.b16 %v667
        %v2105 = vunpack.c.h.b16 %v667
        %v2106 = vunpack.c.l.b16 %v668
        %v2107 = vunpack.c.h.b16 %v668
        %v2108 = vunpack.c.l.b16 %v669
        %v2109 = vunpack.c.h.b16 %v669
        %v2110 = vunpack.c.l.b16 %v670
        %v2111 = vunpack.c.h.b16 %v670
        %v2112 = vunpack.c.l.b16 %v671
        %v2113 = vunpack.c.h.b16 %v671
        %v2114 = vunpack.c.l.b16 %v672
        %v2115 = vunpack.c.h.b16 %v672
        %v2116 = vunpack.c.l.b16 %v673
        %v2117 = vunpack.c.h.b16 %v673
        %v2118 = vunpack.c.l.b16 %v674
        %v2119 = vunpack.c.h.b16 %v674
        %v2120 = vunpack.c.l.b16 %v675
        %v2121 = vunpack.c.h.b16 %v675
        %v2122 = vunpack.c.l.b16 %v676
        %v2123 = vunpack.c.h.b16 %v676
        %v2124 = vunpack.c.l.b16 %v677
        %v2125 = vunpack.c.h.b16 %v677
        %v2126 = vunpack.c.l.b16 %v678
        %v2127 = vunpack.c.h.b16 %v678
        %v2128 = vunpack.c.l.b16 %v679
        %v2129 = vunpack.c.h.b16 %v679
        %v2130 = vunpack.c.l.b16 %v680
        %v2131 = vunpack.c.h.b16 %v680
        %v2132 = vunpack.c.l.b16 %v681
        %v2133 = vunpack.c.h.b16 %v681
        %v2134 = vunpack.c.l.b16 %v682
        %v2135 = vunpack.c.h.b16 %v682
        %v2136 = vunpack.c.l.b16 %v683
        %v2137 = vunpack.c.h.b16 %v683
        %v2138 = vunpack.c.l.b16 %v684
        %v2139 = vunpack.c.h.b16 %v684
        %v2140 = vunpack.c.l.b16 %v685
        %v2141 = vunpack.c.h.b16 %v685
        %v2142 = vunpack.c.l.b16 %v686
        %v2143 = vunpack.c.h.b16 %v686
        %v2144 = vunpack.c.l.b16 %v687
        %v2145 = vunpack.c.h.b16 %v687
        %v2146 = vunpack.c.l.b16 %v688
        %v2147 = vunpack.c.h.b16 %v688
        %v2148 = vunpack.c.l.b16 %v689
        %v2149 = vunpack.c.h.b16 %v689
        %v2150 = vunpack.c.l.b16 %v690
        %v2151 = vunpack.c.h.b16 %v690
        %v2152 = vunpack.c.l.b16 %v691
        %v2153 = vunpack.c.h.b16 %v691
        %v2154 = vunpack.c.l.b16 %v692
        %v2155 = vunpack.c.h.b16 %v692
        %v2156 = vunpack.c.l.b16 %v693
        %v2157 = vunpack.c.h.b16 %v693
        %v2158 = vunpack.c.l.b16 %v694
        %v2159 = vunpack.c.h.b16 %v694
        %v2160 = vunpack.c.l.b16 %v695
        %v2161 = vunpack.c.h.b16 %v695
        %v2162 = vunpack.c.l.b16 %v696
        %v2163 = vunpack.c.h.b16 %v696
        %v2164 = vunpack.c.l.b16 %v697
        %v2165 = vunpack.c.h.b16 %v697
        %v2166 = vunpack.c.l.b16 %v698
        %v2167 = vunpack.c.h.b16 %v698
        %v2168 = vunpack.c.l.b16 %v699
        %v2169 = vunpack.c.h.b16 %v699
        %v2170 = vunpack.c.l.b16 %v700
        %v2171 = vunpack.c.h.b16 %v700
        %v2172 = vunpack.c.l.b16 %v701
        %v2173 = vunpack.c.h.b16 %v701
        %v2174 = vunpack.c.l.b16 %v702
        %v2175 = vunpack.c.h.b16 %v702
        %v2176 = vunpack.c.l.b16 %v703
        %v2177 = vunpack.c.h.b16 %v703
        %v2178 = vunpack.c.l.b16 %v704
        %v2179 = vunpack.c.h.b16 %v704
        %v2180 = vunpack.c.l.b16 %v705
        %v2181 = vunpack.c.h.b16 %v705
        %v2182 = vunpack.c.l.b16 %v706
        %v2183 = vunpack.c.h.b16 %v706
        %v2184 = vunpack.c.l.b16 %v707
        %v2185 = vunpack.c.h.b16 %v707
        %v2186 = vunpack.c.l.b16 %v708
        %v2187 = vunpack.c.h.b16 %v708
        %v2188 = vunpack.c.l.b16 %v709
        %v2189 = vunpack.c.h.b16 %v709
        %v2190 = vunpack.c.l.b16 %v710
        %v2191 = vunpack.c.h.b16 %v710
        %v2192 = vunpack.c.l.b16 %v711
        %v2193 = vunpack.c.h.b16 %v711
        %v2194 = vunpack.c.l.b16 %v712
        %v2195 = vunpack.c.h.b16 %v712
        %v2196 = vunpack.c.l.b16 %v713
        %v2197 = vunpack.c.h.b16 %v713
        %v2198 = vunpack.c.l.b16 %v714
        %v2199 = vunpack.c.h.b16 %v714
        %v2200 = vunpack.c.l.b16 %v715
        %v2201 = vunpack.c.h.b16 %v715
        %v2202 = vunpack.c.l.b16 %v716
        %v2203 = vunpack.c.h.b16 %v716
        %v2204 = vunpack.c.l.b16 %v717
        %v2205 = vunpack.c.h.b16 %v717
        %v2206 = vunpack.c.l.b16 %v718
        %v2207 = vunpack.c.h.b16 %v718
        %v2208 = vunpack.c.l.b16 %v719
        %v2209 = vunpack.c.h.b16 %v719
        %v2210 = vunpack.c.l.b16 %v720
        %v2211 = vunpack.c.h.b16 %v720
        %v2212 = vunpack.c.l.b16 %v721
        %v2213 = vunpack.c.h.b16 %v721
        %v2214 = vunpack.c.l.b16 %v722
        %v2215 = vunpack.c.h.b16 %v722
        %v2216 = vunpack.c.l.b16 %v723
        %v2217 = vunpack.c.h.b16 %v723
        %v2218 = vunpack.c.l.b16 %v724
        %v2219 = vunpack.c.h.b16 %v724
        %v2220 = vunpack.c.l.b16 %v725
        %v2221 = vunpack.c.h.b16 %v725
        %v2222 = vunpack.c.l.b16 %v726
        %v2223 = vunpack.c.h.b16 %v726
        %v2224 = vunpack.c.l.b16 %v727
        %v2225 = vunpack.c.h.b16 %v727
        %v2226 = vunpack.c.l.b16 %v728
        %v2227 = vunpack.c.h.b16 %v728
        %v2228 = vunpack.c.l.b16 %v729
        %v2229 = vunpack.c.h.b16 %v729
        %v2230 = vunpack.c.l.b16 %v730
        %v2231 = vunpack.c.h.b16 %v730
        %v2232 = vunpack.c.l.b16 %v731
        %v2233 = vunpack.c.h.b16 %v731
        %v2234 = vunpack.c.l.b16 %v732
        %v2235 = vunpack.c.h.b16 %v732
        %v2236 = vunpack.c.l.b16 %v733
        %v2237 = vunpack.c.h.b16 %v733
        %v2238 = vunpack.c.l.b16 %v734
        %v2239 = vunpack.c.h.b16 %v734
        %v2240 = vunpack.c.l.b16 %v735
        %v2241 = vunpack.c.h.b16 %v735
        %v2242 = vunpack.c.l.b16 %v736
        %v2243 = vunpack.c.h.b16 %v736
        %v2244 = vunpack.c.l.b16 %v737
        %v2245 = vunpack.c.h.b16 %v737
        %v2246 = vunpack.c.l.b16 %v738
        %v2247 = vunpack.c.h.b16 %v738
        %v2248 = vunpack.c.l.b16 %v739
        %v2249 = vunpack.c.h.b16 %v739
        %v2250 = vunpack.c.l.b16 %v740
        %v2251 = vunpack.c.h.b16 %v740
        %v2252 = vunpack.c.l.b16 %v741
        %v2253 = vunpack.c.h.b16 %v741
        %v2254 = vunpack.c.l.b16 %v742
        %v2255 = vunpack.c.h.b16 %v742
        %v2256 = vunpack.c.l.b16 %v743
        %v2257 = vunpack.c.h.b16 %v743
        %v2258 = vunpack.c.l.b16 %v744
        %v2259 = vunpack.c.h.b16 %v744
        %v2260 = vunpack.c.l.b16 %v745
        %v2261 = vunpack.c.h.b16 %v745
        %v2262 = vunpack.c.l.b16 %v746
        %v2263 = vunpack.c.h.b16 %v746
        %v2264 = vunpack.c.l.b16 %v747
        %v2265 = vunpack.c.h.b16 %v747
        %v2266 = vunpack.c.l.b16 %v748
        %v2267 = vunpack.c.h.b16 %v748
        %v2268 = vunpack.c.l.b16 %v749
        %v2269 = vunpack.c.h.b16 %v749
        %v2270 = vunpack.c.l.b16 %v750
        %v2271 = vunpack.c.h.b16 %v750
        %v2272 = vunpack.c.l.b16 %v751
        %v2273 = vunpack.c.h.b16 %v751
        %v2274 = vunpack.c.l.b16 %v752
        %v2275 = vunpack.c.h.b16 %v752
        %v2276 = vunpack.c.l.b16 %v753
        %v2277 = vunpack.c.h.b16 %v753
        %v2278 = vunpack.c.l.b16 %v754
        %v2279 = vunpack.c.h.b16 %v754
        %v2280 = vunpack.c.l.b16 %v755
        %v2281 = vunpack.c.h.b16 %v755
        %v2282 = vunpack.c.l.b16 %v756
        %v2283 = vunpack.c.h.b16 %v756
        %v2284 = vunpack.c.l.b16 %v757
        %v2285 = vunpack.c.h.b16 %v757
        %v2286 = vunpack.c.l.b16 %v758
        %v2287 = vunpack.c.h.b16 %v758
        %v2288 = vunpack.c.l.b16 %v759
        %v2289 = vunpack.c.h.b16 %v759
        %v2290 = vunpack.c.l.b16 %v760
        %v2291 = vunpack.c.h.b16 %v760
        %v2292 = vunpack.c.l.b16 %v761
        %v2293 = vunpack.c.h.b16 %v761
        %v2294 = vunpack.c.l.b16 %v762
        %v2295 = vunpack.c.h.b16 %v762
        %v2296 = vunpack.c.l.b16 %v763
        %v2297 = vunpack.c.h.b16 %v763
        %v2298 = vunpack.c.l.b16 %v764
        %v2299 = vunpack.c.h.b16 %v764
        %v2300 = vunpack.c.l.b16 %v765
        %v2301 = vunpack.c.h.b16 %v765
        %v2302 = vunpack.c.l.b16 %v766
        %v2303 = vunpack.c.h.b16 %v766
        %v2304 = vunpack.c.l.b16 %v767
        %v2305 = vunpack.c.h.b16 %v767
        %v2306 = vunpack.c.l.b16 %v768
        %v2307 = vunpack.c.h.b16 %v768
        %v2308 = vunpack.c.l.b16 %v769
        %v2309 = vunpack.c.h.b16 %v769
        %v2310 = vunpack.c.l.b16 %v770
        %v2311 = vunpack.c.h.b16 %v770
        %v2312 = vunpack.c.l.b16 %v771
        %v2313 = vunpack.c.h.b16 %v771
        %v2314 = vunpack.c.l.b16 %v772
        %v2315 = vunpack.c.h.b16 %v772
        %v2316 = vunpack.c.l.b16 %v773
        %v2317 = vunpack.c.h.b16 %v773
        %v2318 = vunpack.c.l.b16 %v774
        %v2319 = vunpack.c.h.b16 %v774
        %v2320 = vunpack.c.l.b16 %v775
        %v2321 = vunpack.c.h.b16 %v775
        %v2322 = vunpack.c.l.b16 %v776
        %v2323 = vunpack.c.h.b16 %v776
        %v2324 = vunpack.c.l.b16 %v777
        %v2325 = vunpack.c.h.b16 %v777
        %v2326 = vunpack.c.l.b16 %v778
        %v2327 = vunpack.c.h.b16 %v778
        %v2328 = vunpack.c.l.b16 %v779
        %v2329 = vunpack.c.h.b16 %v779
        %v2330 = vunpack.c.l.b16 %v780
        %v2331 = vunpack.c.h.b16 %v780
        %v2332 = vunpack.c.l.b16 %v781
        %v2333 = vunpack.c.h.b16 %v781
        %v2334 = vunpack.c.l.b16 %v782
        %v2335 = vunpack.c.h.b16 %v782
        %v2336 = vunpack.c.l.b16 %v783
        %v2337 = vunpack.c.h.b16 %v783
        %v2338 = vunpack.c.l.b16 %v784
        %v2339 = vunpack.c.h.b16 %v784
        %v2340 = vunpack.c.l.b16 %v785
        %v2341 = vunpack.c.h.b16 %v785
        %v2342 = vunpack.c.l.b16 %v786
        %v2343 = vunpack.c.h.b16 %v786
        %v2344 = vunpack.c.l.b16 %v787
        %v2345 = vunpack.c.h.b16 %v787
        %v2346 = vunpack.c.l.b16 %v788
        %v2347 = vunpack.c.h.b16 %v788
        %v2348 = vunpack.c.l.b16 %v789
        %v2349 = vunpack.c.h.b16 %v789
        %v2350 = vunpack.c.l.b16 %v790
        %v2351 = vunpack.c.h.b16 %v790
        %v2352 = vunpack.c.l.b16 %v791
        %v2353 = vunpack.c.h.b16 %v791
        %v2354 = vunpack.c.l.b16 %v792
        %v2355 = vunpack.c.h.b16 %v792
        %v2356 = vunpack.c.l.b16 %v793
        %v2357 = vunpack.c.h.b16 %v793
        %v2358 = vunpack.c.l.b16 %v794
        %v2359 = vunpack.c.h.b16 %v794
        %v2360 = vunpack.c.l.b16 %v795
        %v2361 = vunpack.c.h.b16 %v795
        %v2362 = vunpack.c.l.b16 %v796
        %v2363 = vunpack.c.h.b16 %v796
        %v2364 = vunpack.c.l.b16 %v797
        %v2365 = vunpack.c.h.b16 %v797
        %v2366 = vunpack.c.l.b16 %v798
        %v2367 = vunpack.c.h.b16 %v798
        %v2368 = vunpack.c.l.b16 %v799
        %v2369 = vunpack.c.h.b16 %v799
        %v2370 = vunpack.c.l.b16 %v800
        %v2371 = vunpack.c.h.b16 %v800
        %v2372 = vunpack.c.l.b16 %v801
        %v2373 = vunpack.c.h.b16 %v801
        %v2374 = vunpack.c.l.b16 %v802
        %v2375 = vunpack.c.h.b16 %v802
        %v2376 = vunpack.c.l.b16 %v803
        %v2377 = vunpack.c.h.b16 %v803
        %v2378 = vunpack.c.l.b16 %v804
        %v2379 = vunpack.c.h.b16 %v804
        %v2380 = vunpack.c.l.b16 %v805
        %v2381 = vunpack.c.h.b16 %v805
        %v2382 = vunpack.c.l.b16 %v806
        %v2383 = vunpack.c.h.b16 %v806
        %v2384 = vunpack.c.l.b16 %v807
        %v2385 = vunpack.c.h.b16 %v807
        %v2386 = vunpack.c.l.b16 %v808
        %v2387 = vunpack.c.h.b16 %v808
        %v2388 = vunpack.c.l.b16 %v809
        %v2389 = vunpack.c.h.b16 %v809
        %v2390 = vunpack.c.l.b16 %v810
        %v2391 = vunpack.c.h.b16 %v810
        %v2392 = vunpack.c.l.b16 %v811
        %v2393 = vunpack.c.h.b16 %v811
        %v2394 = vunpack.c.l.b16 %v812
        %v2395 = vunpack.c.h.b16 %v812
        %v2396 = vunpack.c.l.b16 %v813
        %v2397 = vunpack.c.h.b16 %v813
        %v2398 = vunpack.c.l.b16 %v814
        %v2399 = vunpack.c.h.b16 %v814
        %v2400 = vunpack.c.l.b16 %v815
        %v2401 = vunpack.c.h.b16 %v815
        %v2402 = vunpack.c.l.b16 %v816
        %v2403 = vunpack.c.h.b16 %v816
        %v2404 = vunpack.c.l.b16 %v817
        %v2405 = vunpack.c.h.b16 %v817
        %v2406 = vunpack.c.l.b16 %v818
        %v2407 = vunpack.c.h.b16 %v818
        %v2408 = vunpack.c.l.b16 %v819
        %v2409 = vunpack.c.h.b16 %v819
        %v2410 = vunpack.c.l.b16 %v820
        %v2411 = vunpack.c.h.b16 %v820
        %v2412 = vunpack.c.l.b16 %v821
        %v2413 = vunpack.c.h.b16 %v821
        %v2414 = vunpack.c.l.b16 %v822
        %v2415 = vunpack.c.h.b16 %v822
        %v2416 = vunpack.c.l.b16 %v823
        %v2417 = vunpack.c.h.b16 %v823
        %v2418 = vunpack.c.l.b16 %v824
        %v2419 = vunpack.c.h.b16 %v824
        %v2420 = vunpack.c.l.b16 %v825
        %v2421 = vunpack.c.h.b16 %v825
        %v2422 = vunpack.c.l.b16 %v826
        %v2423 = vunpack.c.h.b16 %v826
        %v2424 = vunpack.c.l.b16 %v827
        %v2425 = vunpack.c.h.b16 %v827
        %v2426 = vunpack.c.l.b16 %v828
        %v2427 = vunpack.c.h.b16 %v828
        %v2428 = vunpack.c.l.b16 %v829
        %v2429 = vunpack.c.h.b16 %v829
        %v2430 = vunpack.c.l.b16 %v830
        %v2431 = vunpack.c.h.b16 %v830
        %v2432 = vunpack.c.l.b16 %v831
        %v2433 = vunpack.c.h.b16 %v831
        %v2434 = vunpack.c.l.b16 %v832
        %v2435 = vunpack.c.h.b16 %v832
        %v2436 = vunpack.c.l.b16 %v833
        %v2437 = vunpack.c.h.b16 %v833
        %v2438 = vunpack.c.l.b16 %v834
        %v2439 = vunpack.c.h.b16 %v834
        %v2440 = vunpack.c.l.b16 %v835
        %v2441 = vunpack.c.h.b16 %v835
        %v2442 = vunpack.c.l.b16 %v836
        %v2443 = vunpack.c.h.b16 %v836
        %v2444 = vunpack.c.l.b16 %v837
        %v2445 = vunpack.c.h.b16 %v837
        %v2446 = vunpack.c.l.b16 %v838
        %v2447 = vunpack.c.h.b16 %v838
        %v2448 = vunpack.c.l.b16 %v839
        %v2449 = vunpack.c.h.b16 %v839
        %v2450 = vunpack.c.l.b16 %v840
        %v2451 = vunpack.c.h.b16 %v840
        %v2452 = vunpack.c.l.b16 %v841
        %v2453 = vunpack.c.h.b16 %v841
        %v2454 = vunpack.c.l.b16 %v842
        %v2455 = vunpack.c.h.b16 %v842
        %v2456 = vunpack.c.l.b16 %v843
        %v2457 = vunpack.c.h.b16 %v843
        %v2458 = vunpack.c.l.b16 %v844
        %v2459 = vunpack.c.h.b16 %v844
        %v2460 = vunpack.c.l.b16 %v845
        %v2461 = vunpack.c.h.b16 %v845
        %v2462 = vunpack.c.l.b16 %v846
        %v2463 = vunpack.c.h.b16 %v846
        %v2464 = vunpack.c.l.b16 %v847
        %v2465 = vunpack.c.h.b16 %v847
        %v2466 = vunpack.c.l.b16 %v848
        %v2467 = vunpack.c.h.b16 %v848
        %v2468 = vunpack.c.l.b16 %v849
        %v2469 = vunpack.c.h.b16 %v849
        %v2470 = vunpack.c.l.b16 %v850
        %v2471 = vunpack.c.h.b16 %v850
        %v2472 = vunpack.c.l.b16 %v851
        %v2473 = vunpack.c.h.b16 %v851
        %v2474 = vunpack.c.l.b16 %v852
        %v2475 = vunpack.c.h.b16 %v852
        %v2476 = vunpack.c.l.b16 %v853
        %v2477 = vunpack.c.h.b16 %v853
        %v2478 = vunpack.c.l.b16 %v854
        %v2479 = vunpack.c.h.b16 %v854
        %v2480 = vunpack.c.l.b16 %v855
        %v2481 = vunpack.c.h.b16 %v855
        %v2482 = vunpack.c.l.b16 %v856
        %v2483 = vunpack.c.h.b16 %v856
        %v2484 = vunpack.c.l.b16 %v857
        %v2485 = vunpack.c.h.b16 %v857
        %v2486 = vunpack.c.l.b16 %v858
        %v2487 = vunpack.c.h.b16 %v858
        %v2488 = vunpack.c.l.b16 %v859
        %v2489 = vunpack.c.h.b16 %v859
        %v2490 = vunpack.c.l.b16 %v860
        %v2491 = vunpack.c.h.b16 %v860
        %v2492 = vunpack.c.l.b16 %v861
        %v2493 = vunpack.c.h.b16 %v861
        %v2494 = vunpack.c.l.b16 %v862
        %v2495 = vunpack.c.h.b16 %v862
        %v2496 = vunpack.c.l.b16 %v863
        %v2497 = vunpack.c.h.b16 %v863
        %v2498 = vunpack.c.l.b16 %v864
        %v2499 = vunpack.c.h.b16 %v864
        %v2500 = vunpack.c.l.b16 %v865
        %v2501 = vunpack.c.h.b16 %v865
        %v2502 = vunpack.c.l.b16 %v866
        %v2503 = vunpack.c.h.b16 %v866
        %v2504 = vunpack.c.l.b16 %v867
        %v2505 = vunpack.c.h.b16 %v867
        %v2506 = vunpack.c.l.b16 %v868
        %v2507 = vunpack.c.h.b16 %v868
        %v2508 = vunpack.c.l.b16 %v869
        %v2509 = vunpack.c.h.b16 %v869
        %v2510 = vunpack.c.l.b16 %v870
        %v2511 = vunpack.c.h.b16 %v870
        %v2512 = vunpack.c.l.b16 %v871
        %v2513 = vunpack.c.h.b16 %v871
        %v2514 = vunpack.c.l.b16 %v872
        %v2515 = vunpack.c.h.b16 %v872
        %v2516 = vunpack.c.l.b16 %v873
        %v2517 = vunpack.c.h.b16 %v873
        %v2518 = vunpack.c.l.b16 %v874
        %v2519 = vunpack.c.h.b16 %v874
        %v2520 = vunpack.c.l.b16 %v875
        %v2521 = vunpack.c.h.b16 %v875
        %v2522 = vunpack.c.l.b16 %v876
        %v2523 = vunpack.c.h.b16 %v876
        %v2524 = vunpack.c.l.b16 %v877
        %v2525 = vunpack.c.h.b16 %v877
        %v2526 = vunpack.c.l.b16 %v878
        %v2527 = vunpack.c.h.b16 %v878
        %v2528 = vunpack.c.l.b16 %v879
        %v2529 = vunpack.c.h.b16 %v879
        %v2530 = vunpack.c.l.b16 %v880
        %v2531 = vunpack.c.h.b16 %v880
        %v2532 = vunpack.c.l.b16 %v881
        %v2533 = vunpack.c.h.b16 %v881
        %v2534 = vunpack.c.l.b16 %v882
        %v2535 = vunpack.c.h.b16 %v882
        %v2536 = vunpack.c.l.b16 %v883
        %v2537 = vunpack.c.h.b16 %v883
        %v2538 = vunpack.c.l.b16 %v884
        %v2539 = vunpack.c.h.b16 %v884
        %v2540 = vunpack.c.l.b16 %v885
        %v2541 = vunpack.c.h.b16 %v885
        %v2542 = vpack.c.b16 %v1526, %v1518
        %v2543 = vpack.c.b16 %v1527, %v1519
        %v2544 = vpack.c.b16 %v1528, %v1520
        %v2545 = vpack.c.b16 %v1529, %v1521
        %v2546 = vpack.c.b16 %v1530, %v1522
        %v2547 = vpack.c.b16 %v1531, %v1523
        %v2548 = vpack.c.b16 %v1532, %v1524
        %v2549 = vpack.c.b16 %v1533, %v1525
        %v2550 = vpack.c.b16 %v1542, %v1534
        %v2551 = vpack.c.b16 %v1543, %v1535
        %v2552 = vpack.c.b16 %v1544, %v1536
        %v2553 = vpack.c.b16 %v1545, %v1537
        %v2554 = vpack.c.b16 %v1546, %v1538
        %v2555 = vpack.c.b16 %v1547, %v1539
        %v2556 = vpack.c.b16 %v1548, %v1540
        %v2557 = vpack.c.b16 %v1549, %v1541
        %v2558 = vpack.c.b16 %v1558, %v1550
        %v2559 = vpack.c.b16 %v1559, %v1551
        %v2560 = vpack.c.b16 %v1560, %v1552
        %v2561 = vpack.c.b16 %v1561, %v1553
        %v2562 = vpack.c.b16 %v1562, %v1554
        %v2563 = vpack.c.b16 %v1563, %v1555
        %v2564 = vpack.c.b16 %v1564, %v1556
        %v2565 = vpack.c.b16 %v1565, %v1557
        %v2566 = vpack.c.b16 %v1574, %v1566
        %v2567 = vpack.c.b16 %v1575, %v1567
        %v2568 = vpack.c.b16 %v1576, %v1568
        %v2569 = vpack.c.b16 %v1577, %v1569
        %v2570 = vpack.c.b16 %v1578, %v1570
        %v2571 = vpack.c.b16 %v1579, %v1571
        %v2572 = vpack.c.b16 %v1580, %v1572
        %v2573 = vpack.c.b16 %v1581, %v1573
        %v2574 = vpack.c.b16 %v1590, %v1582
        %v2575 = vpack.c.b16 %v1591, %v1583
        %v2576 = vpack.c.b16 %v1592, %v1584
        %v2577 = vpack.c.b16 %v1593, %v1585
        %v2578 = vpack.c.b16 %v1594, %v1586
        %v2579 = vpack.c.b16 %v1595, %v1587
        %v2580 = vpack.c.b16 %v1596, %v1588
        %v2581 = vpack.c.b16 %v1597, %v1589
        %v2582 = vpack.c.b16 %v1606, %v1598
        %v2583 = vpack.c.b16 %v1607, %v1599
        %v2584 = vpack.c.b16 %v1608, %v1600
        %v2585 = vpack.c.b16 %v1609, %v1601
        %v2586 = vpack.c.b16 %v1610, %v1602
        %v2587 = vpack.c.b16 %v1611, %v1603
        %v2588 = vpack.c.b16 %v1612, %v1604
        %v2589 = vpack.c.b16 %v1613, %v1605
        %v2590 = vpack.c.b16 %v1622, %v1614
        %v2591 = vpack.c.b16 %v1623, %v1615
        %v2592 = vpack.c.b16 %v1624, %v1616
        %v2593 = vpack.c.b16 %v1625, %v1617
        %v2594 = vpack.c.b16 %v1626, %v1618
        %v2595 = vpack.c.b16 %v1627, %v1619
        %v2596 = vpack.c.b16 %v1628, %v1620
        %v2597 = vpack.c.b16 %v1629, %v1621
        %v2598 = vpack.c.b16 %v1638, %v1630
        %v2599 = vpack.c.b16 %v1639, %v1631
        %v2600 = vpack.c.b16 %v1640, %v1632
        %v2601 = vpack.c.b16 %v1641, %v1633
        %v2602 = vpack.c.b16 %v1642, %v1634
        %v2603 = vpack.c.b16 %v1643, %v1635
        %v2604 = vpack.c.b16 %v1644, %v1636
        %v2605 = vpack.c.b16 %v1645, %v1637
        %v2606 = vpack.c.b16 %v1654, %v1646
        %v2607 = vpack.c.b16 %v1655, %v1647
        %v2608 = vpack.c.b16 %v1656, %v1648
        %v2609 = vpack.c.b16 %v1657, %v1649
        %v2610 = vpack.c.b16 %v1658, %v1650
        %v2611 = vpack.c.b16 %v1659, %v1651
        %v2612 = vpack.c.b16 %v1660, %v1652
        %v2613 = vpack.c.b16 %v1661, %v1653
        %v2614 = vpack.c.b16 %v1670, %v1662
        %v2615 = vpack.c.b16 %v1671, %v1663
        %v2616 = vpack.c.b16 %v1672, %v1664
        %v2617 = vpack.c.b16 %v1673, %v1665
        %v2618 = vpack.c.b16 %v1674, %v1666
        %v2619 = vpack.c.b16 %v1675, %v1667
        %v2620 = vpack.c.b16 %v1676, %v1668
        %v2621 = vpack.c.b16 %v1677, %v1669
        %v2622 = vpack.c.b16 %v1686, %v1678
        %v2623 = vpack.c.b16 %v1687, %v1679
        %v2624 = vpack.c.b16 %v1688, %v1680
        %v2625 = vpack.c.b16 %v1689, %v1681
        %v2626 = vpack.c.b16 %v1690, %v1682
        %v2627 = vpack.c.b16 %v1691, %v1683
        %v2628 = vpack.c.b16 %v1692, %v1684
        %v2629 = vpack.c.b16 %v1693, %v1685
        %v2630 = vpack.c.b16 %v1702, %v1694
        %v2631 = vpack.c.b16 %v1703, %v1695
        %v2632 = vpack.c.b16 %v1704, %v1696
        %v2633 = vpack.c.b16 %v1705, %v1697
        %v2634 = vpack.c.b16 %v1706, %v1698
        %v2635 = vpack.c.b16 %v1707, %v1699
        %v2636 = vpack.c.b16 %v1708, %v1700
        %v2637 = vpack.c.b16 %v1709, %v1701
        %v2638 = vpack.c.b16 %v1718, %v1710
        %v2639 = vpack.c.b16 %v1719, %v1711
        %v2640 = vpack.c.b16 %v1720, %v1712
        %v2641 = vpack.c.b16 %v1721, %v1713
        %v2642 = vpack.c.b16 %v1722, %v1714
        %v2643 = vpack.c.b16 %v1723, %v1715
        %v2644 = vpack.c.b16 %v1724, %v1716
        %v2645 = vpack.c.b16 %v1725, %v1717
        %v2646 = vpack.c.b16 %v1734, %v1726
        %v2647 = vpack.c.b16 %v1735, %v1727
        %v2648 = vpack.c.b16 %v1736, %v1728
        %v2649 = vpack.c.b16 %v1737, %v1729
        %v2650 = vpack.c.b16 %v1738, %v1730
        %v2651 = vpack.c.b16 %v1739, %v1731
        %v2652 = vpack.c.b16 %v1740, %v1732
        %v2653 = vpack.c.b16 %v1741, %v1733
        %v2654 = vpack.c.b16 %v1750, %v1742
        %v2655 = vpack.c.b16 %v1751, %v1743
        %v2656 = vpack.c.b16 %v1752, %v1744
        %v2657 = vpack.c.b16 %v1753, %v1745
        %v2658 = vpack.c.b16 %v1754, %v1746
        %v2659 = vpack.c.b16 %v1755, %v1747
        %v2660 = vpack.c.b16 %v1756, %v1748
        %v2661 = vpack.c.b16 %v1757, %v1749
        %v2662 = vpack.c.b16 %v1766, %v1758
        %v2663 = vpack.c.b16 %v1767, %v1759
        %v2664 = vpack.c.b16 %v1768, %v1760
        %v2665 = vpack.c.b16 %v1769, %v1761
        %v2666 = vpack.c.b16 %v1770, %v1762
        %v2667 = vpack.c.b16 %v1771, %v1763
        %v2668 = vpack.c.b16 %v1772, %v1764
        %v2669 = vpack.c.b16 %v1773, %v1765
        %v2670 = vpack.c.b16 %v1782, %v1774
        %v2671 = vpack.c.b16 %v1783, %v1775
        %v2672 = vpack.c.b16 %v1784, %v1776
        %v2673 = vpack.c.b16 %v1785, %v1777
        %v2674 = vpack.c.b16 %v1786, %v1778
        %v2675 = vpack.c.b16 %v1787, %v1779
        %v2676 = vpack.c.b16 %v1788, %v1780
        %v2677 = vpack.c.b16 %v1789, %v1781
        %v2678 = vpack.c.b16 %v1798, %v1790
        %v2679 = vpack.c.b16 %v1799, %v1791
        %v2680 = vpack.c.b16 %v1800, %v1792
        %v2681 = vpack.c.b16 %v1801, %v1793
        %v2682 = vpack.c.b16 %v1802, %v1794
        %v2683 = vpack.c.b16 %v1803, %v1795
        %v2684 = vpack.c.b16 %v1804, %v1796
        %v2685 = vpack.c.b16 %v1805, %v1797
        %v2686 = vpack.c.b16 %v1814, %v1806
        %v2687 = vpack.c.b16 %v1815, %v1807
        %v2688 = vpack.c.b16 %v1816, %v1808
        %v2689 = vpack.c.b16 %v1817, %v1809
        %v2690 = vpack.c.b16 %v1818, %v1810
        %v2691 = vpack.c.b16 %v1819, %v1811
        %v2692 = vpack.c.b16 %v1820, %v1812
        %v2693 = vpack.c.b16 %v1821, %v1813
        %v2694 = vpack.c.b16 %v1830, %v1822
        %v2695 = vpack.c.b16 %v1831, %v1823
        %v2696 = vpack.c.b16 %v1832, %v1824
        %v2697 = vpack.c.b16 %v1833, %v1825
        %v2698 = vpack.c.b16 %v1834, %v1826
        %v2699 = vpack.c.b16 %v1835, %v1827
        %v2700 = vpack.c.b16 %v1836, %v1828
        %v2701 = vpack.c.b16 %v1837, %v1829
        %v2702 = vpack.c.b16 %v1846, %v1838
        %v2703 = vpack.c.b16 %v1847, %v1839
        %v2704 = vpack.c.b16 %v1848, %v1840
        %v2705 = vpack.c.b16 %v1849, %v1841
        %v2706 = vpack.c.b16 %v1850, %v1842
        %v2707 = vpack.c.b16 %v1851, %v1843
        %v2708 = vpack.c.b16 %v1852, %v1844
        %v2709 = vpack.c.b16 %v1853, %v1845
        %v2710 = vpack.c.b16 %v1862, %v1854
        %v2711 = vpack.c.b16 %v1863, %v1855
        %v2712 = vpack.c.b16 %v1864, %v1856
        %v2713 = vpack.c.b16 %v1865, %v1857
        %v2714 = vpack.c.b16 %v1866, %v1858
        %v2715 = vpack.c.b16 %v1867, %v1859
        %v2716 = vpack.c.b16 %v1868, %v1860
        %v2717 = vpack.c.b16 %v1869, %v1861
        %v2718 = vpack.c.b16 %v1878, %v1870
        %v2719 = vpack.c.b16 %v1879, %v1871
        %v2720 = vpack.c.b16 %v1880, %v1872
        %v2721 = vpack.c.b16 %v1881, %v1873
        %v2722 = vpack.c.b16 %v1882, %v1874
        %v2723 = vpack.c.b16 %v1883, %v1875
        %v2724 = vpack.c.b16 %v1884, %v1876
        %v2725 = vpack.c.b16 %v1885, %v1877
        %v2726 = vpack.c.b16 %v1894, %v1886
        %v2727 = vpack.c.b16 %v1895, %v1887
        %v2728 = vpack.c.b16 %v1896, %v1888
        %v2729 = vpack.c.b16 %v1897, %v1889
        %v2730 = vpack.c.b16 %v1898, %v1890
        %v2731 = vpack.c.b16 %v1899, %v1891
        %v2732 = vpack.c.b16 %v1900, %v1892
        %v2733 = vpack.c.b16 %v1901, %v1893
        %v2734 = vpack.c.b16 %v1910, %v1902
        %v2735 = vpack.c.b16 %v1911, %v1903
        %v2736 = vpack.c.b16 %v1912, %v1904
        %v2737 = vpack.c.b16 %v1913, %v1905
        %v2738 = vpack.c.b16 %v1914, %v1906
        %v2739 = vpack.c.b16 %v1915, %v1907
        %v2740 = vpack.c.b16 %v1916, %v1908
        %v2741 = vpack.c.b16 %v1917, %v1909
        %v2742 = vpack.c.b16 %v1926, %v1918
        %v2743 = vpack.c.b16 %v1927, %v1919
        %v2744 = vpack.c.b16 %v1928, %v1920
        %v2745 = vpack.c.b16 %v1929, %v1921
        %v2746 = vpack.c.b16 %v1930, %v1922
        %v2747 = vpack.c.b16 %v1931, %v1923
        %v2748 = vpack.c.b16 %v1932, %v1924
        %v2749 = vpack.c.b16 %v1933, %v1925
        %v2750 = vpack.c.b16 %v1942, %v1934
        %v2751 = vpack.c.b16 %v1943, %v1935
        %v2752 = vpack.c.b16 %v1944, %v1936
        %v2753 = vpack.c.b16 %v1945, %v1937
        %v2754 = vpack.c.b16 %v1946, %v1938
        %v2755 = vpack.c.b16 %v1947, %v1939
        %v2756 = vpack.c.b16 %v1948, %v1940
        %v2757 = vpack.c.b16 %v1949, %v1941
        %v2758 = vpack.c.b16 %v1958, %v1950
        %v2759 = vpack.c.b16 %v1959, %v1951
        %v2760 = vpack.c.b16 %v1960, %v1952
        %v2761 = vpack.c.b16 %v1961, %v1953
        %v2762 = vpack.c.b16 %v1962, %v1954
        %v2763 = vpack.c.b16 %v1963, %v1955
        %v2764 = vpack.c.b16 %v1964, %v1956
        %v2765 = vpack.c.b16 %v1965, %v1957
        %v2766 = vpack.c.b16 %v1974, %v1966
        %v2767 = vpack.c.b16 %v1975, %v1967
        %v2768 = vpack.c.b16 %v1976, %v1968
        %v2769 = vpack.c.b16 %v1977, %v1969
        %v2770 = vpack.c.b16 %v1978, %v1970
        %v2771 = vpack.c.b16 %v1979, %v1971
        %v2772 = vpack.c.b16 %v1980, %v1972
        %v2773 = vpack.c.b16 %v1981, %v1973
        %v2774 = vpack.c.b16 %v1990, %v1982
        %v2775 = vpack.c.b16 %v1991, %v1983
        %v2776 = vpack.c.b16 %v1992, %v1984
        %v2777 = vpack.c.b16 %v1993, %v1985
        %v2778 = vpack.c.b16 %v1994, %v1986
        %v2779 = vpack.c.b16 %v1995, %v1987
        %v2780 = vpack.c.b16 %v1996, %v1988
        %v2781 = vpack.c.b16 %v1997, %v1989
        %v2782 = vpack.c.b16 %v2006, %v1998
        %v2783 = vpack.c.b16 %v2007, %v1999
        %v2784 = vpack.c.b16 %v2008, %v2000
        %v2785 = vpack.c.b16 %v2009, %v2001
        %v2786 = vpack.c.b16 %v2010, %v2002
        %v2787 = vpack.c.b16 %v2011, %v2003
        %v2788 = vpack.c.b16 %v2012, %v2004
        %v2789 = vpack.c.b16 %v2013, %v2005
        %v2790 = vpack.c.b16 %v2022, %v2014
        %v2791 = vpack.c.b16 %v2023, %v2015
        %v2792 = vpack.c.b16 %v2024, %v2016
        %v2793 = vpack.c.b16 %v2025, %v2017
        %v2794 = vpack.c.b16 %v2026, %v2018
        %v2795 = vpack.c.b16 %v2027, %v2019
        %v2796 = vpack.c.b16 %v2028, %v2020
        %v2797 = vpack.c.b16 %v2029, %v2021
        %v2798 = vpack.c.b16 %v2038, %v2030
        %v2799 = vpack.c.b16 %v2039, %v2031
        %v2800 = vpack.c.b16 %v2040, %v2032
        %v2801 = vpack.c.b16 %v2041, %v2033
        %v2802 = vpack.c.b16 %v2042, %v2034
        %v2803 = vpack.c.b16 %v2043, %v2035
        %v2804 = vpack.c.b16 %v2044, %v2036
        %v2805 = vpack.c.b16 %v2045, %v2037
        %v2806 = vpack.c.b16 %v2054, %v2046
        %v2807 = vpack.c.b16 %v2055, %v2047
        %v2808 = vpack.c.b16 %v2056, %v2048
        %v2809 = vpack.c.b16 %v2057, %v2049
        %v2810 = vpack.c.b16 %v2058, %v2050
        %v2811 = vpack.c.b16 %v2059, %v2051
        %v2812 = vpack.c.b16 %v2060, %v2052
        %v2813 = vpack.c.b16 %v2061, %v2053
        %v2814 = vpack.c.b16 %v2070, %v2062
        %v2815 = vpack.c.b16 %v2071, %v2063
        %v2816 = vpack.c.b16 %v2072, %v2064
        %v2817 = vpack.c.b16 %v2073, %v2065
        %v2818 = vpack.c.b16 %v2074, %v2066
        %v2819 = vpack.c.b16 %v2075, %v2067
        %v2820 = vpack.c.b16 %v2076, %v2068
        %v2821 = vpack.c.b16 %v2077, %v2069
        %v2822 = vpack.c.b16 %v2086, %v2078
        %v2823 = vpack.c.b16 %v2087, %v2079
        %v2824 = vpack.c.b16 %v2088, %v2080
        %v2825 = vpack.c.b16 %v2089, %v2081
        %v2826 = vpack.c.b16 %v2090, %v2082
        %v2827 = vpack.c.b16 %v2091, %v2083
        %v2828 = vpack.c.b16 %v2092, %v2084
        %v2829 = vpack.c.b16 %v2093, %v2085
        %v2830 = vpack.c.b16 %v2102, %v2094
        %v2831 = vpack.c.b16 %v2103, %v2095
        %v2832 = vpack.c.b16 %v2104, %v2096
        %v2833 = vpack.c.b16 %v2105, %v2097
        %v2834 = vpack.c.b16 %v2106, %v2098
        %v2835 = vpack.c.b16 %v2107, %v2099
        %v2836 = vpack.c.b16 %v2108, %v2100
        %v2837 = vpack.c.b16 %v2109, %v2101
        %v2838 = vpack.c.b16 %v2118, %v2110
        %v2839 = vpack.c.b16 %v2119, %v2111
        %v2840 = vpack.c.b16 %v2120, %v2112
        %v2841 = vpack.c.b16 %v2121, %v2113
        %v2842 = vpack.c.b16 %v2122, %v2114
        %v2843 = vpack.c.b16 %v2123, %v2115
        %v2844 = vpack.c.b16 %v2124, %v2116
        %v2845 = vpack.c.b16 %v2125, %v2117
        %v2846 = vpack.c.b16 %v2134, %v2126
        %v2847 = vpack.c.b16 %v2135, %v2127
        %v2848 = vpack.c.b16 %v2136, %v2128
        %v2849 = vpack.c.b16 %v2137, %v2129
        %v2850 = vpack.c.b16 %v2138, %v2130
        %v2851 = vpack.c.b16 %v2139, %v2131
        %v2852 = vpack.c.b16 %v2140, %v2132
        %v2853 = vpack.c.b16 %v2141, %v2133
        %v2854 = vpack.c.b16 %v2150, %v2142
        %v2855 = vpack.c.b16 %v2151, %v2143
        %v2856 = vpack.c.b16 %v2152, %v2144
        %v2857 = vpack.c.b16 %v2153, %v2145
        %v2858 = vpack.c.b16 %v2154, %v2146
        %v2859 = vpack.c.b16 %v2155, %v2147
        %v2860 = vpack.c.b16 %v2156, %v2148
        %v2861 = vpack.c.b16 %v2157, %v2149
        %v2862 = vpack.c.b16 %v2166, %v2158
        %v2863 = vpack.c.b16 %v2167, %v2159
        %v2864 = vpack.c.b16 %v2168, %v2160
        %v2865 = vpack.c.b16 %v2169, %v2161
        %v2866 = vpack.c.b16 %v2170, %v2162
        %v2867 = vpack.c.b16 %v2171, %v2163
        %v2868 = vpack.c.b16 %v2172, %v2164
        %v2869 = vpack.c.b16 %v2173, %v2165
        %v2870 = vpack.c.b16 %v2182, %v2174
        %v2871 = vpack.c.b16 %v2183, %v2175
        %v2872 = vpack.c.b16 %v2184, %v2176
        %v2873 = vpack.c.b16 %v2185, %v2177
        %v2874 = vpack.c.b16 %v2186, %v2178
        %v2875 = vpack.c.b16 %v2187, %v2179
        %v2876 = vpack.c.b16 %v2188, %v2180
        %v2877 = vpack.c.b16 %v2189, %v2181
        %v2878 = vpack.c.b16 %v2198, %v2190
        %v2879 = vpack.c.b16 %v2199, %v2191
        %v2880 = vpack.c.b16 %v2200, %v2192
        %v2881 = vpack.c.b16 %v2201, %v2193
        %v2882 = vpack.c.b16 %v2202, %v2194
        %v2883 = vpack.c.b16 %v2203, %v2195
        %v2884 = vpack.c.b16 %v2204, %v2196
        %v2885 = vpack.c.b16 %v2205, %v2197
        %v2886 = vpack.c.b16 %v2214, %v2206
        %v2887 = vpack.c.b16 %v2215, %v2207
        %v2888 = vpack.c.b16 %v2216, %v2208
        %v2889 = vpack.c.b16 %v2217, %v2209
        %v2890 = vpack.c.b16 %v2218, %v2210
        %v2891 = vpack.c.b16 %v2219, %v2211
        %v2892 = vpack.c.b16 %v2220, %v2212
        %v2893 = vpack.c.b16 %v2221, %v2213
        %v2894 = vpack.c.b16 %v2230, %v2222
        %v2895 = vpack.c.b16 %v2231, %v2223
        %v2896 = vpack.c.b16 %v2232, %v2224
        %v2897 = vpack.c.b16 %v2233, %v2225
        %v2898 = vpack.c.b16 %v2234, %v2226
        %v2899 = vpack.c.b16 %v2235, %v2227
        %v2900 = vpack.c.b16 %v2236, %v2228
        %v2901 = vpack.c.b16 %v2237, %v2229
        %v2902 = vpack.c.b16 %v2246, %v2238
        %v2903 = vpack.c.b16 %v2247, %v2239
        %v2904 = vpack.c.b16 %v2248, %v2240
        %v2905 = vpack.c.b16 %v2249, %v2241
        %v2906 = vpack.c.b16 %v2250, %v2242
        %v2907 = vpack.c.b16 %v2251, %v2243
        %v2908 = vpack.c.b16 %v2252, %v2244
        %v2909 = vpack.c.b16 %v2253, %v2245
        %v2910 = vpack.c.b16 %v2262, %v2254
        %v2911 = vpack.c.b16 %v2263, %v2255
        %v2912 = vpack.c.b16 %v2264, %v2256
        %v2913 = vpack.c.b16 %v2265, %v2257
        %v2914 = vpack.c.b16 %v2266, %v2258
        %v2915 = vpack.c.b16 %v2267, %v2259
        %v2916 = vpack.c.b16 %v2268, %v2260
        %v2917 = vpack.c.b16 %v2269, %v2261
        %v2918 = vpack.c.b16 %v2278, %v2270
        %v2919 = vpack.c.b16 %v2279, %v2271
        %v2920 = vpack.c.b16 %v2280, %v2272
        %v2921 = vpack.c.b16 %v2281, %v2273
        %v2922 = vpack.c.b16 %v2282, %v2274
        %v2923 = vpack.c.b16 %v2283, %v2275
        %v2924 = vpack.c.b16 %v2284, %v2276
        %v2925 = vpack.c.b16 %v2285, %v2277
        %v2926 = vpack.c.b16 %v2294, %v2286
        %v2927 = vpack.c.b16 %v2295, %v2287
        %v2928 = vpack.c.b16 %v2296, %v2288
        %v2929 = vpack.c.b16 %v2297, %v2289
        %v2930 = vpack.c.b16 %v2298, %v2290
        %v2931 = vpack.c.b16 %v2299, %v2291
        %v2932 = vpack.c.b16 %v2300, %v2292
        %v2933 = vpack.c.b16 %v2301, %v2293
        %v2934 = vpack.c.b16 %v2310, %v2302
        %v2935 = vpack.c.b16 %v2311, %v2303
        %v2936 = vpack.c.b16 %v2312, %v2304
        %v2937 = vpack.c.b16 %v2313, %v2305
        %v2938 = vpack.c.b16 %v2314, %v2306
        %v2939 = vpack.c.b16 %v2315, %v2307
        %v2940 = vpack.c.b16 %v2316, %v2308
        %v2941 = vpack.c.b16 %v2317, %v2309
        %v2942 = vpack.c.b16 %v2326, %v2318
        %v2943 = vpack.c.b16 %v2327, %v2319
        %v2944 = vpack.c.b16 %v2328, %v2320
        %v2945 = vpack.c.b16 %v2329, %v2321
        %v2946 = vpack.c.b16 %v2330, %v2322
        %v2947 = vpack.c.b16 %v2331, %v2323
        %v2948 = vpack.c.b16 %v2332, %v2324
        %v2949 = vpack.c.b16 %v2333, %v2325
        %v2950 = vpack.c.b16 %v2342, %v2334
        %v2951 = vpack.c.b16 %v2343, %v2335
        %v2952 = vpack.c.b16 %v2344, %v2336
        %v2953 = vpack.c.b16 %v2345, %v2337
        %v2954 = vpack.c.b16 %v2346, %v2338
        %v2955 = vpack.c.b16 %v2347, %v2339
        %v2956 = vpack.c.b16 %v2348, %v2340
        %v2957 = vpack.c.b16 %v2349, %v2341
        %v2958 = vpack.c.b16 %v2358, %v2350
        %v2959 = vpack.c.b16 %v2359, %v2351
        %v2960 = vpack.c.b16 %v2360, %v2352
        %v2961 = vpack.c.b16 %v2361, %v2353
        %v2962 = vpack.c.b16 %v2362, %v2354
        %v2963 = vpack.c.b16 %v2363, %v2355
        %v2964 = vpack.c.b16 %v2364, %v2356
        %v2965 = vpack.c.b16 %v2365, %v2357
        %v2966 = vpack.c.b16 %v2374, %v2366
        %v2967 = vpack.c.b16 %v2375, %v2367
        %v2968 = vpack.c.b16 %v2376, %v2368
        %v2969 = vpack.c.b16 %v2377, %v2369
        %v2970 = vpack.c.b16 %v2378, %v2370
        %v2971 = vpack.c.b16 %v2379, %v2371
        %v2972 = vpack.c.b16 %v2380, %v2372
        %v2973 = vpack.c.b16 %v2381, %v2373
        %v2974 = vpack.c.b16 %v2390, %v2382
        %v2975 = vpack.c.b16 %v2391, %v2383
        %v2976 = vpack.c.b16 %v2392, %v2384
        %v2977 = vpack.c.b16 %v2393, %v2385
        %v2978 = vpack.c.b16 %v2394, %v2386
        %v2979 = vpack.c.b16 %v2395, %v2387
        %v2980 = vpack.c.b16 %v2396, %v2388
        %v2981 = vpack.c.b16 %v2397, %v2389
        %v2982 = vpack.c.b16 %v2406, %v2398
        %v2983 = vpack.c.b16 %v2407, %v2399
        %v2984 = vpack.c.b16 %v2408, %v2400
        %v2985 = vpack.c.b16 %v2409, %v2401
        %v2986 = vpack.c.b16 %v2410, %v2402
        %v2987 = vpack.c.b16 %v2411, %v2403
        %v2988 = vpack.c.b16 %v2412, %v2404
        %v2989 = vpack.c.b16 %v2413, %v2405
        %v2990 = vpack.c.b16 %v2422, %v2414
        %v2991 = vpack.c.b16 %v2423, %v2415
        %v2992 = vpack.c.b16 %v2424, %v2416
        %v2993 = vpack.c.b16 %v2425, %v2417
        %v2994 = vpack.c.b16 %v2426, %v2418
        %v2995 = vpack.c.b16 %v2427, %v2419
        %v2996 = vpack.c.b16 %v2428, %v2420
        %v2997 = vpack.c.b16 %v2429, %v2421
        %v2998 = vpack.c.b16 %v2438, %v2430
        %v2999 = vpack.c.b16 %v2439, %v2431
        %v3000 = vpack.c.b16 %v2440, %v2432
        %v3001 = vpack.c.b16 %v2441, %v2433
        %v3002 = vpack.c.b16 %v2442, %v2434
        %v3003 = vpack.c.b16 %v2443, %v2435
        %v3004 = vpack.c.b16 %v2444, %v2436
        %v3005 = vpack.c.b16 %v2445, %v2437
        %v3006 = vpack.c.b16 %v2454, %v2446
        %v3007 = vpack.c.b16 %v2455, %v2447
        %v3008 = vpack.c.b16 %v2456, %v2448
        %v3009 = vpack.c.b16 %v2457, %v2449
        %v3010 = vpack.c.b16 %v2458, %v2450
        %v3011 = vpack.c.b16 %v2459, %v2451
        %v3012 = vpack.c.b16 %v2460, %v2452
        %v3013 = vpack.c.b16 %v2461, %v2453
        %v3014 = vpack.c.b16 %v2470, %v2462
        %v3015 = vpack.c.b16 %v2471, %v2463
        %v3016 = vpack.c.b16 %v2472, %v2464
        %v3017 = vpack.c.b16 %v2473, %v2465
        %v3018 = vpack.c.b16 %v2474, %v2466
        %v3019 = vpack.c.b16 %v2475, %v2467
        %v3020 = vpack.c.b16 %v2476, %v2468
        %v3021 = vpack.c.b16 %v2477, %v2469
        %v3022 = vpack.c.b16 %v2486, %v2478
        %v3023 = vpack.c.b16 %v2487, %v2479
        %v3024 = vpack.c.b16 %v2488, %v2480
        %v3025 = vpack.c.b16 %v2489, %v2481
        %v3026 = vpack.c.b16 %v2490, %v2482
        %v3027 = vpack.c.b16 %v2491, %v2483
        %v3028 = vpack.c.b16 %v2492, %v2484
        %v3029 = vpack.c.b16 %v2493, %v2485
        %v3030 = vpack.c.b16 %v2502, %v2494
        %v3031 = vpack.c.b16 %v2503, %v2495
        %v3032 = vpack.c.b16 %v2504, %v2496
        %v3033 = vpack.c.b16 %v2505, %v2497
        %v3034 = vpack.c.b16 %v2506, %v2498
        %v3035 = vpack.c.b16 %v2507, %v2499
        %v3036 = vpack.c.b16 %v2508, %v2500
        %v3037 = vpack.c.b16 %v2509, %v2501
        %v3038 = vpack.c.b16 %v2518, %v2510
        %v3039 = vpack.c.b16 %v2519, %v2511
        %v3040 = vpack.c.b16 %v2520, %v2512
        %v3041 = vpack.c.b16 %v2521, %v2513
        %v3042 = vpack.c.b16 %v2522, %v2514
        %v3043 = vpack.c.b16 %v2523, %v2515
        %v3044 = vpack.c.b16 %v2524, %v2516
        %v3045 = vpack.c.b16 %v2525, %v2517
        %v3046 = vpack.c.b16 %v2534, %v2526
        %v3047 = vpack.c.b16 %v2535, %v2527
        %v3048 = vpack.c.b16 %v2536, %v2528
        %v3049 = vpack.c.b16 %v2537, %v2529
        %v3050 = vpack.c.b16 %v2538, %v2530
        %v3051 = vpack.c.b16 %v2539, %v2531
        %v3052 = vpack.c.b16 %v2540, %v2532
        %v3053 = vpack.c.b16 %v2541, %v2533
        %3566 = vmatprep.subr.bf16.mxu0 %v2543
        %3567 = vmatpush1.bf16.msra.mxu0 %v2542
        %3568 = vmatprep.subr.bf16.mxu0 %v2551
        %3569 = vmatpush1.bf16.msra.mxu0 %v2550
        %3570 = vmatprep.subr.bf16.mxu0 %v2559
        %3571 = vmatpush1.bf16.msra.mxu0 %v2558
        %3572 = vmatprep.subr.bf16.mxu0 %v2567
        %3573 = vmatpush1.bf16.msra.mxu0 %v2566
        %3574 = vmatprep.subr.bf16.mxu0 %v2575
        %3575 = vmatpush1.bf16.msra.mxu0 %v2574
        %3576 = vmatprep.subr.bf16.mxu0 %v2583
        %3577 = vmatpush1.bf16.msra.mxu0 %v2582
        %3578 = vmatprep.subr.bf16.mxu0 %v2591
        %3579 = vmatpush1.bf16.msra.mxu0 %v2590
        %3580 = vmatprep.subr.bf16.mxu0 %v2599
        %3581 = vmatpush1.bf16.msra.mxu0 %v2598
        %3582 = vmatprep.subr.bf16.mxu0 %v2607
        %3583 = vmatpush1.bf16.msra.mxu0 %v2606
        %3584 = vmatprep.subr.bf16.mxu0 %v2615
        %3585 = vmatpush1.bf16.msra.mxu0 %v2614
        %3586 = vmatprep.subr.bf16.mxu0 %v2623
        %3587 = vmatpush1.bf16.msra.mxu0 %v2622
        %3588 = vmatprep.subr.bf16.mxu0 %v2631
        %3589 = vmatpush1.bf16.msra.mxu0 %v2630
        %3590 = vmatprep.subr.bf16.mxu0 %v2639
        %3591 = vmatpush1.bf16.msra.mxu0 %v2638
        %3592 = vmatprep.subr.bf16.mxu0 %v2647
        %3593 = vmatpush1.bf16.msra.mxu0 %v2646
        %3594 = vmatprep.subr.bf16.mxu0 %v2655
        %3595 = vmatpush1.bf16.msra.mxu0 %v2654
        %3596 = vmatprep.subr.bf16.mxu0 %v2663
        %3597 = vmatpush1.bf16.msra.mxu0 %v2662
        %3598 = vmatprep.mubr.bf16.mxu0 %v959
        %3599 = vmatmul.mubr.bf16.gmra.mrb[0].mxu0 %v958
        %v3600 = vpop.f32.mrb[0].mxu0
        %v3601 = vadd.f32 0.0, %v3600
        %v3602 = vpop.f32.mrb[0].mxu0
        %v3603 = vadd.f32 0.0, %v3602
        %v3604 = vpop.f32.mrb[0].mxu0
        %v3605 = vadd.f32 0.0, %v3604
        %v3606 = vpop.f32.mrb[0].mxu0
        %v3607 = vadd.f32 0.0, %v3606
        %3608 = vmatprep.mubr.bf16.mxu0 %v967
        %3609 = vmatmul.mubr.bf16.gmra.mrb[0].mxu0 %v966
        %v3610 = vpop.f32.mrb[0].mxu0
        %v3611 = vadd.f32 0.0, %v3610
        %v3612 = vpop.f32.mrb[0].mxu0
        %v3613 = vadd.f32 0.0, %v3612
        %v3614 = vpop.f32.mrb[0].mxu0
        %v3615 = vadd.f32 0.0, %v3614
        %v3616 = vpop.f32.mrb[0].mxu0
        %v3617 = vadd.f32 0.0, %v3616
        %3618 = vmatprep.mubr.bf16.mxu0 %v975
        %3619 = vmatmul.mubr.bf16.gmra.mrb[0].mxu0 %v974
        %v3620 = vpop.f32.mrb[0].mxu0
        %v3621 = vadd.f32 0.0, %v3620
        %v3622 = vpop.f32.mrb[0].mxu0
        %v3623 = vadd.f32 0.0, %v3622
        %v3624 = vpop.f32.mrb[0].mxu0
        %v3625 = vadd.f32 0.0, %v3624
        %v3626 = vpop.f32.mrb[0].mxu0
        %v3627 = vadd.f32 0.0, %v3626
        %3628 = vdwg.mxu0
        %3629 = vmatprep.subr.bf16.mxu0 %v2671
        %3630 = vmatpush1.bf16.msra.mxu0 %v2670
        %3631 = vmatprep.subr.bf16.mxu0 %v2679
        %3632 = vmatpush1.bf16.msra.mxu0 %v2678
        %3633 = vmatprep.subr.bf16.mxu0 %v2687
        %3634 = vmatpush1.bf16.msra.mxu0 %v2686
        %3635 = vmatprep.subr.bf16.mxu0 %v2695
        %3636 = vmatpush1.bf16.msra.mxu0 %v2694
        %3637 = vmatprep.subr.bf16.mxu0 %v2703
        %3638 = vmatpush1.bf16.msra.mxu0 %v2702
        %3639 = vmatprep.subr.bf16.mxu0 %v2711
        %3640 = vmatpush1.bf16.msra.mxu0 %v2710
        %3641 = vmatprep.subr.bf16.mxu0 %v2719
        %3642 = vmatpush1.bf16.msra.mxu0 %v2718
        %3643 = vmatprep.subr.bf16.mxu0 %v2727
        %3644 = vmatpush1.bf16.msra.mxu0 %v2726
        %3645 = vmatprep.subr.bf16.mxu0 %v2735
        %3646 = vmatpush1.bf16.msra.mxu0 %v2734
        %3647 = vmatprep.subr.bf16.mxu0 %v2743
        %3648 = vmatpush1.bf16.msra.mxu0 %v2742
        %3649 = vmatprep.subr.bf16.mxu0 %v2751
        %3650 = vmatpush1.bf16.msra.mxu0 %v2750
        %3651 = vmatprep.subr.bf16.mxu0 %v2759
        %3652 = vmatpush1.bf16.msra.mxu0 %v2758
        %3653 = vmatprep.subr.bf16.mxu0 %v2767
        %3654 = vmatpush1.bf16.msra.mxu0 %v2766
        %3655 = vmatprep.subr.bf16.mxu0 %v2775
        %3656 = vmatpush1.bf16.msra.mxu0 %v2774
        %3657 = vmatprep.subr.bf16.mxu0 %v2783
        %3658 = vmatpush1.bf16.msra.mxu0 %v2782
        %3659 = vmatprep.subr.bf16.mxu0 %v2791
        %3660 = vmatpush1.bf16.msra.mxu0 %v2790
        %3661 = vmatprep.mubr.bf16.mxu0 %v961
        %3662 = vmatmul.mubr.bf16.gmra.mrb[0].mxu0 %v960
        %v3663 = vpop.f32.mrb[0].mxu0
        %v3664 = vadd.f32 %v3601, %v3663
        %v3665 = vpop.f32.mrb[0].mxu0
        %v3666 = vadd.f32 %v3603, %v3665
        %v3667 = vpop.f32.mrb[0].mxu0
        %v3668 = vadd.f32 %v3605, %v3667
        %v3669 = vpop.f32.mrb[0].mxu0
        %v3670 = vadd.f32 %v3607, %v3669
        %3671 = vmatprep.mubr.bf16.mxu0 %v969
        %3672 = vmatmul.mubr.bf16.gmra.mrb[0].mxu0 %v968
        %v3673 = vpop.f32.mrb[0].mxu0
        %v3674 = vadd.f32 %v3611, %v3673
        %v3675 = vpop.f32.mrb[0].mxu0
        %v3676 = vadd.f32 %v3613, %v3675
        %v3677 = vpop.f32.mrb[0].mxu0
        %v3678 = vadd.f32 %v3615, %v3677
        %v3679 = vpop.f32.mrb[0].mxu0
        %v3680 = vadd.f32 %v3617, %v3679
        %3681 = vmatprep.mubr.bf16.mxu0 %v977
        %3682 = vmatmul.mubr.bf16.gmra.mrb[0].mxu0 %v976
        %v3683 = vpop.f32.mrb[0].mxu0
        %v3684 = vadd.f32 %v3621, %v3683
        %v3685 = vpop.f32.mrb[0].mxu0
        %v3686 = vadd.f32 %v3623, %v3685
        %v3687 = vpop.f32.mrb[0].mxu0
        %v3688 = vadd.f32 %v3625, %v3687
        %v3689 = vpop.f32.mrb[0].mxu0
        %v3690 = vadd.f32 %v3627, %v3689
        %3691 = vdwg.mxu0
        %3692 = vmatprep.subr.bf16.mxu0 %v2799
        %3693 = vmatpush1.bf16.msra.mxu0 %v2798
        %3694 = vmatprep.subr.bf16.mxu0 %v2807
        %3695 = vmatpush1.bf16.msra.mxu0 %v2806
        %3696 = vmatprep.subr.bf16.mxu0 %v2815
        %3697 = vmatpush1.bf16.msra.mxu0 %v2814
        %3698 = vmatprep.subr.bf16.mxu0 %v2823
        %3699 = vmatpush1.bf16.msra.mxu0 %v2822
        %3700 = vmatprep.subr.bf16.mxu0 %v2831
        %3701 = vmatpush1.bf16.msra.mxu0 %v2830
        %3702 = vmatprep.subr.bf16.mxu0 %v2839
        %3703 = vmatpush1.bf16.msra.mxu0 %v2838
        %3704 = vmatprep.subr.bf16.mxu0 %v2847
        %3705 = vmatpush1.bf16.msra.mxu0 %v2846
        %3706 = vmatprep.subr.bf16.mxu0 %v2855
        %3707 = vmatpush1.bf16.msra.mxu0 %v2854
        %3708 = vmatprep.subr.bf16.mxu0 %v2863
        %3709 = vmatpush1.bf16.msra.mxu0 %v2862
        %3710 = vmatprep.subr.bf16.mxu0 %v2871
        %3711 = vmatpush1.bf16.msra.mxu0 %v2870
        %3712 = vmatprep.subr.bf16.mxu0 %v2879
        %3713 = vmatpush1.bf16.msra.mxu0 %v2878
        %3714 = vmatprep.subr.bf16.mxu0 %v2887
        %3715 = vmatpush1.bf16.msra.mxu0 %v2886
        %3716 = vmatprep.subr.bf16.mxu0 %v2895
        %3717 = vmatpush1.bf16.msra.mxu0 %v2894
        %3718 = vmatprep.subr.bf16.mxu0 %v2903
        %3719 = vmatpush1.bf16.msra.mxu0 %v2902
        %3720 = vmatprep.subr.bf16.mxu0 %v2911
        %3721 = vmatpush1.bf16.msra.mxu0 %v2910
        %3722 = vmatprep.subr.bf16.mxu0 %v2919
        %3723 = vmatpush1.bf16.msra.mxu0 %v2918
        %3724 = vmatprep.mubr.bf16.mxu0 %v963
        %3725 = vmatmul.mubr.bf16.gmra.mrb[0].mxu0 %v962
        %v3726 = vpop.f32.mrb[0].mxu0
        %v3727 = vadd.f32 %v3664, %v3726
        %v3728 = vpop.f32.mrb[0].mxu0
        %v3729 = vadd.f32 %v3666, %v3728
        %v3730 = vpop.f32.mrb[0].mxu0
        %v3731 = vadd.f32 %v3668, %v3730
        %v3732 = vpop.f32.mrb[0].mxu0
        %v3733 = vadd.f32 %v3670, %v3732
        %3734 = vmatprep.mubr.bf16.mxu0 %v971
        %3735 = vmatmul.mubr.bf16.gmra.mrb[0].mxu0 %v970
        %v3736 = vpop.f32.mrb[0].mxu0
        %v3737 = vadd.f32 %v3674, %v3736
        %v3738 = vpop.f32.mrb[0].mxu0
        %v3739 = vadd.f32 %v3676, %v3738
        %v3740 = vpop.f32.mrb[0].mxu0
        %v3741 = vadd.f32 %v3678, %v3740
        %v3742 = vpop.f32.mrb[0].mxu0
        %v3743 = vadd.f32 %v3680, %v3742
        %3744 = vmatprep.mubr.bf16.mxu0 %v979
        %3745 = vmatmul.mubr.bf16.gmra.mrb[0].mxu0 %v978
        %v3746 = vpop.f32.mrb[0].mxu0
        %v3747 = vadd.f32 %v3684, %v3746
        %v3748 = vpop.f32.mrb[0].mxu0
        %v3749 = vadd.f32 %v3686, %v3748
        %v3750 = vpop.f32.mrb[0].mxu0
        %v3751 = vadd.f32 %v3688, %v3750
        %v3752 = vpop.f32.mrb[0].mxu0
        %v3753 = vadd.f32 %v3690, %v3752
        %3754 = vdwg.mxu0
        %3755 = vmatprep.subr.bf16.mxu0 %v2927
        %3756 = vmatpush1.bf16.msra.mxu0 %v2926
        %3757 = vmatprep.subr.bf16.mxu0 %v2935
        %3758 = vmatpush1.bf16.msra.mxu0 %v2934
        %3759 = vmatprep.subr.bf16.mxu0 %v2943
        %3760 = vmatpush1.bf16.msra.mxu0 %v2942
        %3761 = vmatprep.subr.bf16.mxu0 %v2951
        %3762 = vmatpush1.bf16.msra.mxu0 %v2950
        %3763 = vmatprep.subr.bf16.mxu0 %v2959
        %3764 = vmatpush1.bf16.msra.mxu0 %v2958
        %3765 = vmatprep.subr.bf16.mxu0 %v2967
        %3766 = vmatpush1.bf16.msra.mxu0 %v2966
        %3767 = vmatprep.subr.bf16.mxu0 %v2975
        %3768 = vmatpush1.bf16.msra.mxu0 %v2974
        %3769 = vmatprep.subr.bf16.mxu0 %v2983
        %3770 = vmatpush1.bf16.msra.mxu0 %v2982
        %3771 = vmatprep.subr.bf16.mxu0 %v2991
        %3772 = vmatpush1.bf16.msra.mxu0 %v2990
        %3773 = vmatprep.subr.bf16.mxu0 %v2999
        %3774 = vmatpush1.bf16.msra.mxu0 %v2998
        %3775 = vmatprep.subr.bf16.mxu0 %v3007
        %3776 = vmatpush1.bf16.msra.mxu0 %v3006
        %3777 = vmatprep.subr.bf16.mxu0 %v3015
        %3778 = vmatpush1.bf16.msra.mxu0 %v3014
        %3779 = vmatprep.subr.bf16.mxu0 %v3023
        %3780 = vmatpush1.bf16.msra.mxu0 %v3022
        %3781 = vmatprep.subr.bf16.mxu0 %v3031
        %3782 = vmatpush1.bf16.msra.mxu0 %v3030
        %3783 = vmatprep.subr.bf16.mxu0 %v3039
        %3784 = vmatpush1.bf16.msra.mxu0 %v3038
        %3785 = vmatprep.subr.bf16.mxu0 %v3047
        %3786 = vmatpush1.bf16.msra.mxu0 %v3046
        %3787 = vmatprep.mubr.bf16.mxu0 %v965
        %3788 = vmatmul.mubr.bf16.gmra.mrb[0].mxu0 %v964
        %v3789 = vpop.f32.mrb[0].mxu0
        %v3790 = vadd.f32 %v3727, %v3789
        %v3791 = vpop.f32.mrb[0].mxu0
        %v3792 = vadd.f32 %v3729, %v3791
        %v3793 = vpop.f32.mrb[0].mxu0
        %v3794 = vadd.f32 %v3731, %v3793
        %v3795 = vpop.f32.mrb[0].mxu0
        %v3796 = vadd.f32 %v3733, %v3795
        %3797 = vmatprep.mubr.bf16.mxu0 %v973
        %3798 = vmatmul.mubr.bf16.gmra.mrb[0].mxu0 %v972
        %v3799 = vpop.f32.mrb[0].mxu0
        %v3800 = vadd.f32 %v3737, %v3799
        %v3801 = vpop.f32.mrb[0].mxu0
        %v3802 = vadd.f32 %v3739, %v3801
        %v3803 = vpop.f32.mrb[0].mxu0
        %v3804 = vadd.f32 %v3741, %v3803
        %v3805 = vpop.f32.mrb[0].mxu0
        %v3806 = vadd.f32 %v3743, %v3805
        %3807 = vmatprep.mubr.bf16.mxu0 %v981
        %3808 = vmatmul.mubr.bf16.gmra.mrb[0].mxu0 %v980
        %v3809 = vpop.f32.mrb[0].mxu0
        %v3810 = vadd.f32 %v3747, %v3809
        %v3811 = vpop.f32.mrb[0].mxu0
        %v3812 = vadd.f32 %v3749, %v3811
        %v3813 = vpop.f32.mrb[0].mxu0
        %v3814 = vadd.f32 %v3751, %v3813
        %v3815 = vpop.f32.mrb[0].mxu0
        %v3816 = vadd.f32 %v3753, %v3815
        %3817 = vdwg.mxu0
        %3818 = vmatprep.subr.bf16.mxu0 %v2545
        %3819 = vmatpush1.bf16.msra.mxu0 %v2544
        %3820 = vmatprep.subr.bf16.mxu0 %v2553
        %3821 = vmatpush1.bf16.msra.mxu0 %v2552
        %3822 = vmatprep.subr.bf16.mxu0 %v2561
        %3823 = vmatpush1.bf16.msra.mxu0 %v2560
        %3824 = vmatprep.subr.bf16.mxu0 %v2569
        %3825 = vmatpush1.bf16.msra.mxu0 %v2568
        %3826 = vmatprep.subr.bf16.mxu0 %v2577
        %3827 = vmatpush1.bf16.msra.mxu0 %v2576
        %3828 = vmatprep.subr.bf16.mxu0 %v2585
        %3829 = vmatpush1.bf16.msra.mxu0 %v2584
        %3830 = vmatprep.subr.bf16.mxu0 %v2593
        %3831 = vmatpush1.bf16.msra.mxu0 %v2592
        %3832 = vmatprep.subr.bf16.mxu0 %v2601
        %3833 = vmatpush1.bf16.msra.mxu0 %v2600
        %3834 = vmatprep.subr.bf16.mxu0 %v2609
        %3835 = vmatpush1.bf16.msra.mxu0 %v2608
        %3836 = vmatprep.subr.bf16.mxu0 %v2617
        %3837 = vmatpush1.bf16.msra.mxu0 %v2616
        %3838 = vmatprep.subr.bf16.mxu0 %v2625
        %3839 = vmatpush1.bf16.msra.mxu0 %v2624
        %3840 = vmatprep.subr.bf16.mxu0 %v2633
        %3841 = vmatpush1.bf16.msra.mxu0 %v2632
        %3842 = vmatprep.subr.bf16.mxu0 %v2641
        %3843 = vmatpush1.bf16.msra.mxu0 %v2640
        %3844 = vmatprep.subr.bf16.mxu0 %v2649
        %3845 = vmatpush1.bf16.msra.mxu0 %v2648
        %3846 = vmatprep.subr.bf16.mxu0 %v2657
        %3847 = vmatpush1.bf16.msra.mxu0 %v2656
        %3848 = vmatprep.subr.bf16.mxu0 %v2665
        %3849 = vmatpush1.bf16.msra.mxu0 %v2664
        %3850 = vmatprep.mubr.bf16.mxu0 %v959
        %3851 = vmatmul.mubr.bf16.gmra.mrb[0].mxu0 %v958
        %v3852 = vpop.f32.mrb[0].mxu0
        %v3853 = vadd.f32 0.0, %v3852
        %v3854 = vpop.f32.mrb[0].mxu0
        %v3855 = vadd.f32 0.0, %v3854
        %v3856 = vpop.f32.mrb[0].mxu0
        %v3857 = vadd.f32 0.0, %v3856
        %v3858 = vpop.f32.mrb[0].mxu0
        %v3859 = vadd.f32 0.0, %v3858
        %3860 = vmatprep.mubr.bf16.mxu0 %v967
        %3861 = vmatmul.mubr.bf16.gmra.mrb[0].mxu0 %v966
        %v3862 = vpop.f32.mrb[0].mxu0
        %v3863 = vadd.f32 0.0, %v3862
        %v3864 = vpop.f32.mrb[0].mxu0
        %v3865 = vadd.f32 0.0, %v3864
        %v3866 = vpop.f32.mrb[0].mxu0
        %v3867 = vadd.f32 0.0, %v3866
        %v3868 = vpop.f32.mrb[0].mxu0
        %v3869 = vadd.f32 0.0, %v3868
        %3870 = vmatprep.mubr.bf16.mxu0 %v975
        %3871 = vmatmul.mubr.bf16.gmra.mrb[0].mxu0 %v974
        %v3872 = vpop.f32.mrb[0].mxu0
        %v3873 = vadd.f32 0.0, %v3872
        %v3874 = vpop.f32.mrb[0].mxu0
        %v3875 = vadd.f32 0.0, %v3874
        %v3876 = vpop.f32.mrb[0].mxu0
        %v3877 = vadd.f32 0.0, %v3876
        %v3878 = vpop.f32.mrb[0].mxu0
        %v3879 = vadd.f32 0.0, %v3878
        %3880 = vdwg.mxu0
        %3881 = vmatprep.subr.bf16.mxu0 %v2673
        %3882 = vmatpush1.bf16.msra.mxu0 %v2672
        %3883 = vmatprep.subr.bf16.mxu0 %v2681
        %3884 = vmatpush1.bf16.msra.mxu0 %v2680
        %3885 = vmatprep.subr.bf16.mxu0 %v2689
        %3886 = vmatpush1.bf16.msra.mxu0 %v2688
        %3887 = vmatprep.subr.bf16.mxu0 %v2697
        %3888 = vmatpush1.bf16.msra.mxu0 %v2696
        %3889 = vmatprep.subr.bf16.mxu0 %v2705
        %3890 = vmatpush1.bf16.msra.mxu0 %v2704
        %3891 = vmatprep.subr.bf16.mxu0 %v2713
        %3892 = vmatpush1.bf16.msra.mxu0 %v2712
        %3893 = vmatprep.subr.bf16.mxu0 %v2721
        %3894 = vmatpush1.bf16.msra.mxu0 %v2720
        %3895 = vmatprep.subr.bf16.mxu0 %v2729
        %3896 = vmatpush1.bf16.msra.mxu0 %v2728
        %3897 = vmatprep.subr.bf16.mxu0 %v2737
        %3898 = vmatpush1.bf16.msra.mxu0 %v2736
        %3899 = vmatprep.subr.bf16.mxu0 %v2745
        %3900 = vmatpush1.bf16.msra.mxu0 %v2744
        %3901 = vmatprep.subr.bf16.mxu0 %v2753
        %3902 = vmatpush1.bf16.msra.mxu0 %v2752
        %3903 = vmatprep.subr.bf16.mxu0 %v2761
        %3904 = vmatpush1.bf16.msra.mxu0 %v2760
        %3905 = vmatprep.subr.bf16.mxu0 %v2769
        %3906 = vmatpush1.bf16.msra.mxu0 %v2768
        %3907 = vmatprep.subr.bf16.mxu0 %v2777
        %3908 = vmatpush1.bf16.msra.mxu0 %v2776
        %3909 = vmatprep.subr.bf16.mxu0 %v2785
        %3910 = vmatpush1.bf16.msra.mxu0 %v2784
        %3911 = vmatprep.subr.bf16.mxu0 %v2793
        %3912 = vmatpush1.bf16.msra.mxu0 %v2792
        %3913 = vmatprep.mubr.bf16.mxu0 %v961
        %3914 = vmatmul.mubr.bf16.gmra.mrb[0].mxu0 %v960
        %v3915 = vpop.f32.mrb[0].mxu0
        %v3916 = vadd.f32 %v3853, %v3915
        %v3917 = vpop.f32.mrb[0].mxu0
        %v3918 = vadd.f32 %v3855, %v3917
        %v3919 = vpop.f32.mrb[0].mxu0
        %v3920 = vadd.f32 %v3857, %v3919
        %v3921 = vpop.f32.mrb[0].mxu0
        %v3922 = vadd.f32 %v3859, %v3921
        %3923 = vmatprep.mubr.bf16.mxu0 %v969
        %3924 = vmatmul.mubr.bf16.gmra.mrb[0].mxu0 %v968
        %v3925 = vpop.f32.mrb[0].mxu0
        %v3926 = vadd.f32 %v3863, %v3925
        %v3927 = vpop.f32.mrb[0].mxu0
        %v3928 = vadd.f32 %v3865, %v3927
        %v3929 = vpop.f32.mrb[0].mxu0
        %v3930 = vadd.f32 %v3867, %v3929
        %v3931 = vpop.f32.mrb[0].mxu0
        %v3932 = vadd.f32 %v3869, %v3931
        %3933 = vmatprep.mubr.bf16.mxu0 %v977
        %3934 = vmatmul.mubr.bf16.gmra.mrb[0].mxu0 %v976
        %v3935 = vpop.f32.mrb[0].mxu0
        %v3936 = vadd.f32 %v3873, %v3935
        %v3937 = vpop.f32.mrb[0].mxu0
        %v3938 = vadd.f32 %v3875, %v3937
        %v3939 = vpop.f32.mrb[0].mxu0
        %v3940 = vadd.f32 %v3877, %v3939
        %v3941 = vpop.f32.mrb[0].mxu0
        %v3942 = vadd.f32 %v3879, %v3941
        %3943 = vdwg.mxu0
        %3944 = vmatprep.subr.bf16.mxu0 %v2801
        %3945 = vmatpush1.bf16.msra.mxu0 %v2800
        %3946 = vmatprep.subr.bf16.mxu0 %v2809
        %3947 = vmatpush1.bf16.msra.mxu0 %v2808
        %3948 = vmatprep.subr.bf16.mxu0 %v2817
        %3949 = vmatpush1.bf16.msra.mxu0 %v2816
        %3950 = vmatprep.subr.bf16.mxu0 %v2825
        %3951 = vmatpush1.bf16.msra.mxu0 %v2824
        %3952 = vmatprep.subr.bf16.mxu0 %v2833
        %3953 = vmatpush1.bf16.msra.mxu0 %v2832
        %3954 = vmatprep.subr.bf16.mxu0 %v2841
        %3955 = vmatpush1.bf16.msra.mxu0 %v2840
        %3956 = vmatprep.subr.bf16.mxu0 %v2849
        %3957 = vmatpush1.bf16.msra.mxu0 %v2848
        %3958 = vmatprep.subr.bf16.mxu0 %v2857
        %3959 = vmatpush1.bf16.msra.mxu0 %v2856
        %3960 = vmatprep.subr.bf16.mxu0 %v2865
        %3961 = vmatpush1.bf16.msra.mxu0 %v2864
        %3962 = vmatprep.subr.bf16.mxu0 %v2873
        %3963 = vmatpush1.bf16.msra.mxu0 %v2872
        %3964 = vmatprep.subr.bf16.mxu0 %v2881
        %3965 = vmatpush1.bf16.msra.mxu0 %v2880
        %3966 = vmatprep.subr.bf16.mxu0 %v2889
        %3967 = vmatpush1.bf16.msra.mxu0 %v2888
        %3968 = vmatprep.subr.bf16.mxu0 %v2897
        %3969 = vmatpush1.bf16.msra.mxu0 %v2896
        %3970 = vmatprep.subr.bf16.mxu0 %v2905
        %3971 = vmatpush1.bf16.msra.mxu0 %v2904
        %3972 = vmatprep.subr.bf16.mxu0 %v2913
        %3973 = vmatpush1.bf16.msra.mxu0 %v2912
        %3974 = vmatprep.subr.bf16.mxu0 %v2921
        %3975 = vmatpush1.bf16.msra.mxu0 %v2920
        %3976 = vmatprep.mubr.bf16.mxu0 %v963
        %3977 = vmatmul.mubr.bf16.gmra.mrb[0].mxu0 %v962
        %v3978 = vpop.f32.mrb[0].mxu0
        %v3979 = vadd.f32 %v3916, %v3978
        %v3980 = vpop.f32.mrb[0].mxu0
        %v3981 = vadd.f32 %v3918, %v3980
        %v3982 = vpop.f32.mrb[0].mxu0
        %v3983 = vadd.f32 %v3920, %v3982
        %v3984 = vpop.f32.mrb[0].mxu0
        %v3985 = vadd.f32 %v3922, %v3984
        %3986 = vmatprep.mubr.bf16.mxu0 %v971
        %3987 = vmatmul.mubr.bf16.gmra.mrb[0].mxu0 %v970
        %v3988 = vpop.f32.mrb[0].mxu0
        %v3989 = vadd.f32 %v3926, %v3988
        %v3990 = vpop.f32.mrb[0].mxu0
        %v3991 = vadd.f32 %v3928, %v3990
        %v3992 = vpop.f32.mrb[0].mxu0
        %v3993 = vadd.f32 %v3930, %v3992
        %v3994 = vpop.f32.mrb[0].mxu0
        %v3995 = vadd.f32 %v3932, %v3994
        %3996 = vmatprep.mubr.bf16.mxu0 %v979
        %3997 = vmatmul.mubr.bf16.gmra.mrb[0].mxu0 %v978
        %v3998 = vpop.f32.mrb[0].mxu0
        %v3999 = vadd.f32 %v3936, %v3998
        %v4000 = vpop.f32.mrb[0].mxu0
        %v4001 = vadd.f32 %v3938, %v4000
        %v4002 = vpop.f32.mrb[0].mxu0
        %v4003 = vadd.f32 %v3940, %v4002
        %v4004 = vpop.f32.mrb[0].mxu0
        %v4005 = vadd.f32 %v3942, %v4004
        %4006 = vdwg.mxu0
        %4007 = vmatprep.subr.bf16.mxu0 %v2929
        %4008 = vmatpush1.bf16.msra.mxu0 %v2928
        %4009 = vmatprep.subr.bf16.mxu0 %v2937
        %4010 = vmatpush1.bf16.msra.mxu0 %v2936
        %4011 = vmatprep.subr.bf16.mxu0 %v2945
        %4012 = vmatpush1.bf16.msra.mxu0 %v2944
        %4013 = vmatprep.subr.bf16.mxu0 %v2953
        %4014 = vmatpush1.bf16.msra.mxu0 %v2952
        %4015 = vmatprep.subr.bf16.mxu0 %v2961
        %4016 = vmatpush1.bf16.msra.mxu0 %v2960
        %4017 = vmatprep.subr.bf16.mxu0 %v2969
        %4018 = vmatpush1.bf16.msra.mxu0 %v2968
        %4019 = vmatprep.subr.bf16.mxu0 %v2977
        %4020 = vmatpush1.bf16.msra.mxu0 %v2976
        %4021 = vmatprep.subr.bf16.mxu0 %v2985
        %4022 = vmatpush1.bf16.msra.mxu0 %v2984
        %4023 = vmatprep.subr.bf16.mxu0 %v2993
        %4024 = vmatpush1.bf16.msra.mxu0 %v2992
        %4025 = vmatprep.subr.bf16.mxu0 %v3001
        %4026 = vmatpush1.bf16.msra.mxu0 %v3000
        %4027 = vmatprep.subr.bf16.mxu0 %v3009
        %4028 = vmatpush1.bf16.msra.mxu0 %v3008
        %4029 = vmatprep.subr.bf16.mxu0 %v3017
        %4030 = vmatpush1.bf16.msra.mxu0 %v3016
        %4031 = vmatprep.subr.bf16.mxu0 %v3025
        %4032 = vmatpush1.bf16.msra.mxu0 %v3024
        %4033 = vmatprep.subr.bf16.mxu0 %v3033
        %4034 = vmatpush1.bf16.msra.mxu0 %v3032
        %4035 = vmatprep.subr.bf16.mxu0 %v3041
        %4036 = vmatpush1.bf16.msra.mxu0 %v3040
        %4037 = vmatprep.subr.bf16.mxu0 %v3049
        %4038 = vmatpush1.bf16.msra.mxu0 %v3048
        %4039 = vmatprep.mubr.bf16.mxu0 %v965
        %4040 = vmatmul.mubr.bf16.gmra.mrb[0].mxu0 %v964
        %v4041 = vpop.f32.mrb[0].mxu0
        %v4042 = vadd.f32 %v3979, %v4041
        %v4043 = vpop.f32.mrb[0].mxu0
        %v4044 = vadd.f32 %v3981, %v4043
        %v4045 = vpop.f32.mrb[0].mxu0
        %v4046 = vadd.f32 %v3983, %v4045
        %v4047 = vpop.f32.mrb[0].mxu0
        %v4048 = vadd.f32 %v3985, %v4047
        %4049 = vmatprep.mubr.bf16.mxu0 %v973
        %4050 = vmatmul.mubr.bf16.gmra.mrb[0].mxu0 %v972
        %v4051 = vpop.f32.mrb[0].mxu0
        %v4052 = vadd.f32 %v3989, %v4051
        %v4053 = vpop.f32.mrb[0].mxu0
        %v4054 = vadd.f32 %v3991, %v4053
        %v4055 = vpop.f32.mrb[0].mxu0
        %v4056 = vadd.f32 %v3993, %v4055
        %v4057 = vpop.f32.mrb[0].mxu0
        %v4058 = vadd.f32 %v3995, %v4057
        %4059 = vmatprep.mubr.bf16.mxu0 %v981
        %4060 = vmatmul.mubr.bf16.gmra.mrb[0].mxu0 %v980
        %v4061 = vpop.f32.mrb[0].mxu0
        %v4062 = vadd.f32 %v3999, %v4061
        %v4063 = vpop.f32.mrb[0].mxu0
        %v4064 = vadd.f32 %v4001, %v4063
        %v4065 = vpop.f32.mrb[0].mxu0
        %v4066 = vadd.f32 %v4003, %v4065
        %v4067 = vpop.f32.mrb[0].mxu0
        %v4068 = vadd.f32 %v4005, %v4067
        %4069 = vdwg.mxu0
        %4070 = vmatprep.subr.bf16.mxu0 %v2547
        %4071 = vmatpush1.bf16.msra.mxu0 %v2546
        %4072 = vmatprep.subr.bf16.mxu0 %v2555
        %4073 = vmatpush1.bf16.msra.mxu0 %v2554
        %4074 = vmatprep.subr.bf16.mxu0 %v2563
        %4075 = vmatpush1.bf16.msra.mxu0 %v2562
        %4076 = vmatprep.subr.bf16.mxu0 %v2571
        %4077 = vmatpush1.bf16.msra.mxu0 %v2570
        %4078 = vmatprep.subr.bf16.mxu0 %v2579
        %4079 = vmatpush1.bf16.msra.mxu0 %v2578
        %4080 = vmatprep.subr.bf16.mxu0 %v2587
        %4081 = vmatpush1.bf16.msra.mxu0 %v2586
        %4082 = vmatprep.subr.bf16.mxu0 %v2595
        %4083 = vmatpush1.bf16.msra.mxu0 %v2594
        %4084 = vmatprep.subr.bf16.mxu0 %v2603
        %4085 = vmatpush1.bf16.msra.mxu0 %v2602
        %4086 = vmatprep.subr.bf16.mxu0 %v2611
        %4087 = vmatpush1.bf16.msra.mxu0 %v2610
        %4088 = vmatprep.subr.bf16.mxu0 %v2619
        %4089 = vmatpush1.bf16.msra.mxu0 %v2618
        %4090 = vmatprep.subr.bf16.mxu0 %v2627
        %4091 = vmatpush1.bf16.msra.mxu0 %v2626
        %4092 = vmatprep.subr.bf16.mxu0 %v2635
        %4093 = vmatpush1.bf16.msra.mxu0 %v2634
        %4094 = vmatprep.subr.bf16.mxu0 %v2643
        %4095 = vmatpush1.bf16.msra.mxu0 %v2642
        %4096 = vmatprep.subr.bf16.mxu0 %v2651
        %4097 = vmatpush1.bf16.msra.mxu0 %v2650
        %4098 = vmatprep.subr.bf16.mxu0 %v2659
        %4099 = vmatpush1.bf16.msra.mxu0 %v2658
        %4100 = vmatprep.subr.bf16.mxu0 %v2667
        %4101 = vmatpush1.bf16.msra.mxu0 %v2666
        %4102 = vmatprep.mubr.bf16.mxu0 %v959
        %4103 = vmatmul.mubr.bf16.gmra.mrb[0].mxu0 %v958
        %v4104 = vpop.f32.mrb[0].mxu0
        %v4105 = vadd.f32 0.0, %v4104
        %v4106 = vpop.f32.mrb[0].mxu0
        %v4107 = vadd.f32 0.0, %v4106
        %v4108 = vpop.f32.mrb[0].mxu0
        %v4109 = vadd.f32 0.0, %v4108
        %v4110 = vpop.f32.mrb[0].mxu0
        %v4111 = vadd.f32 0.0, %v4110
        %4112 = vmatprep.mubr.bf16.mxu0 %v967
        %4113 = vmatmul.mubr.bf16.gmra.mrb[0].mxu0 %v966
        %v4114 = vpop.f32.mrb[0].mxu0
        %v4115 = vadd.f32 0.0, %v4114
        %v4116 = vpop.f32.mrb[0].mxu0
        %v4117 = vadd.f32 0.0, %v4116
        %v4118 = vpop.f32.mrb[0].mxu0
        %v4119 = vadd.f32 0.0, %v4118
        %v4120 = vpop.f32.mrb[0].mxu0
        %v4121 = vadd.f32 0.0, %v4120
        %4122 = vmatprep.mubr.bf16.mxu0 %v975
        %4123 = vmatmul.mubr.bf16.gmra.mrb[0].mxu0 %v974
        %v4124 = vpop.f32.mrb[0].mxu0
        %v4125 = vadd.f32 0.0, %v4124
        %v4126 = vpop.f32.mrb[0].mxu0
        %v4127 = vadd.f32 0.0, %v4126
        %v4128 = vpop.f32.mrb[0].mxu0
        %v4129 = vadd.f32 0.0, %v4128
        %v4130 = vpop.f32.mrb[0].mxu0
        %v4131 = vadd.f32 0.0, %v4130
        %4132 = vdwg.mxu0
        %4133 = vmatprep.subr.bf16.mxu0 %v2675
        %4134 = vmatpush1.bf16.msra.mxu0 %v2674
        %4135 = vmatprep.subr.bf16.mxu0 %v2683
        %4136 = vmatpush1.bf16.msra.mxu0 %v2682
        %4137 = vmatprep.subr.bf16.mxu0 %v2691
        %4138 = vmatpush1.bf16.msra.mxu0 %v2690
        %4139 = vmatprep.subr.bf16.mxu0 %v2699
        %4140 = vmatpush1.bf16.msra.mxu0 %v2698
        %4141 = vmatprep.subr.bf16.mxu0 %v2707
        %4142 = vmatpush1.bf16.msra.mxu0 %v2706
        %4143 = vmatprep.subr.bf16.mxu0 %v2715
        %4144 = vmatpush1.bf16.msra.mxu0 %v2714
        %4145 = vmatprep.subr.bf16.mxu0 %v2723
        %4146 = vmatpush1.bf16.msra.mxu0 %v2722
        %4147 = vmatprep.subr.bf16.mxu0 %v2731
        %4148 = vmatpush1.bf16.msra.mxu0 %v2730
        %4149 = vmatprep.subr.bf16.mxu0 %v2739
        %4150 = vmatpush1.bf16.msra.mxu0 %v2738
        %4151 = vmatprep.subr.bf16.mxu0 %v2747
        %4152 = vmatpush1.bf16.msra.mxu0 %v2746
        %4153 = vmatprep.subr.bf16.mxu0 %v2755
        %4154 = vmatpush1.bf16.msra.mxu0 %v2754
        %4155 = vmatprep.subr.bf16.mxu0 %v2763
        %4156 = vmatpush1.bf16.msra.mxu0 %v2762
        %4157 = vmatprep.subr.bf16.mxu0 %v2771
        %4158 = vmatpush1.bf16.msra.mxu0 %v2770
        %4159 = vmatprep.subr.bf16.mxu0 %v2779
        %4160 = vmatpush1.bf16.msra.mxu0 %v2778
        %4161 = vmatprep.subr.bf16.mxu0 %v2787
        %4162 = vmatpush1.bf16.msra.mxu0 %v2786
        %4163 = vmatprep.subr.bf16.mxu0 %v2795
        %4164 = vmatpush1.bf16.msra.mxu0 %v2794
        %4165 = vmatprep.mubr.bf16.mxu0 %v961
        %4166 = vmatmul.mubr.bf16.gmra.mrb[0].mxu0 %v960
        %v4167 = vpop.f32.mrb[0].mxu0
        %v4168 = vadd.f32 %v4105, %v4167
        %v4169 = vpop.f32.mrb[0].mxu0
        %v4170 = vadd.f32 %v4107, %v4169
        %v4171 = vpop.f32.mrb[0].mxu0
        %v4172 = vadd.f32 %v4109, %v4171
        %v4173 = vpop.f32.mrb[0].mxu0
        %v4174 = vadd.f32 %v4111, %v4173
        %4175 = vmatprep.mubr.bf16.mxu0 %v969
        %4176 = vmatmul.mubr.bf16.gmra.mrb[0].mxu0 %v968
        %v4177 = vpop.f32.mrb[0].mxu0
        %v4178 = vadd.f32 %v4115, %v4177
        %v4179 = vpop.f32.mrb[0].mxu0
        %v4180 = vadd.f32 %v4117, %v4179
        %v4181 = vpop.f32.mrb[0].mxu0
        %v4182 = vadd.f32 %v4119, %v4181
        %v4183 = vpop.f32.mrb[0].mxu0
        %v4184 = vadd.f32 %v4121, %v4183
        %4185 = vmatprep.mubr.bf16.mxu0 %v977
        %4186 = vmatmul.mubr.bf16.gmra.mrb[0].mxu0 %v976
        %v4187 = vpop.f32.mrb[0].mxu0
        %v4188 = vadd.f32 %v4125, %v4187
        %v4189 = vpop.f32.mrb[0].mxu0
        %v4190 = vadd.f32 %v4127, %v4189
        %v4191 = vpop.f32.mrb[0].mxu0
        %v4192 = vadd.f32 %v4129, %v4191
        %v4193 = vpop.f32.mrb[0].mxu0
        %v4194 = vadd.f32 %v4131, %v4193
        %4195 = vdwg.mxu0
        %4196 = vmatprep.subr.bf16.mxu0 %v2803
        %4197 = vmatpush1.bf16.msra.mxu0 %v2802
        %4198 = vmatprep.subr.bf16.mxu0 %v2811
        %4199 = vmatpush1.bf16.msra.mxu0 %v2810
        %4200 = vmatprep.subr.bf16.mxu0 %v2819
        %4201 = vmatpush1.bf16.msra.mxu0 %v2818
        %4202 = vmatprep.subr.bf16.mxu0 %v2827
        %4203 = vmatpush1.bf16.msra.mxu0 %v2826
        %4204 = vmatprep.subr.bf16.mxu0 %v2835
        %4205 = vmatpush1.bf16.msra.mxu0 %v2834
        %4206 = vmatprep.subr.bf16.mxu0 %v2843
        %4207 = vmatpush1.bf16.msra.mxu0 %v2842
        %4208 = vmatprep.subr.bf16.mxu0 %v2851
        %4209 = vmatpush1.bf16.msra.mxu0 %v2850
        %4210 = vmatprep.subr.bf16.mxu0 %v2859
        %4211 = vmatpush1.bf16.msra.mxu0 %v2858
        %4212 = vmatprep.subr.bf16.mxu0 %v2867
        %4213 = vmatpush1.bf16.msra.mxu0 %v2866
        %4214 = vmatprep.subr.bf16.mxu0 %v2875
        %4215 = vmatpush1.bf16.msra.mxu0 %v2874
        %4216 = vmatprep.subr.bf16.mxu0 %v2883
        %4217 = vmatpush1.bf16.msra.mxu0 %v2882
        %4218 = vmatprep.subr.bf16.mxu0 %v2891
        %4219 = vmatpush1.bf16.msra.mxu0 %v2890
        %4220 = vmatprep.subr.bf16.mxu0 %v2899
        %4221 = vmatpush1.bf16.msra.mxu0 %v2898
        %4222 = vmatprep.subr.bf16.mxu0 %v2907
        %4223 = vmatpush1.bf16.msra.mxu0 %v2906
        %4224 = vmatprep.subr.bf16.mxu0 %v2915
        %4225 = vmatpush1.bf16.msra.mxu0 %v2914
        %4226 = vmatprep.subr.bf16.mxu0 %v2923
        %4227 = vmatpush1.bf16.msra.mxu0 %v2922
        %4228 = vmatprep.mubr.bf16.mxu0 %v963
        %4229 = vmatmul.mubr.bf16.gmra.mrb[0].mxu0 %v962
        %v4230 = vpop.f32.mrb[0].mxu0
        %v4231 = vadd.f32 %v4168, %v4230
        %v4232 = vpop.f32.mrb[0].mxu0
        %v4233 = vadd.f32 %v4170, %v4232
        %v4234 = vpop.f32.mrb[0].mxu0
        %v4235 = vadd.f32 %v4172, %v4234
        %v4236 = vpop.f32.mrb[0].mxu0
        %v4237 = vadd.f32 %v4174, %v4236
        %4238 = vmatprep.mubr.bf16.mxu0 %v971
        %4239 = vmatmul.mubr.bf16.gmra.mrb[0].mxu0 %v970
        %v4240 = vpop.f32.mrb[0].mxu0
        %v4241 = vadd.f32 %v4178, %v4240
        %v4242 = vpop.f32.mrb[0].mxu0
        %v4243 = vadd.f32 %v4180, %v4242
        %v4244 = vpop.f32.mrb[0].mxu0
        %v4245 = vadd.f32 %v4182, %v4244
        %v4246 = vpop.f32.mrb[0].mxu0
        %v4247 = vadd.f32 %v4184, %v4246
        %4248 = vmatprep.mubr.bf16.mxu0 %v979
        %4249 = vmatmul.mubr.bf16.gmra.mrb[0].mxu0 %v978
        %v4250 = vpop.f32.mrb[0].mxu0
        %v4251 = vadd.f32 %v4188, %v4250
        %v4252 = vpop.f32.mrb[0].mxu0
        %v4253 = vadd.f32 %v4190, %v4252
        %v4254 = vpop.f32.mrb[0].mxu0
        %v4255 = vadd.f32 %v4192, %v4254
        %v4256 = vpop.f32.mrb[0].mxu0
        %v4257 = vadd.f32 %v4194, %v4256
        %4258 = vdwg.mxu0
        %4259 = vmatprep.subr.bf16.mxu0 %v2931
        %4260 = vmatpush1.bf16.msra.mxu0 %v2930
        %4261 = vmatprep.subr.bf16.mxu0 %v2939
        %4262 = vmatpush1.bf16.msra.mxu0 %v2938
        %4263 = vmatprep.subr.bf16.mxu0 %v2947
        %4264 = vmatpush1.bf16.msra.mxu0 %v2946
        %4265 = vmatprep.subr.bf16.mxu0 %v2955
        %4266 = vmatpush1.bf16.msra.mxu0 %v2954
        %4267 = vmatprep.subr.bf16.mxu0 %v2963
        %4268 = vmatpush1.bf16.msra.mxu0 %v2962
        %4269 = vmatprep.subr.bf16.mxu0 %v2971
        %4270 = vmatpush1.bf16.msra.mxu0 %v2970
        %4271 = vmatprep.subr.bf16.mxu0 %v2979
        %4272 = vmatpush1.bf16.msra.mxu0 %v2978
        %4273 = vmatprep.subr.bf16.mxu0 %v2987
        %4274 = vmatpush1.bf16.msra.mxu0 %v2986
        %4275 = vmatprep.subr.bf16.mxu0 %v2995
        %4276 = vmatpush1.bf16.msra.mxu0 %v2994
        %4277 = vmatprep.subr.bf16.mxu0 %v3003
        %4278 = vmatpush1.bf16.msra.mxu0 %v3002
        %4279 = vmatprep.subr.bf16.mxu0 %v3011
        %4280 = vmatpush1.bf16.msra.mxu0 %v3010
        %4281 = vmatprep.subr.bf16.mxu0 %v3019
        %4282 = vmatpush1.bf16.msra.mxu0 %v3018
        %4283 = vmatprep.subr.bf16.mxu0 %v3027
        %4284 = vmatpush1.bf16.msra.mxu0 %v3026
        %4285 = vmatprep.subr.bf16.mxu0 %v3035
        %4286 = vmatpush1.bf16.msra.mxu0 %v3034
        %4287 = vmatprep.subr.bf16.mxu0 %v3043
        %4288 = vmatpush1.bf16.msra.mxu0 %v3042
        %4289 = vmatprep.subr.bf16.mxu0 %v3051
        %4290 = vmatpush1.bf16.msra.mxu0 %v3050
        %4291 = vmatprep.mubr.bf16.mxu0 %v965
        %4292 = vmatmul.mubr.bf16.gmra.mrb[0].mxu0 %v964
        %v4293 = vpop.f32.mrb[0].mxu0
        %v4294 = vadd.f32 %v4231, %v4293
        %v4295 = vpop.f32.mrb[0].mxu0
        %v4296 = vadd.f32 %v4233, %v4295
        %v4297 = vpop.f32.mrb[0].mxu0
        %v4298 = vadd.f32 %v4235, %v4297
        %v4299 = vpop.f32.mrb[0].mxu0
        %v4300 = vadd.f32 %v4237, %v4299
        %4301 = vmatprep.mubr.bf16.mxu0 %v973
        %4302 = vmatmul.mubr.bf16.gmra.mrb[0].mxu0 %v972
        %v4303 = vpop.f32.mrb[0].mxu0
        %v4304 = vadd.f32 %v4241, %v4303
        %v4305 = vpop.f32.mrb[0].mxu0
        %v4306 = vadd.f32 %v4243, %v4305
        %v4307 = vpop.f32.mrb[0].mxu0
        %v4308 = vadd.f32 %v4245, %v4307
        %v4309 = vpop.f32.mrb[0].mxu0
        %v4310 = vadd.f32 %v4247, %v4309
        %4311 = vmatprep.mubr.bf16.mxu0 %v981
        %4312 = vmatmul.mubr.bf16.gmra.mrb[0].mxu0 %v980
        %v4313 = vpop.f32.mrb[0].mxu0
        %v4314 = vadd.f32 %v4251, %v4313
        %v4315 = vpop.f32.mrb[0].mxu0
        %v4316 = vadd.f32 %v4253, %v4315
        %v4317 = vpop.f32.mrb[0].mxu0
        %v4318 = vadd.f32 %v4255, %v4317
        %v4319 = vpop.f32.mrb[0].mxu0
        %v4320 = vadd.f32 %v4257, %v4319
        %4321 = vdwg.mxu0
        %4322 = vmatprep.subr.bf16.mxu0 %v2549
        %4323 = vmatpush1.bf16.msra.mxu0 %v2548
        %4324 = vmatprep.subr.bf16.mxu0 %v2557
        %4325 = vmatpush1.bf16.msra.mxu0 %v2556
        %4326 = vmatprep.subr.bf16.mxu0 %v2565
        %4327 = vmatpush1.bf16.msra.mxu0 %v2564
        %4328 = vmatprep.subr.bf16.mxu0 %v2573
        %4329 = vmatpush1.bf16.msra.mxu0 %v2572
        %4330 = vmatprep.subr.bf16.mxu0 %v2581
        %4331 = vmatpush1.bf16.msra.mxu0 %v2580
        %4332 = vmatprep.subr.bf16.mxu0 %v2589
        %4333 = vmatpush1.bf16.msra.mxu0 %v2588
        %4334 = vmatprep.subr.bf16.mxu0 %v2597
        %4335 = vmatpush1.bf16.msra.mxu0 %v2596
        %4336 = vmatprep.subr.bf16.mxu0 %v2605
        %4337 = vmatpush1.bf16.msra.mxu0 %v2604
        %4338 = vmatprep.subr.bf16.mxu0 %v2613
        %4339 = vmatpush1.bf16.msra.mxu0 %v2612
        %4340 = vmatprep.subr.bf16.mxu0 %v2621
        %4341 = vmatpush1.bf16.msra.mxu0 %v2620
        %4342 = vmatprep.subr.bf16.mxu0 %v2629
        %4343 = vmatpush1.bf16.msra.mxu0 %v2628
        %4344 = vmatprep.subr.bf16.mxu0 %v2637
        %4345 = vmatpush1.bf16.msra.mxu0 %v2636
        %4346 = vmatprep.subr.bf16.mxu0 %v2645
        %4347 = vmatpush1.bf16.msra.mxu0 %v2644
        %4348 = vmatprep.subr.bf16.mxu0 %v2653
        %4349 = vmatpush1.bf16.msra.mxu0 %v2652
        %4350 = vmatprep.subr.bf16.mxu0 %v2661
        %4351 = vmatpush1.bf16.msra.mxu0 %v2660
        %4352 = vmatprep.subr.bf16.mxu0 %v2669
        %4353 = vmatpush1.bf16.msra.mxu0 %v2668
        %4354 = vmatprep.mubr.bf16.mxu0 %v959
        %4355 = vmatmul.mubr.bf16.gmra.mrb[0].mxu0 %v958
        %v4356 = vpop.f32.mrb[0].mxu0
        %v4357 = vadd.f32 0.0, %v4356
        %v4358 = vpop.f32.mrb[0].mxu0
        %v4359 = vadd.f32 0.0, %v4358
        %v4360 = vpop.f32.mrb[0].mxu0
        %v4361 = vadd.f32 0.0, %v4360
        %v4362 = vpop.f32.mrb[0].mxu0
        %v4363 = vadd.f32 0.0, %v4362
        %4364 = vmatprep.mubr.bf16.mxu0 %v967
        %4365 = vmatmul.mubr.bf16.gmra.mrb[0].mxu0 %v966
        %v4366 = vpop.f32.mrb[0].mxu0
        %v4367 = vadd.f32 0.0, %v4366
        %v4368 = vpop.f32.mrb[0].mxu0
        %v4369 = vadd.f32 0.0, %v4368
        %v4370 = vpop.f32.mrb[0].mxu0
        %v4371 = vadd.f32 0.0, %v4370
        %v4372 = vpop.f32.mrb[0].mxu0
        %v4373 = vadd.f32 0.0, %v4372
        %4374 = vmatprep.mubr.bf16.mxu0 %v975
        %4375 = vmatmul.mubr.bf16.gmra.mrb[0].mxu0 %v974
        %v4376 = vpop.f32.mrb[0].mxu0
        %v4377 = vadd.f32 0.0, %v4376
        %v4378 = vpop.f32.mrb[0].mxu0
        %v4379 = vadd.f32 0.0, %v4378
        %v4380 = vpop.f32.mrb[0].mxu0
        %v4381 = vadd.f32 0.0, %v4380
        %v4382 = vpop.f32.mrb[0].mxu0
        %v4383 = vadd.f32 0.0, %v4382
        %4384 = vdwg.mxu0
        %4385 = vmatprep.subr.bf16.mxu0 %v2677
        %4386 = vmatpush1.bf16.msra.mxu0 %v2676
        %4387 = vmatprep.subr.bf16.mxu0 %v2685
        %4388 = vmatpush1.bf16.msra.mxu0 %v2684
        %4389 = vmatprep.subr.bf16.mxu0 %v2693
        %4390 = vmatpush1.bf16.msra.mxu0 %v2692
        %4391 = vmatprep.subr.bf16.mxu0 %v2701
        %4392 = vmatpush1.bf16.msra.mxu0 %v2700
        %4393 = vmatprep.subr.bf16.mxu0 %v2709
        %4394 = vmatpush1.bf16.msra.mxu0 %v2708
        %4395 = vmatprep.subr.bf16.mxu0 %v2717
        %4396 = vmatpush1.bf16.msra.mxu0 %v2716
        %4397 = vmatprep.subr.bf16.mxu0 %v2725
        %4398 = vmatpush1.bf16.msra.mxu0 %v2724
        %4399 = vmatprep.subr.bf16.mxu0 %v2733
        %4400 = vmatpush1.bf16.msra.mxu0 %v2732
        %4401 = vmatprep.subr.bf16.mxu0 %v2741
        %4402 = vmatpush1.bf16.msra.mxu0 %v2740
        %4403 = vmatprep.subr.bf16.mxu0 %v2749
        %4404 = vmatpush1.bf16.msra.mxu0 %v2748
        %4405 = vmatprep.subr.bf16.mxu0 %v2757
        %4406 = vmatpush1.bf16.msra.mxu0 %v2756
        %4407 = vmatprep.subr.bf16.mxu0 %v2765
        %4408 = vmatpush1.bf16.msra.mxu0 %v2764
        %4409 = vmatprep.subr.bf16.mxu0 %v2773
        %4410 = vmatpush1.bf16.msra.mxu0 %v2772
        %4411 = vmatprep.subr.bf16.mxu0 %v2781
        %4412 = vmatpush1.bf16.msra.mxu0 %v2780
        %4413 = vmatprep.subr.bf16.mxu0 %v2789
        %4414 = vmatpush1.bf16.msra.mxu0 %v2788
        %4415 = vmatprep.subr.bf16.mxu0 %v2797
        %4416 = vmatpush1.bf16.msra.mxu0 %v2796
        %4417 = vmatprep.mubr.bf16.mxu0 %v961
        %4418 = vmatmul.mubr.bf16.gmra.mrb[0].mxu0 %v960
        %v4419 = vpop.f32.mrb[0].mxu0
        %v4420 = vadd.f32 %v4357, %v4419
        %v4421 = vpop.f32.mrb[0].mxu0
        %v4422 = vadd.f32 %v4359, %v4421
        %v4423 = vpop.f32.mrb[0].mxu0
        %v4424 = vadd.f32 %v4361, %v4423
        %v4425 = vpop.f32.mrb[0].mxu0
        %v4426 = vadd.f32 %v4363, %v4425
        %4427 = vmatprep.mubr.bf16.mxu0 %v969
        %4428 = vmatmul.mubr.bf16.gmra.mrb[0].mxu0 %v968
        %v4429 = vpop.f32.mrb[0].mxu0
        %v4430 = vadd.f32 %v4367, %v4429
        %v4431 = vpop.f32.mrb[0].mxu0
        %v4432 = vadd.f32 %v4369, %v4431
        %v4433 = vpop.f32.mrb[0].mxu0
        %v4434 = vadd.f32 %v4371, %v4433
        %v4435 = vpop.f32.mrb[0].mxu0
        %v4436 = vadd.f32 %v4373, %v4435
        %4437 = vmatprep.mubr.bf16.mxu0 %v977
        %4438 = vmatmul.mubr.bf16.gmra.mrb[0].mxu0 %v976
        %v4439 = vpop.f32.mrb[0].mxu0
        %v4440 = vadd.f32 %v4377, %v4439
        %v4441 = vpop.f32.mrb[0].mxu0
        %v4442 = vadd.f32 %v4379, %v4441
        %v4443 = vpop.f32.mrb[0].mxu0
        %v4444 = vadd.f32 %v4381, %v4443
        %v4445 = vpop.f32.mrb[0].mxu0
        %v4446 = vadd.f32 %v4383, %v4445
        %4447 = vdwg.mxu0
        %4448 = vmatprep.subr.bf16.mxu0 %v2805
        %4449 = vmatpush1.bf16.msra.mxu0 %v2804
        %4450 = vmatprep.subr.bf16.mxu0 %v2813
        %4451 = vmatpush1.bf16.msra.mxu0 %v2812
        %4452 = vmatprep.subr.bf16.mxu0 %v2821
        %4453 = vmatpush1.bf16.msra.mxu0 %v2820
        %4454 = vmatprep.subr.bf16.mxu0 %v2829
        %4455 = vmatpush1.bf16.msra.mxu0 %v2828
        %4456 = vmatprep.subr.bf16.mxu0 %v2837
        %4457 = vmatpush1.bf16.msra.mxu0 %v2836
        %4458 = vmatprep.subr.bf16.mxu0 %v2845
        %4459 = vmatpush1.bf16.msra.mxu0 %v2844
        %4460 = vmatprep.subr.bf16.mxu0 %v2853
        %4461 = vmatpush1.bf16.msra.mxu0 %v2852
        %4462 = vmatprep.subr.bf16.mxu0 %v2861
        %4463 = vmatpush1.bf16.msra.mxu0 %v2860
        %4464 = vmatprep.subr.bf16.mxu0 %v2869
        %4465 = vmatpush1.bf16.msra.mxu0 %v2868
        %4466 = vmatprep.subr.bf16.mxu0 %v2877
        %4467 = vmatpush1.bf16.msra.mxu0 %v2876
        %4468 = vmatprep.subr.bf16.mxu0 %v2885
        %4469 = vmatpush1.bf16.msra.mxu0 %v2884
        %4470 = vmatprep.subr.bf16.mxu0 %v2893
        %4471 = vmatpush1.bf16.msra.mxu0 %v2892
        %4472 = vmatprep.subr.bf16.mxu0 %v2901
        %4473 = vmatpush1.bf16.msra.mxu0 %v2900
        %4474 = vmatprep.subr.bf16.mxu0 %v2909
        %4475 = vmatpush1.bf16.msra.mxu0 %v2908
        %4476 = vmatprep.subr.bf16.mxu0 %v2917
        %4477 = vmatpush1.bf16.msra.mxu0 %v2916
        %4478 = vmatprep.subr.bf16.mxu0 %v2925
        %4479 = vmatpush1.bf16.msra.mxu0 %v2924
        %4480 = vmatprep.mubr.bf16.mxu0 %v963
        %4481 = vmatmul.mubr.bf16.gmra.mrb[0].mxu0 %v962
        %v4482 = vpop.f32.mrb[0].mxu0
        %v4483 = vadd.f32 %v4420, %v4482
        %v4484 = vpop.f32.mrb[0].mxu0
        %v4485 = vadd.f32 %v4422, %v4484
        %v4486 = vpop.f32.mrb[0].mxu0
        %v4487 = vadd.f32 %v4424, %v4486
        %v4488 = vpop.f32.mrb[0].mxu0
        %v4489 = vadd.f32 %v4426, %v4488
        %4490 = vmatprep.mubr.bf16.mxu0 %v971
        %4491 = vmatmul.mubr.bf16.gmra.mrb[0].mxu0 %v970
        %v4492 = vpop.f32.mrb[0].mxu0
        %v4493 = vadd.f32 %v4430, %v4492
        %v4494 = vpop.f32.mrb[0].mxu0
        %v4495 = vadd.f32 %v4432, %v4494
        %v4496 = vpop.f32.mrb[0].mxu0
        %v4497 = vadd.f32 %v4434, %v4496
        %v4498 = vpop.f32.mrb[0].mxu0
        %v4499 = vadd.f32 %v4436, %v4498
        %4500 = vmatprep.mubr.bf16.mxu0 %v979
        %4501 = vmatmul.mubr.bf16.gmra.mrb[0].mxu0 %v978
        %v4502 = vpop.f32.mrb[0].mxu0
        %v4503 = vadd.f32 %v4440, %v4502
        %v4504 = vpop.f32.mrb[0].mxu0
        %v4505 = vadd.f32 %v4442, %v4504
        %v4506 = vpop.f32.mrb[0].mxu0
        %v4507 = vadd.f32 %v4444, %v4506
        %v4508 = vpop.f32.mrb[0].mxu0
        %v4509 = vadd.f32 %v4446, %v4508
        %4510 = vdwg.mxu0
        %4511 = vmatprep.subr.bf16.mxu0 %v2933
        %4512 = vmatpush1.bf16.msra.mxu0 %v2932
        %4513 = vmatprep.subr.bf16.mxu0 %v2941
        %4514 = vmatpush1.bf16.msra.mxu0 %v2940
        %4515 = vmatprep.subr.bf16.mxu0 %v2949
        %4516 = vmatpush1.bf16.msra.mxu0 %v2948
        %4517 = vmatprep.subr.bf16.mxu0 %v2957
        %4518 = vmatpush1.bf16.msra.mxu0 %v2956
        %4519 = vmatprep.subr.bf16.mxu0 %v2965
        %4520 = vmatpush1.bf16.msra.mxu0 %v2964
        %4521 = vmatprep.subr.bf16.mxu0 %v2973
        %4522 = vmatpush1.bf16.msra.mxu0 %v2972
        %4523 = vmatprep.subr.bf16.mxu0 %v2981
        %4524 = vmatpush1.bf16.msra.mxu0 %v2980
        %4525 = vmatprep.subr.bf16.mxu0 %v2989
        %4526 = vmatpush1.bf16.msra.mxu0 %v2988
        %4527 = vmatprep.subr.bf16.mxu0 %v2997
        %4528 = vmatpush1.bf16.msra.mxu0 %v2996
        %4529 = vmatprep.subr.bf16.mxu0 %v3005
        %4530 = vmatpush1.bf16.msra.mxu0 %v3004
        %4531 = vmatprep.subr.bf16.mxu0 %v3013
        %4532 = vmatpush1.bf16.msra.mxu0 %v3012
        %4533 = vmatprep.subr.bf16.mxu0 %v3021
        %4534 = vmatpush1.bf16.msra.mxu0 %v3020
        %4535 = vmatprep.subr.bf16.mxu0 %v3029
        %4536 = vmatpush1.bf16.msra.mxu0 %v3028
        %4537 = vmatprep.subr.bf16.mxu0 %v3037
        %4538 = vmatpush1.bf16.msra.mxu0 %v3036
        %4539 = vmatprep.subr.bf16.mxu0 %v3045
        %4540 = vmatpush1.bf16.msra.mxu0 %v3044
        %4541 = vmatprep.subr.bf16.mxu0 %v3053
        %4542 = vmatpush1.bf16.msra.mxu0 %v3052
        %4543 = vmatprep.mubr.bf16.mxu0 %v965
        %4544 = vmatmul.mubr.bf16.gmra.mrb[0].mxu0 %v964
        %v4545 = vpop.f32.mrb[0].mxu0
        %v4546 = vadd.f32 %v4483, %v4545
        %v4547 = vpop.f32.mrb[0].mxu0
        %v4548 = vadd.f32 %v4485, %v4547
        %v4549 = vpop.f32.mrb[0].mxu0
        %v4550 = vadd.f32 %v4487, %v4549
        %v4551 = vpop.f32.mrb[0].mxu0
        %v4552 = vadd.f32 %v4489, %v4551
        %4553 = vmatprep.mubr.bf16.mxu0 %v973
        %4554 = vmatmul.mubr.bf16.gmra.mrb[0].mxu0 %v972
        %v4555 = vpop.f32.mrb[0].mxu0
        %v4556 = vadd.f32 %v4493, %v4555
        %v4557 = vpop.f32.mrb[0].mxu0
        %v4558 = vadd.f32 %v4495, %v4557
        %v4559 = vpop.f32.mrb[0].mxu0
        %v4560 = vadd.f32 %v4497, %v4559
        %v4561 = vpop.f32.mrb[0].mxu0
        %v4562 = vadd.f32 %v4499, %v4561
        %4563 = vmatprep.mubr.bf16.mxu0 %v981
        %4564 = vmatmul.mubr.bf16.gmra.mrb[0].mxu0 %v980
        %v4565 = vpop.f32.mrb[0].mxu0
        %v4566 = vadd.f32 %v4503, %v4565
        %v4567 = vpop.f32.mrb[0].mxu0
        %v4568 = vadd.f32 %v4505, %v4567
        %v4569 = vpop.f32.mrb[0].mxu0
        %v4570 = vadd.f32 %v4507, %v4569
        %v4571 = vpop.f32.mrb[0].mxu0
        %v4572 = vadd.f32 %v4509, %v4571
        %4573 = vdwg.mxu0
        %v4574 = vadd.f32 %v302, %v3790
        %v4575 = vadd.f32 %v303, %v3792
        %v4576 = vadd.f32 %v304, %v4042
        %v4577 = vadd.f32 %v305, %v4044
        %v4578 = vadd.f32 %v306, %v4294
        %v4579 = vadd.f32 %v307, %v4296
        %v4580 = vadd.f32 %v308, %v4546
        %v4581 = vadd.f32 %v309, %v4548
        %v4582 = vadd.f32 %v310, %v3794
        %v4583 = vadd.f32 %v311, %v3796
        %v4584 = vadd.f32 %v312, %v4046
        %v4585 = vadd.f32 %v313, %v4048
        %v4586 = vadd.f32 %v314, %v4298
        %v4587 = vadd.f32 %v315, %v4300
        %v4588 = vadd.f32 %v316, %v4550
        %v4589 = vadd.f32 %v317, %v4552
        %v4590 = vadd.f32 %v318, %v3800
        %v4591 = vadd.f32 %v319, %v3802
        %v4592 = vadd.f32 %v320, %v4052
        %v4593 = vadd.f32 %v321, %v4054
        %v4594 = vadd.f32 %v322, %v4304
        %v4595 = vadd.f32 %v323, %v4306
        %v4596 = vadd.f32 %v324, %v4556
        %v4597 = vadd.f32 %v325, %v4558
        %v4598 = vadd.f32 %v326, %v3804
        %v4599 = vadd.f32 %v327, %v3806
        %v4600 = vadd.f32 %v328, %v4056
        %v4601 = vadd.f32 %v329, %v4058
        %v4602 = vadd.f32 %v330, %v4308
        %v4603 = vadd.f32 %v331, %v4310
        %v4604 = vadd.f32 %v332, %v4560
        %v4605 = vadd.f32 %v333, %v4562
        %v4606 = vadd.f32 %v334, %v3810
        %v4607 = vadd.f32 %v335, %v3812
        %v4608 = vadd.f32 %v336, %v4062
        %v4609 = vadd.f32 %v337, %v4064
        %v4610 = vadd.f32 %v338, %v4314
        %v4611 = vadd.f32 %v339, %v4316
        %v4612 = vadd.f32 %v340, %v4566
        %v4613 = vadd.f32 %v341, %v4568
        %v4614 = vadd.f32 %v342, %v3814
        %v4615 = vadd.f32 %v343, %v3816
        %v4616 = vadd.f32 %v344, %v4066
        %v4617 = vadd.f32 %v345, %v4068
        %v4618 = vadd.f32 %v346, %v4318
        %v4619 = vadd.f32 %v347, %v4320
        %v4620 = vadd.f32 %v348, %v4570
        %v4621 = vadd.f32 %v349, %v4572
        %4622 = vst [vmem:[#allocation2] sm:$0xff] %v4574
        %4623 = vst [vmem:[#allocation2 + $0x8] sm:$0xff] %v4575
        %4624 = vst [vmem:[#allocation2 + $0x10] sm:$0xff] %v4576
        %4625 = vst [vmem:[#allocation2 + $0x18] sm:$0xff] %v4577
        %4626 = vst [vmem:[#allocation2 + $0x20] sm:$0xff] %v4578
        %4627 = vst [vmem:[#allocation2 + $0x28] sm:$0xff] %v4579
        %4628 = vst [vmem:[#allocation2 + $0x30] sm:$0xff] %v4580
        %4629 = vst [vmem:[#allocation2 + $0x38] sm:$0xff] %v4581
        %4630 = vst [vmem:[#allocation2 + $0x40] sm:$0xff] %v4582
        %4631 = vst [vmem:[#allocation2 + $0x48] sm:$0xff] %v4583
        %4632 = vst [vmem:[#allocation2 + $0x50] sm:$0xff] %v4584
        %4633 = vst [vmem:[#allocation2 + $0x58] sm:$0xff] %v4585
        %4634 = vst [vmem:[#allocation2 + $0x60] sm:$0xff] %v4586
        %4635 = vst [vmem:[#allocation2 + $0x68] sm:$0xff] %v4587
        %4636 = vst [vmem:[#allocation2 + $0x70] sm:$0xff] %v4588
        %4637 = vst [vmem:[#allocation2 + $0x78] sm:$0xff] %v4589
        %4638 = vst [vmem:[#allocation2 + $0x80] sm:$0xff] %v4590
        %4639 = vst [vmem:[#allocation2 + $0x88] sm:$0xff] %v4591
        %4640 = vst [vmem:[#allocation2 + $0x90] sm:$0xff] %v4592
        %4641 = vst [vmem:[#allocation2 + $0x98] sm:$0xff] %v4593
        %4642 = vst [vmem:[#allocation2 + $0xa0] sm:$0xff] %v4594
        %4643 = vst [vmem:[#allocation2 + $0xa8] sm:$0xff] %v4595
        %4644 = vst [vmem:[#allocation2 + $0xb0] sm:$0xff] %v4596
        %4645 = vst [vmem:[#allocation2 + $0xb8] sm:$0xff] %v4597
        %4646 = vst [vmem:[#allocation2 + $0xc0] sm:$0xff] %v4598
        %4647 = vst [vmem:[#allocation2 + $0xc8] sm:$0xff] %v4599
        %4648 = vst [vmem:[#allocation2 + $0xd0] sm:$0xff] %v4600
        %4649 = vst [vmem:[#allocation2 + $0xd8] sm:$0xff] %v4601
        %4650 = vst [vmem:[#allocation2 + $0xe0] sm:$0xff] %v4602
        %4651 = vst [vmem:[#allocation2 + $0xe8] sm:$0xff] %v4603
        %4652 = vst [vmem:[#allocation2 + $0xf0] sm:$0xff] %v4604
        %4653 = vst [vmem:[#allocation2 + $0xf8] sm:$0xff] %v4605
        %4654 = vst [vmem:[#allocation2 + $0x100] sm:$0xff] %v4606
        %4655 = vst [vmem:[#allocation2 + $0x108] sm:$0xff] %v4607
        %4656 = vst [vmem:[#allocation2 + $0x110] sm:$0xff] %v4608
        %4657 = vst [vmem:[#allocation2 + $0x118] sm:$0xff] %v4609
        %4658 = vst [vmem:[#allocation2 + $0x120] sm:$0xff] %v4610
        %4659 = vst [vmem:[#allocation2 + $0x128] sm:$0xff] %v4611
        %4660 = vst [vmem:[#allocation2 + $0x130] sm:$0xff] %v4612
        %4661 = vst [vmem:[#allocation2 + $0x138] sm:$0xff] %v4613
        %4662 = vst [vmem:[#allocation2 + $0x140] sm:$0xff] %v4614
        %4663 = vst [vmem:[#allocation2 + $0x148] sm:$0xff] %v4615
        %4664 = vst [vmem:[#allocation2 + $0x150] sm:$0xff] %v4616
        %4665 = vst [vmem:[#allocation2 + $0x158] sm:$0xff] %v4617
        %4666 = vst [vmem:[#allocation2 + $0x160] sm:$0xff] %v4618
        %4667 = vst [vmem:[#allocation2 + $0x168] sm:$0xff] %v4619
        %4668 = vst [vmem:[#allocation2 + $0x170] sm:$0xff] %v4620
        %4669 = vst [vmem:[#allocation2 + $0x178] sm:$0xff] %v4621
        %p4670 = scmp.eq.s32.totalorder %s23, 4
        // Predicated region
        $region45: #{discriminator_p_forward.10} parent=31 // pred_check
          %p4671 = pneg %p4670
        $region46: #{discriminator_p_forward.10} parent=31 // pred_check_branch
          %4673 = sbr.rel (%p4671) target = $region48
        $region47: #{discriminator_p_forward.10} parent=31 // pred_region
          %v4674 = vld [vmem:[#allocation2] sm:$0xff]
          %v4675 = vld [vmem:[#allocation2 + $0x8] sm:$0xff]
          %v4676 = vld [vmem:[#allocation2 + $0x10] sm:$0xff]
          %v4677 = vld [vmem:[#allocation2 + $0x18] sm:$0xff]
          %v4678 = vld [vmem:[#allocation2 + $0x20] sm:$0xff]
          %v4679 = vld [vmem:[#allocation2 + $0x28] sm:$0xff]
          %v4680 = vld [vmem:[#allocation2 + $0x30] sm:$0xff]
          %v4681 = vld [vmem:[#allocation2 + $0x38] sm:$0xff]
          %v4682 = vld [vmem:[#allocation2 + $0x40] sm:$0xff]
          %v4683 = vld [vmem:[#allocation2 + $0x48] sm:$0xff]
          %v4684 = vld [vmem:[#allocation2 + $0x50] sm:$0xff]
          %v4685 = vld [vmem:[#allocation2 + $0x58] sm:$0xff]
          %v4686 = vld [vmem:[#allocation2 + $0x60] sm:$0xff]
          %v4687 = vld [vmem:[#allocation2 + $0x68] sm:$0xff]
          %v4688 = vld [vmem:[#allocation2 + $0x70] sm:$0xff]
          %v4689 = vld [vmem:[#allocation2 + $0x78] sm:$0xff]
          %v4690 = vld [vmem:[#allocation2 + $0x80] sm:$0xff]
          %v4691 = vld [vmem:[#allocation2 + $0x88] sm:$0xff]
          %v4692 = vld [vmem:[#allocation2 + $0x90] sm:$0xff]
          %v4693 = vld [vmem:[#allocation2 + $0x98] sm:$0xff]
          %v4694 = vld [vmem:[#allocation2 + $0xa0] sm:$0xff]
          %v4695 = vld [vmem:[#allocation2 + $0xa8] sm:$0xff]
          %v4696 = vld [vmem:[#allocation2 + $0xb0] sm:$0xff]
          %v4697 = vld [vmem:[#allocation2 + $0xb8] sm:$0xff]
          %v4698 = vld [vmem:[#allocation2 + $0xc0] sm:$0xff]
          %v4699 = vld [vmem:[#allocation2 + $0xc8] sm:$0xff]
          %v4700 = vld [vmem:[#allocation2 + $0xd0] sm:$0xff]
          %v4701 = vld [vmem:[#allocation2 + $0xd8] sm:$0xff]
          %v4702 = vld [vmem:[#allocation2 + $0xe0] sm:$0xff]
          %v4703 = vld [vmem:[#allocation2 + $0xe8] sm:$0xff]
          %v4704 = vld [vmem:[#allocation2 + $0xf0] sm:$0xff]
          %v4705 = vld [vmem:[#allocation2 + $0xf8] sm:$0xff]
          %v4706 = vld [vmem:[#allocation2 + $0x100] sm:$0xff]
          %v4707 = vld [vmem:[#allocation2 + $0x108] sm:$0xff]
          %v4708 = vld [vmem:[#allocation2 + $0x110] sm:$0xff]
          %v4709 = vld [vmem:[#allocation2 + $0x118] sm:$0xff]
          %v4710 = vld [vmem:[#allocation2 + $0x120] sm:$0xff]
          %v4711 = vld [vmem:[#allocation2 + $0x128] sm:$0xff]
          %v4712 = vld [vmem:[#allocation2 + $0x130] sm:$0xff]
          %v4713 = vld [vmem:[#allocation2 + $0x138] sm:$0xff]
          %v4714 = vld [vmem:[#allocation2 + $0x140] sm:$0xff]
          %v4715 = vld [vmem:[#allocation2 + $0x148] sm:$0xff]
          %v4716 = vld [vmem:[#allocation2 + $0x150] sm:$0xff]
          %v4717 = vld [vmem:[#allocation2 + $0x158] sm:$0xff]
          %v4718 = vld [vmem:[#allocation2 + $0x160] sm:$0xff]
          %v4719 = vld [vmem:[#allocation2 + $0x168] sm:$0xff]
          %v4720 = vld [vmem:[#allocation2 + $0x170] sm:$0xff]
          %v4721 = vld [vmem:[#allocation2 + $0x178] sm:$0xff]
          %v4722 = vld [vmem:[#allocation5] sm:$0xff]
          %v4724 = vlaneseq
          %v4725 = vshrl.u32 %v4724, 7
          %v4726 = vsub.s32 0, %v4725
          %v4727 = vrot.slane %v4722, %v4726
          %v4728 = vlaneseq
          %v4729 = vshrl.u32 %v4728, 7
          %v4730 = vsub.s32 1, %v4729
          %v4731 = vrot.slane %v4722, %v4730
          %v4732 = vlaneseq
          %v4733 = vshrl.u32 %v4732, 7
          %v4734 = vsub.s32 2, %v4733
          %v4735 = vrot.slane %v4722, %v4734
          %v4736 = vlaneseq
          %v4737 = vshrl.u32 %v4736, 7
          %v4738 = vsub.s32 3, %v4737
          %v4739 = vrot.slane %v4722, %v4738
          %v4740 = vlaneseq
          %v4741 = vshrl.u32 %v4740, 7
          %v4742 = vsub.s32 4, %v4741
          %v4743 = vrot.slane %v4722, %v4742
          %v4744 = vlaneseq
          %v4745 = vshrl.u32 %v4744, 7
          %v4746 = vsub.s32 5, %v4745
          %v4747 = vrot.slane %v4722, %v4746
          %v4748 = vlaneseq
          %v4749 = vshrl.u32 %v4748, 7
          %v4750 = vsub.s32 6, %v4749
          %v4751 = vrot.slane %v4722, %v4750
          %v4752 = vlaneseq
          %v4753 = vshrl.u32 %v4752, 7
          %v4754 = vsub.s32 7, %v4753
          %v4755 = vrot.slane %v4722, %v4754
          %v4764 = vadd.f32 %v4674, %v4727
          %v4765 = vadd.f32 %v4675, %v4731
          %v4766 = vadd.f32 %v4676, %v4735
          %v4767 = vadd.f32 %v4677, %v4739
          %v4768 = vadd.f32 %v4678, %v4743
          %v4769 = vadd.f32 %v4679, %v4747
          %v4770 = vadd.f32 %v4680, %v4751
          %v4771 = vadd.f32 %v4681, %v4755
          %v4772 = vadd.f32 %v4682, %v4727
          %v4773 = vadd.f32 %v4683, %v4731
          %v4774 = vadd.f32 %v4684, %v4735
          %v4775 = vadd.f32 %v4685, %v4739
          %v4776 = vadd.f32 %v4686, %v4743
          %v4777 = vadd.f32 %v4687, %v4747
          %v4778 = vadd.f32 %v4688, %v4751
          %v4779 = vadd.f32 %v4689, %v4755
          %v4780 = vadd.f32 %v4690, %v4727
          %v4781 = vadd.f32 %v4691, %v4731
          %v4782 = vadd.f32 %v4692, %v4735
          %v4783 = vadd.f32 %v4693, %v4739
          %v4784 = vadd.f32 %v4694, %v4743
          %v4785 = vadd.f32 %v4695, %v4747
          %v4786 = vadd.f32 %v4696, %v4751
          %v4787 = vadd.f32 %v4697, %v4755
          %v4788 = vadd.f32 %v4698, %v4727
          %v4789 = vadd.f32 %v4699, %v4731
          %v4790 = vadd.f32 %v4700, %v4735
          %v4791 = vadd.f32 %v4701, %v4739
          %v4792 = vadd.f32 %v4702, %v4743
          %v4793 = vadd.f32 %v4703, %v4747
          %v4794 = vadd.f32 %v4704, %v4751
          %v4795 = vadd.f32 %v4705, %v4755
          %v4796 = vadd.f32 %v4706, %v4727
          %v4797 = vadd.f32 %v4707, %v4731
          %v4798 = vadd.f32 %v4708, %v4735
          %v4799 = vadd.f32 %v4709, %v4739
          %v4800 = vadd.f32 %v4710, %v4743
          %v4801 = vadd.f32 %v4711, %v4747
          %v4802 = vadd.f32 %v4712, %v4751
          %v4803 = vadd.f32 %v4713, %v4755
          %v4804 = vadd.f32 %v4714, %v4727
          %v4805 = vadd.f32 %v4715, %v4731
          %v4806 = vadd.f32 %v4716, %v4735
          %v4807 = vadd.f32 %v4717, %v4739
          %v4808 = vadd.f32 %v4718, %v4743
          %v4809 = vadd.f32 %v4719, %v4747
          %v4810 = vadd.f32 %v4720, %v4751
          %v4811 = vadd.f32 %v4721, %v4755
          %vm4812 = vcmp.ge.f32.partialorder %v4764, 0.0
          %vm4813 = vcmp.ge.f32.partialorder %v4765, 0.0
          %vm4814 = vcmp.ge.f32.partialorder %v4766, 0.0
          %vm4815 = vcmp.ge.f32.partialorder %v4767, 0.0
          %vm4816 = vcmp.ge.f32.partialorder %v4768, 0.0
          %vm4817 = vcmp.ge.f32.partialorder %v4769, 0.0
          %vm4818 = vcmp.ge.f32.partialorder %v4770, 0.0
          %vm4819 = vcmp.ge.f32.partialorder %v4771, 0.0
          %vm4820 = vcmp.ge.f32.partialorder %v4772, 0.0
          %vm4821 = vcmp.ge.f32.partialorder %v4773, 0.0
          %vm4822 = vcmp.ge.f32.partialorder %v4774, 0.0
          %vm4823 = vcmp.ge.f32.partialorder %v4775, 0.0
          %vm4824 = vcmp.ge.f32.partialorder %v4776, 0.0
          %vm4825 = vcmp.ge.f32.partialorder %v4777, 0.0
          %vm4826 = vcmp.ge.f32.partialorder %v4778, 0.0
          %vm4827 = vcmp.ge.f32.partialorder %v4779, 0.0
          %vm4828 = vcmp.ge.f32.partialorder %v4780, 0.0
          %vm4829 = vcmp.ge.f32.partialorder %v4781, 0.0
          %vm4830 = vcmp.ge.f32.partialorder %v4782, 0.0
          %vm4831 = vcmp.ge.f32.partialorder %v4783, 0.0
          %vm4832 = vcmp.ge.f32.partialorder %v4784, 0.0
          %vm4833 = vcmp.ge.f32.partialorder %v4785, 0.0
          %vm4834 = vcmp.ge.f32.partialorder %v4786, 0.0
          %vm4835 = vcmp.ge.f32.partialorder %v4787, 0.0
          %vm4836 = vcmp.ge.f32.partialorder %v4788, 0.0
          %vm4837 = vcmp.ge.f32.partialorder %v4789, 0.0
          %vm4838 = vcmp.ge.f32.partialorder %v4790, 0.0
          %vm4839 = vcmp.ge.f32.partialorder %v4791, 0.0
          %vm4840 = vcmp.ge.f32.partialorder %v4792, 0.0
          %vm4841 = vcmp.ge.f32.partialorder %v4793, 0.0
          %vm4842 = vcmp.ge.f32.partialorder %v4794, 0.0
          %vm4843 = vcmp.ge.f32.partialorder %v4795, 0.0
          %vm4844 = vcmp.ge.f32.partialorder %v4796, 0.0
          %vm4845 = vcmp.ge.f32.partialorder %v4797, 0.0
          %vm4846 = vcmp.ge.f32.partialorder %v4798, 0.0
          %vm4847 = vcmp.ge.f32.partialorder %v4799, 0.0
          %vm4848 = vcmp.ge.f32.partialorder %v4800, 0.0
          %vm4849 = vcmp.ge.f32.partialorder %v4801, 0.0
          %vm4850 = vcmp.ge.f32.partialorder %v4802, 0.0
          %vm4851 = vcmp.ge.f32.partialorder %v4803, 0.0
          %vm4852 = vcmp.ge.f32.partialorder %v4804, 0.0
          %vm4853 = vcmp.ge.f32.partialorder %v4805, 0.0
          %vm4854 = vcmp.ge.f32.partialorder %v4806, 0.0
          %vm4855 = vcmp.ge.f32.partialorder %v4807, 0.0
          %vm4856 = vcmp.ge.f32.partialorder %v4808, 0.0
          %vm4857 = vcmp.ge.f32.partialorder %v4809, 0.0
          %vm4858 = vcmp.ge.f32.partialorder %v4810, 0.0
          %vm4859 = vcmp.ge.f32.partialorder %v4811, 0.0
          %v4860 = vmul.f32 %v4764, 0.1
          %v4861 = vmul.f32 %v4765, 0.1
          %v4862 = vmul.f32 %v4766, 0.1
          %v4863 = vmul.f32 %v4767, 0.1
          %v4864 = vmul.f32 %v4768, 0.1
          %v4865 = vmul.f32 %v4769, 0.1
          %v4866 = vmul.f32 %v4770, 0.1
          %v4867 = vmul.f32 %v4771, 0.1
          %v4868 = vmul.f32 %v4772, 0.1
          %v4869 = vmul.f32 %v4773, 0.1
          %v4870 = vmul.f32 %v4774, 0.1
          %v4871 = vmul.f32 %v4775, 0.1
          %v4872 = vmul.f32 %v4776, 0.1
          %v4873 = vmul.f32 %v4777, 0.1
          %v4874 = vmul.f32 %v4778, 0.1
          %v4875 = vmul.f32 %v4779, 0.1
          %v4876 = vmul.f32 %v4780, 0.1
          %v4877 = vmul.f32 %v4781, 0.1
          %v4878 = vmul.f32 %v4782, 0.1
          %v4879 = vmul.f32 %v4783, 0.1
          %v4880 = vmul.f32 %v4784, 0.1
          %v4881 = vmul.f32 %v4785, 0.1
          %v4882 = vmul.f32 %v4786, 0.1
          %v4883 = vmul.f32 %v4787, 0.1
          %v4884 = vmul.f32 %v4788, 0.1
          %v4885 = vmul.f32 %v4789, 0.1
          %v4886 = vmul.f32 %v4790, 0.1
          %v4887 = vmul.f32 %v4791, 0.1
          %v4888 = vmul.f32 %v4792, 0.1
          %v4889 = vmul.f32 %v4793, 0.1
          %v4890 = vmul.f32 %v4794, 0.1
          %v4891 = vmul.f32 %v4795, 0.1
          %v4892 = vmul.f32 %v4796, 0.1
          %v4893 = vmul.f32 %v4797, 0.1
          %v4894 = vmul.f32 %v4798, 0.1
          %v4895 = vmul.f32 %v4799, 0.1
          %v4896 = vmul.f32 %v4800, 0.1
          %v4897 = vmul.f32 %v4801, 0.1
          %v4898 = vmul.f32 %v4802, 0.1
          %v4899 = vmul.f32 %v4803, 0.1
          %v4900 = vmul.f32 %v4804, 0.1
          %v4901 = vmul.f32 %v4805, 0.1
          %v4902 = vmul.f32 %v4806, 0.1
          %v4903 = vmul.f32 %v4807, 0.1
          %v4904 = vmul.f32 %v4808, 0.1
          %v4905 = vmul.f32 %v4809, 0.1
          %v4906 = vmul.f32 %v4810, 0.1
          %v4907 = vmul.f32 %v4811, 0.1
          %v4908 = vsel %vm4812, %v4764, %v4860
          %v4909 = vsel %vm4813, %v4765, %v4861
          %v4910 = vsel %vm4814, %v4766, %v4862
          %v4911 = vsel %vm4815, %v4767, %v4863
          %v4912 = vsel %vm4816, %v4768, %v4864
          %v4913 = vsel %vm4817, %v4769, %v4865
          %v4914 = vsel %vm4818, %v4770, %v4866
          %v4915 = vsel %vm4819, %v4771, %v4867
          %v4916 = vsel %vm4820, %v4772, %v4868
          %v4917 = vsel %vm4821, %v4773, %v4869
          %v4918 = vsel %vm4822, %v4774, %v4870
          %v4919 = vsel %vm4823, %v4775, %v4871
          %v4920 = vsel %vm4824, %v4776, %v4872
          %v4921 = vsel %vm4825, %v4777, %v4873
          %v4922 = vsel %vm4826, %v4778, %v4874
          %v4923 = vsel %vm4827, %v4779, %v4875
          %v4924 = vsel %vm4828, %v4780, %v4876
          %v4925 = vsel %vm4829, %v4781, %v4877
          %v4926 = vsel %vm4830, %v4782, %v4878
          %v4927 = vsel %vm4831, %v4783, %v4879
          %v4928 = vsel %vm4832, %v4784, %v4880
          %v4929 = vsel %vm4833, %v4785, %v4881
          %v4930 = vsel %vm4834, %v4786, %v4882
          %v4931 = vsel %vm4835, %v4787, %v4883
          %v4932 = vsel %vm4836, %v4788, %v4884
          %v4933 = vsel %vm4837, %v4789, %v4885
          %v4934 = vsel %vm4838, %v4790, %v4886
          %v4935 = vsel %vm4839, %v4791, %v4887
          %v4936 = vsel %vm4840, %v4792, %v4888
          %v4937 = vsel %vm4841, %v4793, %v4889
          %v4938 = vsel %vm4842, %v4794, %v4890
          %v4939 = vsel %vm4843, %v4795, %v4891
          %v4940 = vsel %vm4844, %v4796, %v4892
          %v4941 = vsel %vm4845, %v4797, %v4893
          %v4942 = vsel %vm4846, %v4798, %v4894
          %v4943 = vsel %vm4847, %v4799, %v4895
          %v4944 = vsel %vm4848, %v4800, %v4896
          %v4945 = vsel %vm4849, %v4801, %v4897
          %v4946 = vsel %vm4850, %v4802, %v4898
          %v4947 = vsel %vm4851, %v4803, %v4899
          %v4948 = vsel %vm4852, %v4804, %v4900
          %v4949 = vsel %vm4853, %v4805, %v4901
          %v4950 = vsel %vm4854, %v4806, %v4902
          %v4951 = vsel %vm4855, %v4807, %v4903
          %v4952 = vsel %vm4856, %v4808, %v4904
          %v4953 = vsel %vm4857, %v4809, %v4905
          %v4954 = vsel %vm4858, %v4810, %v4906
          %v4955 = vsel %vm4859, %v4811, %v4907
          %v4956 = vpack.c.bf16 %v4908, %v4908
          %v4957 = vpack.c.bf16 %v4909, %v4909
          %v4958 = vpack.c.bf16 %v4910, %v4910
          %v4959 = vpack.c.bf16 %v4911, %v4911
          %v4960 = vpack.c.bf16 %v4912, %v4912
          %v4961 = vpack.c.bf16 %v4913, %v4913
          %v4962 = vpack.c.bf16 %v4914, %v4914
          %v4963 = vpack.c.bf16 %v4915, %v4915
          %v4964 = vpack.c.bf16 %v4916, %v4916
          %v4965 = vpack.c.bf16 %v4917, %v4917
          %v4966 = vpack.c.bf16 %v4918, %v4918
          %v4967 = vpack.c.bf16 %v4919, %v4919
          %v4968 = vpack.c.bf16 %v4920, %v4920
          %v4969 = vpack.c.bf16 %v4921, %v4921
          %v4970 = vpack.c.bf16 %v4922, %v4922
          %v4971 = vpack.c.bf16 %v4923, %v4923
          %v4972 = vpack.c.bf16 %v4924, %v4924
          %v4973 = vpack.c.bf16 %v4925, %v4925
          %v4974 = vpack.c.bf16 %v4926, %v4926
          %v4975 = vpack.c.bf16 %v4927, %v4927
          %v4976 = vpack.c.bf16 %v4928, %v4928
          %v4977 = vpack.c.bf16 %v4929, %v4929
          %v4978 = vpack.c.bf16 %v4930, %v4930
          %v4979 = vpack.c.bf16 %v4931, %v4931
          %v4980 = vpack.c.bf16 %v4932, %v4932
          %v4981 = vpack.c.bf16 %v4933, %v4933
          %v4982 = vpack.c.bf16 %v4934, %v4934
          %v4983 = vpack.c.bf16 %v4935, %v4935
          %v4984 = vpack.c.bf16 %v4936, %v4936
          %v4985 = vpack.c.bf16 %v4937, %v4937
          %v4986 = vpack.c.bf16 %v4938, %v4938
          %v4987 = vpack.c.bf16 %v4939, %v4939
          %v4988 = vpack.c.bf16 %v4940, %v4940
          %v4989 = vpack.c.bf16 %v4941, %v4941
          %v4990 = vpack.c.bf16 %v4942, %v4942
          %v4991 = vpack.c.bf16 %v4943, %v4943
          %v4992 = vpack.c.bf16 %v4944, %v4944
          %v4993 = vpack.c.bf16 %v4945, %v4945
          %v4994 = vpack.c.bf16 %v4946, %v4946
          %v4995 = vpack.c.bf16 %v4947, %v4947
          %v4996 = vpack.c.bf16 %v4948, %v4948
          %v4997 = vpack.c.bf16 %v4949, %v4949
          %v4998 = vpack.c.bf16 %v4950, %v4950
          %v4999 = vpack.c.bf16 %v4951, %v4951
          %v5000 = vpack.c.bf16 %v4952, %v4952
          %v5001 = vpack.c.bf16 %v4953, %v4953
          %v5002 = vpack.c.bf16 %v4954, %v4954
          %v5003 = vpack.c.bf16 %v4955, %v4955
          %v5052 = vunpack.c.l.b16 %v4956
          %v5053 = vunpack.c.l.b16 %v4957
          %v5054 = vunpack.c.l.b16 %v4958
          %v5055 = vunpack.c.l.b16 %v4959
          %v5056 = vunpack.c.l.b16 %v4960
          %v5057 = vunpack.c.l.b16 %v4961
          %v5058 = vunpack.c.l.b16 %v4962
          %v5059 = vunpack.c.l.b16 %v4963
          %v5060 = vunpack.c.l.b16 %v4964
          %v5061 = vunpack.c.l.b16 %v4965
          %v5062 = vunpack.c.l.b16 %v4966
          %v5063 = vunpack.c.l.b16 %v4967
          %v5064 = vunpack.c.l.b16 %v4968
          %v5065 = vunpack.c.l.b16 %v4969
          %v5066 = vunpack.c.l.b16 %v4970
          %v5067 = vunpack.c.l.b16 %v4971
          %v5068 = vunpack.c.l.b16 %v4972
          %v5069 = vunpack.c.l.b16 %v4973
          %v5070 = vunpack.c.l.b16 %v4974
          %v5071 = vunpack.c.l.b16 %v4975
          %v5072 = vunpack.c.l.b16 %v4976
          %v5073 = vunpack.c.l.b16 %v4977
          %v5074 = vunpack.c.l.b16 %v4978
          %v5075 = vunpack.c.l.b16 %v4979
          %v5076 = vunpack.c.l.b16 %v4980
          %v5077 = vunpack.c.l.b16 %v4981
          %v5078 = vunpack.c.l.b16 %v4982
          %v5079 = vunpack.c.l.b16 %v4983
          %v5080 = vunpack.c.l.b16 %v4984
          %v5081 = vunpack.c.l.b16 %v4985
          %v5082 = vunpack.c.l.b16 %v4986
          %v5083 = vunpack.c.l.b16 %v4987
          %v5084 = vunpack.c.l.b16 %v4988
          %v5085 = vunpack.c.l.b16 %v4989
          %v5086 = vunpack.c.l.b16 %v4990
          %v5087 = vunpack.c.l.b16 %v4991
          %v5088 = vunpack.c.l.b16 %v4992
          %v5089 = vunpack.c.l.b16 %v4993
          %v5090 = vunpack.c.l.b16 %v4994
          %v5091 = vunpack.c.l.b16 %v4995
          %v5092 = vunpack.c.l.b16 %v4996
          %v5093 = vunpack.c.l.b16 %v4997
          %v5094 = vunpack.c.l.b16 %v4998
          %v5095 = vunpack.c.l.b16 %v4999
          %v5096 = vunpack.c.l.b16 %v5000
          %v5097 = vunpack.c.l.b16 %v5001
          %v5098 = vunpack.c.l.b16 %v5002
          %v5099 = vunpack.c.l.b16 %v5003
          %v5100 = vpack.c.b16 %v5053, %v5052
          %v5101 = vpack.c.b16 %v5055, %v5054
          %v5102 = vpack.c.b16 %v5057, %v5056
          %v5103 = vpack.c.b16 %v5059, %v5058
          %v5104 = vpack.c.b16 %v5061, %v5060
          %v5105 = vpack.c.b16 %v5063, %v5062
          %v5106 = vpack.c.b16 %v5065, %v5064
          %v5107 = vpack.c.b16 %v5067, %v5066
          %v5108 = vpack.c.b16 %v5069, %v5068
          %v5109 = vpack.c.b16 %v5071, %v5070
          %v5110 = vpack.c.b16 %v5073, %v5072
          %v5111 = vpack.c.b16 %v5075, %v5074
          %v5112 = vpack.c.b16 %v5077, %v5076
          %v5113 = vpack.c.b16 %v5079, %v5078
          %v5114 = vpack.c.b16 %v5081, %v5080
          %v5115 = vpack.c.b16 %v5083, %v5082
          %v5116 = vpack.c.b16 %v5085, %v5084
          %v5117 = vpack.c.b16 %v5087, %v5086
          %v5118 = vpack.c.b16 %v5089, %v5088
          %v5119 = vpack.c.b16 %v5091, %v5090
          %v5120 = vpack.c.b16 %v5093, %v5092
          %v5121 = vpack.c.b16 %v5095, %v5094
          %v5122 = vpack.c.b16 %v5097, %v5096
          %v5123 = vpack.c.b16 %v5099, %v5098
          %5148 = vst [vmem:[%s249] sm:$0xff] %v5100
          %5149 = vst [vmem:[%s249 + $0x8] sm:$0xff] %v5101
          %5150 = vst [vmem:[%s249 + $0x10] sm:$0xff] %v5102
          %5151 = vst [vmem:[%s249 + $0x18] sm:$0xff] %v5103
          %5152 = vst [vmem:[%s249 + $0x20] sm:$0xff] %v5104
          %5153 = vst [vmem:[%s249 + $0x28] sm:$0xff] %v5105
          %5154 = vst [vmem:[%s249 + $0x30] sm:$0xff] %v5106
          %5155 = vst [vmem:[%s249 + $0x38] sm:$0xff] %v5107
          %5156 = vst [vmem:[%s249 + $0x40] sm:$0xff] %v5108
          %5157 = vst [vmem:[%s249 + $0x48] sm:$0xff] %v5109
          %5158 = vst [vmem:[%s249 + $0x50] sm:$0xff] %v5110
          %5159 = vst [vmem:[%s249 + $0x58] sm:$0xff] %v5111
          %5160 = vst [vmem:[%s249 + $0x60] sm:$0xff] %v5112
          %5161 = vst [vmem:[%s249 + $0x68] sm:$0xff] %v5113
          %5162 = vst [vmem:[%s249 + $0x70] sm:$0xff] %v5114
          %5163 = vst [vmem:[%s249 + $0x78] sm:$0xff] %v5115
          %5164 = vst [vmem:[%s249 + $0x80] sm:$0xff] %v5116
          %5165 = vst [vmem:[%s249 + $0x88] sm:$0xff] %v5117
          %5166 = vst [vmem:[%s249 + $0x90] sm:$0xff] %v5118
          %5167 = vst [vmem:[%s249 + $0x98] sm:$0xff] %v5119
          %5168 = vst [vmem:[%s249 + $0xa0] sm:$0xff] %v5120
          %5169 = vst [vmem:[%s249 + $0xa8] sm:$0xff] %v5121
          %5170 = vst [vmem:[%s249 + $0xb0] sm:$0xff] %v5122
          %5171 = vst [vmem:[%s249 + $0xb8] sm:$0xff] %v5123
        $region48: #{discriminator_p_forward.10} parent=31 // pred_fallthru
          _
        %p5172 = scmp.lt.s32.totalorder %s22, 0
        %s5173 = scalar_select %p5172, %s22, 0
        %s5174 = smul.addr %s5173, 8
        %s5175 = smul.addr %s5174, 4
        %s5176 = scalar_lea.vmem %s3, %s5175
        // Predicated region
        $region49: #{discriminator_p_forward.10} parent=31 // pred_check
          %p5177 = pneg %p123
        $region50: #{discriminator_p_forward.10} parent=31 // pred_check_branch
          %5179 = sbr.rel (%p5177) target = $region52
        $region51: #{discriminator_p_forward.10} parent=31 // pred_region
          _
        $region52: #{discriminator_p_forward.10} parent=31 // pred_fallthru
          _
        // Predicated region
        $region53: #{discriminator_p_forward.10} parent=31 // pred_check
          %p5180 = pneg %p123
        $region54: #{discriminator_p_forward.10} parent=31 // pred_check_branch
          %5182 = sbr.rel (%p5180) target = $region56
        $region55: #{discriminator_p_forward.10} parent=31 // pred_region
          %p5183 = scmp.lt.s32.totalorder %s22, 0
          %s5184 = scalar_select %p5183, %s22, 0
          %s5185 = smul.addr %s5184, 8
          %s5186 = smul.addr %s5185, 4
          %s5187 = scalar_lea.vmem %s3, %s5186
        $region56: #{discriminator_p_forward.10} parent=31 // pred_fallthru
          _
      $region32: #{discriminator_p_forward.10} parent=5 // pred_fallthru
        _
      %p5188 = scmp.le.s32.totalorder 2, %s13
      // Predicated region
      $region57: #{discriminator_p_forward.10} parent=5 // pred_check
        %p5189 = pneg %p5188
      $region58: #{discriminator_p_forward.10} parent=5 // pred_check_branch
        %5191 = sbr.rel (%p5189) target = $region60
      $region59: #{discriminator_p_forward.10} parent=5 // pred_region
        %s5192 = ssub.s32 %s13, 2
      $region60: #{discriminator_p_forward.10} parent=5 // pred_fallthru
        _
    $region6: #{discriminator_p_forward.10} parent=1 // loop_footer
      %s17 = sadd.s32 1, %s13
    $region7: #{discriminator_p_forward.10} parent=1 // loop_footer_branch
      %12 = sbr.rel target = $region3
    $region8: #{discriminator_p_forward.10} parent=1 // loop_exit
      _
    %5193 = vsyncpa [#allocation4], 1
    %s5194 = scalar_lea.sflag [#allocation4], 1
    %5195 = vsyncpa %s5194, 1
    %5196 = vsyncpa [#allocation6], 1

</llo_original>
